<compile_context>
chip_gen: v7x
topology: tpu7x:2x2x1
jax: 0.10.0
libtpu: 0.0.40
codegen_flags: <defaults>
</compile_context>

<pallas_src>
import functools
import math

import jax
import jax.numpy as jnp
from jax import lax
from jax.experimental import pallas as pl
from jax.experimental.pallas import tpu as pltpu

BN_EPS = 1e-4  # eps used in the module's F.batch_norm calls


# ---------------------------------------------------------------------------
# Fused SegBlock kernel (one image per grid step, whole block in VMEM)
# ---------------------------------------------------------------------------
def _seg_block_kernel(x_ref, s1_ref, b1_ref, s2_ref, b2_ref,
                      k1_ref, cb1_ref, k2_ref, cb2_ref, *rest,
                      H, W, Wp, learnable_sc):
    if learnable_sc:
        wsc_ref, bsc_ref, o_ref = rest
    else:
        (o_ref,) = rest

    HpWp = (H + 2) * Wp          # padded flattened frame length (mult. of 8)
    rlen = H * Wp                # computed/output rows, starting at row Wp

    # ---- interior masks built in-kernel (no DMA'd mask input)
    q = lax.broadcasted_iota(jnp.int32, (HpWp, 1), 0)
    col = q % Wp
    inside_full = (col >= 1) & (col <= W) & (q >= Wp) & (q < Wp + rlen)
    j = lax.broadcasted_iota(jnp.int32, (rlen, 1), 0)
    colj = j % Wp
    inside_mid = (colj >= 1) & (colj <= W)

    # ---- BN1 (inference, folded scale/bias), f32
    xn = x_ref[...].astype(jnp.float32) * s1_ref[...] + b1_ref[...]

    # ---- shortcut on the pre-activation BN1 output, computed FIRST so the
    #      full-frame f32 `xn` is dead during both convolutions.
    xn_mid = xn[Wp:Wp + rlen, :]                          # aligned row slice
    if learnable_sc:
        sc = jnp.dot(xn_mid.astype(jnp.bfloat16), wsc_ref[...],
                     preferred_element_type=jnp.float32) + bsc_ref[...]
    else:
        sc = xn_mid

    # ---- conv1 input frame: ReLU + zero padding, bf16 for the MXU
    h0 = jnp.where(inside_full, jnp.maximum(xn, 0.0), 0.0).astype(jnp.bfloat16)

    def conv3x3(frame, k_ref):
        """3x3 pad=1 conv of a zero-padded bf16 frame.

        Builds the three dx-shifted copies once, lane-concatenates them into a
        (HpWp, 3*C) LHS, then does three aligned K=3*C MXU matmuls (one per dy,
        tap slice start = dy*Wp which is a multiple of 8).
        """
        C = frame.shape[1]
        zrow = jnp.zeros((1, C), frame.dtype)
        up = jnp.concatenate([zrow, frame[:HpWp - 1, :]], axis=0)   # f[q-1]
        dn = jnp.concatenate([frame[1:, :], zrow], axis=0)          # f[q+1]
        wide = jnp.concatenate([up, frame, dn], axis=1)             # (HpWp, 3C)
        acc = None
        for dy in range(3):
            tap = wide[dy * Wp:dy * Wp + rlen, :]                   # aligned
            part = jnp.dot(tap, k_ref[dy],
                           preferred_element_type=jnp.float32)
            acc = part if acc is None else acc + part
        return acc

    # ---- conv1 + bias, BN2 + ReLU + pad-column mask (one jnp.where)
    h1 = conv3x3(h0, k1_ref) + cb1_ref[...]
    h1 = jnp.where(inside_mid,
                   jnp.maximum(h1 * s2_ref[...] + b2_ref[...], 0.0),
                   0.0).astype(jnp.bfloat16)

    # ---- conv2 input frame: aligned zero borders (no full-frame memset)
    zpad = jnp.zeros((Wp, h1.shape[1]), jnp.bfloat16)
    h1f = jnp.concatenate([zpad, h1, zpad], axis=0)                 # (HpWp, Cout)

    # ---- conv2 + bias, add shortcut, single aligned lane-dense store
    h2 = conv3x3(h1f, k2_ref) + cb2_ref[...]
    o_ref[...] = (h2 + sc).astype(o_ref.dtype)


# ---------------------------------------------------------------------------
# Wrapper: layout prep (NCHW -> padded flattened NHWC), BN folding, pallas_call
# ---------------------------------------------------------------------------
@functools.partial(jax.jit, static_argnames=("upsample",))
def seg_block(x, params, *, upsample=False):
    """SegBlock forward (eval mode).  x: (N, C_in, H, W) float32, NCHW."""
    out_dtype = x.dtype
    N, Cin, H, W = x.shape
    Cout = params["w1"].shape[0]
    learnable_sc = (Cin != Cout) or bool(upsample)

    if upsample:
        # F.interpolate(scale_factor=2, mode='nearest') commutes with the
        # per-channel BN1 / ReLU / 1x1 shortcut, so upsample the raw input
        # once and keep everything else fused in the kernel.
        x = jnp.repeat(jnp.repeat(x, 2, axis=2), 2, axis=3)
        H, W = 2 * H, 2 * W

    Wp = ((W + 2 + 7) // 8) * 8          # padded width, multiple of 8
    Hp = H + 2
    HpWp = Hp * Wp
    rlen = H * Wp                        # rows the kernel computes/stores

    # NCHW -> channels-last (lanes = channels), zero-pad spatially, flatten.
    # bf16 halves the x DMA bytes; BN/accumulation stay f32 in-kernel.
    xt = jnp.transpose(x, (0, 2, 3, 1)).astype(jnp.bfloat16)       # (N,H,W,Cin)
    xp = jnp.pad(xt, ((0, 0), (1, 1), (1, Wp - W - 1), (0, 0)))    # (N,Hp,Wp,Cin)
    xpf = xp.reshape(N, HpWp, Cin)

    # Fold inference batch-norm (weight=None, bias=None) into scale/bias (f32).
    s1 = (1.0 / jnp.sqrt(params["var1"] + BN_EPS)).reshape(1, Cin)
    b1 = (-params["mean1"]).reshape(1, Cin) * s1
    s2 = (1.0 / jnp.sqrt(params["var2"] + BN_EPS)).reshape(1, Cout)
    b2 = (-params["mean2"]).reshape(1, Cout) * s2

    # Conv weights (O, I, 3, 3) -> per-dy (3*C_in, C_out) matrices whose K dim
    # is laid out [dx-major, channel-minor] to match the lane-concatenated LHS.
    k1 = jnp.transpose(params["w1"], (2, 3, 1, 0)).reshape(3, 3 * Cin, Cout)
    k2 = jnp.transpose(params["w2"], (2, 3, 1, 0)).reshape(3, 3 * Cout, Cout)
    k1 = k1.astype(jnp.bfloat16)
    k2 = k2.astype(jnp.bfloat16)
    cb1 = params["b1"].reshape(1, Cout).astype(jnp.float32)
    cb2 = params["b2"].reshape(1, Cout).astype(jnp.float32)

    const2d = lambda shape: pl.BlockSpec(shape, lambda n: (0, 0))
    const3d = lambda shape: pl.BlockSpec(shape, lambda n: (0, 0, 0))

    in_specs = [
        pl.BlockSpec((None, HpWp, Cin), lambda n: (n, 0, 0)),   # x frame
        const2d((1, Cin)), const2d((1, Cin)),                    # BN1 scale/bias
        const2d((1, Cout)), const2d((1, Cout)),                  # BN2 scale/bias
        const3d((3, 3 * Cin, Cout)), const2d((1, Cout)),         # conv1 W / b
        const3d((3, 3 * Cout, Cout)), const2d((1, Cout)),        # conv2 W / b
    ]
    operands = [xpf, s1, b1, s2, b2, k1, cb1, k2, cb2]
    if learnable_sc:
        wsc = params["wsc"][:, :, 0, 0].T.astype(jnp.bfloat16)   # (Cin, Cout)
        bsc = params["bsc"].reshape(1, Cout).astype(jnp.float32)
        in_specs += [const2d((Cin, Cout)), const2d((1, Cout))]
        operands += [wsc, bsc]

    kernel = functools.partial(_seg_block_kernel, H=H, W=W, Wp=Wp,
                               learnable_sc=learnable_sc)
    out_rows = pl.pallas_call(
        kernel,
        grid=(N,),
        in_specs=in_specs,
        out_specs=pl.BlockSpec((None, rlen, Cout), lambda n: (n, 0, 0)),
        out_shape=jax.ShapeDtypeStruct((N, rlen, Cout), out_dtype),
        compiler_params=pltpu.CompilerParams(
            dimension_semantics=("parallel",),
            vmem_limit_bytes=64 * 1024 * 1024),
    )(*operands)

    # Rows [Wp, (H+1)*Wp) of the padded frame: reshape, drop pad columns, NCHW.
    out = out_rows.reshape(N, H, Wp, Cout)[:, :, 1:W + 1, :]
    return jnp.transpose(out, (0, 3, 1, 2))


# ---------------------------------------------------------------------------
# Pure-JAX reference (mirrors the PyTorch forward; conv inputs/weights are
# quantized to bf16 exactly like the kernel so the comparison is tight)
# ---------------------------------------------------------------------------
def _reference(x, p, *, upsample, learnable_sc):
    f32 = jnp.float32
    dn = ("NCHW", "OIHW", "NCHW")

    def bn(v, mean, var):
        return (v - mean[None, :, None, None]) / \
               jnp.sqrt(var + BN_EPS)[None, :, None, None]

    def conv(v, w, b, pad):
        return lax.conv_general_dilated(
            v.astype(jnp.bfloat16), w.astype(jnp.bfloat16), (1, 1), pad,
            dimension_numbers=dn,
            preferred_element_type=f32) + b[None, :, None, None]

    x = x.astype(jnp.bfloat16).astype(f32)     # matches the wrapper's x cast
    xb = bn(x, p["mean1"], p["var1"])
    h = jnp.maximum(xb, 0.0)
    if upsample:
        h = jnp.repeat(jnp.repeat(h, 2, axis=2), 2, axis=3)
        xb = jnp.repeat(jnp.repeat(xb, 2, axis=2), 2, axis=3)
    h = conv(h, p["w1"], p["b1"], "SAME")
    h = jnp.maximum(bn(h, p["mean2"], p["var2"]), 0.0)
    h = conv(h, p["w2"], p["b2"], "SAME")
    if learnable_sc:
        xb = conv(xb, p["wsc"], p["bsc"], "VALID")
    return h + xb


def _make_params(key, cin, cout):
    ks = jax.random.split(key, 10)
    rnd = lambda k, s, sc: jax.random.normal(k, s, jnp.float32) * sc
    return {
        "w1": rnd(ks[0], (cout, cin, 3, 3), 1.0 / math.sqrt(cin * 9)),
        "b1": rnd(ks[1], (cout,), 0.1),
        "w2": rnd(ks[2], (cout, cout, 3, 3), 1.0 / math.sqrt(cout * 9)),
        "b2": rnd(ks[3], (cout,), 0.1),
        "wsc": rnd(ks[4], (cout, cin, 1, 1), 1.0 / math.sqrt(cin)),
        "bsc": rnd(ks[5], (cout,), 0.1),
        "mean1": rnd(ks[6], (cin,), 0.5),
        "var1": jax.random.uniform(ks[7], (cin,), minval=0.5, maxval=1.5),
        "mean2": rnd(ks[8], (cout,), 0.5),
        "var2": jax.random.uniform(ks[9], (cout,), minval=0.5, maxval=1.5),
    }


if __name__ == "__main__":
    key = jax.random.PRNGKey(0)
    kx, ka, kb, kc = jax.random.split(key, 4)

    N, Cin, Cout, H, W = 2, 64, 128, 16, 16
    x = jax.random.normal(kx, (N, Cin, H, W), jnp.float32)

    # Config A: channel change -> learnable 1x1 shortcut, no upsample.
    pa = _make_params(ka, Cin, Cout)
    out_a = jax.block_until_ready(seg_block(x, pa, upsample=False))
    ref_a = _reference(x, pa, upsample=False, learnable_sc=True)
    assert out_a.shape == (N, Cout, H, W)
    assert jnp.allclose(out_a, ref_a, atol=2e-2, rtol=2e-2), \
        float(jnp.max(jnp.abs(out_a - ref_a)))

    # Config B: same channels, no upsample -> identity shortcut.
    pb = _make_params(kb, Cin, Cin)
    out_b = jax.block_until_ready(seg_block(x, pb, upsample=False))
    ref_b = _reference(x, pb, upsample=False, learnable_sc=False)
    assert jnp.allclose(out_b, ref_b, atol=2e-2, rtol=2e-2), \
        float(jnp.max(jnp.abs(out_b - ref_b)))

    # Config C: same channels with nearest-2x upsample -> learnable shortcut.
    pc = _make_params(kc, Cin, Cin)
    out_c = jax.block_until_ready(seg_block(x, pc, upsample=True))
    ref_c = _reference(x, pc, upsample=True, learnable_sc=True)
    assert out_c.shape == (N, Cin, 2 * H, 2 * W)
    assert jnp.allclose(out_c, ref_c, atol=2e-2, rtol=2e-2), \
        float(jnp.max(jnp.abs(out_c - ref_c)))

    print("KERNEL_OK")
</pallas_src>

<mosaic_0001>
module attributes {stable_mosaic.version = 11 : i64} {
  func.func @_seg_block_kernel(%arg0: i32, %arg1: memref<1x432x64xbf16, #tpu.memory_space<vmem>>, %arg2: memref<1x64xf32, #tpu.memory_space<vmem>>, %arg3: memref<1x64xf32, #tpu.memory_space<vmem>>, %arg4: memref<1x128xf32, #tpu.memory_space<vmem>>, %arg5: memref<1x128xf32, #tpu.memory_space<vmem>>, %arg6: memref<3x192x128xbf16, #tpu.memory_space<vmem>>, %arg7: memref<1x128xf32, #tpu.memory_space<vmem>>, %arg8: memref<3x384x128xbf16, #tpu.memory_space<vmem>>, %arg9: memref<1x128xf32, #tpu.memory_space<vmem>>, %arg10: memref<64x128xbf16, #tpu.memory_space<vmem>>, %arg11: memref<1x128xf32, #tpu.memory_space<vmem>>, %arg12: memref<1x384x128xf32, #tpu.memory_space<vmem>>) attributes {dimension_semantics = [#tpu.dimension_semantics<parallel>], iteration_bounds = array<i64: 2>, scalar_prefetch = 0 : i64, scratch_operands = 0 : i64, tpu.core_type = #tpu.core_type<tc>, window_params = [{transform_indices = @transform_0, window_bounds = array<i64: 1, 432, 64>}, {pipeline_mode = #tpu.pipeline_mode<synchronous>, transform_indices = @transform_1, window_bounds = array<i64: 1, 64>}, {pipeline_mode = #tpu.pipeline_mode<synchronous>, transform_indices = @transform_2, window_bounds = array<i64: 1, 64>}, {pipeline_mode = #tpu.pipeline_mode<synchronous>, transform_indices = @transform_3, window_bounds = array<i64: 1, 128>}, {pipeline_mode = #tpu.pipeline_mode<synchronous>, transform_indices = @transform_4, window_bounds = array<i64: 1, 128>}, {pipeline_mode = #tpu.pipeline_mode<synchronous>, transform_indices = @transform_5, window_bounds = array<i64: 3, 192, 128>}, {pipeline_mode = #tpu.pipeline_mode<synchronous>, transform_indices = @transform_6, window_bounds = array<i64: 1, 128>}, {pipeline_mode = #tpu.pipeline_mode<synchronous>, transform_indices = @transform_7, window_bounds = array<i64: 3, 384, 128>}, {pipeline_mode = #tpu.pipeline_mode<synchronous>, transform_indices = @transform_8, window_bounds = array<i64: 1, 128>}, {pipeline_mode = #tpu.pipeline_mode<synchronous>, transform_indices = @transform_9, window_bounds = array<i64: 64, 128>}, {pipeline_mode = #tpu.pipeline_mode<synchronous>, transform_indices = @transform_10, window_bounds = array<i64: 1, 128>}, {transform_indices = @transform_11, window_bounds = array<i64: 1, 384, 128>}]} {
    %0 = tpu.iota {dimensions = array<i32: 0>} : vector<432x1xi32>
    %c24_i32 = arith.constant 24 : i32
    %c0_i32 = arith.constant 0 : i32
    %1 = arith.cmpi eq, %c24_i32, %c0_i32 : i32
    %c1_i32 = arith.constant 1 : i32
    %2 = arith.select %1, %c1_i32, %c24_i32 : i32
    %3 = vector.broadcast %2 : i32 to vector<432x1xi32>
    %4 = arith.remsi %0, %3 : vector<432x1xi32>
    %c0_i32_0 = arith.constant 0 : i32
    %5 = vector.broadcast %c0_i32_0 : i32 to vector<432x1xi32>
    %6 = arith.cmpi ne, %4, %5 : vector<432x1xi32>
    %c0_i32_1 = arith.constant 0 : i32
    %7 = vector.broadcast %c0_i32_1 : i32 to vector<432x1xi32>
    %8 = arith.cmpi slt, %4, %7 : vector<432x1xi32>
    %c0_i32_2 = arith.constant 0 : i32
    %9 = arith.cmpi slt, %2, %c0_i32_2 : i32
    %10 = vector.broadcast %9 : i1 to vector<432x1xi1>
    %11 = vector.broadcast %10 : vector<432x1xi1> to vector<432x1xi1>
    %12 = arith.xori %8, %11 : vector<432x1xi1>
    %13 = arith.andi %12, %6 : vector<432x1xi1>
    %14 = vector.broadcast %2 : i32 to vector<432x1xi32>
    %15 = arith.addi %4, %14 : vector<432x1xi32>
    %16 = arith.select %13, %15, %4 : vector<432x1xi1>, vector<432x1xi32>
    %c1_i32_3 = arith.constant 1 : i32
    %17 = vector.broadcast %c1_i32_3 : i32 to vector<432x1xi32>
    %18 = arith.cmpi sge, %16, %17 : vector<432x1xi32>
    %c16_i32 = arith.constant 16 : i32
    %19 = vector.broadcast %c16_i32 : i32 to vector<432x1xi32>
    %20 = arith.cmpi sle, %16, %19 : vector<432x1xi32>
    %21 = arith.andi %18, %20 : vector<432x1xi1>
    %c24_i32_4 = arith.constant 24 : i32
    %22 = vector.broadcast %c24_i32_4 : i32 to vector<432x1xi32>
    %23 = arith.cmpi sge, %0, %22 : vector<432x1xi32>
    %24 = arith.andi %21, %23 : vector<432x1xi1>
    %c408_i32 = arith.constant 408 : i32
    %25 = vector.broadcast %c408_i32 : i32 to vector<432x1xi32>
    %26 = arith.cmpi slt, %0, %25 : vector<432x1xi32>
    %27 = arith.andi %24, %26 : vector<432x1xi1>
    %28 = tpu.iota {dimensions = array<i32: 0>} : vector<384x1xi32>
    %c24_i32_5 = arith.constant 24 : i32
    %c0_i32_6 = arith.constant 0 : i32
    %29 = arith.cmpi eq, %c24_i32_5, %c0_i32_6 : i32
    %c1_i32_7 = arith.constant 1 : i32
    %30 = arith.select %29, %c1_i32_7, %c24_i32_5 : i32
    %31 = vector.broadcast %30 : i32 to vector<384x1xi32>
    %32 = arith.remsi %28, %31 : vector<384x1xi32>
    %c0_i32_8 = arith.constant 0 : i32
    %33 = vector.broadcast %c0_i32_8 : i32 to vector<384x1xi32>
    %34 = arith.cmpi ne, %32, %33 : vector<384x1xi32>
    %c0_i32_9 = arith.constant 0 : i32
    %35 = vector.broadcast %c0_i32_9 : i32 to vector<384x1xi32>
    %36 = arith.cmpi slt, %32, %35 : vector<384x1xi32>
    %c0_i32_10 = arith.constant 0 : i32
    %37 = arith.cmpi slt, %30, %c0_i32_10 : i32
    %38 = vector.broadcast %37 : i1 to vector<384x1xi1>
    %39 = vector.broadcast %38 : vector<384x1xi1> to vector<384x1xi1>
    %40 = arith.xori %36, %39 : vector<384x1xi1>
    %41 = arith.andi %40, %34 : vector<384x1xi1>
    %42 = vector.broadcast %30 : i32 to vector<384x1xi32>
    %43 = arith.addi %32, %42 : vector<384x1xi32>
    %44 = arith.select %41, %43, %32 : vector<384x1xi1>, vector<384x1xi32>
    %c1_i32_11 = arith.constant 1 : i32
    %45 = vector.broadcast %c1_i32_11 : i32 to vector<384x1xi32>
    %46 = arith.cmpi sge, %44, %45 : vector<384x1xi32>
    %c16_i32_12 = arith.constant 16 : i32
    %47 = vector.broadcast %c16_i32_12 : i32 to vector<384x1xi32>
    %48 = arith.cmpi sle, %44, %47 : vector<384x1xi32>
    %49 = arith.andi %46, %48 : vector<384x1xi1>
    %c0 = arith.constant 0 : index
    %c0_13 = arith.constant 0 : index
    %c0_14 = arith.constant 0 : index
    %50 = vector.load %arg1[%c0, %c0_13, %c0_14] : memref<1x432x64xbf16, #tpu.memory_space<vmem>>, vector<1x432x64xbf16>
    %51 = vector.shape_cast %50 : vector<1x432x64xbf16> to vector<432x64xbf16>
    %52 = arith.extf %51 : vector<432x64xbf16> to vector<432x64xf32>
    %c0_15 = arith.constant 0 : index
    %c0_16 = arith.constant 0 : index
    %53 = vector.load %arg2[%c0_15, %c0_16] : memref<1x64xf32, #tpu.memory_space<vmem>>, vector<1x64xf32>
    %54 = vector.broadcast %53 : vector<1x64xf32> to vector<432x64xf32>
    %55 = arith.mulf %52, %54 : vector<432x64xf32>
    %c0_17 = arith.constant 0 : index
    %c0_18 = arith.constant 0 : index
    %56 = vector.load %arg3[%c0_17, %c0_18] : memref<1x64xf32, #tpu.memory_space<vmem>>, vector<1x64xf32>
    %57 = vector.broadcast %56 : vector<1x64xf32> to vector<432x64xf32>
    %58 = arith.addf %55, %57 : vector<432x64xf32>
    %59 = vector.extract_strided_slice %58 {offsets = [24, 0], sizes = [384, 64], strides = [1, 1]} : vector<432x64xf32> to vector<384x64xf32>
    %60 = arith.truncf %59 : vector<384x64xf32> to vector<384x64xbf16>
    %c0_19 = arith.constant 0 : index
    %c0_20 = arith.constant 0 : index
    %61 = vector.load %arg10[%c0_19, %c0_20] : memref<64x128xbf16, #tpu.memory_space<vmem>>, vector<64x128xbf16>
    %cst = arith.constant dense<0.000000e+00> : vector<384x128xf32>
    %62 = tpu.matmul %60, %61, %cst {dimension_numbers = #tpu.dot_dimension_numbers<[1], [0], [0], [1], [0, 0, 1, 1], [], []>} : vector<384x64xbf16>, vector<64x128xbf16>, vector<384x128xf32> -> vector<384x128xf32>
    %c0_21 = arith.constant 0 : index
    %c0_22 = arith.constant 0 : index
    %63 = vector.load %arg11[%c0_21, %c0_22] : memref<1x128xf32, #tpu.memory_space<vmem>>, vector<1x128xf32>
    %64 = vector.broadcast %63 : vector<1x128xf32> to vector<384x128xf32>
    %65 = arith.addf %62, %64 : vector<384x128xf32>
    %cst_23 = arith.constant 0.000000e+00 : f32
    %66 = vector.broadcast %cst_23 : f32 to vector<432x64xf32>
    %67 = arith.maximumf %58, %66 : vector<432x64xf32>
    %cst_24 = arith.constant 0.000000e+00 : f32
    %68 = vector.shape_cast %27 : vector<432x1xi1> to vector<432x1xi1>
    %69 = vector.broadcast %68 : vector<432x1xi1> to vector<432x64xi1>
    %70 = vector.broadcast %cst_24 : f32 to vector<432x64xf32>
    %71 = arith.select %69, %67, %70 : vector<432x64xi1>, vector<432x64xf32>
    %72 = arith.truncf %71 : vector<432x64xf32> to vector<432x64xbf16>
    %cst_25 = arith.constant 0.000000e+00 : bf16
    %73 = vector.broadcast %cst_25 : bf16 to vector<1x64xbf16>
    %74 = vector.extract_strided_slice %72 {offsets = [0, 0], sizes = [431, 64], strides = [1, 1]} : vector<432x64xbf16> to vector<431x64xbf16>
    %75 = tpu.concatenate %73, %74 in 0 : vector<1x64xbf16>, vector<431x64xbf16> -> vector<432x64xbf16>
    %76 = vector.extract_strided_slice %72 {offsets = [1, 0], sizes = [431, 64], strides = [1, 1]} : vector<432x64xbf16> to vector<431x64xbf16>
    %77 = tpu.concatenate %76, %73 in 0 : vector<431x64xbf16>, vector<1x64xbf16> -> vector<432x64xbf16>
    %78 = tpu.concatenate %75, %72, %77 in 1 : vector<432x64xbf16>, vector<432x64xbf16>, vector<432x64xbf16> -> vector<432x192xbf16>
    %79 = vector.extract_strided_slice %78 {offsets = [0, 0], sizes = [384, 192], strides = [1, 1]} : vector<432x192xbf16> to vector<384x192xbf16>
    %c0_26 = arith.constant 0 : index
    %c0_27 = arith.constant 0 : index
    %c0_28 = arith.constant 0 : index
    %80 = vector.load %arg6[%c0_26, %c0_27, %c0_28] : memref<3x192x128xbf16, #tpu.memory_space<vmem>>, vector<1x192x128xbf16>
    %81 = vector.shape_cast %80 : vector<1x192x128xbf16> to vector<192x128xbf16>
    %cst_29 = arith.constant dense<0.000000e+00> : vector<384x128xf32>
    %82 = tpu.matmul %79, %81, %cst_29 {dimension_numbers = #tpu.dot_dimension_numbers<[1], [0], [0], [1], [0, 0, 1, 1], [], []>} : vector<384x192xbf16>, vector<192x128xbf16>, vector<384x128xf32> -> vector<384x128xf32>
    %83 = vector.extract_strided_slice %78 {offsets = [24, 0], sizes = [384, 192], strides = [1, 1]} : vector<432x192xbf16> to vector<384x192xbf16>
    %c1 = arith.constant 1 : index
    %c0_30 = arith.constant 0 : index
    %c0_31 = arith.constant 0 : index
    %84 = vector.load %arg6[%c1, %c0_30, %c0_31] : memref<3x192x128xbf16, #tpu.memory_space<vmem>>, vector<1x192x128xbf16>
    %85 = vector.shape_cast %84 : vector<1x192x128xbf16> to vector<192x128xbf16>
    %cst_32 = arith.constant dense<0.000000e+00> : vector<384x128xf32>
    %86 = tpu.matmul %83, %85, %cst_32 {dimension_numbers = #tpu.dot_dimension_numbers<[1], [0], [0], [1], [0, 0, 1, 1], [], []>} : vector<384x192xbf16>, vector<192x128xbf16>, vector<384x128xf32> -> vector<384x128xf32>
    %87 = arith.addf %82, %86 : vector<384x128xf32>
    %88 = vector.extract_strided_slice %78 {offsets = [48, 0], sizes = [384, 192], strides = [1, 1]} : vector<432x192xbf16> to vector<384x192xbf16>
    %c2 = arith.constant 2 : index
    %c0_33 = arith.constant 0 : index
    %c0_34 = arith.constant 0 : index
    %89 = vector.load %arg6[%c2, %c0_33, %c0_34] : memref<3x192x128xbf16, #tpu.memory_space<vmem>>, vector<1x192x128xbf16>
    %90 = vector.shape_cast %89 : vector<1x192x128xbf16> to vector<192x128xbf16>
    %cst_35 = arith.constant dense<0.000000e+00> : vector<384x128xf32>
    %91 = tpu.matmul %88, %90, %cst_35 {dimension_numbers = #tpu.dot_dimension_numbers<[1], [0], [0], [1], [0, 0, 1, 1], [], []>} : vector<384x192xbf16>, vector<192x128xbf16>, vector<384x128xf32> -> vector<384x128xf32>
    %92 = arith.addf %87, %91 : vector<384x128xf32>
    %c0_36 = arith.constant 0 : index
    %c0_37 = arith.constant 0 : index
    %93 = vector.load %arg7[%c0_36, %c0_37] : memref<1x128xf32, #tpu.memory_space<vmem>>, vector<1x128xf32>
    %94 = vector.broadcast %93 : vector<1x128xf32> to vector<384x128xf32>
    %95 = arith.addf %92, %94 : vector<384x128xf32>
    %c0_38 = arith.constant 0 : index
    %c0_39 = arith.constant 0 : index
    %96 = vector.load %arg4[%c0_38, %c0_39] : memref<1x128xf32, #tpu.memory_space<vmem>>, vector<1x128xf32>
    %97 = vector.broadcast %96 : vector<1x128xf32> to vector<384x128xf32>
    %98 = arith.mulf %95, %97 : vector<384x128xf32>
    %c0_40 = arith.constant 0 : index
    %c0_41 = arith.constant 0 : index
    %99 = vector.load %arg5[%c0_40, %c0_41] : memref<1x128xf32, #tpu.memory_space<vmem>>, vector<1x128xf32>
    %100 = vector.broadcast %99 : vector<1x128xf32> to vector<384x128xf32>
    %101 = arith.addf %98, %100 : vector<384x128xf32>
    %cst_42 = arith.constant 0.000000e+00 : f32
    %102 = vector.broadcast %cst_42 : f32 to vector<384x128xf32>
    %103 = arith.maximumf %101, %102 : vector<384x128xf32>
    %cst_43 = arith.constant 0.000000e+00 : f32
    %104 = vector.shape_cast %49 : vector<384x1xi1> to vector<384x1xi1>
    %105 = vector.broadcast %104 : vector<384x1xi1> to vector<384x128xi1>
    %106 = vector.broadcast %cst_43 : f32 to vector<384x128xf32>
    %107 = arith.select %105, %103, %106 : vector<384x128xi1>, vector<384x128xf32>
    %108 = arith.truncf %107 : vector<384x128xf32> to vector<384x128xbf16>
    %cst_44 = arith.constant 0.000000e+00 : bf16
    %109 = vector.broadcast %cst_44 : bf16 to vector<24x128xbf16>
    %110 = tpu.concatenate %109, %108, %109 in 0 : vector<24x128xbf16>, vector<384x128xbf16>, vector<24x128xbf16> -> vector<432x128xbf16>
    %cst_45 = arith.constant 0.000000e+00 : bf16
    %111 = vector.broadcast %cst_45 : bf16 to vector<1x128xbf16>
    %112 = vector.extract_strided_slice %110 {offsets = [0, 0], sizes = [431, 128], strides = [1, 1]} : vector<432x128xbf16> to vector<431x128xbf16>
    %113 = tpu.concatenate %111, %112 in 0 : vector<1x128xbf16>, vector<431x128xbf16> -> vector<432x128xbf16>
    %114 = vector.extract_strided_slice %110 {offsets = [1, 0], sizes = [431, 128], strides = [1, 1]} : vector<432x128xbf16> to vector<431x128xbf16>
    %115 = tpu.concatenate %114, %111 in 0 : vector<431x128xbf16>, vector<1x128xbf16> -> vector<432x128xbf16>
    %116 = tpu.concatenate %113, %110, %115 in 1 : vector<432x128xbf16>, vector<432x128xbf16>, vector<432x128xbf16> -> vector<432x384xbf16>
    %117 = vector.extract_strided_slice %116 {offsets = [0, 0], sizes = [384, 384], strides = [1, 1]} : vector<432x384xbf16> to vector<384x384xbf16>
    %c0_46 = arith.constant 0 : index
    %c0_47 = arith.constant 0 : index
    %c0_48 = arith.constant 0 : index
    %118 = vector.load %arg8[%c0_46, %c0_47, %c0_48] : memref<3x384x128xbf16, #tpu.memory_space<vmem>>, vector<1x384x128xbf16>
    %119 = vector.shape_cast %118 : vector<1x384x128xbf16> to vector<384x128xbf16>
    %cst_49 = arith.constant dense<0.000000e+00> : vector<384x128xf32>
    %120 = tpu.matmul %117, %119, %cst_49 {dimension_numbers = #tpu.dot_dimension_numbers<[1], [0], [0], [1], [0, 0, 1, 1], [], []>} : vector<384x384xbf16>, vector<384x128xbf16>, vector<384x128xf32> -> vector<384x128xf32>
    %121 = vector.extract_strided_slice %116 {offsets = [24, 0], sizes = [384, 384], strides = [1, 1]} : vector<432x384xbf16> to vector<384x384xbf16>
    %c1_50 = arith.constant 1 : index
    %c0_51 = arith.constant 0 : index
    %c0_52 = arith.constant 0 : index
    %122 = vector.load %arg8[%c1_50, %c0_51, %c0_52] : memref<3x384x128xbf16, #tpu.memory_space<vmem>>, vector<1x384x128xbf16>
    %123 = vector.shape_cast %122 : vector<1x384x128xbf16> to vector<384x128xbf16>
    %cst_53 = arith.constant dense<0.000000e+00> : vector<384x128xf32>
    %124 = tpu.matmul %121, %123, %cst_53 {dimension_numbers = #tpu.dot_dimension_numbers<[1], [0], [0], [1], [0, 0, 1, 1], [], []>} : vector<384x384xbf16>, vector<384x128xbf16>, vector<384x128xf32> -> vector<384x128xf32>
    %125 = arith.addf %120, %124 : vector<384x128xf32>
    %126 = vector.extract_strided_slice %116 {offsets = [48, 0], sizes = [384, 384], strides = [1, 1]} : vector<432x384xbf16> to vector<384x384xbf16>
    %c2_54 = arith.constant 2 : index
    %c0_55 = arith.constant 0 : index
    %c0_56 = arith.constant 0 : index
    %127 = vector.load %arg8[%c2_54, %c0_55, %c0_56] : memref<3x384x128xbf16, #tpu.memory_space<vmem>>, vector<1x384x128xbf16>
    %128 = vector.shape_cast %127 : vector<1x384x128xbf16> to vector<384x128xbf16>
    %cst_57 = arith.constant dense<0.000000e+00> : vector<384x128xf32>
    %129 = tpu.matmul %126, %128, %cst_57 {dimension_numbers = #tpu.dot_dimension_numbers<[1], [0], [0], [1], [0, 0, 1, 1], [], []>} : vector<384x384xbf16>, vector<384x128xbf16>, vector<384x128xf32> -> vector<384x128xf32>
    %130 = arith.addf %125, %129 : vector<384x128xf32>
    %c0_58 = arith.constant 0 : index
    %c0_59 = arith.constant 0 : index
    %131 = vector.load %arg9[%c0_58, %c0_59] : memref<1x128xf32, #tpu.memory_space<vmem>>, vector<1x128xf32>
    %132 = vector.broadcast %131 : vector<1x128xf32> to vector<384x128xf32>
    %133 = arith.addf %130, %132 : vector<384x128xf32>
    %134 = arith.addf %133, %65 : vector<384x128xf32>
    %c0_60 = arith.constant 0 : index
    %c0_61 = arith.constant 0 : index
    %c0_62 = arith.constant 0 : index
    %135 = vector.load %arg12[%c0_60, %c0_61, %c0_62] : memref<1x384x128xf32, #tpu.memory_space<vmem>>, vector<1x384x128xf32>
    %136 = vector.shape_cast %135 : vector<1x384x128xf32> to vector<384x128xf32>
    %137 = vector.shape_cast %134 : vector<384x128xf32> to vector<1x384x128xf32>
    tpu.vector_store %arg12[%c0_60, %c0_61, %c0_62], %137 {strides = array<i32>} : memref<1x384x128xf32, #tpu.memory_space<vmem>>, vector<1x384x128xf32>,
    return
  }
  func.func @transform_0(%arg0: i32) -> (i32, i32, i32) {
    %c0_i32 = arith.constant 0 : i32
    %c0_i32_0 = arith.constant 0 : i32
    %c0_i32_1 = arith.constant 0 : i32
    return %arg0, %c0_i32, %c0_i32_0 : i32, i32, i32
  }
  func.func @transform_1(%arg0: i32) -> (i32, i32) {
    %c0_i32 = arith.constant 0 : i32
    %c0_i32_0 = arith.constant 0 : i32
    %c0_i32_1 = arith.constant 0 : i32
    return %c0_i32, %c0_i32_0 : i32, i32
  }
  func.func @transform_2(%arg0: i32) -> (i32, i32) {
    %c0_i32 = arith.constant 0 : i32
    %c0_i32_0 = arith.constant 0 : i32
    %c0_i32_1 = arith.constant 0 : i32
    return %c0_i32, %c0_i32_0 : i32, i32
  }
  func.func @transform_3(%arg0: i32) -> (i32, i32) {
    %c0_i32 = arith.constant 0 : i32
    %c0_i32_0 = arith.constant 0 : i32
    %c0_i32_1 = arith.constant 0 : i32
    return %c0_i32, %c0_i32_0 : i32, i32
  }
  func.func @transform_4(%arg0: i32) -> (i32, i32) {
    %c0_i32 = arith.constant 0 : i32
    %c0_i32_0 = arith.constant 0 : i32
    %c0_i32_1 = arith.constant 0 : i32
    return %c0_i32, %c0_i32_0 : i32, i32
  }
  func.func @transform_5(%arg0: i32) -> (i32, i32, i32) {
    %c0_i32 = arith.constant 0 : i32
    %c0_i32_0 = arith.constant 0 : i32
    %c0_i32_1 = arith.constant 0 : i32
    %c0_i32_2 = arith.constant 0 : i32
    return %c0_i32, %c0_i32_0, %c0_i32_1 : i32, i32, i32
  }
  func.func @transform_6(%arg0: i32) -> (i32, i32) {
    %c0_i32 = arith.constant 0 : i32
    %c0_i32_0 = arith.constant 0 : i32
    %c0_i32_1 = arith.constant 0 : i32
    return %c0_i32, %c0_i32_0 : i32, i32
  }
  func.func @transform_7(%arg0: i32) -> (i32, i32, i32) {
    %c0_i32 = arith.constant 0 : i32
    %c0_i32_0 = arith.constant 0 : i32
    %c0_i32_1 = arith.constant 0 : i32
    %c0_i32_2 = arith.constant 0 : i32
    return %c0_i32, %c0_i32_0, %c0_i32_1 : i32, i32, i32
  }
  func.func @transform_8(%arg0: i32) -> (i32, i32) {
    %c0_i32 = arith.constant 0 : i32
    %c0_i32_0 = arith.constant 0 : i32
    %c0_i32_1 = arith.constant 0 : i32
    return %c0_i32, %c0_i32_0 : i32, i32
  }
  func.func @transform_9(%arg0: i32) -> (i32, i32) {
    %c0_i32 = arith.constant 0 : i32
    %c0_i32_0 = arith.constant 0 : i32
    %c0_i32_1 = arith.constant 0 : i32
    return %c0_i32, %c0_i32_0 : i32, i32
  }
  func.func @transform_10(%arg0: i32) -> (i32, i32) {
    %c0_i32 = arith.constant 0 : i32
    %c0_i32_0 = arith.constant 0 : i32
    %c0_i32_1 = arith.constant 0 : i32
    return %c0_i32, %c0_i32_0 : i32, i32
  }
  func.func @transform_11(%arg0: i32) -> (i32, i32, i32) {
    %c0_i32 = arith.constant 0 : i32
    %c0_i32_0 = arith.constant 0 : i32
    %c0_i32_1 = arith.constant 0 : i32
    return %arg0, %c0_i32, %c0_i32_0 : i32, i32, i32
  }
}

</mosaic_0001>

<llo_original>
// kernel: seg_block.1
$region0: #{seg_block.1}
  #allocation0 [shape = 'u32[]', space=smem, size = 0x4, offset = 0x4, fixed_abs, tag = 'smem constant byte address 0x4 - core index']
  #allocation1 [shape = 'u32[144,128]{1,0:T(1,128)}', space=vmem, size = 0x12000, scoped, tag = 'internal scratch']
  %s0 = inlined_call_operand.hbm [shape: bf16[2,432,64], index: 0, kind: input, shape index: {}]
  %s1 = inlined_call_operand.hbm [shape: f32[1,64], index: 1, kind: input, shape index: {}]
  %s2 = inlined_call_operand.hbm [shape: f32[1,64], index: 2, kind: input, shape index: {}]
  %s3 = inlined_call_operand.hbm [shape: f32[1,128], index: 3, kind: input, shape index: {}]
  %s4 = inlined_call_operand.hbm [shape: f32[1,128], index: 4, kind: input, shape index: {}]
  %s5 = inlined_call_operand.hbm [shape: bf16[3,192,128], index: 5, kind: input, shape index: {}]
  %s6 = inlined_call_operand.hbm [shape: f32[1,128], index: 6, kind: input, shape index: {}]
  %s7 = inlined_call_operand.hbm [shape: bf16[3,384,128], index: 7, kind: input, shape index: {}]
  %s8 = inlined_call_operand.hbm [shape: f32[1,128], index: 8, kind: input, shape index: {}]
  %s9 = inlined_call_operand.hbm [shape: bf16[64,128], index: 9, kind: input, shape index: {}]
  %s10 = inlined_call_operand.hbm [shape: f32[1,128], index: 10, kind: input, shape index: {}]
  %s11 = inlined_call_operand.hbm [shape: f32[2,384,128], index: 11, kind: output, shape index: {}]
  %s12 = sld [smem:[#allocation0]]
  $region121: #{seg_block.1} parent=0
    _
  %s14 = ssub.s32 1, %s12
  %s15 = scalar_select 0, %s14, %s12
  $region1: #{seg_block.1} parent=0
    #allocation2 [shape = 'u8[221184]{0}', space=vmem, size = 0x36000, scoped, tag = 'input window, operand 0']
    #allocation3 [shape = 's32[2]{0}', space=sflag, size = 0x8, scoped, tag = 'scoped memory for seg_block.1']
    #allocation4 [shape = 's32[2]{0}', space=sflag, size = 0x8, scoped, tag = 'scoped memory for seg_block.1']
    #allocation5 [shape = 'u8[512]{0}', space=vmem, size = 0x400, scoped, tag = 'input window, operand 1, single buffered']
    #allocation6 [shape = 's32[1]{0}', space=sflag, size = 0x4, scoped, tag = 'scoped memory for seg_block.1']
    #allocation7 [shape = 'u8[512]{0}', space=vmem, size = 0x400, scoped, tag = 'input window, operand 2, single buffered']
    #allocation8 [shape = 'u8[512]{0}', space=vmem, size = 0x400, scoped, tag = 'input window, operand 3, single buffered']
    #allocation9 [shape = 's32[1]{0}', space=sflag, size = 0x4, scoped, tag = 'scoped memory for seg_block.1']
    #allocation10 [shape = 'u8[512]{0}', space=vmem, size = 0x400, scoped, tag = 'input window, operand 4, single buffered']
    #allocation11 [shape = 'u8[147456]{0}', space=vmem, size = 0x24000, scoped, tag = 'input window, operand 5, single buffered']
    #allocation12 [shape = 's32[1]{0}', space=sflag, size = 0x4, scoped, tag = 'scoped memory for seg_block.1']
    #allocation13 [shape = 'u8[512]{0}', space=vmem, size = 0x400, scoped, tag = 'input window, operand 6, single buffered']
    #allocation14 [shape = 'u8[294912]{0}', space=vmem, size = 0x48000, scoped, tag = 'input window, operand 7, single buffered']
    #allocation15 [shape = 's32[1]{0}', space=sflag, size = 0x4, scoped, tag = 'scoped memory for seg_block.1']
    #allocation16 [shape = 'u8[512]{0}', space=vmem, size = 0x400, scoped, tag = 'input window, operand 8, single buffered']
    #allocation17 [shape = 'u8[16384]{0}', space=vmem, size = 0x4000, scoped, tag = 'input window, operand 9, single buffered']
    #allocation18 [shape = 's32[1]{0}', space=sflag, size = 0x4, scoped, tag = 'scoped memory for seg_block.1']
    #allocation19 [shape = 'u8[512]{0}', space=vmem, size = 0x400, scoped, tag = 'input window, operand 10, single buffered']
    #allocation20 [shape = 'u8[393216]{0}', space=vmem, size = 0x60000, scoped, tag = 'output window, operand 0']
    %16 = vsyncpa [#allocation3], 0
    %s17 = scalar_lea.sflag [#allocation3], 1
    %18 = vsyncpa %s17, 0
    %19 = vsyncpa [#allocation6], 0
    %20 = vsyncpa [#allocation9], 0
    %21 = vsyncpa [#allocation12], 0
    %22 = vsyncpa [#allocation15], 0
    %23 = vsyncpa [#allocation18], 0
    %24 = vsyncpa [#allocation4], 0
    %s25 = scalar_lea.sflag [#allocation4], 1
    %26 = vsyncpa %s25, 0
    loop: start=0, step=1, limit=4
    $region2: #{seg_block.1} parent=1 // loop_pre_header
      _
    $region3: #{seg_block.1} parent=1 // loop_header
      %s28 = sphi 0, %s32
      %p29 = scmp.ge.s32.totalorder %s28, 4
      %s38 = sphi 0, %s40
      %s41 = sphi 0, %s38
      %s42 = sphi 0, %s41
      %s58 = sphi 0, %s42
      %s62 = sphi 0, %s62
      %s64 = sphi 0, %s62
      %s65 = sphi 0, %s64
      %s79 = sphi 0, %s65
      %s83 = sphi 0, %s83
      %s85 = sphi 0, %s83
      %s86 = sphi 0, %s85
      %s100 = sphi 0, %s86
      %s104 = sphi 0, %s104
      %s106 = sphi 0, %s104
      %s107 = sphi 0, %s106
      %s121 = sphi 0, %s107
      %s125 = sphi 0, %s125
      %s127 = sphi 0, %s125
      %s128 = sphi 0, %s127
      %s142 = sphi 0, %s128
      %s146 = sphi 0, %s146
      %s148 = sphi 0, %s146
      %s149 = sphi 0, %s148
      %s163 = sphi 0, %s149
      %s167 = sphi 0, %s167
      %s169 = sphi 0, %s167
      %s170 = sphi 0, %s169
      %s184 = sphi 0, %s170
      %s188 = sphi 0, %s188
      %s190 = sphi 0, %s188
      %s191 = sphi 0, %s190
      %s205 = sphi 0, %s191
      %s209 = sphi 0, %s209
      %s211 = sphi 0, %s209
      %s212 = sphi 0, %s211
      %s226 = sphi 0, %s212
      %s230 = sphi 0, %s230
      %s232 = sphi 0, %s230
      %s233 = sphi 0, %s232
      %s247 = sphi 0, %s233
      %s251 = sphi 0, %s251
      %s253 = sphi 0, %s251
      %s254 = sphi 0, %s253
      %s268 = sphi 0, %s254
      %s274 = sphi 0, %s276
      %s277 = sphi 0, %s274
      %s278 = sphi 0, %s277
      %s294 = sphi 0, %s278
    $region4: #{seg_block.1} parent=1 // loop_header_branch
      %31 = sbr.rel (%p29) target = $region8
    $region5: #{seg_block.1} parent=1 // loop_body
      %s33 = ssub.s32 %s28, 1
      %s34 = ssub.s32 %s28, 2
      %s35 = sadd.s32 %s28, 1
      %s36 = ssub.s32 %s28, %s35
      %p37 = scmp.eq.s32.totalorder %s36, 0
      %s39 = sadd.s32 %s38, 1
      %s40 = scalar_select %p37, %s38, %s39
      %p43 = pneg %p37
      %p44 = scmp.eq.s32.totalorder %s28, 1
      %p45 = por %p43, %p44
      %p46 = scmp.ne.s32.totalorder %s38, %s41
      %p47 = scmp.eq.s32.totalorder %s28, 0
      %p48 = por %p46, %p47
      %p49 = scmp.ne.s32.totalorder %s38, %s41
      %p50 = scmp.eq.s32.totalorder %s33, 1
      %p51 = por %p49, %p50
      %p52 = scmp.ne.s32.totalorder %s41, %s42
      %p53 = scmp.eq.s32.totalorder %s33, 0
      %p54 = por %p52, %p53
      %p55 = scmp.ne.s32.totalorder %s41, %s42
      %p56 = scmp.eq.s32.totalorder %s34, 1
      %p57 = por %p55, %p56
      %p59 = scmp.ne.s32.totalorder %s42, %s58
      %p60 = scmp.eq.s32.totalorder %s34, 0
      %p61 = por %p59, %p60
      %s63 = sadd.s32 %s62, 1
      %p66 = scmp.eq.s32.totalorder %s28, 1
      %p67 = scmp.ne.s32.totalorder %s62, %s64
      %p68 = scmp.eq.s32.totalorder %s28, 0
      %p69 = por %p67, %p68
      %p70 = scmp.ne.s32.totalorder %s62, %s64
      %p71 = scmp.eq.s32.totalorder %s33, 1
      %p72 = por %p70, %p71
      %p73 = scmp.ne.s32.totalorder %s64, %s65
      %p74 = scmp.eq.s32.totalorder %s33, 0
      %p75 = por %p73, %p74
      %p76 = scmp.ne.s32.totalorder %s64, %s65
      %p77 = scmp.eq.s32.totalorder %s34, 1
      %p78 = por %p76, %p77
      %p80 = scmp.ne.s32.totalorder %s65, %s79
      %p81 = scmp.eq.s32.totalorder %s34, 0
      %p82 = por %p80, %p81
      %s84 = sadd.s32 %s83, 1
      %p87 = scmp.eq.s32.totalorder %s28, 1
      %p88 = scmp.ne.s32.totalorder %s83, %s85
      %p89 = scmp.eq.s32.totalorder %s28, 0
      %p90 = por %p88, %p89
      %p91 = scmp.ne.s32.totalorder %s83, %s85
      %p92 = scmp.eq.s32.totalorder %s33, 1
      %p93 = por %p91, %p92
      %p94 = scmp.ne.s32.totalorder %s85, %s86
      %p95 = scmp.eq.s32.totalorder %s33, 0
      %p96 = por %p94, %p95
      %p97 = scmp.ne.s32.totalorder %s85, %s86
      %p98 = scmp.eq.s32.totalorder %s34, 1
      %p99 = por %p97, %p98
      %p101 = scmp.ne.s32.totalorder %s86, %s100
      %p102 = scmp.eq.s32.totalorder %s34, 0
      %p103 = por %p101, %p102
      %s105 = sadd.s32 %s104, 1
      %p108 = scmp.eq.s32.totalorder %s28, 1
      %p109 = scmp.ne.s32.totalorder %s104, %s106
      %p110 = scmp.eq.s32.totalorder %s28, 0
      %p111 = por %p109, %p110
      %p112 = scmp.ne.s32.totalorder %s104, %s106
      %p113 = scmp.eq.s32.totalorder %s33, 1
      %p114 = por %p112, %p113
      %p115 = scmp.ne.s32.totalorder %s106, %s107
      %p116 = scmp.eq.s32.totalorder %s33, 0
      %p117 = por %p115, %p116
      %p118 = scmp.ne.s32.totalorder %s106, %s107
      %p119 = scmp.eq.s32.totalorder %s34, 1
      %p120 = por %p118, %p119
      %p122 = scmp.ne.s32.totalorder %s107, %s121
      %p123 = scmp.eq.s32.totalorder %s34, 0
      %p124 = por %p122, %p123
      %s126 = sadd.s32 %s125, 1
      %p129 = scmp.eq.s32.totalorder %s28, 1
      %p130 = scmp.ne.s32.totalorder %s125, %s127
      %p131 = scmp.eq.s32.totalorder %s28, 0
      %p132 = por %p130, %p131
      %p133 = scmp.ne.s32.totalorder %s125, %s127
      %p134 = scmp.eq.s32.totalorder %s33, 1
      %p135 = por %p133, %p134
      %p136 = scmp.ne.s32.totalorder %s127, %s128
      %p137 = scmp.eq.s32.totalorder %s33, 0
      %p138 = por %p136, %p137
      %p139 = scmp.ne.s32.totalorder %s127, %s128
      %p140 = scmp.eq.s32.totalorder %s34, 1
      %p141 = por %p139, %p140
      %p143 = scmp.ne.s32.totalorder %s128, %s142
      %p144 = scmp.eq.s32.totalorder %s34, 0
      %p145 = por %p143, %p144
      %s147 = sadd.s32 %s146, 1
      %p150 = scmp.eq.s32.totalorder %s28, 1
      %p151 = scmp.ne.s32.totalorder %s146, %s148
      %p152 = scmp.eq.s32.totalorder %s28, 0
      %p153 = por %p151, %p152
      %p154 = scmp.ne.s32.totalorder %s146, %s148
      %p155 = scmp.eq.s32.totalorder %s33, 1
      %p156 = por %p154, %p155
      %p157 = scmp.ne.s32.totalorder %s148, %s149
      %p158 = scmp.eq.s32.totalorder %s33, 0
      %p159 = por %p157, %p158
      %p160 = scmp.ne.s32.totalorder %s148, %s149
      %p161 = scmp.eq.s32.totalorder %s34, 1
      %p162 = por %p160, %p161
      %p164 = scmp.ne.s32.totalorder %s149, %s163
      %p165 = scmp.eq.s32.totalorder %s34, 0
      %p166 = por %p164, %p165
      %s168 = sadd.s32 %s167, 1
      %p171 = scmp.eq.s32.totalorder %s28, 1
      %p172 = scmp.ne.s32.totalorder %s167, %s169
      %p173 = scmp.eq.s32.totalorder %s28, 0
      %p174 = por %p172, %p173
      %p175 = scmp.ne.s32.totalorder %s167, %s169
      %p176 = scmp.eq.s32.totalorder %s33, 1
      %p177 = por %p175, %p176
      %p178 = scmp.ne.s32.totalorder %s169, %s170
      %p179 = scmp.eq.s32.totalorder %s33, 0
      %p180 = por %p178, %p179
      %p181 = scmp.ne.s32.totalorder %s169, %s170
      %p182 = scmp.eq.s32.totalorder %s34, 1
      %p183 = por %p181, %p182
      %p185 = scmp.ne.s32.totalorder %s170, %s184
      %p186 = scmp.eq.s32.totalorder %s34, 0
      %p187 = por %p185, %p186
      %s189 = sadd.s32 %s188, 1
      %p192 = scmp.eq.s32.totalorder %s28, 1
      %p193 = scmp.ne.s32.totalorder %s188, %s190
      %p194 = scmp.eq.s32.totalorder %s28, 0
      %p195 = por %p193, %p194
      %p196 = scmp.ne.s32.totalorder %s188, %s190
      %p197 = scmp.eq.s32.totalorder %s33, 1
      %p198 = por %p196, %p197
      %p199 = scmp.ne.s32.totalorder %s190, %s191
      %p200 = scmp.eq.s32.totalorder %s33, 0
      %p201 = por %p199, %p200
      %p202 = scmp.ne.s32.totalorder %s190, %s191
      %p203 = scmp.eq.s32.totalorder %s34, 1
      %p204 = por %p202, %p203
      %p206 = scmp.ne.s32.totalorder %s191, %s205
      %p207 = scmp.eq.s32.totalorder %s34, 0
      %p208 = por %p206, %p207
      %s210 = sadd.s32 %s209, 1
      %p213 = scmp.eq.s32.totalorder %s28, 1
      %p214 = scmp.ne.s32.totalorder %s209, %s211
      %p215 = scmp.eq.s32.totalorder %s28, 0
      %p216 = por %p214, %p215
      %p217 = scmp.ne.s32.totalorder %s209, %s211
      %p218 = scmp.eq.s32.totalorder %s33, 1
      %p219 = por %p217, %p218
      %p220 = scmp.ne.s32.totalorder %s211, %s212
      %p221 = scmp.eq.s32.totalorder %s33, 0
      %p222 = por %p220, %p221
      %p223 = scmp.ne.s32.totalorder %s211, %s212
      %p224 = scmp.eq.s32.totalorder %s34, 1
      %p225 = por %p223, %p224
      %p227 = scmp.ne.s32.totalorder %s212, %s226
      %p228 = scmp.eq.s32.totalorder %s34, 0
      %p229 = por %p227, %p228
      %s231 = sadd.s32 %s230, 1
      %p234 = scmp.eq.s32.totalorder %s28, 1
      %p235 = scmp.ne.s32.totalorder %s230, %s232
      %p236 = scmp.eq.s32.totalorder %s28, 0
      %p237 = por %p235, %p236
      %p238 = scmp.ne.s32.totalorder %s230, %s232
      %p239 = scmp.eq.s32.totalorder %s33, 1
      %p240 = por %p238, %p239
      %p241 = scmp.ne.s32.totalorder %s232, %s233
      %p242 = scmp.eq.s32.totalorder %s33, 0
      %p243 = por %p241, %p242
      %p244 = scmp.ne.s32.totalorder %s232, %s233
      %p245 = scmp.eq.s32.totalorder %s34, 1
      %p246 = por %p244, %p245
      %p248 = scmp.ne.s32.totalorder %s233, %s247
      %p249 = scmp.eq.s32.totalorder %s34, 0
      %p250 = por %p248, %p249
      %s252 = sadd.s32 %s251, 1
      %p255 = scmp.eq.s32.totalorder %s28, 1
      %p256 = scmp.ne.s32.totalorder %s251, %s253
      %p257 = scmp.eq.s32.totalorder %s28, 0
      %p258 = por %p256, %p257
      %p259 = scmp.ne.s32.totalorder %s251, %s253
      %p260 = scmp.eq.s32.totalorder %s33, 1
      %p261 = por %p259, %p260
      %p262 = scmp.ne.s32.totalorder %s253, %s254
      %p263 = scmp.eq.s32.totalorder %s33, 0
      %p264 = por %p262, %p263
      %p265 = scmp.ne.s32.totalorder %s253, %s254
      %p266 = scmp.eq.s32.totalorder %s34, 1
      %p267 = por %p265, %p266
      %p269 = scmp.ne.s32.totalorder %s254, %s268
      %p270 = scmp.eq.s32.totalorder %s34, 0
      %p271 = por %p269, %p270
      %s272 = ssub.s32 %s28, %s35
      %p273 = scmp.eq.s32.totalorder %s272, 0
      %s275 = sadd.s32 %s274, 1
      %s276 = scalar_select %p273, %s274, %s275
      %p279 = pneg %p273
      %p280 = scmp.eq.s32.totalorder %s28, 1
      %p281 = por %p279, %p280
      %p282 = scmp.ne.s32.totalorder %s274, %s277
      %p283 = scmp.eq.s32.totalorder %s28, 0
      %p284 = por %p282, %p283
      %p285 = scmp.ne.s32.totalorder %s274, %s277
      %p286 = scmp.eq.s32.totalorder %s33, 1
      %p287 = por %p285, %p286
      %p288 = scmp.ne.s32.totalorder %s277, %s278
      %p289 = scmp.eq.s32.totalorder %s33, 0
      %p290 = por %p288, %p289
      %p291 = scmp.ne.s32.totalorder %s277, %s278
      %p292 = scmp.eq.s32.totalorder %s34, 1
      %p293 = por %p291, %p292
      %p295 = scmp.ne.s32.totalorder %s278, %s294
      %p296 = scmp.eq.s32.totalorder %s34, 0
      %p297 = por %p295, %p296
      %p298 = scmp.le.s32.totalorder 1, %s28
      %p299 = scmp.lt.s32.totalorder %s28, 3
      %p300 = pnand %p298, %p299
      %p301 = pneg %p300
      // Predicated region
      $region9: #{seg_block.1} parent=5 // pred_check
        _
      $region10: #{seg_block.1} parent=5 // pred_check_branch
        %303 = sbr.rel (%p300) target = $region12
      $region11: #{seg_block.1} parent=5 // pred_region
        %s304 = ssub.s32 %s28, 1
        // Predicated region
        $region13: #{seg_block.1} parent=11 // pred_check
          %p305 = pneg %p75
        $region14: #{seg_block.1} parent=11 // pred_check_branch
          %307 = sbr.rel (%p305) target = $region16
        $region15: #{seg_block.1} parent=11 // pred_region
          %s309 = ssub.s32 16, 16
          %310 = vsyncadd [#allocation6], %s309
          %s312 = sshll.u32 [#allocation5], 4
          %s313 = int_to_ptr.vmem [resolvable:$true] %s312
          %315 = dma.hbm_to_vmem [thread:$0]  %s1, 16, %s313, [#allocation6]
        $region16: #{seg_block.1} parent=11 // pred_fallthru
          _
        // Predicated region
        $region17: #{seg_block.1} parent=11 // pred_check
          %p316 = pneg %p96
        $region18: #{seg_block.1} parent=11 // pred_check_branch
          %318 = sbr.rel (%p316) target = $region20
        $region19: #{seg_block.1} parent=11 // pred_region
          %s320 = ssub.s32 16, 16
          %321 = vsyncadd [#allocation6], %s320
          %s323 = sshll.u32 [#allocation7], 4
          %s324 = int_to_ptr.vmem [resolvable:$true] %s323
          %326 = dma.hbm_to_vmem [thread:$0]  %s2, 16, %s324, [#allocation6]
        $region20: #{seg_block.1} parent=11 // pred_fallthru
          _
        // Predicated region
        $region21: #{seg_block.1} parent=11 // pred_check
          %p327 = pneg %p117
        $region22: #{seg_block.1} parent=11 // pred_check_branch
          %329 = sbr.rel (%p327) target = $region24
        $region23: #{seg_block.1} parent=11 // pred_region
          %s331 = ssub.s32 16, 16
          %332 = vsyncadd [#allocation9], %s331
          %s334 = sshll.u32 [#allocation8], 4
          %s335 = int_to_ptr.vmem [resolvable:$true] %s334
          %337 = dma.hbm_to_vmem [thread:$0]  %s3, 16, %s335, [#allocation9]
        $region24: #{seg_block.1} parent=11 // pred_fallthru
          _
        // Predicated region
        $region25: #{seg_block.1} parent=11 // pred_check
          %p338 = pneg %p138
        $region26: #{seg_block.1} parent=11 // pred_check_branch
          %340 = sbr.rel (%p338) target = $region28
        $region27: #{seg_block.1} parent=11 // pred_region
          %s342 = ssub.s32 16, 16
          %343 = vsyncadd [#allocation9], %s342
          %s345 = sshll.u32 [#allocation10], 4
          %s346 = int_to_ptr.vmem [resolvable:$true] %s345
          %348 = dma.hbm_to_vmem [thread:$0]  %s4, 16, %s346, [#allocation9]
        $region28: #{seg_block.1} parent=11 // pred_fallthru
          _
        // Predicated region
        $region29: #{seg_block.1} parent=11 // pred_check
          %p349 = pneg %p159
        $region30: #{seg_block.1} parent=11 // pred_check_branch
          %351 = sbr.rel (%p349) target = $region32
        $region31: #{seg_block.1} parent=11 // pred_region
          %s353 = ssub.s32 4608, 4608
          %354 = vsyncadd [#allocation12], %s353
          %s355 = sshll.u32 [#allocation11], 4
          %s356 = int_to_ptr.vmem [resolvable:$true] %s355
          %361 = dma.hbm_to_vmem [thread:$0]  %s5, 4608, %s356, [#allocation12], 64, 64, 4
        $region32: #{seg_block.1} parent=11 // pred_fallthru
          _
        // Predicated region
        $region33: #{seg_block.1} parent=11 // pred_check
          %p362 = pneg %p180
        $region34: #{seg_block.1} parent=11 // pred_check_branch
          %364 = sbr.rel (%p362) target = $region36
        $region35: #{seg_block.1} parent=11 // pred_region
          %s366 = ssub.s32 16, 16
          %367 = vsyncadd [#allocation12], %s366
          %s369 = sshll.u32 [#allocation13], 4
          %s370 = int_to_ptr.vmem [resolvable:$true] %s369
          %372 = dma.hbm_to_vmem [thread:$0]  %s6, 16, %s370, [#allocation12]
        $region36: #{seg_block.1} parent=11 // pred_fallthru
          _
        // Predicated region
        $region37: #{seg_block.1} parent=11 // pred_check
          %p373 = pneg %p201
        $region38: #{seg_block.1} parent=11 // pred_check_branch
          %375 = sbr.rel (%p373) target = $region40
        $region39: #{seg_block.1} parent=11 // pred_region
          %s377 = ssub.s32 9216, 9216
          %378 = vsyncadd [#allocation15], %s377
          %s379 = sshll.u32 [#allocation14], 4
          %s380 = int_to_ptr.vmem [resolvable:$true] %s379
          %385 = dma.hbm_to_vmem [thread:$0]  %s7, 9216, %s380, [#allocation15], 64, 64, 4
        $region40: #{seg_block.1} parent=11 // pred_fallthru
          _
        // Predicated region
        $region41: #{seg_block.1} parent=11 // pred_check
          %p386 = pneg %p222
        $region42: #{seg_block.1} parent=11 // pred_check_branch
          %388 = sbr.rel (%p386) target = $region44
        $region43: #{seg_block.1} parent=11 // pred_region
          %s390 = ssub.s32 16, 16
          %391 = vsyncadd [#allocation15], %s390
          %s393 = sshll.u32 [#allocation16], 4
          %s394 = int_to_ptr.vmem [resolvable:$true] %s393
          %396 = dma.hbm_to_vmem [thread:$0]  %s8, 16, %s394, [#allocation15]
        $region44: #{seg_block.1} parent=11 // pred_fallthru
          _
        // Predicated region
        $region45: #{seg_block.1} parent=11 // pred_check
          %p397 = pneg %p243
        $region46: #{seg_block.1} parent=11 // pred_check_branch
          %399 = sbr.rel (%p397) target = $region48
        $region47: #{seg_block.1} parent=11 // pred_region
          %s401 = ssub.s32 512, 512
          %402 = vsyncadd [#allocation18], %s401
          %s403 = sshll.u32 [#allocation17], 4
          %s404 = int_to_ptr.vmem [resolvable:$true] %s403
          %409 = dma.hbm_to_vmem [thread:$0]  %s9, 512, %s404, [#allocation18], 64, 64, 4
        $region48: #{seg_block.1} parent=11 // pred_fallthru
          _
        // Predicated region
        $region49: #{seg_block.1} parent=11 // pred_check
          %p410 = pneg %p264
        $region50: #{seg_block.1} parent=11 // pred_check_branch
          %412 = sbr.rel (%p410) target = $region52
        $region51: #{seg_block.1} parent=11 // pred_region
          %s414 = ssub.s32 16, 16
          %415 = vsyncadd [#allocation18], %s414
          %s417 = sshll.u32 [#allocation19], 4
          %s418 = int_to_ptr.vmem [resolvable:$true] %s417
          %420 = dma.hbm_to_vmem [thread:$0]  %s10, 16, %s418, [#allocation18]
        $region52: #{seg_block.1} parent=11 // pred_fallthru
          _
      $region12: #{seg_block.1} parent=5 // pred_fallthru
        _
      %p421 = scmp.lt.s32.totalorder %s28, 2
      // Predicated region
      $region53: #{seg_block.1} parent=5 // pred_check
        %p422 = pneg %p421
      $region54: #{seg_block.1} parent=5 // pred_check_branch
        %424 = sbr.rel (%p422) target = $region56
      $region55: #{seg_block.1} parent=5 // pred_region
        // Predicated region
        $region57: #{seg_block.1} parent=55 // pred_check
          %p425 = pneg %p48
        $region58: #{seg_block.1} parent=55 // pred_check_branch
          %427 = sbr.rel (%p425) target = $region60
        $region59: #{seg_block.1} parent=55 // pred_region
          %s428 = sand.u32 %s38, 1
          %s429 = scalar_lea.sflag [#allocation3], %s428
          %s430 = sand.u32 %s38, 1
          %s431 = smul.addr %s430, 216
          %s432 = scalar_lea.vmem [#allocation2], %s431
          %s434 = ssub.s32 3456, 3456
          %435 = vsyncadd %s429, %s434
          %s436 = smul.addr %s28, 54
          %s437 = smul.addr %s436, 64
          %s438 = scalar_lea.hbm %s0, %s437
          %s439 = sshll.u32 %s432, 4
          %s440 = int_to_ptr.vmem [resolvable:$true] %s439
          %445 = dma.hbm_to_vmem [thread:$0]  %s438, 3456, %s440, %s429, 64, 64, 4
        $region60: #{seg_block.1} parent=55 // pred_fallthru
          _
      $region56: #{seg_block.1} parent=5 // pred_fallthru
        _
      %p446 = scmp.le.s32.totalorder 1, %s28
      %p447 = scmp.lt.s32.totalorder %s28, 3
      %p448 = pnand %p446, %p447
      %p449 = pneg %p448
      // Predicated region
      $region61: #{seg_block.1} parent=5 // pred_check
        _
      $region62: #{seg_block.1} parent=5 // pred_check_branch
        %451 = sbr.rel (%p448) target = $region64
      $region63: #{seg_block.1} parent=5 // pred_region
        %s452 = ssub.s32 %s28, 1
        %s453 = sand.u32 %s41, 1
        %s454 = scalar_lea.sflag [#allocation3], %s453
        %s455 = sand.u32 %s41, 1
        %s456 = smul.addr %s455, 216
        %s457 = scalar_lea.vmem [#allocation2], %s456
        // Predicated region
        $region65: #{seg_block.1} parent=63 // pred_check
          %p458 = pneg %p54
        $region66: #{seg_block.1} parent=63 // pred_check_branch
          %460 = sbr.rel (%p458) target = $region68
        $region67: #{seg_block.1} parent=63 // pred_region
          %461 = dma.done %s454, 3456
        $region68: #{seg_block.1} parent=63 // pred_fallthru
          _
        // Predicated region
        $region69: #{seg_block.1} parent=63 // pred_check
          %p462 = pneg %p75
        $region70: #{seg_block.1} parent=63 // pred_check_branch
          %464 = sbr.rel (%p462) target = $region72
        $region71: #{seg_block.1} parent=63 // pred_region
          %465 = dma.done [#allocation6], 16
        $region72: #{seg_block.1} parent=63 // pred_fallthru
          _
        // Predicated region
        $region73: #{seg_block.1} parent=63 // pred_check
          %p466 = pneg %p96
        $region74: #{seg_block.1} parent=63 // pred_check_branch
          %468 = sbr.rel (%p466) target = $region76
        $region75: #{seg_block.1} parent=63 // pred_region
          %469 = dma.done [#allocation6], 16
        $region76: #{seg_block.1} parent=63 // pred_fallthru
          _
        // Predicated region
        $region77: #{seg_block.1} parent=63 // pred_check
          %p470 = pneg %p117
        $region78: #{seg_block.1} parent=63 // pred_check_branch
          %472 = sbr.rel (%p470) target = $region80
        $region79: #{seg_block.1} parent=63 // pred_region
          %473 = dma.done [#allocation9], 16
        $region80: #{seg_block.1} parent=63 // pred_fallthru
          _
        // Predicated region
        $region81: #{seg_block.1} parent=63 // pred_check
          %p474 = pneg %p138
        $region82: #{seg_block.1} parent=63 // pred_check_branch
          %476 = sbr.rel (%p474) target = $region84
        $region83: #{seg_block.1} parent=63 // pred_region
          %477 = dma.done [#allocation9], 16
        $region84: #{seg_block.1} parent=63 // pred_fallthru
          _
        // Predicated region
        $region85: #{seg_block.1} parent=63 // pred_check
          %p478 = pneg %p159
        $region86: #{seg_block.1} parent=63 // pred_check_branch
          %480 = sbr.rel (%p478) target = $region88
        $region87: #{seg_block.1} parent=63 // pred_region
          %481 = dma.done [#allocation12], 4608
        $region88: #{seg_block.1} parent=63 // pred_fallthru
          _
        // Predicated region
        $region89: #{seg_block.1} parent=63 // pred_check
          %p482 = pneg %p180
        $region90: #{seg_block.1} parent=63 // pred_check_branch
          %484 = sbr.rel (%p482) target = $region92
        $region91: #{seg_block.1} parent=63 // pred_region
          %485 = dma.done [#allocation12], 16
        $region92: #{seg_block.1} parent=63 // pred_fallthru
          _
        // Predicated region
        $region93: #{seg_block.1} parent=63 // pred_check
          %p486 = pneg %p201
        $region94: #{seg_block.1} parent=63 // pred_check_branch
          %488 = sbr.rel (%p486) target = $region96
        $region95: #{seg_block.1} parent=63 // pred_region
          %489 = dma.done [#allocation15], 9216
        $region96: #{seg_block.1} parent=63 // pred_fallthru
          _
        // Predicated region
        $region97: #{seg_block.1} parent=63 // pred_check
          %p490 = pneg %p222
        $region98: #{seg_block.1} parent=63 // pred_check_branch
          %492 = sbr.rel (%p490) target = $region100
        $region99: #{seg_block.1} parent=63 // pred_region
          %493 = dma.done [#allocation15], 16
        $region100: #{seg_block.1} parent=63 // pred_fallthru
          _
        // Predicated region
        $region101: #{seg_block.1} parent=63 // pred_check
          %p494 = pneg %p243
        $region102: #{seg_block.1} parent=63 // pred_check_branch
          %496 = sbr.rel (%p494) target = $region104
        $region103: #{seg_block.1} parent=63 // pred_region
          %497 = dma.done [#allocation18], 512
        $region104: #{seg_block.1} parent=63 // pred_fallthru
          _
        // Predicated region
        $region105: #{seg_block.1} parent=63 // pred_check
          %p498 = pneg %p264
        $region106: #{seg_block.1} parent=63 // pred_check_branch
          %500 = sbr.rel (%p498) target = $region108
        $region107: #{seg_block.1} parent=63 // pred_region
          %501 = dma.done [#allocation18], 16
        $region108: #{seg_block.1} parent=63 // pred_fallthru
          _
        %s502 = sand.u32 %s41, 1
        %s503 = scalar_lea.sflag [#allocation3], %s502
        %s504 = sand.u32 %s41, 1
        %s505 = smul.addr %s504, 216
        %s506 = scalar_lea.vmem [#allocation2], %s505
        %p507 = pneg %p54
        %p508 = pneg %p51
        %p509 = pneg %p75
        %p510 = pneg %p72
        %p511 = pneg %p96
        %p512 = pneg %p93
        %p513 = pneg %p117
        %p514 = pneg %p114
        %p515 = pneg %p138
        %p516 = pneg %p135
        %p517 = pneg %p159
        %p518 = pneg %p156
        %p519 = pneg %p180
        %p520 = pneg %p177
        %p521 = pneg %p201
        %p522 = pneg %p198
        %p523 = pneg %p222
        %p524 = pneg %p219
        %p525 = pneg %p243
        %p526 = pneg %p240
        %p527 = pneg %p264
        %p528 = pneg %p261
        %p529 = pneg %p290
        %p530 = pneg %p287
        %s531 = sand.u32 %s277, 1
        %s532 = scalar_lea.sflag [#allocation4], %s531
        %s533 = sand.u32 %s277, 1
        %s534 = smul.addr %s533, 384
        %s535 = scalar_lea.vmem [#allocation20], %s534
        %v537 = vlaneseq
        %v538 = vshrl.u32 %v537, 7
        %v539 = vadd.s32 %v538, 8
        %v540 = vadd.s32 %v538, 16
        %v541 = vadd.s32 %v538, 24
        %v542 = vadd.s32 %v538, 32
        %v543 = vadd.s32 %v538, 40
        %v544 = vadd.s32 %v538, 48
        %v545 = vadd.s32 %v538, 56
        %v546 = vadd.s32 %v538, 64
        %v547 = vadd.s32 %v538, 72
        %v548 = vadd.s32 %v538, 80
        %v549 = vadd.s32 %v538, 88
        %v550 = vadd.s32 %v538, 96
        %v551 = vadd.s32 %v538, 104
        %v552 = vadd.s32 %v538, 112
        %v553 = vadd.s32 %v538, 120
        %v554 = vadd.s32 %v538, 128
        %v555 = vadd.s32 %v538, 136
        %v556 = vadd.s32 %v538, 144
        %v557 = vadd.s32 %v538, 152
        %v558 = vadd.s32 %v538, 160
        %v559 = vadd.s32 %v538, 168
        %v560 = vadd.s32 %v538, 176
        %v561 = vadd.s32 %v538, 184
        %v562 = vadd.s32 %v538, 192
        %v563 = vadd.s32 %v538, 200
        %v564 = vadd.s32 %v538, 208
        %v565 = vadd.s32 %v538, 216
        %v566 = vadd.s32 %v538, 224
        %v567 = vadd.s32 %v538, 232
        %v568 = vadd.s32 %v538, 240
        %v569 = vadd.s32 %v538, 248
        %v570 = vadd.s32 %v538, 256
        %v571 = vadd.s32 %v538, 264
        %v572 = vadd.s32 %v538, 272
        %v573 = vadd.s32 %v538, 280
        %v574 = vadd.s32 %v538, 288
        %v575 = vadd.s32 %v538, 296
        %v576 = vadd.s32 %v538, 304
        %v577 = vadd.s32 %v538, 312
        %v578 = vadd.s32 %v538, 320
        %v579 = vadd.s32 %v538, 328
        %v580 = vadd.s32 %v538, 336
        %v581 = vadd.s32 %v538, 344
        %v582 = vadd.s32 %v538, 352
        %v583 = vadd.s32 %v538, 360
        %v584 = vadd.s32 %v538, 368
        %v585 = vadd.s32 %v538, 376
        %v586 = vadd.s32 %v538, 384
        %v587 = vadd.s32 %v538, 392
        %v588 = vadd.s32 %v538, 400
        %v589 = vadd.s32 %v538, 408
        %v590 = vadd.s32 %v538, 416
        %v591 = vadd.s32 %v538, 424
        %vm592 = vcmp.lt.s32.totalorder %v538, 0
        %v593 = vsub.s32 0, %v538
        %v594 = vsel %vm592, %v593, %v538
        %v595 = vmul.u32.u64.compose %v594, 2863311531
        %v596 = vextract.low.u32 %v595
        %v597 = vextract.high.u32 %v595
        %v598 = vshrl.u32 %v597, 4
        %v599 = vmul.u32 %v598, 24
        %v600 = vsub.s32 %v594, %v599
        %v601 = vsub.s32 0, %v600
        %v602 = vsel %vm592, %v601, %v600
        %vm603 = vcmp.lt.s32.totalorder %v539, 0
        %v604 = vsub.s32 0, %v539
        %v605 = vsel %vm603, %v604, %v539
        %v606 = vmul.u32.u64.compose %v605, 2863311531
        %v607 = vextract.low.u32 %v606
        %v608 = vextract.high.u32 %v606
        %v609 = vshrl.u32 %v608, 4
        %v610 = vmul.u32 %v609, 24
        %v611 = vsub.s32 %v605, %v610
        %v612 = vsub.s32 0, %v611
        %v613 = vsel %vm603, %v612, %v611
        %vm614 = vcmp.lt.s32.totalorder %v540, 0
        %v615 = vsub.s32 0, %v540
        %v616 = vsel %vm614, %v615, %v540
        %v617 = vmul.u32.u64.compose %v616, 2863311531
        %v618 = vextract.low.u32 %v617
        %v619 = vextract.high.u32 %v617
        %v620 = vshrl.u32 %v619, 4
        %v621 = vmul.u32 %v620, 24
        %v622 = vsub.s32 %v616, %v621
        %v623 = vsub.s32 0, %v622
        %v624 = vsel %vm614, %v623, %v622
        %vm625 = vcmp.lt.s32.totalorder %v541, 0
        %v626 = vsub.s32 0, %v541
        %v627 = vsel %vm625, %v626, %v541
        %v628 = vmul.u32.u64.compose %v627, 2863311531
        %v629 = vextract.low.u32 %v628
        %v630 = vextract.high.u32 %v628
        %v631 = vshrl.u32 %v630, 4
        %v632 = vmul.u32 %v631, 24
        %v633 = vsub.s32 %v627, %v632
        %v634 = vsub.s32 0, %v633
        %v635 = vsel %vm625, %v634, %v633
        %vm636 = vcmp.lt.s32.totalorder %v542, 0
        %v637 = vsub.s32 0, %v542
        %v638 = vsel %vm636, %v637, %v542
        %v639 = vmul.u32.u64.compose %v638, 2863311531
        %v640 = vextract.low.u32 %v639
        %v641 = vextract.high.u32 %v639
        %v642 = vshrl.u32 %v641, 4
        %v643 = vmul.u32 %v642, 24
        %v644 = vsub.s32 %v638, %v643
        %v645 = vsub.s32 0, %v644
        %v646 = vsel %vm636, %v645, %v644
        %vm647 = vcmp.lt.s32.totalorder %v543, 0
        %v648 = vsub.s32 0, %v543
        %v649 = vsel %vm647, %v648, %v543
        %v650 = vmul.u32.u64.compose %v649, 2863311531
        %v651 = vextract.low.u32 %v650
        %v652 = vextract.high.u32 %v650
        %v653 = vshrl.u32 %v652, 4
        %v654 = vmul.u32 %v653, 24
        %v655 = vsub.s32 %v649, %v654
        %v656 = vsub.s32 0, %v655
        %v657 = vsel %vm647, %v656, %v655
        %vm658 = vcmp.lt.s32.totalorder %v544, 0
        %v659 = vsub.s32 0, %v544
        %v660 = vsel %vm658, %v659, %v544
        %v661 = vmul.u32.u64.compose %v660, 2863311531
        %v662 = vextract.low.u32 %v661
        %v663 = vextract.high.u32 %v661
        %v664 = vshrl.u32 %v663, 4
        %v665 = vmul.u32 %v664, 24
        %v666 = vsub.s32 %v660, %v665
        %v667 = vsub.s32 0, %v666
        %v668 = vsel %vm658, %v667, %v666
        %vm669 = vcmp.lt.s32.totalorder %v545, 0
        %v670 = vsub.s32 0, %v545
        %v671 = vsel %vm669, %v670, %v545
        %v672 = vmul.u32.u64.compose %v671, 2863311531
        %v673 = vextract.low.u32 %v672
        %v674 = vextract.high.u32 %v672
        %v675 = vshrl.u32 %v674, 4
        %v676 = vmul.u32 %v675, 24
        %v677 = vsub.s32 %v671, %v676
        %v678 = vsub.s32 0, %v677
        %v679 = vsel %vm669, %v678, %v677
        %vm680 = vcmp.lt.s32.totalorder %v546, 0
        %v681 = vsub.s32 0, %v546
        %v682 = vsel %vm680, %v681, %v546
        %v683 = vmul.u32.u64.compose %v682, 2863311531
        %v684 = vextract.low.u32 %v683
        %v685 = vextract.high.u32 %v683
        %v686 = vshrl.u32 %v685, 4
        %v687 = vmul.u32 %v686, 24
        %v688 = vsub.s32 %v682, %v687
        %v689 = vsub.s32 0, %v688
        %v690 = vsel %vm680, %v689, %v688
        %vm691 = vcmp.lt.s32.totalorder %v547, 0
        %v692 = vsub.s32 0, %v547
        %v693 = vsel %vm691, %v692, %v547
        %v694 = vmul.u32.u64.compose %v693, 2863311531
        %v695 = vextract.low.u32 %v694
        %v696 = vextract.high.u32 %v694
        %v697 = vshrl.u32 %v696, 4
        %v698 = vmul.u32 %v697, 24
        %v699 = vsub.s32 %v693, %v698
        %v700 = vsub.s32 0, %v699
        %v701 = vsel %vm691, %v700, %v699
        %vm702 = vcmp.lt.s32.totalorder %v548, 0
        %v703 = vsub.s32 0, %v548
        %v704 = vsel %vm702, %v703, %v548
        %v705 = vmul.u32.u64.compose %v704, 2863311531
        %v706 = vextract.low.u32 %v705
        %v707 = vextract.high.u32 %v705
        %v708 = vshrl.u32 %v707, 4
        %v709 = vmul.u32 %v708, 24
        %v710 = vsub.s32 %v704, %v709
        %v711 = vsub.s32 0, %v710
        %v712 = vsel %vm702, %v711, %v710
        %vm713 = vcmp.lt.s32.totalorder %v549, 0
        %v714 = vsub.s32 0, %v549
        %v715 = vsel %vm713, %v714, %v549
        %v716 = vmul.u32.u64.compose %v715, 2863311531
        %v717 = vextract.low.u32 %v716
        %v718 = vextract.high.u32 %v716
        %v719 = vshrl.u32 %v718, 4
        %v720 = vmul.u32 %v719, 24
        %v721 = vsub.s32 %v715, %v720
        %v722 = vsub.s32 0, %v721
        %v723 = vsel %vm713, %v722, %v721
        %vm724 = vcmp.lt.s32.totalorder %v550, 0
        %v725 = vsub.s32 0, %v550
        %v726 = vsel %vm724, %v725, %v550
        %v727 = vmul.u32.u64.compose %v726, 2863311531
        %v728 = vextract.low.u32 %v727
        %v729 = vextract.high.u32 %v727
        %v730 = vshrl.u32 %v729, 4
        %v731 = vmul.u32 %v730, 24
        %v732 = vsub.s32 %v726, %v731
        %v733 = vsub.s32 0, %v732
        %v734 = vsel %vm724, %v733, %v732
        %vm735 = vcmp.lt.s32.totalorder %v551, 0
        %v736 = vsub.s32 0, %v551
        %v737 = vsel %vm735, %v736, %v551
        %v738 = vmul.u32.u64.compose %v737, 2863311531
        %v739 = vextract.low.u32 %v738
        %v740 = vextract.high.u32 %v738
        %v741 = vshrl.u32 %v740, 4
        %v742 = vmul.u32 %v741, 24
        %v743 = vsub.s32 %v737, %v742
        %v744 = vsub.s32 0, %v743
        %v745 = vsel %vm735, %v744, %v743
        %vm746 = vcmp.lt.s32.totalorder %v552, 0
        %v747 = vsub.s32 0, %v552
        %v748 = vsel %vm746, %v747, %v552
        %v749 = vmul.u32.u64.compose %v748, 2863311531
        %v750 = vextract.low.u32 %v749
        %v751 = vextract.high.u32 %v749
        %v752 = vshrl.u32 %v751, 4
        %v753 = vmul.u32 %v752, 24
        %v754 = vsub.s32 %v748, %v753
        %v755 = vsub.s32 0, %v754
        %v756 = vsel %vm746, %v755, %v754
        %vm757 = vcmp.lt.s32.totalorder %v553, 0
        %v758 = vsub.s32 0, %v553
        %v759 = vsel %vm757, %v758, %v553
        %v760 = vmul.u32.u64.compose %v759, 2863311531
        %v761 = vextract.low.u32 %v760
        %v762 = vextract.high.u32 %v760
        %v763 = vshrl.u32 %v762, 4
        %v764 = vmul.u32 %v763, 24
        %v765 = vsub.s32 %v759, %v764
        %v766 = vsub.s32 0, %v765
        %v767 = vsel %vm757, %v766, %v765
        %vm768 = vcmp.lt.s32.totalorder %v554, 0
        %v769 = vsub.s32 0, %v554
        %v770 = vsel %vm768, %v769, %v554
        %v771 = vmul.u32.u64.compose %v770, 2863311531
        %v772 = vextract.low.u32 %v771
        %v773 = vextract.high.u32 %v771
        %v774 = vshrl.u32 %v773, 4
        %v775 = vmul.u32 %v774, 24
        %v776 = vsub.s32 %v770, %v775
        %v777 = vsub.s32 0, %v776
        %v778 = vsel %vm768, %v777, %v776
        %vm779 = vcmp.lt.s32.totalorder %v555, 0
        %v780 = vsub.s32 0, %v555
        %v781 = vsel %vm779, %v780, %v555
        %v782 = vmul.u32.u64.compose %v781, 2863311531
        %v783 = vextract.low.u32 %v782
        %v784 = vextract.high.u32 %v782
        %v785 = vshrl.u32 %v784, 4
        %v786 = vmul.u32 %v785, 24
        %v787 = vsub.s32 %v781, %v786
        %v788 = vsub.s32 0, %v787
        %v789 = vsel %vm779, %v788, %v787
        %vm790 = vcmp.lt.s32.totalorder %v556, 0
        %v791 = vsub.s32 0, %v556
        %v792 = vsel %vm790, %v791, %v556
        %v793 = vmul.u32.u64.compose %v792, 2863311531
        %v794 = vextract.low.u32 %v793
        %v795 = vextract.high.u32 %v793
        %v796 = vshrl.u32 %v795, 4
        %v797 = vmul.u32 %v796, 24
        %v798 = vsub.s32 %v792, %v797
        %v799 = vsub.s32 0, %v798
        %v800 = vsel %vm790, %v799, %v798
        %vm801 = vcmp.lt.s32.totalorder %v557, 0
        %v802 = vsub.s32 0, %v557
        %v803 = vsel %vm801, %v802, %v557
        %v804 = vmul.u32.u64.compose %v803, 2863311531
        %v805 = vextract.low.u32 %v804
        %v806 = vextract.high.u32 %v804
        %v807 = vshrl.u32 %v806, 4
        %v808 = vmul.u32 %v807, 24
        %v809 = vsub.s32 %v803, %v808
        %v810 = vsub.s32 0, %v809
        %v811 = vsel %vm801, %v810, %v809
        %vm812 = vcmp.lt.s32.totalorder %v558, 0
        %v813 = vsub.s32 0, %v558
        %v814 = vsel %vm812, %v813, %v558
        %v815 = vmul.u32.u64.compose %v814, 2863311531
        %v816 = vextract.low.u32 %v815
        %v817 = vextract.high.u32 %v815
        %v818 = vshrl.u32 %v817, 4
        %v819 = vmul.u32 %v818, 24
        %v820 = vsub.s32 %v814, %v819
        %v821 = vsub.s32 0, %v820
        %v822 = vsel %vm812, %v821, %v820
        %vm823 = vcmp.lt.s32.totalorder %v559, 0
        %v824 = vsub.s32 0, %v559
        %v825 = vsel %vm823, %v824, %v559
        %v826 = vmul.u32.u64.compose %v825, 2863311531
        %v827 = vextract.low.u32 %v826
        %v828 = vextract.high.u32 %v826
        %v829 = vshrl.u32 %v828, 4
        %v830 = vmul.u32 %v829, 24
        %v831 = vsub.s32 %v825, %v830
        %v832 = vsub.s32 0, %v831
        %v833 = vsel %vm823, %v832, %v831
        %vm834 = vcmp.lt.s32.totalorder %v560, 0
        %v835 = vsub.s32 0, %v560
        %v836 = vsel %vm834, %v835, %v560
        %v837 = vmul.u32.u64.compose %v836, 2863311531
        %v838 = vextract.low.u32 %v837
        %v839 = vextract.high.u32 %v837
        %v840 = vshrl.u32 %v839, 4
        %v841 = vmul.u32 %v840, 24
        %v842 = vsub.s32 %v836, %v841
        %v843 = vsub.s32 0, %v842
        %v844 = vsel %vm834, %v843, %v842
        %vm845 = vcmp.lt.s32.totalorder %v561, 0
        %v846 = vsub.s32 0, %v561
        %v847 = vsel %vm845, %v846, %v561
        %v848 = vmul.u32.u64.compose %v847, 2863311531
        %v849 = vextract.low.u32 %v848
        %v850 = vextract.high.u32 %v848
        %v851 = vshrl.u32 %v850, 4
        %v852 = vmul.u32 %v851, 24
        %v853 = vsub.s32 %v847, %v852
        %v854 = vsub.s32 0, %v853
        %v855 = vsel %vm845, %v854, %v853
        %vm856 = vcmp.lt.s32.totalorder %v562, 0
        %v857 = vsub.s32 0, %v562
        %v858 = vsel %vm856, %v857, %v562
        %v859 = vmul.u32.u64.compose %v858, 2863311531
        %v860 = vextract.low.u32 %v859
        %v861 = vextract.high.u32 %v859
        %v862 = vshrl.u32 %v861, 4
        %v863 = vmul.u32 %v862, 24
        %v864 = vsub.s32 %v858, %v863
        %v865 = vsub.s32 0, %v864
        %v866 = vsel %vm856, %v865, %v864
        %vm867 = vcmp.lt.s32.totalorder %v563, 0
        %v868 = vsub.s32 0, %v563
        %v869 = vsel %vm867, %v868, %v563
        %v870 = vmul.u32.u64.compose %v869, 2863311531
        %v871 = vextract.low.u32 %v870
        %v872 = vextract.high.u32 %v870
        %v873 = vshrl.u32 %v872, 4
        %v874 = vmul.u32 %v873, 24
        %v875 = vsub.s32 %v869, %v874
        %v876 = vsub.s32 0, %v875
        %v877 = vsel %vm867, %v876, %v875
        %vm878 = vcmp.lt.s32.totalorder %v564, 0
        %v879 = vsub.s32 0, %v564
        %v880 = vsel %vm878, %v879, %v564
        %v881 = vmul.u32.u64.compose %v880, 2863311531
        %v882 = vextract.low.u32 %v881
        %v883 = vextract.high.u32 %v881
        %v884 = vshrl.u32 %v883, 4
        %v885 = vmul.u32 %v884, 24
        %v886 = vsub.s32 %v880, %v885
        %v887 = vsub.s32 0, %v886
        %v888 = vsel %vm878, %v887, %v886
        %vm889 = vcmp.lt.s32.totalorder %v565, 0
        %v890 = vsub.s32 0, %v565
        %v891 = vsel %vm889, %v890, %v565
        %v892 = vmul.u32.u64.compose %v891, 2863311531
        %v893 = vextract.low.u32 %v892
        %v894 = vextract.high.u32 %v892
        %v895 = vshrl.u32 %v894, 4
        %v896 = vmul.u32 %v895, 24
        %v897 = vsub.s32 %v891, %v896
        %v898 = vsub.s32 0, %v897
        %v899 = vsel %vm889, %v898, %v897
        %vm900 = vcmp.lt.s32.totalorder %v566, 0
        %v901 = vsub.s32 0, %v566
        %v902 = vsel %vm900, %v901, %v566
        %v903 = vmul.u32.u64.compose %v902, 2863311531
        %v904 = vextract.low.u32 %v903
        %v905 = vextract.high.u32 %v903
        %v906 = vshrl.u32 %v905, 4
        %v907 = vmul.u32 %v906, 24
        %v908 = vsub.s32 %v902, %v907
        %v909 = vsub.s32 0, %v908
        %v910 = vsel %vm900, %v909, %v908
        %vm911 = vcmp.lt.s32.totalorder %v567, 0
        %v912 = vsub.s32 0, %v567
        %v913 = vsel %vm911, %v912, %v567
        %v914 = vmul.u32.u64.compose %v913, 2863311531
        %v915 = vextract.low.u32 %v914
        %v916 = vextract.high.u32 %v914
        %v917 = vshrl.u32 %v916, 4
        %v918 = vmul.u32 %v917, 24
        %v919 = vsub.s32 %v913, %v918
        %v920 = vsub.s32 0, %v919
        %v921 = vsel %vm911, %v920, %v919
        %vm922 = vcmp.lt.s32.totalorder %v568, 0
        %v923 = vsub.s32 0, %v568
        %v924 = vsel %vm922, %v923, %v568
        %v925 = vmul.u32.u64.compose %v924, 2863311531
        %v926 = vextract.low.u32 %v925
        %v927 = vextract.high.u32 %v925
        %v928 = vshrl.u32 %v927, 4
        %v929 = vmul.u32 %v928, 24
        %v930 = vsub.s32 %v924, %v929
        %v931 = vsub.s32 0, %v930
        %v932 = vsel %vm922, %v931, %v930
        %vm933 = vcmp.lt.s32.totalorder %v569, 0
        %v934 = vsub.s32 0, %v569
        %v935 = vsel %vm933, %v934, %v569
        %v936 = vmul.u32.u64.compose %v935, 2863311531
        %v937 = vextract.low.u32 %v936
        %v938 = vextract.high.u32 %v936
        %v939 = vshrl.u32 %v938, 4
        %v940 = vmul.u32 %v939, 24
        %v941 = vsub.s32 %v935, %v940
        %v942 = vsub.s32 0, %v941
        %v943 = vsel %vm933, %v942, %v941
        %vm944 = vcmp.lt.s32.totalorder %v570, 0
        %v945 = vsub.s32 0, %v570
        %v946 = vsel %vm944, %v945, %v570
        %v947 = vmul.u32.u64.compose %v946, 2863311531
        %v948 = vextract.low.u32 %v947
        %v949 = vextract.high.u32 %v947
        %v950 = vshrl.u32 %v949, 4
        %v951 = vmul.u32 %v950, 24
        %v952 = vsub.s32 %v946, %v951
        %v953 = vsub.s32 0, %v952
        %v954 = vsel %vm944, %v953, %v952
        %vm955 = vcmp.lt.s32.totalorder %v571, 0
        %v956 = vsub.s32 0, %v571
        %v957 = vsel %vm955, %v956, %v571
        %v958 = vmul.u32.u64.compose %v957, 2863311531
        %v959 = vextract.low.u32 %v958
        %v960 = vextract.high.u32 %v958
        %v961 = vshrl.u32 %v960, 4
        %v962 = vmul.u32 %v961, 24
        %v963 = vsub.s32 %v957, %v962
        %v964 = vsub.s32 0, %v963
        %v965 = vsel %vm955, %v964, %v963
        %vm966 = vcmp.lt.s32.totalorder %v572, 0
        %v967 = vsub.s32 0, %v572
        %v968 = vsel %vm966, %v967, %v572
        %v969 = vmul.u32.u64.compose %v968, 2863311531
        %v970 = vextract.low.u32 %v969
        %v971 = vextract.high.u32 %v969
        %v972 = vshrl.u32 %v971, 4
        %v973 = vmul.u32 %v972, 24
        %v974 = vsub.s32 %v968, %v973
        %v975 = vsub.s32 0, %v974
        %v976 = vsel %vm966, %v975, %v974
        %vm977 = vcmp.lt.s32.totalorder %v573, 0
        %v978 = vsub.s32 0, %v573
        %v979 = vsel %vm977, %v978, %v573
        %v980 = vmul.u32.u64.compose %v979, 2863311531
        %v981 = vextract.low.u32 %v980
        %v982 = vextract.high.u32 %v980
        %v983 = vshrl.u32 %v982, 4
        %v984 = vmul.u32 %v983, 24
        %v985 = vsub.s32 %v979, %v984
        %v986 = vsub.s32 0, %v985
        %v987 = vsel %vm977, %v986, %v985
        %vm988 = vcmp.lt.s32.totalorder %v574, 0
        %v989 = vsub.s32 0, %v574
        %v990 = vsel %vm988, %v989, %v574
        %v991 = vmul.u32.u64.compose %v990, 2863311531
        %v992 = vextract.low.u32 %v991
        %v993 = vextract.high.u32 %v991
        %v994 = vshrl.u32 %v993, 4
        %v995 = vmul.u32 %v994, 24
        %v996 = vsub.s32 %v990, %v995
        %v997 = vsub.s32 0, %v996
        %v998 = vsel %vm988, %v997, %v996
        %vm999 = vcmp.lt.s32.totalorder %v575, 0
        %v1000 = vsub.s32 0, %v575
        %v1001 = vsel %vm999, %v1000, %v575
        %v1002 = vmul.u32.u64.compose %v1001, 2863311531
        %v1003 = vextract.low.u32 %v1002
        %v1004 = vextract.high.u32 %v1002
        %v1005 = vshrl.u32 %v1004, 4
        %v1006 = vmul.u32 %v1005, 24
        %v1007 = vsub.s32 %v1001, %v1006
        %v1008 = vsub.s32 0, %v1007
        %v1009 = vsel %vm999, %v1008, %v1007
        %vm1010 = vcmp.lt.s32.totalorder %v576, 0
        %v1011 = vsub.s32 0, %v576
        %v1012 = vsel %vm1010, %v1011, %v576
        %v1013 = vmul.u32.u64.compose %v1012, 2863311531
        %v1014 = vextract.low.u32 %v1013
        %v1015 = vextract.high.u32 %v1013
        %v1016 = vshrl.u32 %v1015, 4
        %v1017 = vmul.u32 %v1016, 24
        %v1018 = vsub.s32 %v1012, %v1017
        %v1019 = vsub.s32 0, %v1018
        %v1020 = vsel %vm1010, %v1019, %v1018
        %vm1021 = vcmp.lt.s32.totalorder %v577, 0
        %v1022 = vsub.s32 0, %v577
        %v1023 = vsel %vm1021, %v1022, %v577
        %v1024 = vmul.u32.u64.compose %v1023, 2863311531
        %v1025 = vextract.low.u32 %v1024
        %v1026 = vextract.high.u32 %v1024
        %v1027 = vshrl.u32 %v1026, 4
        %v1028 = vmul.u32 %v1027, 24
        %v1029 = vsub.s32 %v1023, %v1028
        %v1030 = vsub.s32 0, %v1029
        %v1031 = vsel %vm1021, %v1030, %v1029
        %vm1032 = vcmp.lt.s32.totalorder %v578, 0
        %v1033 = vsub.s32 0, %v578
        %v1034 = vsel %vm1032, %v1033, %v578
        %v1035 = vmul.u32.u64.compose %v1034, 2863311531
        %v1036 = vextract.low.u32 %v1035
        %v1037 = vextract.high.u32 %v1035
        %v1038 = vshrl.u32 %v1037, 4
        %v1039 = vmul.u32 %v1038, 24
        %v1040 = vsub.s32 %v1034, %v1039
        %v1041 = vsub.s32 0, %v1040
        %v1042 = vsel %vm1032, %v1041, %v1040
        %vm1043 = vcmp.lt.s32.totalorder %v579, 0
        %v1044 = vsub.s32 0, %v579
        %v1045 = vsel %vm1043, %v1044, %v579
        %v1046 = vmul.u32.u64.compose %v1045, 2863311531
        %v1047 = vextract.low.u32 %v1046
        %v1048 = vextract.high.u32 %v1046
        %v1049 = vshrl.u32 %v1048, 4
        %v1050 = vmul.u32 %v1049, 24
        %v1051 = vsub.s32 %v1045, %v1050
        %v1052 = vsub.s32 0, %v1051
        %v1053 = vsel %vm1043, %v1052, %v1051
        %vm1054 = vcmp.lt.s32.totalorder %v580, 0
        %v1055 = vsub.s32 0, %v580
        %v1056 = vsel %vm1054, %v1055, %v580
        %v1057 = vmul.u32.u64.compose %v1056, 2863311531
        %v1058 = vextract.low.u32 %v1057
        %v1059 = vextract.high.u32 %v1057
        %v1060 = vshrl.u32 %v1059, 4
        %v1061 = vmul.u32 %v1060, 24
        %v1062 = vsub.s32 %v1056, %v1061
        %v1063 = vsub.s32 0, %v1062
        %v1064 = vsel %vm1054, %v1063, %v1062
        %vm1065 = vcmp.lt.s32.totalorder %v581, 0
        %v1066 = vsub.s32 0, %v581
        %v1067 = vsel %vm1065, %v1066, %v581
        %v1068 = vmul.u32.u64.compose %v1067, 2863311531
        %v1069 = vextract.low.u32 %v1068
        %v1070 = vextract.high.u32 %v1068
        %v1071 = vshrl.u32 %v1070, 4
        %v1072 = vmul.u32 %v1071, 24
        %v1073 = vsub.s32 %v1067, %v1072
        %v1074 = vsub.s32 0, %v1073
        %v1075 = vsel %vm1065, %v1074, %v1073
        %vm1076 = vcmp.lt.s32.totalorder %v582, 0
        %v1077 = vsub.s32 0, %v582
        %v1078 = vsel %vm1076, %v1077, %v582
        %v1079 = vmul.u32.u64.compose %v1078, 2863311531
        %v1080 = vextract.low.u32 %v1079
        %v1081 = vextract.high.u32 %v1079
        %v1082 = vshrl.u32 %v1081, 4
        %v1083 = vmul.u32 %v1082, 24
        %v1084 = vsub.s32 %v1078, %v1083
        %v1085 = vsub.s32 0, %v1084
        %v1086 = vsel %vm1076, %v1085, %v1084
        %vm1087 = vcmp.lt.s32.totalorder %v583, 0
        %v1088 = vsub.s32 0, %v583
        %v1089 = vsel %vm1087, %v1088, %v583
        %v1090 = vmul.u32.u64.compose %v1089, 2863311531
        %v1091 = vextract.low.u32 %v1090
        %v1092 = vextract.high.u32 %v1090
        %v1093 = vshrl.u32 %v1092, 4
        %v1094 = vmul.u32 %v1093, 24
        %v1095 = vsub.s32 %v1089, %v1094
        %v1096 = vsub.s32 0, %v1095
        %v1097 = vsel %vm1087, %v1096, %v1095
        %vm1098 = vcmp.lt.s32.totalorder %v584, 0
        %v1099 = vsub.s32 0, %v584
        %v1100 = vsel %vm1098, %v1099, %v584
        %v1101 = vmul.u32.u64.compose %v1100, 2863311531
        %v1102 = vextract.low.u32 %v1101
        %v1103 = vextract.high.u32 %v1101
        %v1104 = vshrl.u32 %v1103, 4
        %v1105 = vmul.u32 %v1104, 24
        %v1106 = vsub.s32 %v1100, %v1105
        %v1107 = vsub.s32 0, %v1106
        %v1108 = vsel %vm1098, %v1107, %v1106
        %vm1109 = vcmp.lt.s32.totalorder %v585, 0
        %v1110 = vsub.s32 0, %v585
        %v1111 = vsel %vm1109, %v1110, %v585
        %v1112 = vmul.u32.u64.compose %v1111, 2863311531
        %v1113 = vextract.low.u32 %v1112
        %v1114 = vextract.high.u32 %v1112
        %v1115 = vshrl.u32 %v1114, 4
        %v1116 = vmul.u32 %v1115, 24
        %v1117 = vsub.s32 %v1111, %v1116
        %v1118 = vsub.s32 0, %v1117
        %v1119 = vsel %vm1109, %v1118, %v1117
        %vm1120 = vcmp.lt.s32.totalorder %v586, 0
        %v1121 = vsub.s32 0, %v586
        %v1122 = vsel %vm1120, %v1121, %v586
        %v1123 = vmul.u32.u64.compose %v1122, 2863311531
        %v1124 = vextract.low.u32 %v1123
        %v1125 = vextract.high.u32 %v1123
        %v1126 = vshrl.u32 %v1125, 4
        %v1127 = vmul.u32 %v1126, 24
        %v1128 = vsub.s32 %v1122, %v1127
        %v1129 = vsub.s32 0, %v1128
        %v1130 = vsel %vm1120, %v1129, %v1128
        %vm1131 = vcmp.lt.s32.totalorder %v587, 0
        %v1132 = vsub.s32 0, %v587
        %v1133 = vsel %vm1131, %v1132, %v587
        %v1134 = vmul.u32.u64.compose %v1133, 2863311531
        %v1135 = vextract.low.u32 %v1134
        %v1136 = vextract.high.u32 %v1134
        %v1137 = vshrl.u32 %v1136, 4
        %v1138 = vmul.u32 %v1137, 24
        %v1139 = vsub.s32 %v1133, %v1138
        %v1140 = vsub.s32 0, %v1139
        %v1141 = vsel %vm1131, %v1140, %v1139
        %vm1142 = vcmp.lt.s32.totalorder %v588, 0
        %v1143 = vsub.s32 0, %v588
        %v1144 = vsel %vm1142, %v1143, %v588
        %v1145 = vmul.u32.u64.compose %v1144, 2863311531
        %v1146 = vextract.low.u32 %v1145
        %v1147 = vextract.high.u32 %v1145
        %v1148 = vshrl.u32 %v1147, 4
        %v1149 = vmul.u32 %v1148, 24
        %v1150 = vsub.s32 %v1144, %v1149
        %v1151 = vsub.s32 0, %v1150
        %v1152 = vsel %vm1142, %v1151, %v1150
        %vm1153 = vcmp.lt.s32.totalorder %v589, 0
        %v1154 = vsub.s32 0, %v589
        %v1155 = vsel %vm1153, %v1154, %v589
        %v1156 = vmul.u32.u64.compose %v1155, 2863311531
        %v1157 = vextract.low.u32 %v1156
        %v1158 = vextract.high.u32 %v1156
        %v1159 = vshrl.u32 %v1158, 4
        %v1160 = vmul.u32 %v1159, 24
        %v1161 = vsub.s32 %v1155, %v1160
        %v1162 = vsub.s32 0, %v1161
        %v1163 = vsel %vm1153, %v1162, %v1161
        %vm1164 = vcmp.lt.s32.totalorder %v590, 0
        %v1165 = vsub.s32 0, %v590
        %v1166 = vsel %vm1164, %v1165, %v590
        %v1167 = vmul.u32.u64.compose %v1166, 2863311531
        %v1168 = vextract.low.u32 %v1167
        %v1169 = vextract.high.u32 %v1167
        %v1170 = vshrl.u32 %v1169, 4
        %v1171 = vmul.u32 %v1170, 24
        %v1172 = vsub.s32 %v1166, %v1171
        %v1173 = vsub.s32 0, %v1172
        %v1174 = vsel %vm1164, %v1173, %v1172
        %vm1175 = vcmp.lt.s32.totalorder %v591, 0
        %v1176 = vsub.s32 0, %v591
        %v1177 = vsel %vm1175, %v1176, %v591
        %v1178 = vmul.u32.u64.compose %v1177, 2863311531
        %v1179 = vextract.low.u32 %v1178
        %v1180 = vextract.high.u32 %v1178
        %v1181 = vshrl.u32 %v1180, 4
        %v1182 = vmul.u32 %v1181, 24
        %v1183 = vsub.s32 %v1177, %v1182
        %v1184 = vsub.s32 0, %v1183
        %v1185 = vsel %vm1175, %v1184, %v1183
        %vm1186 = vcmp.ne.s32.totalorder %v602, 0
        %vm1187 = vcmp.ne.s32.totalorder %v613, 0
        %vm1188 = vcmp.ne.s32.totalorder %v624, 0
        %vm1189 = vcmp.ne.s32.totalorder %v635, 0
        %vm1190 = vcmp.ne.s32.totalorder %v646, 0
        %vm1191 = vcmp.ne.s32.totalorder %v657, 0
        %vm1192 = vcmp.ne.s32.totalorder %v668, 0
        %vm1193 = vcmp.ne.s32.totalorder %v679, 0
        %vm1194 = vcmp.ne.s32.totalorder %v690, 0
        %vm1195 = vcmp.ne.s32.totalorder %v701, 0
        %vm1196 = vcmp.ne.s32.totalorder %v712, 0
        %vm1197 = vcmp.ne.s32.totalorder %v723, 0
        %vm1198 = vcmp.ne.s32.totalorder %v734, 0
        %vm1199 = vcmp.ne.s32.totalorder %v745, 0
        %vm1200 = vcmp.ne.s32.totalorder %v756, 0
        %vm1201 = vcmp.ne.s32.totalorder %v767, 0
        %vm1202 = vcmp.ne.s32.totalorder %v778, 0
        %vm1203 = vcmp.ne.s32.totalorder %v789, 0
        %vm1204 = vcmp.ne.s32.totalorder %v800, 0
        %vm1205 = vcmp.ne.s32.totalorder %v811, 0
        %vm1206 = vcmp.ne.s32.totalorder %v822, 0
        %vm1207 = vcmp.ne.s32.totalorder %v833, 0
        %vm1208 = vcmp.ne.s32.totalorder %v844, 0
        %vm1209 = vcmp.ne.s32.totalorder %v855, 0
        %vm1210 = vcmp.ne.s32.totalorder %v866, 0
        %vm1211 = vcmp.ne.s32.totalorder %v877, 0
        %vm1212 = vcmp.ne.s32.totalorder %v888, 0
        %vm1213 = vcmp.ne.s32.totalorder %v899, 0
        %vm1214 = vcmp.ne.s32.totalorder %v910, 0
        %vm1215 = vcmp.ne.s32.totalorder %v921, 0
        %vm1216 = vcmp.ne.s32.totalorder %v932, 0
        %vm1217 = vcmp.ne.s32.totalorder %v943, 0
        %vm1218 = vcmp.ne.s32.totalorder %v954, 0
        %vm1219 = vcmp.ne.s32.totalorder %v965, 0
        %vm1220 = vcmp.ne.s32.totalorder %v976, 0
        %vm1221 = vcmp.ne.s32.totalorder %v987, 0
        %vm1222 = vcmp.ne.s32.totalorder %v998, 0
        %vm1223 = vcmp.ne.s32.totalorder %v1009, 0
        %vm1224 = vcmp.ne.s32.totalorder %v1020, 0
        %vm1225 = vcmp.ne.s32.totalorder %v1031, 0
        %vm1226 = vcmp.ne.s32.totalorder %v1042, 0
        %vm1227 = vcmp.ne.s32.totalorder %v1053, 0
        %vm1228 = vcmp.ne.s32.totalorder %v1064, 0
        %vm1229 = vcmp.ne.s32.totalorder %v1075, 0
        %vm1230 = vcmp.ne.s32.totalorder %v1086, 0
        %vm1231 = vcmp.ne.s32.totalorder %v1097, 0
        %vm1232 = vcmp.ne.s32.totalorder %v1108, 0
        %vm1233 = vcmp.ne.s32.totalorder %v1119, 0
        %vm1234 = vcmp.ne.s32.totalorder %v1130, 0
        %vm1235 = vcmp.ne.s32.totalorder %v1141, 0
        %vm1236 = vcmp.ne.s32.totalorder %v1152, 0
        %vm1237 = vcmp.ne.s32.totalorder %v1163, 0
        %vm1238 = vcmp.ne.s32.totalorder %v1174, 0
        %vm1239 = vcmp.ne.s32.totalorder %v1185, 0
        %vm1240 = vcmp.lt.s32.totalorder %v602, 0
        %vm1241 = vcmp.lt.s32.totalorder %v613, 0
        %vm1242 = vcmp.lt.s32.totalorder %v624, 0
        %vm1243 = vcmp.lt.s32.totalorder %v635, 0
        %vm1244 = vcmp.lt.s32.totalorder %v646, 0
        %vm1245 = vcmp.lt.s32.totalorder %v657, 0
        %vm1246 = vcmp.lt.s32.totalorder %v668, 0
        %vm1247 = vcmp.lt.s32.totalorder %v679, 0
        %vm1248 = vcmp.lt.s32.totalorder %v690, 0
        %vm1249 = vcmp.lt.s32.totalorder %v701, 0
        %vm1250 = vcmp.lt.s32.totalorder %v712, 0
        %vm1251 = vcmp.lt.s32.totalorder %v723, 0
        %vm1252 = vcmp.lt.s32.totalorder %v734, 0
        %vm1253 = vcmp.lt.s32.totalorder %v745, 0
        %vm1254 = vcmp.lt.s32.totalorder %v756, 0
        %vm1255 = vcmp.lt.s32.totalorder %v767, 0
        %vm1256 = vcmp.lt.s32.totalorder %v778, 0
        %vm1257 = vcmp.lt.s32.totalorder %v789, 0
        %vm1258 = vcmp.lt.s32.totalorder %v800, 0
        %vm1259 = vcmp.lt.s32.totalorder %v811, 0
        %vm1260 = vcmp.lt.s32.totalorder %v822, 0
        %vm1261 = vcmp.lt.s32.totalorder %v833, 0
        %vm1262 = vcmp.lt.s32.totalorder %v844, 0
        %vm1263 = vcmp.lt.s32.totalorder %v855, 0
        %vm1264 = vcmp.lt.s32.totalorder %v866, 0
        %vm1265 = vcmp.lt.s32.totalorder %v877, 0
        %vm1266 = vcmp.lt.s32.totalorder %v888, 0
        %vm1267 = vcmp.lt.s32.totalorder %v899, 0
        %vm1268 = vcmp.lt.s32.totalorder %v910, 0
        %vm1269 = vcmp.lt.s32.totalorder %v921, 0
        %vm1270 = vcmp.lt.s32.totalorder %v932, 0
        %vm1271 = vcmp.lt.s32.totalorder %v943, 0
        %vm1272 = vcmp.lt.s32.totalorder %v954, 0
        %vm1273 = vcmp.lt.s32.totalorder %v965, 0
        %vm1274 = vcmp.lt.s32.totalorder %v976, 0
        %vm1275 = vcmp.lt.s32.totalorder %v987, 0
        %vm1276 = vcmp.lt.s32.totalorder %v998, 0
        %vm1277 = vcmp.lt.s32.totalorder %v1009, 0
        %vm1278 = vcmp.lt.s32.totalorder %v1020, 0
        %vm1279 = vcmp.lt.s32.totalorder %v1031, 0
        %vm1280 = vcmp.lt.s32.totalorder %v1042, 0
        %vm1281 = vcmp.lt.s32.totalorder %v1053, 0
        %vm1282 = vcmp.lt.s32.totalorder %v1064, 0
        %vm1283 = vcmp.lt.s32.totalorder %v1075, 0
        %vm1284 = vcmp.lt.s32.totalorder %v1086, 0
        %vm1285 = vcmp.lt.s32.totalorder %v1097, 0
        %vm1286 = vcmp.lt.s32.totalorder %v1108, 0
        %vm1287 = vcmp.lt.s32.totalorder %v1119, 0
        %vm1288 = vcmp.lt.s32.totalorder %v1130, 0
        %vm1289 = vcmp.lt.s32.totalorder %v1141, 0
        %vm1290 = vcmp.lt.s32.totalorder %v1152, 0
        %vm1291 = vcmp.lt.s32.totalorder %v1163, 0
        %vm1292 = vcmp.lt.s32.totalorder %v1174, 0
        %vm1293 = vcmp.lt.s32.totalorder %v1185, 0
        %vm1294 = vmand %vm1240, %vm1186
        %vm1295 = vmand %vm1241, %vm1187
        %vm1296 = vmand %vm1242, %vm1188
        %vm1297 = vmand %vm1243, %vm1189
        %vm1298 = vmand %vm1244, %vm1190
        %vm1299 = vmand %vm1245, %vm1191
        %vm1300 = vmand %vm1246, %vm1192
        %vm1301 = vmand %vm1247, %vm1193
        %vm1302 = vmand %vm1248, %vm1194
        %vm1303 = vmand %vm1249, %vm1195
        %vm1304 = vmand %vm1250, %vm1196
        %vm1305 = vmand %vm1251, %vm1197
        %vm1306 = vmand %vm1252, %vm1198
        %vm1307 = vmand %vm1253, %vm1199
        %vm1308 = vmand %vm1254, %vm1200
        %vm1309 = vmand %vm1255, %vm1201
        %vm1310 = vmand %vm1256, %vm1202
        %vm1311 = vmand %vm1257, %vm1203
        %vm1312 = vmand %vm1258, %vm1204
        %vm1313 = vmand %vm1259, %vm1205
        %vm1314 = vmand %vm1260, %vm1206
        %vm1315 = vmand %vm1261, %vm1207
        %vm1316 = vmand %vm1262, %vm1208
        %vm1317 = vmand %vm1263, %vm1209
        %vm1318 = vmand %vm1264, %vm1210
        %vm1319 = vmand %vm1265, %vm1211
        %vm1320 = vmand %vm1266, %vm1212
        %vm1321 = vmand %vm1267, %vm1213
        %vm1322 = vmand %vm1268, %vm1214
        %vm1323 = vmand %vm1269, %vm1215
        %vm1324 = vmand %vm1270, %vm1216
        %vm1325 = vmand %vm1271, %vm1217
        %vm1326 = vmand %vm1272, %vm1218
        %vm1327 = vmand %vm1273, %vm1219
        %vm1328 = vmand %vm1274, %vm1220
        %vm1329 = vmand %vm1275, %vm1221
        %vm1330 = vmand %vm1276, %vm1222
        %vm1331 = vmand %vm1277, %vm1223
        %vm1332 = vmand %vm1278, %vm1224
        %vm1333 = vmand %vm1279, %vm1225
        %vm1334 = vmand %vm1280, %vm1226
        %vm1335 = vmand %vm1281, %vm1227
        %vm1336 = vmand %vm1282, %vm1228
        %vm1337 = vmand %vm1283, %vm1229
        %vm1338 = vmand %vm1284, %vm1230
        %vm1339 = vmand %vm1285, %vm1231
        %vm1340 = vmand %vm1286, %vm1232
        %vm1341 = vmand %vm1287, %vm1233
        %vm1342 = vmand %vm1288, %vm1234
        %vm1343 = vmand %vm1289, %vm1235
        %vm1344 = vmand %vm1290, %vm1236
        %vm1345 = vmand %vm1291, %vm1237
        %vm1346 = vmand %vm1292, %vm1238
        %vm1347 = vmand %vm1293, %vm1239
        %v1348 = vadd.s32 %v602, 24
        %v1349 = vadd.s32 %v613, 24
        %v1350 = vadd.s32 %v624, 24
        %v1351 = vadd.s32 %v635, 24
        %v1352 = vadd.s32 %v646, 24
        %v1353 = vadd.s32 %v657, 24
        %v1354 = vadd.s32 %v668, 24
        %v1355 = vadd.s32 %v679, 24
        %v1356 = vadd.s32 %v690, 24
        %v1357 = vadd.s32 %v701, 24
        %v1358 = vadd.s32 %v712, 24
        %v1359 = vadd.s32 %v723, 24
        %v1360 = vadd.s32 %v734, 24
        %v1361 = vadd.s32 %v745, 24
        %v1362 = vadd.s32 %v756, 24
        %v1363 = vadd.s32 %v767, 24
        %v1364 = vadd.s32 %v778, 24
        %v1365 = vadd.s32 %v789, 24
        %v1366 = vadd.s32 %v800, 24
        %v1367 = vadd.s32 %v811, 24
        %v1368 = vadd.s32 %v822, 24
        %v1369 = vadd.s32 %v833, 24
        %v1370 = vadd.s32 %v844, 24
        %v1371 = vadd.s32 %v855, 24
        %v1372 = vadd.s32 %v866, 24
        %v1373 = vadd.s32 %v877, 24
        %v1374 = vadd.s32 %v888, 24
        %v1375 = vadd.s32 %v899, 24
        %v1376 = vadd.s32 %v910, 24
        %v1377 = vadd.s32 %v921, 24
        %v1378 = vadd.s32 %v932, 24
        %v1379 = vadd.s32 %v943, 24
        %v1380 = vadd.s32 %v954, 24
        %v1381 = vadd.s32 %v965, 24
        %v1382 = vadd.s32 %v976, 24
        %v1383 = vadd.s32 %v987, 24
        %v1384 = vadd.s32 %v998, 24
        %v1385 = vadd.s32 %v1009, 24
        %v1386 = vadd.s32 %v1020, 24
        %v1387 = vadd.s32 %v1031, 24
        %v1388 = vadd.s32 %v1042, 24
        %v1389 = vadd.s32 %v1053, 24
        %v1390 = vadd.s32 %v1064, 24
        %v1391 = vadd.s32 %v1075, 24
        %v1392 = vadd.s32 %v1086, 24
        %v1393 = vadd.s32 %v1097, 24
        %v1394 = vadd.s32 %v1108, 24
        %v1395 = vadd.s32 %v1119, 24
        %v1396 = vadd.s32 %v1130, 24
        %v1397 = vadd.s32 %v1141, 24
        %v1398 = vadd.s32 %v1152, 24
        %v1399 = vadd.s32 %v1163, 24
        %v1400 = vadd.s32 %v1174, 24
        %v1401 = vadd.s32 %v1185, 24
        %v1402 = vsel %vm1294, %v1348, %v602
        %v1403 = vsel %vm1295, %v1349, %v613
        %v1404 = vsel %vm1296, %v1350, %v624
        %v1405 = vsel %vm1297, %v1351, %v635
        %v1406 = vsel %vm1298, %v1352, %v646
        %v1407 = vsel %vm1299, %v1353, %v657
        %v1408 = vsel %vm1300, %v1354, %v668
        %v1409 = vsel %vm1301, %v1355, %v679
        %v1410 = vsel %vm1302, %v1356, %v690
        %v1411 = vsel %vm1303, %v1357, %v701
        %v1412 = vsel %vm1304, %v1358, %v712
        %v1413 = vsel %vm1305, %v1359, %v723
        %v1414 = vsel %vm1306, %v1360, %v734
        %v1415 = vsel %vm1307, %v1361, %v745
        %v1416 = vsel %vm1308, %v1362, %v756
        %v1417 = vsel %vm1309, %v1363, %v767
        %v1418 = vsel %vm1310, %v1364, %v778
        %v1419 = vsel %vm1311, %v1365, %v789
        %v1420 = vsel %vm1312, %v1366, %v800
        %v1421 = vsel %vm1313, %v1367, %v811
        %v1422 = vsel %vm1314, %v1368, %v822
        %v1423 = vsel %vm1315, %v1369, %v833
        %v1424 = vsel %vm1316, %v1370, %v844
        %v1425 = vsel %vm1317, %v1371, %v855
        %v1426 = vsel %vm1318, %v1372, %v866
        %v1427 = vsel %vm1319, %v1373, %v877
        %v1428 = vsel %vm1320, %v1374, %v888
        %v1429 = vsel %vm1321, %v1375, %v899
        %v1430 = vsel %vm1322, %v1376, %v910
        %v1431 = vsel %vm1323, %v1377, %v921
        %v1432 = vsel %vm1324, %v1378, %v932
        %v1433 = vsel %vm1325, %v1379, %v943
        %v1434 = vsel %vm1326, %v1380, %v954
        %v1435 = vsel %vm1327, %v1381, %v965
        %v1436 = vsel %vm1328, %v1382, %v976
        %v1437 = vsel %vm1329, %v1383, %v987
        %v1438 = vsel %vm1330, %v1384, %v998
        %v1439 = vsel %vm1331, %v1385, %v1009
        %v1440 = vsel %vm1332, %v1386, %v1020
        %v1441 = vsel %vm1333, %v1387, %v1031
        %v1442 = vsel %vm1334, %v1388, %v1042
        %v1443 = vsel %vm1335, %v1389, %v1053
        %v1444 = vsel %vm1336, %v1390, %v1064
        %v1445 = vsel %vm1337, %v1391, %v1075
        %v1446 = vsel %vm1338, %v1392, %v1086
        %v1447 = vsel %vm1339, %v1393, %v1097
        %v1448 = vsel %vm1340, %v1394, %v1108
        %v1449 = vsel %vm1341, %v1395, %v1119
        %v1450 = vsel %vm1342, %v1396, %v1130
        %v1451 = vsel %vm1343, %v1397, %v1141
        %v1452 = vsel %vm1344, %v1398, %v1152
        %v1453 = vsel %vm1345, %v1399, %v1163
        %v1454 = vsel %vm1346, %v1400, %v1174
        %v1455 = vsel %vm1347, %v1401, %v1185
        %vm1456 = vcmp.ge.s32.totalorder %v1402, 1
        %vm1457 = vcmp.ge.s32.totalorder %v1403, 1
        %vm1458 = vcmp.ge.s32.totalorder %v1404, 1
        %vm1459 = vcmp.ge.s32.totalorder %v1405, 1
        %vm1460 = vcmp.ge.s32.totalorder %v1406, 1
        %vm1461 = vcmp.ge.s32.totalorder %v1407, 1
        %vm1462 = vcmp.ge.s32.totalorder %v1408, 1
        %vm1463 = vcmp.ge.s32.totalorder %v1409, 1
        %vm1464 = vcmp.ge.s32.totalorder %v1410, 1
        %vm1465 = vcmp.ge.s32.totalorder %v1411, 1
        %vm1466 = vcmp.ge.s32.totalorder %v1412, 1
        %vm1467 = vcmp.ge.s32.totalorder %v1413, 1
        %vm1468 = vcmp.ge.s32.totalorder %v1414, 1
        %vm1469 = vcmp.ge.s32.totalorder %v1415, 1
        %vm1470 = vcmp.ge.s32.totalorder %v1416, 1
        %vm1471 = vcmp.ge.s32.totalorder %v1417, 1
        %vm1472 = vcmp.ge.s32.totalorder %v1418, 1
        %vm1473 = vcmp.ge.s32.totalorder %v1419, 1
        %vm1474 = vcmp.ge.s32.totalorder %v1420, 1
        %vm1475 = vcmp.ge.s32.totalorder %v1421, 1
        %vm1476 = vcmp.ge.s32.totalorder %v1422, 1
        %vm1477 = vcmp.ge.s32.totalorder %v1423, 1
        %vm1478 = vcmp.ge.s32.totalorder %v1424, 1
        %vm1479 = vcmp.ge.s32.totalorder %v1425, 1
        %vm1480 = vcmp.ge.s32.totalorder %v1426, 1
        %vm1481 = vcmp.ge.s32.totalorder %v1427, 1
        %vm1482 = vcmp.ge.s32.totalorder %v1428, 1
        %vm1483 = vcmp.ge.s32.totalorder %v1429, 1
        %vm1484 = vcmp.ge.s32.totalorder %v1430, 1
        %vm1485 = vcmp.ge.s32.totalorder %v1431, 1
        %vm1486 = vcmp.ge.s32.totalorder %v1432, 1
        %vm1487 = vcmp.ge.s32.totalorder %v1433, 1
        %vm1488 = vcmp.ge.s32.totalorder %v1434, 1
        %vm1489 = vcmp.ge.s32.totalorder %v1435, 1
        %vm1490 = vcmp.ge.s32.totalorder %v1436, 1
        %vm1491 = vcmp.ge.s32.totalorder %v1437, 1
        %vm1492 = vcmp.ge.s32.totalorder %v1438, 1
        %vm1493 = vcmp.ge.s32.totalorder %v1439, 1
        %vm1494 = vcmp.ge.s32.totalorder %v1440, 1
        %vm1495 = vcmp.ge.s32.totalorder %v1441, 1
        %vm1496 = vcmp.ge.s32.totalorder %v1442, 1
        %vm1497 = vcmp.ge.s32.totalorder %v1443, 1
        %vm1498 = vcmp.ge.s32.totalorder %v1444, 1
        %vm1499 = vcmp.ge.s32.totalorder %v1445, 1
        %vm1500 = vcmp.ge.s32.totalorder %v1446, 1
        %vm1501 = vcmp.ge.s32.totalorder %v1447, 1
        %vm1502 = vcmp.ge.s32.totalorder %v1448, 1
        %vm1503 = vcmp.ge.s32.totalorder %v1449, 1
        %vm1504 = vcmp.ge.s32.totalorder %v1450, 1
        %vm1505 = vcmp.ge.s32.totalorder %v1451, 1
        %vm1506 = vcmp.ge.s32.totalorder %v1452, 1
        %vm1507 = vcmp.ge.s32.totalorder %v1453, 1
        %vm1508 = vcmp.ge.s32.totalorder %v1454, 1
        %vm1509 = vcmp.ge.s32.totalorder %v1455, 1
        %vm1510 = vcmp.le.s32.totalorder %v1402, 16
        %vm1511 = vcmp.le.s32.totalorder %v1403, 16
        %vm1512 = vcmp.le.s32.totalorder %v1404, 16
        %vm1513 = vcmp.le.s32.totalorder %v1405, 16
        %vm1514 = vcmp.le.s32.totalorder %v1406, 16
        %vm1515 = vcmp.le.s32.totalorder %v1407, 16
        %vm1516 = vcmp.le.s32.totalorder %v1408, 16
        %vm1517 = vcmp.le.s32.totalorder %v1409, 16
        %vm1518 = vcmp.le.s32.totalorder %v1410, 16
        %vm1519 = vcmp.le.s32.totalorder %v1411, 16
        %vm1520 = vcmp.le.s32.totalorder %v1412, 16
        %vm1521 = vcmp.le.s32.totalorder %v1413, 16
        %vm1522 = vcmp.le.s32.totalorder %v1414, 16
        %vm1523 = vcmp.le.s32.totalorder %v1415, 16
        %vm1524 = vcmp.le.s32.totalorder %v1416, 16
        %vm1525 = vcmp.le.s32.totalorder %v1417, 16
        %vm1526 = vcmp.le.s32.totalorder %v1418, 16
        %vm1527 = vcmp.le.s32.totalorder %v1419, 16
        %vm1528 = vcmp.le.s32.totalorder %v1420, 16
        %vm1529 = vcmp.le.s32.totalorder %v1421, 16
        %vm1530 = vcmp.le.s32.totalorder %v1422, 16
        %vm1531 = vcmp.le.s32.totalorder %v1423, 16
        %vm1532 = vcmp.le.s32.totalorder %v1424, 16
        %vm1533 = vcmp.le.s32.totalorder %v1425, 16
        %vm1534 = vcmp.le.s32.totalorder %v1426, 16
        %vm1535 = vcmp.le.s32.totalorder %v1427, 16
        %vm1536 = vcmp.le.s32.totalorder %v1428, 16
        %vm1537 = vcmp.le.s32.totalorder %v1429, 16
        %vm1538 = vcmp.le.s32.totalorder %v1430, 16
        %vm1539 = vcmp.le.s32.totalorder %v1431, 16
        %vm1540 = vcmp.le.s32.totalorder %v1432, 16
        %vm1541 = vcmp.le.s32.totalorder %v1433, 16
        %vm1542 = vcmp.le.s32.totalorder %v1434, 16
        %vm1543 = vcmp.le.s32.totalorder %v1435, 16
        %vm1544 = vcmp.le.s32.totalorder %v1436, 16
        %vm1545 = vcmp.le.s32.totalorder %v1437, 16
        %vm1546 = vcmp.le.s32.totalorder %v1438, 16
        %vm1547 = vcmp.le.s32.totalorder %v1439, 16
        %vm1548 = vcmp.le.s32.totalorder %v1440, 16
        %vm1549 = vcmp.le.s32.totalorder %v1441, 16
        %vm1550 = vcmp.le.s32.totalorder %v1442, 16
        %vm1551 = vcmp.le.s32.totalorder %v1443, 16
        %vm1552 = vcmp.le.s32.totalorder %v1444, 16
        %vm1553 = vcmp.le.s32.totalorder %v1445, 16
        %vm1554 = vcmp.le.s32.totalorder %v1446, 16
        %vm1555 = vcmp.le.s32.totalorder %v1447, 16
        %vm1556 = vcmp.le.s32.totalorder %v1448, 16
        %vm1557 = vcmp.le.s32.totalorder %v1449, 16
        %vm1558 = vcmp.le.s32.totalorder %v1450, 16
        %vm1559 = vcmp.le.s32.totalorder %v1451, 16
        %vm1560 = vcmp.le.s32.totalorder %v1452, 16
        %vm1561 = vcmp.le.s32.totalorder %v1453, 16
        %vm1562 = vcmp.le.s32.totalorder %v1454, 16
        %vm1563 = vcmp.le.s32.totalorder %v1455, 16
        %vm1564 = vmand %vm1456, %vm1510
        %vm1565 = vmand %vm1457, %vm1511
        %vm1566 = vmand %vm1458, %vm1512
        %vm1567 = vmand %vm1459, %vm1513
        %vm1568 = vmand %vm1460, %vm1514
        %vm1569 = vmand %vm1461, %vm1515
        %vm1570 = vmand %vm1462, %vm1516
        %vm1571 = vmand %vm1463, %vm1517
        %vm1572 = vmand %vm1464, %vm1518
        %vm1573 = vmand %vm1465, %vm1519
        %vm1574 = vmand %vm1466, %vm1520
        %vm1575 = vmand %vm1467, %vm1521
        %vm1576 = vmand %vm1468, %vm1522
        %vm1577 = vmand %vm1469, %vm1523
        %vm1578 = vmand %vm1470, %vm1524
        %vm1579 = vmand %vm1471, %vm1525
        %vm1580 = vmand %vm1472, %vm1526
        %vm1581 = vmand %vm1473, %vm1527
        %vm1582 = vmand %vm1474, %vm1528
        %vm1583 = vmand %vm1475, %vm1529
        %vm1584 = vmand %vm1476, %vm1530
        %vm1585 = vmand %vm1477, %vm1531
        %vm1586 = vmand %vm1478, %vm1532
        %vm1587 = vmand %vm1479, %vm1533
        %vm1588 = vmand %vm1480, %vm1534
        %vm1589 = vmand %vm1481, %vm1535
        %vm1590 = vmand %vm1482, %vm1536
        %vm1591 = vmand %vm1483, %vm1537
        %vm1592 = vmand %vm1484, %vm1538
        %vm1593 = vmand %vm1485, %vm1539
        %vm1594 = vmand %vm1486, %vm1540
        %vm1595 = vmand %vm1487, %vm1541
        %vm1596 = vmand %vm1488, %vm1542
        %vm1597 = vmand %vm1489, %vm1543
        %vm1598 = vmand %vm1490, %vm1544
        %vm1599 = vmand %vm1491, %vm1545
        %vm1600 = vmand %vm1492, %vm1546
        %vm1601 = vmand %vm1493, %vm1547
        %vm1602 = vmand %vm1494, %vm1548
        %vm1603 = vmand %vm1495, %vm1549
        %vm1604 = vmand %vm1496, %vm1550
        %vm1605 = vmand %vm1497, %vm1551
        %vm1606 = vmand %vm1498, %vm1552
        %vm1607 = vmand %vm1499, %vm1553
        %vm1608 = vmand %vm1500, %vm1554
        %vm1609 = vmand %vm1501, %vm1555
        %vm1610 = vmand %vm1502, %vm1556
        %vm1611 = vmand %vm1503, %vm1557
        %vm1612 = vmand %vm1504, %vm1558
        %vm1613 = vmand %vm1505, %vm1559
        %vm1614 = vmand %vm1506, %vm1560
        %vm1615 = vmand %vm1507, %vm1561
        %vm1616 = vmand %vm1508, %vm1562
        %vm1617 = vmand %vm1509, %vm1563
        %vm1618 = vcmp.ge.s32.totalorder %v538, 24
        %vm1619 = vcmp.ge.s32.totalorder %v539, 24
        %vm1620 = vcmp.ge.s32.totalorder %v540, 24
        %vm1621 = vcmp.ge.s32.totalorder %v541, 24
        %vm1622 = vcmp.ge.s32.totalorder %v542, 24
        %vm1623 = vcmp.ge.s32.totalorder %v543, 24
        %vm1624 = vcmp.ge.s32.totalorder %v544, 24
        %vm1625 = vcmp.ge.s32.totalorder %v545, 24
        %vm1626 = vcmp.ge.s32.totalorder %v546, 24
        %vm1627 = vcmp.ge.s32.totalorder %v547, 24
        %vm1628 = vcmp.ge.s32.totalorder %v548, 24
        %vm1629 = vcmp.ge.s32.totalorder %v549, 24
        %vm1630 = vcmp.ge.s32.totalorder %v550, 24
        %vm1631 = vcmp.ge.s32.totalorder %v551, 24
        %vm1632 = vcmp.ge.s32.totalorder %v552, 24
        %vm1633 = vcmp.ge.s32.totalorder %v553, 24
        %vm1634 = vcmp.ge.s32.totalorder %v554, 24
        %vm1635 = vcmp.ge.s32.totalorder %v555, 24
        %vm1636 = vcmp.ge.s32.totalorder %v556, 24
        %vm1637 = vcmp.ge.s32.totalorder %v557, 24
        %vm1638 = vcmp.ge.s32.totalorder %v558, 24
        %vm1639 = vcmp.ge.s32.totalorder %v559, 24
        %vm1640 = vcmp.ge.s32.totalorder %v560, 24
        %vm1641 = vcmp.ge.s32.totalorder %v561, 24
        %vm1642 = vcmp.ge.s32.totalorder %v562, 24
        %vm1643 = vcmp.ge.s32.totalorder %v563, 24
        %vm1644 = vcmp.ge.s32.totalorder %v564, 24
        %vm1645 = vcmp.ge.s32.totalorder %v565, 24
        %vm1646 = vcmp.ge.s32.totalorder %v566, 24
        %vm1647 = vcmp.ge.s32.totalorder %v567, 24
        %vm1648 = vcmp.ge.s32.totalorder %v568, 24
        %vm1649 = vcmp.ge.s32.totalorder %v569, 24
        %vm1650 = vcmp.ge.s32.totalorder %v570, 24
        %vm1651 = vcmp.ge.s32.totalorder %v571, 24
        %vm1652 = vcmp.ge.s32.totalorder %v572, 24
        %vm1653 = vcmp.ge.s32.totalorder %v573, 24
        %vm1654 = vcmp.ge.s32.totalorder %v574, 24
        %vm1655 = vcmp.ge.s32.totalorder %v575, 24
        %vm1656 = vcmp.ge.s32.totalorder %v576, 24
        %vm1657 = vcmp.ge.s32.totalorder %v577, 24
        %vm1658 = vcmp.ge.s32.totalorder %v578, 24
        %vm1659 = vcmp.ge.s32.totalorder %v579, 24
        %vm1660 = vcmp.ge.s32.totalorder %v580, 24
        %vm1661 = vcmp.ge.s32.totalorder %v581, 24
        %vm1662 = vcmp.ge.s32.totalorder %v582, 24
        %vm1663 = vcmp.ge.s32.totalorder %v583, 24
        %vm1664 = vcmp.ge.s32.totalorder %v584, 24
        %vm1665 = vcmp.ge.s32.totalorder %v585, 24
        %vm1666 = vcmp.ge.s32.totalorder %v586, 24
        %vm1667 = vcmp.ge.s32.totalorder %v587, 24
        %vm1668 = vcmp.ge.s32.totalorder %v588, 24
        %vm1669 = vcmp.ge.s32.totalorder %v589, 24
        %vm1670 = vcmp.ge.s32.totalorder %v590, 24
        %vm1671 = vcmp.ge.s32.totalorder %v591, 24
        %vm1672 = vmand %vm1564, %vm1618
        %vm1673 = vmand %vm1565, %vm1619
        %vm1674 = vmand %vm1566, %vm1620
        %vm1675 = vmand %vm1567, %vm1621
        %vm1676 = vmand %vm1568, %vm1622
        %vm1677 = vmand %vm1569, %vm1623
        %vm1678 = vmand %vm1570, %vm1624
        %vm1679 = vmand %vm1571, %vm1625
        %vm1680 = vmand %vm1572, %vm1626
        %vm1681 = vmand %vm1573, %vm1627
        %vm1682 = vmand %vm1574, %vm1628
        %vm1683 = vmand %vm1575, %vm1629
        %vm1684 = vmand %vm1576, %vm1630
        %vm1685 = vmand %vm1577, %vm1631
        %vm1686 = vmand %vm1578, %vm1632
        %vm1687 = vmand %vm1579, %vm1633
        %vm1688 = vmand %vm1580, %vm1634
        %vm1689 = vmand %vm1581, %vm1635
        %vm1690 = vmand %vm1582, %vm1636
        %vm1691 = vmand %vm1583, %vm1637
        %vm1692 = vmand %vm1584, %vm1638
        %vm1693 = vmand %vm1585, %vm1639
        %vm1694 = vmand %vm1586, %vm1640
        %vm1695 = vmand %vm1587, %vm1641
        %vm1696 = vmand %vm1588, %vm1642
        %vm1697 = vmand %vm1589, %vm1643
        %vm1698 = vmand %vm1590, %vm1644
        %vm1699 = vmand %vm1591, %vm1645
        %vm1700 = vmand %vm1592, %vm1646
        %vm1701 = vmand %vm1593, %vm1647
        %vm1702 = vmand %vm1594, %vm1648
        %vm1703 = vmand %vm1595, %vm1649
        %vm1704 = vmand %vm1596, %vm1650
        %vm1705 = vmand %vm1597, %vm1651
        %vm1706 = vmand %vm1598, %vm1652
        %vm1707 = vmand %vm1599, %vm1653
        %vm1708 = vmand %vm1600, %vm1654
        %vm1709 = vmand %vm1601, %vm1655
        %vm1710 = vmand %vm1602, %vm1656
        %vm1711 = vmand %vm1603, %vm1657
        %vm1712 = vmand %vm1604, %vm1658
        %vm1713 = vmand %vm1605, %vm1659
        %vm1714 = vmand %vm1606, %vm1660
        %vm1715 = vmand %vm1607, %vm1661
        %vm1716 = vmand %vm1608, %vm1662
        %vm1717 = vmand %vm1609, %vm1663
        %vm1718 = vmand %vm1610, %vm1664
        %vm1719 = vmand %vm1611, %vm1665
        %vm1720 = vmand %vm1612, %vm1666
        %vm1721 = vmand %vm1613, %vm1667
        %vm1722 = vmand %vm1614, %vm1668
        %vm1723 = vmand %vm1615, %vm1669
        %vm1724 = vmand %vm1616, %vm1670
        %vm1725 = vmand %vm1617, %vm1671
        %vm1726 = vcmp.lt.s32.totalorder %v538, 408
        %vm1727 = vcmp.lt.s32.totalorder %v539, 408
        %vm1728 = vcmp.lt.s32.totalorder %v540, 408
        %vm1729 = vcmp.lt.s32.totalorder %v541, 408
        %vm1730 = vcmp.lt.s32.totalorder %v542, 408
        %vm1731 = vcmp.lt.s32.totalorder %v543, 408
        %vm1732 = vcmp.lt.s32.totalorder %v544, 408
        %vm1733 = vcmp.lt.s32.totalorder %v545, 408
        %vm1734 = vcmp.lt.s32.totalorder %v546, 408
        %vm1735 = vcmp.lt.s32.totalorder %v547, 408
        %vm1736 = vcmp.lt.s32.totalorder %v548, 408
        %vm1737 = vcmp.lt.s32.totalorder %v549, 408
        %vm1738 = vcmp.lt.s32.totalorder %v550, 408
        %vm1739 = vcmp.lt.s32.totalorder %v551, 408
        %vm1740 = vcmp.lt.s32.totalorder %v552, 408
        %vm1741 = vcmp.lt.s32.totalorder %v553, 408
        %vm1742 = vcmp.lt.s32.totalorder %v554, 408
        %vm1743 = vcmp.lt.s32.totalorder %v555, 408
        %vm1744 = vcmp.lt.s32.totalorder %v556, 408
        %vm1745 = vcmp.lt.s32.totalorder %v557, 408
        %vm1746 = vcmp.lt.s32.totalorder %v558, 408
        %vm1747 = vcmp.lt.s32.totalorder %v559, 408
        %vm1748 = vcmp.lt.s32.totalorder %v560, 408
        %vm1749 = vcmp.lt.s32.totalorder %v561, 408
        %vm1750 = vcmp.lt.s32.totalorder %v562, 408
        %vm1751 = vcmp.lt.s32.totalorder %v563, 408
        %vm1752 = vcmp.lt.s32.totalorder %v564, 408
        %vm1753 = vcmp.lt.s32.totalorder %v565, 408
        %vm1754 = vcmp.lt.s32.totalorder %v566, 408
        %vm1755 = vcmp.lt.s32.totalorder %v567, 408
        %vm1756 = vcmp.lt.s32.totalorder %v568, 408
        %vm1757 = vcmp.lt.s32.totalorder %v569, 408
        %vm1758 = vcmp.lt.s32.totalorder %v570, 408
        %vm1759 = vcmp.lt.s32.totalorder %v571, 408
        %vm1760 = vcmp.lt.s32.totalorder %v572, 408
        %vm1761 = vcmp.lt.s32.totalorder %v573, 408
        %vm1762 = vcmp.lt.s32.totalorder %v574, 408
        %vm1763 = vcmp.lt.s32.totalorder %v575, 408
        %vm1764 = vcmp.lt.s32.totalorder %v576, 408
        %vm1765 = vcmp.lt.s32.totalorder %v577, 408
        %vm1766 = vcmp.lt.s32.totalorder %v578, 408
        %vm1767 = vcmp.lt.s32.totalorder %v579, 408
        %vm1768 = vcmp.lt.s32.totalorder %v580, 408
        %vm1769 = vcmp.lt.s32.totalorder %v581, 408
        %vm1770 = vcmp.lt.s32.totalorder %v582, 408
        %vm1771 = vcmp.lt.s32.totalorder %v583, 408
        %vm1772 = vcmp.lt.s32.totalorder %v584, 408
        %vm1773 = vcmp.lt.s32.totalorder %v585, 408
        %vm1774 = vcmp.lt.s32.totalorder %v586, 408
        %vm1775 = vcmp.lt.s32.totalorder %v587, 408
        %vm1776 = vcmp.lt.s32.totalorder %v588, 408
        %vm1777 = vcmp.lt.s32.totalorder %v589, 408
        %vm1778 = vcmp.lt.s32.totalorder %v590, 408
        %vm1779 = vcmp.lt.s32.totalorder %v591, 408
        %vm1780 = vmand %vm1672, %vm1726
        %vm1781 = vmand %vm1673, %vm1727
        %vm1782 = vmand %vm1674, %vm1728
        %vm1783 = vmand %vm1675, %vm1729
        %vm1784 = vmand %vm1676, %vm1730
        %vm1785 = vmand %vm1677, %vm1731
        %vm1786 = vmand %vm1678, %vm1732
        %vm1787 = vmand %vm1679, %vm1733
        %vm1788 = vmand %vm1680, %vm1734
        %vm1789 = vmand %vm1681, %vm1735
        %vm1790 = vmand %vm1682, %vm1736
        %vm1791 = vmand %vm1683, %vm1737
        %vm1792 = vmand %vm1684, %vm1738
        %vm1793 = vmand %vm1685, %vm1739
        %vm1794 = vmand %vm1686, %vm1740
        %vm1795 = vmand %vm1687, %vm1741
        %vm1796 = vmand %vm1688, %vm1742
        %vm1797 = vmand %vm1689, %vm1743
        %vm1798 = vmand %vm1690, %vm1744
        %vm1799 = vmand %vm1691, %vm1745
        %vm1800 = vmand %vm1692, %vm1746
        %vm1801 = vmand %vm1693, %vm1747
        %vm1802 = vmand %vm1694, %vm1748
        %vm1803 = vmand %vm1695, %vm1749
        %vm1804 = vmand %vm1696, %vm1750
        %vm1805 = vmand %vm1697, %vm1751
        %vm1806 = vmand %vm1698, %vm1752
        %vm1807 = vmand %vm1699, %vm1753
        %vm1808 = vmand %vm1700, %vm1754
        %vm1809 = vmand %vm1701, %vm1755
        %vm1810 = vmand %vm1702, %vm1756
        %vm1811 = vmand %vm1703, %vm1757
        %vm1812 = vmand %vm1704, %vm1758
        %vm1813 = vmand %vm1705, %vm1759
        %vm1814 = vmand %vm1706, %vm1760
        %vm1815 = vmand %vm1707, %vm1761
        %vm1816 = vmand %vm1708, %vm1762
        %vm1817 = vmand %vm1709, %vm1763
        %vm1818 = vmand %vm1710, %vm1764
        %vm1819 = vmand %vm1711, %vm1765
        %vm1820 = vmand %vm1712, %vm1766
        %vm1821 = vmand %vm1713, %vm1767
        %vm1822 = vmand %vm1714, %vm1768
        %vm1823 = vmand %vm1715, %vm1769
        %vm1824 = vmand %vm1716, %vm1770
        %vm1825 = vmand %vm1717, %vm1771
        %vm1826 = vmand %vm1718, %vm1772
        %vm1827 = vmand %vm1719, %vm1773
        %vm1828 = vmand %vm1720, %vm1774
        %vm1829 = vmand %vm1721, %vm1775
        %vm1830 = vmand %vm1722, %vm1776
        %vm1831 = vmand %vm1723, %vm1777
        %vm1832 = vmand %vm1724, %vm1778
        %vm1833 = vmand %vm1725, %vm1779
        %v1834 = vld [vmem:[%s457] sm:$0xf]
        %v1835 = vld [vmem:[%s457 + $0x4] sm:$0xf]
        %v1836 = vld [vmem:[%s457 + $0x8] sm:$0xf]
        %v1837 = vld [vmem:[%s457 + $0xc] sm:$0xf]
        %v1838 = vld [vmem:[%s457 + $0x10] sm:$0xf]
        %v1839 = vld [vmem:[%s457 + $0x14] sm:$0xf]
        %v1840 = vld [vmem:[%s457 + $0x18] sm:$0xf]
        %v1841 = vld [vmem:[%s457 + $0x1c] sm:$0xf]
        %v1842 = vld [vmem:[%s457 + $0x20] sm:$0xf]
        %v1843 = vld [vmem:[%s457 + $0x24] sm:$0xf]
        %v1844 = vld [vmem:[%s457 + $0x28] sm:$0xf]
        %v1845 = vld [vmem:[%s457 + $0x2c] sm:$0xf]
        %v1846 = vld [vmem:[%s457 + $0x30] sm:$0xf]
        %v1847 = vld [vmem:[%s457 + $0x34] sm:$0xf]
        %v1848 = vld [vmem:[%s457 + $0x38] sm:$0xf]
        %v1849 = vld [vmem:[%s457 + $0x3c] sm:$0xf]
        %v1850 = vld [vmem:[%s457 + $0x40] sm:$0xf]
        %v1851 = vld [vmem:[%s457 + $0x44] sm:$0xf]
        %v1852 = vld [vmem:[%s457 + $0x48] sm:$0xf]
        %v1853 = vld [vmem:[%s457 + $0x4c] sm:$0xf]
        %v1854 = vld [vmem:[%s457 + $0x50] sm:$0xf]
        %v1855 = vld [vmem:[%s457 + $0x54] sm:$0xf]
        %v1856 = vld [vmem:[%s457 + $0x58] sm:$0xf]
        %v1857 = vld [vmem:[%s457 + $0x5c] sm:$0xf]
        %v1858 = vld [vmem:[%s457 + $0x60] sm:$0xf]
        %v1859 = vld [vmem:[%s457 + $0x64] sm:$0xf]
        %v1860 = vld [vmem:[%s457 + $0x68] sm:$0xf]
        %v1861 = vld [vmem:[%s457 + $0x6c] sm:$0xf]
        %v1862 = vld [vmem:[%s457 + $0x70] sm:$0xf]
        %v1863 = vld [vmem:[%s457 + $0x74] sm:$0xf]
        %v1864 = vld [vmem:[%s457 + $0x78] sm:$0xf]
        %v1865 = vld [vmem:[%s457 + $0x7c] sm:$0xf]
        %v1866 = vld [vmem:[%s457 + $0x80] sm:$0xf]
        %v1867 = vld [vmem:[%s457 + $0x84] sm:$0xf]
        %v1868 = vld [vmem:[%s457 + $0x88] sm:$0xf]
        %v1869 = vld [vmem:[%s457 + $0x8c] sm:$0xf]
        %v1870 = vld [vmem:[%s457 + $0x90] sm:$0xf]
        %v1871 = vld [vmem:[%s457 + $0x94] sm:$0xf]
        %v1872 = vld [vmem:[%s457 + $0x98] sm:$0xf]
        %v1873 = vld [vmem:[%s457 + $0x9c] sm:$0xf]
        %v1874 = vld [vmem:[%s457 + $0xa0] sm:$0xf]
        %v1875 = vld [vmem:[%s457 + $0xa4] sm:$0xf]
        %v1876 = vld [vmem:[%s457 + $0xa8] sm:$0xf]
        %v1877 = vld [vmem:[%s457 + $0xac] sm:$0xf]
        %v1878 = vld [vmem:[%s457 + $0xb0] sm:$0xf]
        %v1879 = vld [vmem:[%s457 + $0xb4] sm:$0xf]
        %v1880 = vld [vmem:[%s457 + $0xb8] sm:$0xf]
        %v1881 = vld [vmem:[%s457 + $0xbc] sm:$0xf]
        %v1882 = vld [vmem:[%s457 + $0xc0] sm:$0xf]
        %v1883 = vld [vmem:[%s457 + $0xc4] sm:$0xf]
        %v1884 = vld [vmem:[%s457 + $0xc8] sm:$0xf]
        %v1885 = vld [vmem:[%s457 + $0xcc] sm:$0xf]
        %v1886 = vld [vmem:[%s457 + $0xd0] sm:$0xf]
        %v1887 = vld [vmem:[%s457 + $0xd4] sm:$0xf]
        %v1888 = vunpack.c.l.bf16 %v1834
        %v1889 = vunpack.c.l.bf16 %v1835
        %v1890 = vunpack.c.l.bf16 %v1836
        %v1891 = vunpack.c.l.bf16 %v1837
        %v1892 = vunpack.c.l.bf16 %v1838
        %v1893 = vunpack.c.l.bf16 %v1839
        %v1894 = vunpack.c.l.bf16 %v1840
        %v1895 = vunpack.c.l.bf16 %v1841
        %v1896 = vunpack.c.l.bf16 %v1842
        %v1897 = vunpack.c.l.bf16 %v1843
        %v1898 = vunpack.c.l.bf16 %v1844
        %v1899 = vunpack.c.l.bf16 %v1845
        %v1900 = vunpack.c.l.bf16 %v1846
        %v1901 = vunpack.c.l.bf16 %v1847
        %v1902 = vunpack.c.l.bf16 %v1848
        %v1903 = vunpack.c.l.bf16 %v1849
        %v1904 = vunpack.c.l.bf16 %v1850
        %v1905 = vunpack.c.l.bf16 %v1851
        %v1906 = vunpack.c.l.bf16 %v1852
        %v1907 = vunpack.c.l.bf16 %v1853
        %v1908 = vunpack.c.l.bf16 %v1854
        %v1909 = vunpack.c.l.bf16 %v1855
        %v1910 = vunpack.c.l.bf16 %v1856
        %v1911 = vunpack.c.l.bf16 %v1857
        %v1912 = vunpack.c.l.bf16 %v1858
        %v1913 = vunpack.c.l.bf16 %v1859
        %v1914 = vunpack.c.l.bf16 %v1860
        %v1915 = vunpack.c.l.bf16 %v1861
        %v1916 = vunpack.c.l.bf16 %v1862
        %v1917 = vunpack.c.l.bf16 %v1863
        %v1918 = vunpack.c.l.bf16 %v1864
        %v1919 = vunpack.c.l.bf16 %v1865
        %v1920 = vunpack.c.l.bf16 %v1866
        %v1921 = vunpack.c.l.bf16 %v1867
        %v1922 = vunpack.c.l.bf16 %v1868
        %v1923 = vunpack.c.l.bf16 %v1869
        %v1924 = vunpack.c.l.bf16 %v1870
        %v1925 = vunpack.c.l.bf16 %v1871
        %v1926 = vunpack.c.l.bf16 %v1872
        %v1927 = vunpack.c.l.bf16 %v1873
        %v1928 = vunpack.c.l.bf16 %v1874
        %v1929 = vunpack.c.l.bf16 %v1875
        %v1930 = vunpack.c.l.bf16 %v1876
        %v1931 = vunpack.c.l.bf16 %v1877
        %v1932 = vunpack.c.l.bf16 %v1878
        %v1933 = vunpack.c.l.bf16 %v1879
        %v1934 = vunpack.c.l.bf16 %v1880
        %v1935 = vunpack.c.l.bf16 %v1881
        %v1936 = vunpack.c.l.bf16 %v1882
        %v1937 = vunpack.c.l.bf16 %v1883
        %v1938 = vunpack.c.l.bf16 %v1884
        %v1939 = vunpack.c.l.bf16 %v1885
        %v1940 = vunpack.c.l.bf16 %v1886
        %v1941 = vunpack.c.l.bf16 %v1887
        %v1942 = vld [vmem:[#allocation5] sm:$0x1]
        %v1944 = vlaneseq
        %v1945 = vshrl.u32 %v1944, 7
        %v1946 = vsub.s32 0, %v1945
        %v1947 = vrot.slane %v1942, %v1946
        %v1949 = vmul.f32 %v1888, %v1947
        %v1950 = vmul.f32 %v1889, %v1947
        %v1951 = vmul.f32 %v1890, %v1947
        %v1952 = vmul.f32 %v1891, %v1947
        %v1953 = vmul.f32 %v1892, %v1947
        %v1954 = vmul.f32 %v1893, %v1947
        %v1955 = vmul.f32 %v1894, %v1947
        %v1956 = vmul.f32 %v1895, %v1947
        %v1957 = vmul.f32 %v1896, %v1947
        %v1958 = vmul.f32 %v1897, %v1947
        %v1959 = vmul.f32 %v1898, %v1947
        %v1960 = vmul.f32 %v1899, %v1947
        %v1961 = vmul.f32 %v1900, %v1947
        %v1962 = vmul.f32 %v1901, %v1947
        %v1963 = vmul.f32 %v1902, %v1947
        %v1964 = vmul.f32 %v1903, %v1947
        %v1965 = vmul.f32 %v1904, %v1947
        %v1966 = vmul.f32 %v1905, %v1947
        %v1967 = vmul.f32 %v1906, %v1947
        %v1968 = vmul.f32 %v1907, %v1947
        %v1969 = vmul.f32 %v1908, %v1947
        %v1970 = vmul.f32 %v1909, %v1947
        %v1971 = vmul.f32 %v1910, %v1947
        %v1972 = vmul.f32 %v1911, %v1947
        %v1973 = vmul.f32 %v1912, %v1947
        %v1974 = vmul.f32 %v1913, %v1947
        %v1975 = vmul.f32 %v1914, %v1947
        %v1976 = vmul.f32 %v1915, %v1947
        %v1977 = vmul.f32 %v1916, %v1947
        %v1978 = vmul.f32 %v1917, %v1947
        %v1979 = vmul.f32 %v1918, %v1947
        %v1980 = vmul.f32 %v1919, %v1947
        %v1981 = vmul.f32 %v1920, %v1947
        %v1982 = vmul.f32 %v1921, %v1947
        %v1983 = vmul.f32 %v1922, %v1947
        %v1984 = vmul.f32 %v1923, %v1947
        %v1985 = vmul.f32 %v1924, %v1947
        %v1986 = vmul.f32 %v1925, %v1947
        %v1987 = vmul.f32 %v1926, %v1947
        %v1988 = vmul.f32 %v1927, %v1947
        %v1989 = vmul.f32 %v1928, %v1947
        %v1990 = vmul.f32 %v1929, %v1947
        %v1991 = vmul.f32 %v1930, %v1947
        %v1992 = vmul.f32 %v1931, %v1947
        %v1993 = vmul.f32 %v1932, %v1947
        %v1994 = vmul.f32 %v1933, %v1947
        %v1995 = vmul.f32 %v1934, %v1947
        %v1996 = vmul.f32 %v1935, %v1947
        %v1997 = vmul.f32 %v1936, %v1947
        %v1998 = vmul.f32 %v1937, %v1947
        %v1999 = vmul.f32 %v1938, %v1947
        %v2000 = vmul.f32 %v1939, %v1947
        %v2001 = vmul.f32 %v1940, %v1947
        %v2002 = vmul.f32 %v1941, %v1947
        %v2003 = vld [vmem:[#allocation7] sm:$0x1]
        %v2005 = vlaneseq
        %v2006 = vshrl.u32 %v2005, 7
        %v2007 = vsub.s32 0, %v2006
        %v2008 = vrot.slane %v2003, %v2007
        %v2010 = vadd.f32 %v1949, %v2008
        %v2011 = vadd.f32 %v1950, %v2008
        %v2012 = vadd.f32 %v1951, %v2008
        %v2013 = vadd.f32 %v1952, %v2008
        %v2014 = vadd.f32 %v1953, %v2008
        %v2015 = vadd.f32 %v1954, %v2008
        %v2016 = vadd.f32 %v1955, %v2008
        %v2017 = vadd.f32 %v1956, %v2008
        %v2018 = vadd.f32 %v1957, %v2008
        %v2019 = vadd.f32 %v1958, %v2008
        %v2020 = vadd.f32 %v1959, %v2008
        %v2021 = vadd.f32 %v1960, %v2008
        %v2022 = vadd.f32 %v1961, %v2008
        %v2023 = vadd.f32 %v1962, %v2008
        %v2024 = vadd.f32 %v1963, %v2008
        %v2025 = vadd.f32 %v1964, %v2008
        %v2026 = vadd.f32 %v1965, %v2008
        %v2027 = vadd.f32 %v1966, %v2008
        %v2028 = vadd.f32 %v1967, %v2008
        %v2029 = vadd.f32 %v1968, %v2008
        %v2030 = vadd.f32 %v1969, %v2008
        %v2031 = vadd.f32 %v1970, %v2008
        %v2032 = vadd.f32 %v1971, %v2008
        %v2033 = vadd.f32 %v1972, %v2008
        %v2034 = vadd.f32 %v1973, %v2008
        %v2035 = vadd.f32 %v1974, %v2008
        %v2036 = vadd.f32 %v1975, %v2008
        %v2037 = vadd.f32 %v1976, %v2008
        %v2038 = vadd.f32 %v1977, %v2008
        %v2039 = vadd.f32 %v1978, %v2008
        %v2040 = vadd.f32 %v1979, %v2008
        %v2041 = vadd.f32 %v1980, %v2008
        %v2042 = vadd.f32 %v1981, %v2008
        %v2043 = vadd.f32 %v1982, %v2008
        %v2044 = vadd.f32 %v1983, %v2008
        %v2045 = vadd.f32 %v1984, %v2008
        %v2046 = vadd.f32 %v1985, %v2008
        %v2047 = vadd.f32 %v1986, %v2008
        %v2048 = vadd.f32 %v1987, %v2008
        %v2049 = vadd.f32 %v1988, %v2008
        %v2050 = vadd.f32 %v1989, %v2008
        %v2051 = vadd.f32 %v1990, %v2008
        %v2052 = vadd.f32 %v1991, %v2008
        %v2053 = vadd.f32 %v1992, %v2008
        %v2054 = vadd.f32 %v1993, %v2008
        %v2055 = vadd.f32 %v1994, %v2008
        %v2056 = vadd.f32 %v1995, %v2008
        %v2057 = vadd.f32 %v1996, %v2008
        %v2058 = vadd.f32 %v1997, %v2008
        %v2059 = vadd.f32 %v1998, %v2008
        %v2060 = vadd.f32 %v1999, %v2008
        %v2061 = vadd.f32 %v2000, %v2008
        %v2062 = vadd.f32 %v2001, %v2008
        %v2063 = vadd.f32 %v2002, %v2008
        %v2064 = vpack.c.bf16 %v2014, %v2013
        %v2065 = vpack.c.bf16 %v2016, %v2015
        %v2066 = vpack.c.bf16 %v2018, %v2017
        %v2067 = vpack.c.bf16 %v2020, %v2019
        %v2068 = vpack.c.bf16 %v2022, %v2021
        %v2069 = vpack.c.bf16 %v2024, %v2023
        %v2070 = vpack.c.bf16 %v2026, %v2025
        %v2071 = vpack.c.bf16 %v2028, %v2027
        %v2072 = vpack.c.bf16 %v2030, %v2029
        %v2073 = vpack.c.bf16 %v2032, %v2031
        %v2074 = vpack.c.bf16 %v2034, %v2033
        %v2075 = vpack.c.bf16 %v2036, %v2035
        %v2076 = vpack.c.bf16 %v2038, %v2037
        %v2077 = vpack.c.bf16 %v2040, %v2039
        %v2078 = vpack.c.bf16 %v2042, %v2041
        %v2079 = vpack.c.bf16 %v2044, %v2043
        %v2080 = vpack.c.bf16 %v2046, %v2045
        %v2081 = vpack.c.bf16 %v2048, %v2047
        %v2082 = vpack.c.bf16 %v2050, %v2049
        %v2083 = vpack.c.bf16 %v2052, %v2051
        %v2084 = vpack.c.bf16 %v2054, %v2053
        %v2085 = vpack.c.bf16 %v2056, %v2055
        %v2086 = vpack.c.bf16 %v2058, %v2057
        %v2087 = vpack.c.bf16 %v2060, %v2059
        %v2088 = vld [vmem:[#allocation17] sm:$0xf]
        %v2089 = vld [vmem:[#allocation17 + $0x4] sm:$0xf]
        %v2090 = vld [vmem:[#allocation17 + $0x8] sm:$0xf]
        %v2091 = vld [vmem:[#allocation17 + $0xc] sm:$0xf]
        %v2092 = vld [vmem:[#allocation17 + $0x10] sm:$0xf]
        %v2093 = vld [vmem:[#allocation17 + $0x14] sm:$0xf]
        %v2094 = vld [vmem:[#allocation17 + $0x18] sm:$0xf]
        %v2095 = vld [vmem:[#allocation17 + $0x1c] sm:$0xf]
        %v2096 = vld [vmem:[#allocation19] sm:$0x1]
        %v2098 = vlaneseq
        %v2099 = vshrl.u32 %v2098, 7
        %v2100 = vsub.s32 0, %v2099
        %v2101 = vrot.slane %v2096, %v2100
        %v2111 = vunpack.c.l.b16 %v2088
        %v2112 = vunpack.c.l.b16 %v2089
        %v2113 = vunpack.c.l.b16 %v2090
        %v2114 = vunpack.c.l.b16 %v2091
        %v2115 = vunpack.c.l.b16 %v2092
        %v2116 = vunpack.c.l.b16 %v2093
        %v2117 = vunpack.c.l.b16 %v2094
        %v2118 = vunpack.c.l.b16 %v2095
        %v2119 = vpack.c.b16 %v2112, %v2111
        %v2120 = vpack.c.b16 %v2114, %v2113
        %v2121 = vpack.c.b16 %v2116, %v2115
        %v2122 = vpack.c.b16 %v2118, %v2117
        %vm2127 = vcmask 523264
        %v2129 = vsel %vm2127, %v2064, 0
        %v2132 = vsel %vm2127, %v2065, 0
        %v2135 = vsel %vm2127, %v2066, 0
        %v2138 = vsel %vm2127, %v2067, 0
        %v2141 = vsel %vm2127, %v2068, 0
        %v2144 = vsel %vm2127, %v2069, 0
        %v2147 = vsel %vm2127, %v2070, 0
        %v2150 = vsel %vm2127, %v2071, 0
        %v2153 = vsel %vm2127, %v2072, 0
        %v2156 = vsel %vm2127, %v2073, 0
        %v2159 = vsel %vm2127, %v2074, 0
        %v2162 = vsel %vm2127, %v2075, 0
        %v2165 = vsel %vm2127, %v2076, 0
        %v2168 = vsel %vm2127, %v2077, 0
        %v2171 = vsel %vm2127, %v2078, 0
        %v2174 = vsel %vm2127, %v2079, 0
        %v2177 = vsel %vm2127, %v2080, 0
        %v2180 = vsel %vm2127, %v2081, 0
        %v2183 = vsel %vm2127, %v2082, 0
        %v2186 = vsel %vm2127, %v2083, 0
        %v2189 = vsel %vm2127, %v2084, 0
        %v2192 = vsel %vm2127, %v2085, 0
        %v2195 = vsel %vm2127, %v2086, 0
        %v2198 = vsel %vm2127, %v2087, 0
        %2200 = vmatprep.subr.bf16.mxu0 0
        %2201 = vmatpush1.bf16.msra.mxu0 %v2119
        %2202 = vmatprep.subr.bf16.mxu0 0
        %2203 = vmatpush1.bf16.msra.mxu0 %v2120
        %2204 = vmatprep.subr.bf16.mxu0 0
        %2205 = vmatpush1.bf16.msra.mxu0 %v2121
        %2206 = vmatprep.subr.bf16.mxu0 0
        %2207 = vmatpush1.bf16.msra.mxu0 %v2122
        %2208 = vmatprep.subr.bf16.mxu0 0
        %2209 = vmatpush1.bf16.msra.mxu0 0
        %2210 = vmatprep.subr.bf16.mxu0 0
        %2211 = vmatpush1.bf16.msra.mxu0 0
        %2212 = vmatprep.subr.bf16.mxu0 0
        %2213 = vmatpush1.bf16.msra.mxu0 0
        %2214 = vmatprep.subr.bf16.mxu0 0
        %2215 = vmatpush1.bf16.msra.mxu0 0
        %2216 = vmatprep.subr.bf16.mxu0 0
        %2217 = vmatpush1.bf16.msra.mxu0 0
        %2218 = vmatprep.subr.bf16.mxu0 0
        %2219 = vmatpush1.bf16.msra.mxu0 0
        %2220 = vmatprep.subr.bf16.mxu0 0
        %2221 = vmatpush1.bf16.msra.mxu0 0
        %2222 = vmatprep.subr.bf16.mxu0 0
        %2223 = vmatpush1.bf16.msra.mxu0 0
        %2224 = vmatprep.subr.bf16.mxu0 0
        %2225 = vmatpush1.bf16.msra.mxu0 0
        %2226 = vmatprep.subr.bf16.mxu0 0
        %2227 = vmatpush1.bf16.msra.mxu0 0
        %2228 = vmatprep.subr.bf16.mxu0 0
        %2229 = vmatpush1.bf16.msra.mxu0 0
        %2230 = vmatprep.subr.bf16.mxu0 0
        %2231 = vmatpush1.bf16.msra.mxu0 0
        %2232 = vmatprep.mubr.bf16.mxu0 0
        %2233 = vmatmul.mubr.bf16.gmra.mrb[0].mxu0 %v2129
        %v2234 = vpop.f32.mrb[0].mxu0
        %v2235 = vadd.f32 %v2101, %v2234
        %v2236 = vpop.f32.mrb[0].mxu0
        %v2237 = vpop.f32.mrb[0].mxu0
        %v2238 = vadd.f32 %v2101, %v2237
        %v2239 = vpop.f32.mrb[0].mxu0
        %2240 = vmatprep.mubr.bf16.mxu0 0
        %2241 = vmatmul.mubr.bf16.gmra.mrb[0].mxu0 %v2132
        %v2242 = vpop.f32.mrb[0].mxu0
        %v2243 = vadd.f32 %v2101, %v2242
        %v2244 = vpop.f32.mrb[0].mxu0
        %v2245 = vpop.f32.mrb[0].mxu0
        %v2246 = vadd.f32 %v2101, %v2245
        %v2247 = vpop.f32.mrb[0].mxu0
        %2248 = vmatprep.mubr.bf16.mxu0 0
        %2249 = vmatmul.mubr.bf16.gmra.mrb[0].mxu0 %v2135
        %v2250 = vpop.f32.mrb[0].mxu0
        %v2251 = vadd.f32 %v2101, %v2250
        %v2252 = vpop.f32.mrb[0].mxu0
        %v2253 = vpop.f32.mrb[0].mxu0
        %v2254 = vadd.f32 %v2101, %v2253
        %v2255 = vpop.f32.mrb[0].mxu0
        %2256 = vmatprep.mubr.bf16.mxu0 0
        %2257 = vmatmul.mubr.bf16.gmra.mrb[0].mxu0 %v2138
        %v2258 = vpop.f32.mrb[0].mxu0
        %v2259 = vadd.f32 %v2101, %v2258
        %v2260 = vpop.f32.mrb[0].mxu0
        %v2261 = vpop.f32.mrb[0].mxu0
        %v2262 = vadd.f32 %v2101, %v2261
        %v2263 = vpop.f32.mrb[0].mxu0
        %2264 = vmatprep.mubr.bf16.mxu0 0
        %2265 = vmatmul.mubr.bf16.gmra.mrb[0].mxu0 %v2141
        %v2266 = vpop.f32.mrb[0].mxu0
        %v2267 = vadd.f32 %v2101, %v2266
        %v2268 = vpop.f32.mrb[0].mxu0
        %v2269 = vpop.f32.mrb[0].mxu0
        %v2270 = vadd.f32 %v2101, %v2269
        %v2271 = vpop.f32.mrb[0].mxu0
        %2272 = vmatprep.mubr.bf16.mxu0 0
        %2273 = vmatmul.mubr.bf16.gmra.mrb[0].mxu0 %v2144
        %v2274 = vpop.f32.mrb[0].mxu0
        %v2275 = vadd.f32 %v2101, %v2274
        %v2276 = vpop.f32.mrb[0].mxu0
        %v2277 = vpop.f32.mrb[0].mxu0
        %v2278 = vadd.f32 %v2101, %v2277
        %v2279 = vpop.f32.mrb[0].mxu0
        %2280 = vmatprep.mubr.bf16.mxu0 0
        %2281 = vmatmul.mubr.bf16.gmra.mrb[0].mxu0 %v2147
        %v2282 = vpop.f32.mrb[0].mxu0
        %v2283 = vadd.f32 %v2101, %v2282
        %v2284 = vpop.f32.mrb[0].mxu0
        %v2285 = vpop.f32.mrb[0].mxu0
        %v2286 = vadd.f32 %v2101, %v2285
        %v2287 = vpop.f32.mrb[0].mxu0
        %2288 = vmatprep.mubr.bf16.mxu0 0
        %2289 = vmatmul.mubr.bf16.gmra.mrb[0].mxu0 %v2150
        %v2290 = vpop.f32.mrb[0].mxu0
        %v2291 = vadd.f32 %v2101, %v2290
        %v2292 = vpop.f32.mrb[0].mxu0
        %v2293 = vpop.f32.mrb[0].mxu0
        %v2294 = vadd.f32 %v2101, %v2293
        %v2295 = vpop.f32.mrb[0].mxu0
        %2296 = vmatprep.mubr.bf16.mxu0 0
        %2297 = vmatmul.mubr.bf16.gmra.mrb[0].mxu0 %v2153
        %v2298 = vpop.f32.mrb[0].mxu0
        %v2299 = vadd.f32 %v2101, %v2298
        %v2300 = vpop.f32.mrb[0].mxu0
        %v2301 = vpop.f32.mrb[0].mxu0
        %v2302 = vadd.f32 %v2101, %v2301
        %v2303 = vpop.f32.mrb[0].mxu0
        %2304 = vmatprep.mubr.bf16.mxu0 0
        %2305 = vmatmul.mubr.bf16.gmra.mrb[0].mxu0 %v2156
        %v2306 = vpop.f32.mrb[0].mxu0
        %v2307 = vadd.f32 %v2101, %v2306
        %v2308 = vpop.f32.mrb[0].mxu0
        %v2309 = vpop.f32.mrb[0].mxu0
        %v2310 = vadd.f32 %v2101, %v2309
        %v2311 = vpop.f32.mrb[0].mxu0
        %2312 = vmatprep.mubr.bf16.mxu0 0
        %2313 = vmatmul.mubr.bf16.gmra.mrb[0].mxu0 %v2159
        %v2314 = vpop.f32.mrb[0].mxu0
        %v2315 = vadd.f32 %v2101, %v2314
        %v2316 = vpop.f32.mrb[0].mxu0
        %v2317 = vpop.f32.mrb[0].mxu0
        %v2318 = vadd.f32 %v2101, %v2317
        %v2319 = vpop.f32.mrb[0].mxu0
        %2320 = vmatprep.mubr.bf16.mxu0 0
        %2321 = vmatmul.mubr.bf16.gmra.mrb[0].mxu0 %v2162
        %v2322 = vpop.f32.mrb[0].mxu0
        %v2323 = vadd.f32 %v2101, %v2322
        %v2324 = vpop.f32.mrb[0].mxu0
        %v2325 = vpop.f32.mrb[0].mxu0
        %v2326 = vadd.f32 %v2101, %v2325
        %v2327 = vpop.f32.mrb[0].mxu0
        %2328 = vmatprep.mubr.bf16.mxu0 0
        %2329 = vmatmul.mubr.bf16.gmra.mrb[0].mxu0 %v2165
        %v2330 = vpop.f32.mrb[0].mxu0
        %v2331 = vadd.f32 %v2101, %v2330
        %v2332 = vpop.f32.mrb[0].mxu0
        %v2333 = vpop.f32.mrb[0].mxu0
        %v2334 = vadd.f32 %v2101, %v2333
        %v2335 = vpop.f32.mrb[0].mxu0
        %2336 = vmatprep.mubr.bf16.mxu0 0
        %2337 = vmatmul.mubr.bf16.gmra.mrb[0].mxu0 %v2168
        %v2338 = vpop.f32.mrb[0].mxu0
        %v2339 = vadd.f32 %v2101, %v2338
        %v2340 = vpop.f32.mrb[0].mxu0
        %v2341 = vpop.f32.mrb[0].mxu0
        %v2342 = vadd.f32 %v2101, %v2341
        %v2343 = vpop.f32.mrb[0].mxu0
        %2344 = vmatprep.mubr.bf16.mxu0 0
        %2345 = vmatmul.mubr.bf16.gmra.mrb[0].mxu0 %v2171
        %v2346 = vpop.f32.mrb[0].mxu0
        %v2347 = vadd.f32 %v2101, %v2346
        %v2348 = vpop.f32.mrb[0].mxu0
        %v2349 = vpop.f32.mrb[0].mxu0
        %v2350 = vadd.f32 %v2101, %v2349
        %v2351 = vpop.f32.mrb[0].mxu0
        %2352 = vmatprep.mubr.bf16.mxu0 0
        %2353 = vmatmul.mubr.bf16.gmra.mrb[0].mxu0 %v2174
        %v2354 = vpop.f32.mrb[0].mxu0
        %v2355 = vadd.f32 %v2101, %v2354
        %v2356 = vpop.f32.mrb[0].mxu0
        %v2357 = vpop.f32.mrb[0].mxu0
        %v2358 = vadd.f32 %v2101, %v2357
        %v2359 = vpop.f32.mrb[0].mxu0
        %2360 = vmatprep.mubr.bf16.mxu0 0
        %2361 = vmatmul.mubr.bf16.gmra.mrb[0].mxu0 %v2177
        %v2362 = vpop.f32.mrb[0].mxu0
        %v2363 = vadd.f32 %v2101, %v2362
        %v2364 = vpop.f32.mrb[0].mxu0
        %v2365 = vpop.f32.mrb[0].mxu0
        %v2366 = vadd.f32 %v2101, %v2365
        %v2367 = vpop.f32.mrb[0].mxu0
        %2368 = vmatprep.mubr.bf16.mxu0 0
        %2369 = vmatmul.mubr.bf16.gmra.mrb[0].mxu0 %v2180
        %v2370 = vpop.f32.mrb[0].mxu0
        %v2371 = vadd.f32 %v2101, %v2370
        %v2372 = vpop.f32.mrb[0].mxu0
        %v2373 = vpop.f32.mrb[0].mxu0
        %v2374 = vadd.f32 %v2101, %v2373
        %v2375 = vpop.f32.mrb[0].mxu0
        %2376 = vmatprep.mubr.bf16.mxu0 0
        %2377 = vmatmul.mubr.bf16.gmra.mrb[0].mxu0 %v2183
        %v2378 = vpop.f32.mrb[0].mxu0
        %v2379 = vadd.f32 %v2101, %v2378
        %v2380 = vpop.f32.mrb[0].mxu0
        %v2381 = vpop.f32.mrb[0].mxu0
        %v2382 = vadd.f32 %v2101, %v2381
        %v2383 = vpop.f32.mrb[0].mxu0
        %2384 = vmatprep.mubr.bf16.mxu0 0
        %2385 = vmatmul.mubr.bf16.gmra.mrb[0].mxu0 %v2186
        %v2386 = vpop.f32.mrb[0].mxu0
        %v2387 = vadd.f32 %v2101, %v2386
        %v2388 = vpop.f32.mrb[0].mxu0
        %v2389 = vpop.f32.mrb[0].mxu0
        %v2390 = vadd.f32 %v2101, %v2389
        %v2391 = vpop.f32.mrb[0].mxu0
        %2392 = vmatprep.mubr.bf16.mxu0 0
        %2393 = vmatmul.mubr.bf16.gmra.mrb[0].mxu0 %v2189
        %v2394 = vpop.f32.mrb[0].mxu0
        %v2395 = vadd.f32 %v2101, %v2394
        %v2396 = vpop.f32.mrb[0].mxu0
        %v2397 = vpop.f32.mrb[0].mxu0
        %v2398 = vadd.f32 %v2101, %v2397
        %v2399 = vpop.f32.mrb[0].mxu0
        %2400 = vmatprep.mubr.bf16.mxu0 0
        %2401 = vmatmul.mubr.bf16.gmra.mrb[0].mxu0 %v2192
        %v2402 = vpop.f32.mrb[0].mxu0
        %v2403 = vadd.f32 %v2101, %v2402
        %v2404 = vpop.f32.mrb[0].mxu0
        %v2405 = vpop.f32.mrb[0].mxu0
        %v2406 = vadd.f32 %v2101, %v2405
        %v2407 = vpop.f32.mrb[0].mxu0
        %2408 = vmatprep.mubr.bf16.mxu0 0
        %2409 = vmatmul.mubr.bf16.gmra.mrb[0].mxu0 %v2195
        %v2410 = vpop.f32.mrb[0].mxu0
        %v2411 = vadd.f32 %v2101, %v2410
        %v2412 = vpop.f32.mrb[0].mxu0
        %v2413 = vpop.f32.mrb[0].mxu0
        %v2414 = vadd.f32 %v2101, %v2413
        %v2415 = vpop.f32.mrb[0].mxu0
        %2416 = vmatprep.mubr.bf16.mxu0 0
        %2417 = vmatmul.mubr.bf16.gmra.mrb[0].mxu0 %v2198
        %v2418 = vpop.f32.mrb[0].mxu0
        %v2419 = vadd.f32 %v2101, %v2418
        %v2420 = vpop.f32.mrb[0].mxu0
        %v2421 = vpop.f32.mrb[0].mxu0
        %v2422 = vadd.f32 %v2101, %v2421
        %v2423 = vpop.f32.mrb[0].mxu0
        %2424 = vdwg.mxu0
        %v2425 = vmax.f32 %v2010, 0.0
        %v2426 = vmax.f32 %v2011, 0.0
        %v2427 = vmax.f32 %v2012, 0.0
        %v2428 = vmax.f32 %v2013, 0.0
        %v2429 = vmax.f32 %v2014, 0.0
        %v2430 = vmax.f32 %v2015, 0.0
        %v2431 = vmax.f32 %v2016, 0.0
        %v2432 = vmax.f32 %v2017, 0.0
        %v2433 = vmax.f32 %v2018, 0.0
        %v2434 = vmax.f32 %v2019, 0.0
        %v2435 = vmax.f32 %v2020, 0.0
        %v2436 = vmax.f32 %v2021, 0.0
        %v2437 = vmax.f32 %v2022, 0.0
        %v2438 = vmax.f32 %v2023, 0.0
        %v2439 = vmax.f32 %v2024, 0.0
        %v2440 = vmax.f32 %v2025, 0.0
        %v2441 = vmax.f32 %v2026, 0.0
        %v2442 = vmax.f32 %v2027, 0.0
        %v2443 = vmax.f32 %v2028, 0.0
        %v2444 = vmax.f32 %v2029, 0.0
        %v2445 = vmax.f32 %v2030, 0.0
        %v2446 = vmax.f32 %v2031, 0.0
        %v2447 = vmax.f32 %v2032, 0.0
        %v2448 = vmax.f32 %v2033, 0.0
        %v2449 = vmax.f32 %v2034, 0.0
        %v2450 = vmax.f32 %v2035, 0.0
        %v2451 = vmax.f32 %v2036, 0.0
        %v2452 = vmax.f32 %v2037, 0.0
        %v2453 = vmax.f32 %v2038, 0.0
        %v2454 = vmax.f32 %v2039, 0.0
        %v2455 = vmax.f32 %v2040, 0.0
        %v2456 = vmax.f32 %v2041, 0.0
        %v2457 = vmax.f32 %v2042, 0.0
        %v2458 = vmax.f32 %v2043, 0.0
        %v2459 = vmax.f32 %v2044, 0.0
        %v2460 = vmax.f32 %v2045, 0.0
        %v2461 = vmax.f32 %v2046, 0.0
        %v2462 = vmax.f32 %v2047, 0.0
        %v2463 = vmax.f32 %v2048, 0.0
        %v2464 = vmax.f32 %v2049, 0.0
        %v2465 = vmax.f32 %v2050, 0.0
        %v2466 = vmax.f32 %v2051, 0.0
        %v2467 = vmax.f32 %v2052, 0.0
        %v2468 = vmax.f32 %v2053, 0.0
        %v2469 = vmax.f32 %v2054, 0.0
        %v2470 = vmax.f32 %v2055, 0.0
        %v2471 = vmax.f32 %v2056, 0.0
        %v2472 = vmax.f32 %v2057, 0.0
        %v2473 = vmax.f32 %v2058, 0.0
        %v2474 = vmax.f32 %v2059, 0.0
        %v2475 = vmax.f32 %v2060, 0.0
        %v2476 = vmax.f32 %v2061, 0.0
        %v2477 = vmax.f32 %v2062, 0.0
        %v2478 = vmax.f32 %v2063, 0.0
        %v2479 = vsel %vm1780, 1, 0
        %v2480 = vsel %vm1781, 1, 0
        %v2481 = vsel %vm1782, 1, 0
        %v2482 = vsel %vm1783, 1, 0
        %v2483 = vsel %vm1784, 1, 0
        %v2484 = vsel %vm1785, 1, 0
        %v2485 = vsel %vm1786, 1, 0
        %v2486 = vsel %vm1787, 1, 0
        %v2487 = vsel %vm1788, 1, 0
        %v2488 = vsel %vm1789, 1, 0
        %v2489 = vsel %vm1790, 1, 0
        %v2490 = vsel %vm1791, 1, 0
        %v2491 = vsel %vm1792, 1, 0
        %v2492 = vsel %vm1793, 1, 0
        %v2493 = vsel %vm1794, 1, 0
        %v2494 = vsel %vm1795, 1, 0
        %v2495 = vsel %vm1796, 1, 0
        %v2496 = vsel %vm1797, 1, 0
        %v2497 = vsel %vm1798, 1, 0
        %v2498 = vsel %vm1799, 1, 0
        %v2499 = vsel %vm1800, 1, 0
        %v2500 = vsel %vm1801, 1, 0
        %v2501 = vsel %vm1802, 1, 0
        %v2502 = vsel %vm1803, 1, 0
        %v2503 = vsel %vm1804, 1, 0
        %v2504 = vsel %vm1805, 1, 0
        %v2505 = vsel %vm1806, 1, 0
        %v2506 = vsel %vm1807, 1, 0
        %v2507 = vsel %vm1808, 1, 0
        %v2508 = vsel %vm1809, 1, 0
        %v2509 = vsel %vm1810, 1, 0
        %v2510 = vsel %vm1811, 1, 0
        %v2511 = vsel %vm1812, 1, 0
        %v2512 = vsel %vm1813, 1, 0
        %v2513 = vsel %vm1814, 1, 0
        %v2514 = vsel %vm1815, 1, 0
        %v2515 = vsel %vm1816, 1, 0
        %v2516 = vsel %vm1817, 1, 0
        %v2517 = vsel %vm1818, 1, 0
        %v2518 = vsel %vm1819, 1, 0
        %v2519 = vsel %vm1820, 1, 0
        %v2520 = vsel %vm1821, 1, 0
        %v2521 = vsel %vm1822, 1, 0
        %v2522 = vsel %vm1823, 1, 0
        %v2523 = vsel %vm1824, 1, 0
        %v2524 = vsel %vm1825, 1, 0
        %v2525 = vsel %vm1826, 1, 0
        %v2526 = vsel %vm1827, 1, 0
        %v2527 = vsel %vm1828, 1, 0
        %v2528 = vsel %vm1829, 1, 0
        %v2529 = vsel %vm1830, 1, 0
        %v2530 = vsel %vm1831, 1, 0
        %v2531 = vsel %vm1832, 1, 0
        %v2532 = vsel %vm1833, 1, 0
        %vm2533 = vcmp.eq.s32.totalorder %v2479, 1
        %vm2534 = vcmp.eq.s32.totalorder %v2480, 1
        %vm2535 = vcmp.eq.s32.totalorder %v2481, 1
        %vm2536 = vcmp.eq.s32.totalorder %v2482, 1
        %vm2537 = vcmp.eq.s32.totalorder %v2483, 1
        %vm2538 = vcmp.eq.s32.totalorder %v2484, 1
        %vm2539 = vcmp.eq.s32.totalorder %v2485, 1
        %vm2540 = vcmp.eq.s32.totalorder %v2486, 1
        %vm2541 = vcmp.eq.s32.totalorder %v2487, 1
        %vm2542 = vcmp.eq.s32.totalorder %v2488, 1
        %vm2543 = vcmp.eq.s32.totalorder %v2489, 1
        %vm2544 = vcmp.eq.s32.totalorder %v2490, 1
        %vm2545 = vcmp.eq.s32.totalorder %v2491, 1
        %vm2546 = vcmp.eq.s32.totalorder %v2492, 1
        %vm2547 = vcmp.eq.s32.totalorder %v2493, 1
        %vm2548 = vcmp.eq.s32.totalorder %v2494, 1
        %vm2549 = vcmp.eq.s32.totalorder %v2495, 1
        %vm2550 = vcmp.eq.s32.totalorder %v2496, 1
        %vm2551 = vcmp.eq.s32.totalorder %v2497, 1
        %vm2552 = vcmp.eq.s32.totalorder %v2498, 1
        %vm2553 = vcmp.eq.s32.totalorder %v2499, 1
        %vm2554 = vcmp.eq.s32.totalorder %v2500, 1
        %vm2555 = vcmp.eq.s32.totalorder %v2501, 1
        %vm2556 = vcmp.eq.s32.totalorder %v2502, 1
        %vm2557 = vcmp.eq.s32.totalorder %v2503, 1
        %vm2558 = vcmp.eq.s32.totalorder %v2504, 1
        %vm2559 = vcmp.eq.s32.totalorder %v2505, 1
        %vm2560 = vcmp.eq.s32.totalorder %v2506, 1
        %vm2561 = vcmp.eq.s32.totalorder %v2507, 1
        %vm2562 = vcmp.eq.s32.totalorder %v2508, 1
        %vm2563 = vcmp.eq.s32.totalorder %v2509, 1
        %vm2564 = vcmp.eq.s32.totalorder %v2510, 1
        %vm2565 = vcmp.eq.s32.totalorder %v2511, 1
        %vm2566 = vcmp.eq.s32.totalorder %v2512, 1
        %vm2567 = vcmp.eq.s32.totalorder %v2513, 1
        %vm2568 = vcmp.eq.s32.totalorder %v2514, 1
        %vm2569 = vcmp.eq.s32.totalorder %v2515, 1
        %vm2570 = vcmp.eq.s32.totalorder %v2516, 1
        %vm2571 = vcmp.eq.s32.totalorder %v2517, 1
        %vm2572 = vcmp.eq.s32.totalorder %v2518, 1
        %vm2573 = vcmp.eq.s32.totalorder %v2519, 1
        %vm2574 = vcmp.eq.s32.totalorder %v2520, 1
        %vm2575 = vcmp.eq.s32.totalorder %v2521, 1
        %vm2576 = vcmp.eq.s32.totalorder %v2522, 1
        %vm2577 = vcmp.eq.s32.totalorder %v2523, 1
        %vm2578 = vcmp.eq.s32.totalorder %v2524, 1
        %vm2579 = vcmp.eq.s32.totalorder %v2525, 1
        %vm2580 = vcmp.eq.s32.totalorder %v2526, 1
        %vm2581 = vcmp.eq.s32.totalorder %v2527, 1
        %vm2582 = vcmp.eq.s32.totalorder %v2528, 1
        %vm2583 = vcmp.eq.s32.totalorder %v2529, 1
        %vm2584 = vcmp.eq.s32.totalorder %v2530, 1
        %vm2585 = vcmp.eq.s32.totalorder %v2531, 1
        %vm2586 = vcmp.eq.s32.totalorder %v2532, 1
        %v2587 = vsel %vm2533, %v2425, 0.0
        %v2588 = vsel %vm2534, %v2426, 0.0
        %v2589 = vsel %vm2535, %v2427, 0.0
        %v2590 = vsel %vm2536, %v2428, 0.0
        %v2591 = vsel %vm2537, %v2429, 0.0
        %v2592 = vsel %vm2538, %v2430, 0.0
        %v2593 = vsel %vm2539, %v2431, 0.0
        %v2594 = vsel %vm2540, %v2432, 0.0
        %v2595 = vsel %vm2541, %v2433, 0.0
        %v2596 = vsel %vm2542, %v2434, 0.0
        %v2597 = vsel %vm2543, %v2435, 0.0
        %v2598 = vsel %vm2544, %v2436, 0.0
        %v2599 = vsel %vm2545, %v2437, 0.0
        %v2600 = vsel %vm2546, %v2438, 0.0
        %v2601 = vsel %vm2547, %v2439, 0.0
        %v2602 = vsel %vm2548, %v2440, 0.0
        %v2603 = vsel %vm2549, %v2441, 0.0
        %v2604 = vsel %vm2550, %v2442, 0.0
        %v2605 = vsel %vm2551, %v2443, 0.0
        %v2606 = vsel %vm2552, %v2444, 0.0
        %v2607 = vsel %vm2553, %v2445, 0.0
        %v2608 = vsel %vm2554, %v2446, 0.0
        %v2609 = vsel %vm2555, %v2447, 0.0
        %v2610 = vsel %vm2556, %v2448, 0.0
        %v2611 = vsel %vm2557, %v2449, 0.0
        %v2612 = vsel %vm2558, %v2450, 0.0
        %v2613 = vsel %vm2559, %v2451, 0.0
        %v2614 = vsel %vm2560, %v2452, 0.0
        %v2615 = vsel %vm2561, %v2453, 0.0
        %v2616 = vsel %vm2562, %v2454, 0.0
        %v2617 = vsel %vm2563, %v2455, 0.0
        %v2618 = vsel %vm2564, %v2456, 0.0
        %v2619 = vsel %vm2565, %v2457, 0.0
        %v2620 = vsel %vm2566, %v2458, 0.0
        %v2621 = vsel %vm2567, %v2459, 0.0
        %v2622 = vsel %vm2568, %v2460, 0.0
        %v2623 = vsel %vm2569, %v2461, 0.0
        %v2624 = vsel %vm2570, %v2462, 0.0
        %v2625 = vsel %vm2571, %v2463, 0.0
        %v2626 = vsel %vm2572, %v2464, 0.0
        %v2627 = vsel %vm2573, %v2465, 0.0
        %v2628 = vsel %vm2574, %v2466, 0.0
        %v2629 = vsel %vm2575, %v2467, 0.0
        %v2630 = vsel %vm2576, %v2468, 0.0
        %v2631 = vsel %vm2577, %v2469, 0.0
        %v2632 = vsel %vm2578, %v2470, 0.0
        %v2633 = vsel %vm2579, %v2471, 0.0
        %v2634 = vsel %vm2580, %v2472, 0.0
        %v2635 = vsel %vm2581, %v2473, 0.0
        %v2636 = vsel %vm2582, %v2474, 0.0
        %v2637 = vsel %vm2583, %v2475, 0.0
        %v2638 = vsel %vm2584, %v2476, 0.0
        %v2639 = vsel %vm2585, %v2477, 0.0
        %v2640 = vsel %vm2586, %v2478, 0.0
        %v2641 = vpack.c.bf16 %v2588, %v2587
        %v2642 = vpack.c.bf16 %v2590, %v2589
        %v2643 = vpack.c.bf16 %v2592, %v2591
        %v2644 = vpack.c.bf16 %v2594, %v2593
        %v2645 = vpack.c.bf16 %v2596, %v2595
        %v2646 = vpack.c.bf16 %v2598, %v2597
        %v2647 = vpack.c.bf16 %v2600, %v2599
        %v2648 = vpack.c.bf16 %v2602, %v2601
        %v2649 = vpack.c.bf16 %v2604, %v2603
        %v2650 = vpack.c.bf16 %v2606, %v2605
        %v2651 = vpack.c.bf16 %v2608, %v2607
        %v2652 = vpack.c.bf16 %v2610, %v2609
        %v2653 = vpack.c.bf16 %v2612, %v2611
        %v2654 = vpack.c.bf16 %v2614, %v2613
        %v2655 = vpack.c.bf16 %v2616, %v2615
        %v2656 = vpack.c.bf16 %v2618, %v2617
        %v2657 = vpack.c.bf16 %v2620, %v2619
        %v2658 = vpack.c.bf16 %v2622, %v2621
        %v2659 = vpack.c.bf16 %v2624, %v2623
        %v2660 = vpack.c.bf16 %v2626, %v2625
        %v2661 = vpack.c.bf16 %v2628, %v2627
        %v2662 = vpack.c.bf16 %v2630, %v2629
        %v2663 = vpack.c.bf16 %v2632, %v2631
        %v2664 = vpack.c.bf16 %v2634, %v2633
        %v2665 = vpack.c.bf16 %v2636, %v2635
        %v2666 = vpack.c.bf16 %v2638, %v2637
        %v2667 = vpack.c.bf16 %v2640, %v2639
        %vm2668 = vsmask.f32 256
        %v2670 = vshrl.u32 %v2641, 16
        %v2672 = vrot.slane %v2670, 7
        %v2673 = vshll.u32 %v2641, 16
        %v2675 = vor.u32 %v2672, %v2673
        %v2677 = vshrl.u32 %v2642, 16
        %v2679 = vrot.slane %v2677, 7
        %v2680 = vshll.u32 %v2642, 16
        %v2682 = vor.u32 %v2679, %v2680
        %v2683 = vsel %vm2668, %v2672, %v2682
        %v2685 = vshrl.u32 %v2643, 16
        %v2687 = vrot.slane %v2685, 7
        %v2688 = vshll.u32 %v2643, 16
        %v2690 = vor.u32 %v2687, %v2688
        %v2691 = vsel %vm2668, %v2679, %v2690
        %v2693 = vshrl.u32 %v2644, 16
        %v2695 = vrot.slane %v2693, 7
        %v2696 = vshll.u32 %v2644, 16
        %v2698 = vor.u32 %v2695, %v2696
        %v2699 = vsel %vm2668, %v2687, %v2698
        %v2701 = vshrl.u32 %v2645, 16
        %v2703 = vrot.slane %v2701, 7
        %v2704 = vshll.u32 %v2645, 16
        %v2706 = vor.u32 %v2703, %v2704
        %v2707 = vsel %vm2668, %v2695, %v2706
        %v2709 = vshrl.u32 %v2646, 16
        %v2711 = vrot.slane %v2709, 7
        %v2712 = vshll.u32 %v2646, 16
        %v2714 = vor.u32 %v2711, %v2712
        %v2715 = vsel %vm2668, %v2703, %v2714
        %v2717 = vshrl.u32 %v2647, 16
        %v2719 = vrot.slane %v2717, 7
        %v2720 = vshll.u32 %v2647, 16
        %v2722 = vor.u32 %v2719, %v2720
        %v2723 = vsel %vm2668, %v2711, %v2722
        %v2725 = vshrl.u32 %v2648, 16
        %v2727 = vrot.slane %v2725, 7
        %v2728 = vshll.u32 %v2648, 16
        %v2730 = vor.u32 %v2727, %v2728
        %v2731 = vsel %vm2668, %v2719, %v2730
        %v2733 = vshrl.u32 %v2649, 16
        %v2735 = vrot.slane %v2733, 7
        %v2736 = vshll.u32 %v2649, 16
        %v2738 = vor.u32 %v2735, %v2736
        %v2739 = vsel %vm2668, %v2727, %v2738
        %v2741 = vshrl.u32 %v2650, 16
        %v2743 = vrot.slane %v2741, 7
        %v2744 = vshll.u32 %v2650, 16
        %v2746 = vor.u32 %v2743, %v2744
        %v2747 = vsel %vm2668, %v2735, %v2746
        %v2749 = vshrl.u32 %v2651, 16
        %v2751 = vrot.slane %v2749, 7
        %v2752 = vshll.u32 %v2651, 16
        %v2754 = vor.u32 %v2751, %v2752
        %v2755 = vsel %vm2668, %v2743, %v2754
        %v2757 = vshrl.u32 %v2652, 16
        %v2759 = vrot.slane %v2757, 7
        %v2760 = vshll.u32 %v2652, 16
        %v2762 = vor.u32 %v2759, %v2760
        %v2763 = vsel %vm2668, %v2751, %v2762
        %v2765 = vshrl.u32 %v2653, 16
        %v2767 = vrot.slane %v2765, 7
        %v2768 = vshll.u32 %v2653, 16
        %v2770 = vor.u32 %v2767, %v2768
        %v2771 = vsel %vm2668, %v2759, %v2770
        %v2773 = vshrl.u32 %v2654, 16
        %v2775 = vrot.slane %v2773, 7
        %v2776 = vshll.u32 %v2654, 16
        %v2778 = vor.u32 %v2775, %v2776
        %v2779 = vsel %vm2668, %v2767, %v2778
        %v2781 = vshrl.u32 %v2655, 16
        %v2783 = vrot.slane %v2781, 7
        %v2784 = vshll.u32 %v2655, 16
        %v2786 = vor.u32 %v2783, %v2784
        %v2787 = vsel %vm2668, %v2775, %v2786
        %v2789 = vshrl.u32 %v2656, 16
        %v2791 = vrot.slane %v2789, 7
        %v2792 = vshll.u32 %v2656, 16
        %v2794 = vor.u32 %v2791, %v2792
        %v2795 = vsel %vm2668, %v2783, %v2794
        %v2797 = vshrl.u32 %v2657, 16
        %v2799 = vrot.slane %v2797, 7
        %v2800 = vshll.u32 %v2657, 16
        %v2802 = vor.u32 %v2799, %v2800
        %v2803 = vsel %vm2668, %v2791, %v2802
        %v2805 = vshrl.u32 %v2658, 16
        %v2807 = vrot.slane %v2805, 7
        %v2808 = vshll.u32 %v2658, 16
        %v2810 = vor.u32 %v2807, %v2808
        %v2811 = vsel %vm2668, %v2799, %v2810
        %v2813 = vshrl.u32 %v2659, 16
        %v2815 = vrot.slane %v2813, 7
        %v2816 = vshll.u32 %v2659, 16
        %v2818 = vor.u32 %v2815, %v2816
        %v2819 = vsel %vm2668, %v2807, %v2818
        %v2821 = vshrl.u32 %v2660, 16
        %v2823 = vrot.slane %v2821, 7
        %v2824 = vshll.u32 %v2660, 16
        %v2826 = vor.u32 %v2823, %v2824
        %v2827 = vsel %vm2668, %v2815, %v2826
        %v2829 = vshrl.u32 %v2661, 16
        %v2831 = vrot.slane %v2829, 7
        %v2832 = vshll.u32 %v2661, 16
        %v2834 = vor.u32 %v2831, %v2832
        %v2835 = vsel %vm2668, %v2823, %v2834
        %v2837 = vshrl.u32 %v2662, 16
        %v2839 = vrot.slane %v2837, 7
        %v2840 = vshll.u32 %v2662, 16
        %v2842 = vor.u32 %v2839, %v2840
        %v2843 = vsel %vm2668, %v2831, %v2842
        %v2845 = vshrl.u32 %v2663, 16
        %v2847 = vrot.slane %v2845, 7
        %v2848 = vshll.u32 %v2663, 16
        %v2850 = vor.u32 %v2847, %v2848
        %v2851 = vsel %vm2668, %v2839, %v2850
        %v2853 = vshrl.u32 %v2664, 16
        %v2855 = vrot.slane %v2853, 7
        %v2856 = vshll.u32 %v2664, 16
        %v2858 = vor.u32 %v2855, %v2856
        %v2859 = vsel %vm2668, %v2847, %v2858
        %v2861 = vshrl.u32 %v2665, 16
        %v2863 = vrot.slane %v2861, 7
        %v2864 = vshll.u32 %v2665, 16
        %v2866 = vor.u32 %v2863, %v2864
        %v2867 = vsel %vm2668, %v2855, %v2866
        %v2869 = vshrl.u32 %v2666, 16
        %v2871 = vrot.slane %v2869, 7
        %v2872 = vshll.u32 %v2666, 16
        %v2874 = vor.u32 %v2871, %v2872
        %v2875 = vsel %vm2668, %v2863, %v2874
        %v2877 = vshrl.u32 %v2667, 16
        %v2879 = vrot.slane %v2877, 7
        %v2880 = vshll.u32 %v2667, 16
        %v2882 = vor.u32 %v2879, %v2880
        %v2883 = vsel %vm2668, %v2871, %v2882
        %vm2885 = vcmask 1040384
        %vm2886 = vmand %vm2885, %vm2668
        %v2887 = vsel %vm2886, 0, %v2675
        %vm2888 = vsmask.f32 7424
        %v2889 = vrot.slane %v2673, 1
        %v2890 = vor.u32 %v2670, %v2889
        %v2891 = vrot.slane %v2680, 1
        %v2892 = vsel %vm2888, %v2890, %v2891
        %v2893 = vor.u32 %v2677, %v2891
        %v2894 = vrot.slane %v2688, 1
        %v2895 = vsel %vm2888, %v2893, %v2894
        %v2896 = vor.u32 %v2685, %v2894
        %v2897 = vrot.slane %v2696, 1
        %v2898 = vsel %vm2888, %v2896, %v2897
        %v2899 = vor.u32 %v2693, %v2897
        %v2900 = vrot.slane %v2704, 1
        %v2901 = vsel %vm2888, %v2899, %v2900
        %v2902 = vor.u32 %v2701, %v2900
        %v2903 = vrot.slane %v2712, 1
        %v2904 = vsel %vm2888, %v2902, %v2903
        %v2905 = vor.u32 %v2709, %v2903
        %v2906 = vrot.slane %v2720, 1
        %v2907 = vsel %vm2888, %v2905, %v2906
        %v2908 = vor.u32 %v2717, %v2906
        %v2909 = vrot.slane %v2728, 1
        %v2910 = vsel %vm2888, %v2908, %v2909
        %v2911 = vor.u32 %v2725, %v2909
        %v2912 = vrot.slane %v2736, 1
        %v2913 = vsel %vm2888, %v2911, %v2912
        %v2914 = vor.u32 %v2733, %v2912
        %v2915 = vrot.slane %v2744, 1
        %v2916 = vsel %vm2888, %v2914, %v2915
        %v2917 = vor.u32 %v2741, %v2915
        %v2918 = vrot.slane %v2752, 1
        %v2919 = vsel %vm2888, %v2917, %v2918
        %v2920 = vor.u32 %v2749, %v2918
        %v2921 = vrot.slane %v2760, 1
        %v2922 = vsel %vm2888, %v2920, %v2921
        %v2923 = vor.u32 %v2757, %v2921
        %v2924 = vrot.slane %v2768, 1
        %v2925 = vsel %vm2888, %v2923, %v2924
        %v2926 = vor.u32 %v2765, %v2924
        %v2927 = vrot.slane %v2776, 1
        %v2928 = vsel %vm2888, %v2926, %v2927
        %v2929 = vor.u32 %v2773, %v2927
        %v2930 = vrot.slane %v2784, 1
        %v2931 = vsel %vm2888, %v2929, %v2930
        %v2932 = vor.u32 %v2781, %v2930
        %v2933 = vrot.slane %v2792, 1
        %v2934 = vsel %vm2888, %v2932, %v2933
        %v2935 = vor.u32 %v2789, %v2933
        %v2936 = vrot.slane %v2800, 1
        %v2937 = vsel %vm2888, %v2935, %v2936
        %v2938 = vor.u32 %v2797, %v2936
        %v2939 = vrot.slane %v2808, 1
        %v2940 = vsel %vm2888, %v2938, %v2939
        %v2941 = vor.u32 %v2805, %v2939
        %v2942 = vrot.slane %v2816, 1
        %v2943 = vsel %vm2888, %v2941, %v2942
        %v2944 = vor.u32 %v2813, %v2942
        %v2945 = vrot.slane %v2824, 1
        %v2946 = vsel %vm2888, %v2944, %v2945
        %v2947 = vor.u32 %v2821, %v2945
        %v2948 = vrot.slane %v2832, 1
        %v2949 = vsel %vm2888, %v2947, %v2948
        %v2950 = vor.u32 %v2829, %v2948
        %v2951 = vrot.slane %v2840, 1
        %v2952 = vsel %vm2888, %v2950, %v2951
        %v2953 = vor.u32 %v2837, %v2951
        %v2954 = vrot.slane %v2848, 1
        %v2955 = vsel %vm2888, %v2953, %v2954
        %v2956 = vor.u32 %v2845, %v2954
        %v2957 = vrot.slane %v2856, 1
        %v2958 = vsel %vm2888, %v2956, %v2957
        %v2959 = vor.u32 %v2853, %v2957
        %v2960 = vrot.slane %v2864, 1
        %v2961 = vsel %vm2888, %v2959, %v2960
        %v2962 = vor.u32 %v2861, %v2960
        %v2963 = vrot.slane %v2872, 1
        %v2964 = vsel %vm2888, %v2962, %v2963
        %v2965 = vor.u32 %v2869, %v2963
        %v2966 = vrot.slane %v2880, 1
        %v2967 = vsel %vm2888, %v2965, %v2966
        %v2968 = vor.u32 %v2877, %v2966
        %vm2970 = vcmask 1047552
        %vm2971 = vmand %vm2970, %vm2888
        %v2972 = vsel %vm2971, %v2968, 0
        %3000 = vrot.lane.b32.xlu0 %v2641, 64
        %v3001 = vpop.permute.xlu0 %3000
        %3002 = vrot.lane.b32.xlu0 %v2642, 64
        %v3003 = vpop.permute.xlu0 %3002
        %3004 = vrot.lane.b32.xlu0 %v2643, 64
        %v3005 = vpop.permute.xlu0 %3004
        %3006 = vrot.lane.b32.xlu0 %v2644, 64
        %v3007 = vpop.permute.xlu0 %3006
        %3008 = vrot.lane.b32.xlu0 %v2645, 64
        %v3009 = vpop.permute.xlu0 %3008
        %3010 = vrot.lane.b32.xlu0 %v2646, 64
        %v3011 = vpop.permute.xlu0 %3010
        %3012 = vrot.lane.b32.xlu0 %v2647, 64
        %v3013 = vpop.permute.xlu0 %3012
        %3014 = vrot.lane.b32.xlu0 %v2648, 64
        %v3015 = vpop.permute.xlu0 %3014
        %3016 = vrot.lane.b32.xlu0 %v2649, 64
        %v3017 = vpop.permute.xlu0 %3016
        %3018 = vrot.lane.b32.xlu0 %v2650, 64
        %v3019 = vpop.permute.xlu0 %3018
        %3020 = vrot.lane.b32.xlu0 %v2651, 64
        %v3021 = vpop.permute.xlu0 %3020
        %3022 = vrot.lane.b32.xlu0 %v2652, 64
        %v3023 = vpop.permute.xlu0 %3022
        %3024 = vrot.lane.b32.xlu0 %v2653, 64
        %v3025 = vpop.permute.xlu0 %3024
        %3026 = vrot.lane.b32.xlu0 %v2654, 64
        %v3027 = vpop.permute.xlu0 %3026
        %3028 = vrot.lane.b32.xlu0 %v2655, 64
        %v3029 = vpop.permute.xlu0 %3028
        %3030 = vrot.lane.b32.xlu0 %v2656, 64
        %v3031 = vpop.permute.xlu0 %3030
        %3032 = vrot.lane.b32.xlu0 %v2657, 64
        %v3033 = vpop.permute.xlu0 %3032
        %3034 = vrot.lane.b32.xlu0 %v2658, 64
        %v3035 = vpop.permute.xlu0 %3034
        %3036 = vrot.lane.b32.xlu0 %v2659, 64
        %v3037 = vpop.permute.xlu0 %3036
        %3038 = vrot.lane.b32.xlu0 %v2660, 64
        %v3039 = vpop.permute.xlu0 %3038
        %3040 = vrot.lane.b32.xlu0 %v2661, 64
        %v3041 = vpop.permute.xlu0 %3040
        %3042 = vrot.lane.b32.xlu0 %v2662, 64
        %v3043 = vpop.permute.xlu0 %3042
        %3044 = vrot.lane.b32.xlu0 %v2663, 64
        %v3045 = vpop.permute.xlu0 %3044
        %3046 = vrot.lane.b32.xlu0 %v2664, 64
        %v3047 = vpop.permute.xlu0 %3046
        %3048 = vrot.lane.b32.xlu0 %v2665, 64
        %v3049 = vpop.permute.xlu0 %3048
        %3050 = vrot.lane.b32.xlu0 %v2666, 64
        %v3051 = vpop.permute.xlu0 %3050
        %3052 = vrot.lane.b32.xlu0 %v2667, 64
        %v3053 = vpop.permute.xlu0 %3052
        %v3056 = vsel %vm2127, %v2887, %v3001
        %v3060 = vsel %vm2127, %v2683, %v3003
        %v3064 = vsel %vm2127, %v2691, %v3005
        %v3068 = vsel %vm2127, %v2699, %v3007
        %v3072 = vsel %vm2127, %v2707, %v3009
        %v3076 = vsel %vm2127, %v2715, %v3011
        %v3080 = vsel %vm2127, %v2723, %v3013
        %v3084 = vsel %vm2127, %v2731, %v3015
        %v3088 = vsel %vm2127, %v2739, %v3017
        %v3092 = vsel %vm2127, %v2747, %v3019
        %v3096 = vsel %vm2127, %v2755, %v3021
        %v3100 = vsel %vm2127, %v2763, %v3023
        %v3104 = vsel %vm2127, %v2771, %v3025
        %v3108 = vsel %vm2127, %v2779, %v3027
        %v3112 = vsel %vm2127, %v2787, %v3029
        %v3116 = vsel %vm2127, %v2795, %v3031
        %v3120 = vsel %vm2127, %v2803, %v3033
        %v3124 = vsel %vm2127, %v2811, %v3035
        %v3128 = vsel %vm2127, %v2819, %v3037
        %v3132 = vsel %vm2127, %v2827, %v3039
        %v3136 = vsel %vm2127, %v2835, %v3041
        %v3140 = vsel %vm2127, %v2843, %v3043
        %v3144 = vsel %vm2127, %v2851, %v3045
        %v3148 = vsel %vm2127, %v2859, %v3047
        %v3152 = vsel %vm2127, %v2867, %v3049
        %v3156 = vsel %vm2127, %v2875, %v3051
        %v3160 = vsel %vm2127, %v2883, %v3053
        %v3162 = vld [vmem:[#allocation11] sm:$0xf]
        %v3163 = vld [vmem:[#allocation11 + $0x4] sm:$0xf]
        %v3164 = vld [vmem:[#allocation11 + $0x8] sm:$0xf]
        %v3165 = vld [vmem:[#allocation11 + $0xc] sm:$0xf]
        %v3166 = vld [vmem:[#allocation11 + $0x10] sm:$0xf]
        %v3167 = vld [vmem:[#allocation11 + $0x14] sm:$0xf]
        %v3168 = vld [vmem:[#allocation11 + $0x18] sm:$0xf]
        %v3169 = vld [vmem:[#allocation11 + $0x1c] sm:$0xf]
        %v3170 = vld [vmem:[#allocation11 + $0x20] sm:$0xf]
        %v3171 = vld [vmem:[#allocation11 + $0x24] sm:$0xf]
        %v3172 = vld [vmem:[#allocation11 + $0x28] sm:$0xf]
        %v3173 = vld [vmem:[#allocation11 + $0x2c] sm:$0xf]
        %v3174 = vld [vmem:[#allocation11 + $0x30] sm:$0xf]
        %v3175 = vld [vmem:[#allocation11 + $0x34] sm:$0xf]
        %v3176 = vld [vmem:[#allocation11 + $0x38] sm:$0xf]
        %v3177 = vld [vmem:[#allocation11 + $0x3c] sm:$0xf]
        %v3178 = vld [vmem:[#allocation11 + $0x40] sm:$0xf]
        %v3179 = vld [vmem:[#allocation11 + $0x44] sm:$0xf]
        %v3180 = vld [vmem:[#allocation11 + $0x48] sm:$0xf]
        %v3181 = vld [vmem:[#allocation11 + $0x4c] sm:$0xf]
        %v3182 = vld [vmem:[#allocation11 + $0x50] sm:$0xf]
        %v3183 = vld [vmem:[#allocation11 + $0x54] sm:$0xf]
        %v3184 = vld [vmem:[#allocation11 + $0x58] sm:$0xf]
        %v3185 = vld [vmem:[#allocation11 + $0x5c] sm:$0xf]
        %s3186 = scalar_lea.vmem [#allocation11], 96
        %v3187 = vld [vmem:[%s3186] sm:$0xf]
        %v3188 = vld [vmem:[%s3186 + $0x4] sm:$0xf]
        %v3189 = vld [vmem:[%s3186 + $0x8] sm:$0xf]
        %v3190 = vld [vmem:[%s3186 + $0xc] sm:$0xf]
        %v3191 = vld [vmem:[%s3186 + $0x10] sm:$0xf]
        %v3192 = vld [vmem:[%s3186 + $0x14] sm:$0xf]
        %v3193 = vld [vmem:[%s3186 + $0x18] sm:$0xf]
        %v3194 = vld [vmem:[%s3186 + $0x1c] sm:$0xf]
        %v3195 = vld [vmem:[%s3186 + $0x20] sm:$0xf]
        %v3196 = vld [vmem:[%s3186 + $0x24] sm:$0xf]
        %v3197 = vld [vmem:[%s3186 + $0x28] sm:$0xf]
        %v3198 = vld [vmem:[%s3186 + $0x2c] sm:$0xf]
        %v3199 = vld [vmem:[%s3186 + $0x30] sm:$0xf]
        %v3200 = vld [vmem:[%s3186 + $0x34] sm:$0xf]
        %v3201 = vld [vmem:[%s3186 + $0x38] sm:$0xf]
        %v3202 = vld [vmem:[%s3186 + $0x3c] sm:$0xf]
        %v3203 = vld [vmem:[%s3186 + $0x40] sm:$0xf]
        %v3204 = vld [vmem:[%s3186 + $0x44] sm:$0xf]
        %v3205 = vld [vmem:[%s3186 + $0x48] sm:$0xf]
        %v3206 = vld [vmem:[%s3186 + $0x4c] sm:$0xf]
        %v3207 = vld [vmem:[%s3186 + $0x50] sm:$0xf]
        %v3208 = vld [vmem:[%s3186 + $0x54] sm:$0xf]
        %v3209 = vld [vmem:[%s3186 + $0x58] sm:$0xf]
        %v3210 = vld [vmem:[%s3186 + $0x5c] sm:$0xf]
        %vm3236 = vcmask 1043456
        %v3237 = vrot.slane %v3060, 4
        %v3238 = vrot.slane %v3064, 4
        %v3239 = vsel %vm3236, %v3237, %v3238
        %v3240 = vrot.slane %v2895, 4
        %v3241 = vrot.slane %v2898, 4
        %v3242 = vsel %vm3236, %v3240, %v3241
        %v3243 = vrot.slane %v3068, 4
        %v3244 = vsel %vm3236, %v3238, %v3243
        %v3245 = vrot.slane %v2901, 4
        %v3246 = vsel %vm3236, %v3241, %v3245
        %v3247 = vrot.slane %v3072, 4
        %v3248 = vsel %vm3236, %v3243, %v3247
        %v3249 = vrot.slane %v2904, 4
        %v3250 = vsel %vm3236, %v3245, %v3249
        %v3251 = vrot.slane %v3076, 4
        %v3252 = vsel %vm3236, %v3247, %v3251
        %v3253 = vrot.slane %v2907, 4
        %v3254 = vsel %vm3236, %v3249, %v3253
        %v3255 = vrot.slane %v3080, 4
        %v3256 = vsel %vm3236, %v3251, %v3255
        %v3257 = vrot.slane %v2910, 4
        %v3258 = vsel %vm3236, %v3253, %v3257
        %v3259 = vrot.slane %v3084, 4
        %v3260 = vsel %vm3236, %v3255, %v3259
        %v3261 = vrot.slane %v2913, 4
        %v3262 = vsel %vm3236, %v3257, %v3261
        %v3263 = vrot.slane %v3088, 4
        %v3264 = vsel %vm3236, %v3259, %v3263
        %v3265 = vrot.slane %v2916, 4
        %v3266 = vsel %vm3236, %v3261, %v3265
        %v3267 = vrot.slane %v3092, 4
        %v3268 = vsel %vm3236, %v3263, %v3267
        %v3269 = vrot.slane %v2919, 4
        %v3270 = vsel %vm3236, %v3265, %v3269
        %v3271 = vrot.slane %v3096, 4
        %v3272 = vsel %vm3236, %v3267, %v3271
        %v3273 = vrot.slane %v2922, 4
        %v3274 = vsel %vm3236, %v3269, %v3273
        %v3275 = vrot.slane %v3100, 4
        %v3276 = vsel %vm3236, %v3271, %v3275
        %v3277 = vrot.slane %v2925, 4
        %v3278 = vsel %vm3236, %v3273, %v3277
        %v3279 = vrot.slane %v3104, 4
        %v3280 = vsel %vm3236, %v3275, %v3279
        %v3281 = vrot.slane %v2928, 4
        %v3282 = vsel %vm3236, %v3277, %v3281
        %v3283 = vrot.slane %v3108, 4
        %v3284 = vsel %vm3236, %v3279, %v3283
        %v3285 = vrot.slane %v2931, 4
        %v3286 = vsel %vm3236, %v3281, %v3285
        %v3287 = vrot.slane %v3112, 4
        %v3288 = vsel %vm3236, %v3283, %v3287
        %v3289 = vrot.slane %v2934, 4
        %v3290 = vsel %vm3236, %v3285, %v3289
        %v3291 = vrot.slane %v3116, 4
        %v3292 = vsel %vm3236, %v3287, %v3291
        %v3293 = vrot.slane %v2937, 4
        %v3294 = vsel %vm3236, %v3289, %v3293
        %v3295 = vrot.slane %v3120, 4
        %v3296 = vsel %vm3236, %v3291, %v3295
        %v3297 = vrot.slane %v2940, 4
        %v3298 = vsel %vm3236, %v3293, %v3297
        %v3299 = vrot.slane %v3124, 4
        %v3300 = vsel %vm3236, %v3295, %v3299
        %v3301 = vrot.slane %v2943, 4
        %v3302 = vsel %vm3236, %v3297, %v3301
        %v3303 = vrot.slane %v3128, 4
        %v3304 = vsel %vm3236, %v3299, %v3303
        %v3305 = vrot.slane %v2946, 4
        %v3306 = vsel %vm3236, %v3301, %v3305
        %v3307 = vrot.slane %v3132, 4
        %v3308 = vsel %vm3236, %v3303, %v3307
        %v3309 = vrot.slane %v2949, 4
        %v3310 = vsel %vm3236, %v3305, %v3309
        %v3311 = vrot.slane %v3136, 4
        %v3312 = vsel %vm3236, %v3307, %v3311
        %v3313 = vrot.slane %v2952, 4
        %v3314 = vsel %vm3236, %v3309, %v3313
        %v3315 = vrot.slane %v3140, 4
        %v3316 = vsel %vm3236, %v3311, %v3315
        %v3317 = vrot.slane %v2955, 4
        %v3318 = vsel %vm3236, %v3313, %v3317
        %v3319 = vrot.slane %v3144, 4
        %v3320 = vsel %vm3236, %v3315, %v3319
        %v3321 = vrot.slane %v2958, 4
        %v3322 = vsel %vm3236, %v3317, %v3321
        %v3323 = vrot.slane %v3148, 4
        %v3324 = vsel %vm3236, %v3319, %v3323
        %v3325 = vrot.slane %v2961, 4
        %v3326 = vsel %vm3236, %v3321, %v3325
        %v3327 = vrot.slane %v3152, 4
        %v3328 = vsel %vm3236, %v3323, %v3327
        %v3329 = vrot.slane %v2964, 4
        %v3330 = vsel %vm3236, %v3325, %v3329
        %v3331 = vrot.slane %v3156, 4
        %v3332 = vsel %vm3236, %v3327, %v3331
        %v3333 = vrot.slane %v2967, 4
        %v3334 = vsel %vm3236, %v3329, %v3333
        %v3383 = vunpack.c.l.b16 %v3187
        %v3384 = vunpack.c.l.b16 %v3188
        %v3385 = vunpack.c.l.b16 %v3189
        %v3386 = vunpack.c.l.b16 %v3190
        %v3387 = vunpack.c.l.b16 %v3191
        %v3388 = vunpack.c.l.b16 %v3192
        %v3389 = vunpack.c.l.b16 %v3193
        %v3390 = vunpack.c.l.b16 %v3194
        %v3391 = vunpack.c.l.b16 %v3195
        %v3392 = vunpack.c.l.b16 %v3196
        %v3393 = vunpack.c.l.b16 %v3197
        %v3394 = vunpack.c.l.b16 %v3198
        %v3395 = vunpack.c.l.b16 %v3199
        %v3396 = vunpack.c.l.b16 %v3200
        %v3397 = vunpack.c.l.b16 %v3201
        %v3398 = vunpack.c.l.b16 %v3202
        %v3399 = vunpack.c.l.b16 %v3203
        %v3400 = vunpack.c.l.b16 %v3204
        %v3401 = vunpack.c.l.b16 %v3205
        %v3402 = vunpack.c.l.b16 %v3206
        %v3403 = vunpack.c.l.b16 %v3207
        %v3404 = vunpack.c.l.b16 %v3208
        %v3405 = vunpack.c.l.b16 %v3209
        %v3406 = vunpack.c.l.b16 %v3210
        %v3407 = vpack.c.b16 %v3384, %v3383
        %v3408 = vpack.c.b16 %v3386, %v3385
        %v3409 = vpack.c.b16 %v3388, %v3387
        %v3410 = vpack.c.b16 %v3390, %v3389
        %v3411 = vpack.c.b16 %v3392, %v3391
        %v3412 = vpack.c.b16 %v3394, %v3393
        %v3413 = vpack.c.b16 %v3396, %v3395
        %v3414 = vpack.c.b16 %v3398, %v3397
        %v3415 = vpack.c.b16 %v3400, %v3399
        %v3416 = vpack.c.b16 %v3402, %v3401
        %v3417 = vpack.c.b16 %v3404, %v3403
        %v3418 = vpack.c.b16 %v3406, %v3405
        %v3432 = vsel %vm2127, %v3242, 0
        %v3435 = vsel %vm2127, %v3246, 0
        %v3438 = vsel %vm2127, %v3250, 0
        %v3441 = vsel %vm2127, %v3254, 0
        %v3444 = vsel %vm2127, %v3258, 0
        %v3447 = vsel %vm2127, %v3262, 0
        %v3450 = vsel %vm2127, %v3266, 0
        %v3453 = vsel %vm2127, %v3270, 0
        %v3456 = vsel %vm2127, %v3274, 0
        %v3459 = vsel %vm2127, %v3278, 0
        %v3462 = vsel %vm2127, %v3282, 0
        %v3465 = vsel %vm2127, %v3286, 0
        %v3468 = vsel %vm2127, %v3290, 0
        %v3471 = vsel %vm2127, %v3294, 0
        %v3474 = vsel %vm2127, %v3298, 0
        %v3477 = vsel %vm2127, %v3302, 0
        %v3480 = vsel %vm2127, %v3306, 0
        %v3483 = vsel %vm2127, %v3310, 0
        %v3486 = vsel %vm2127, %v3314, 0
        %v3489 = vsel %vm2127, %v3318, 0
        %v3492 = vsel %vm2127, %v3322, 0
        %v3495 = vsel %vm2127, %v3326, 0
        %v3498 = vsel %vm2127, %v3330, 0
        %v3501 = vsel %vm2127, %v3334, 0
        %3503 = vmatprep.subr.bf16.mxu0 0
        %3504 = vmatpush1.bf16.msra.mxu0 %v3407
        %3505 = vmatprep.subr.bf16.mxu0 0
        %3506 = vmatpush1.bf16.msra.mxu0 %v3408
        %3507 = vmatprep.subr.bf16.mxu0 0
        %3508 = vmatpush1.bf16.msra.mxu0 %v3409
        %3509 = vmatprep.subr.bf16.mxu0 0
        %3510 = vmatpush1.bf16.msra.mxu0 %v3410
        %3511 = vmatprep.subr.bf16.mxu0 0
        %3512 = vmatpush1.bf16.msra.mxu0 %v3411
        %3513 = vmatprep.subr.bf16.mxu0 0
        %3514 = vmatpush1.bf16.msra.mxu0 %v3412
        %3515 = vmatprep.subr.bf16.mxu0 0
        %3516 = vmatpush1.bf16.msra.mxu0 %v3413
        %3517 = vmatprep.subr.bf16.mxu0 0
        %3518 = vmatpush1.bf16.msra.mxu0 %v3414
        %3519 = vmatprep.subr.bf16.mxu0 0
        %3520 = vmatpush1.bf16.msra.mxu0 %v3415
        %3521 = vmatprep.subr.bf16.mxu0 0
        %3522 = vmatpush1.bf16.msra.mxu0 %v3416
        %3523 = vmatprep.subr.bf16.mxu0 0
        %3524 = vmatpush1.bf16.msra.mxu0 %v3417
        %3525 = vmatprep.subr.bf16.mxu0 0
        %3526 = vmatpush1.bf16.msra.mxu0 %v3418
        %3527 = vmatprep.subr.bf16.mxu0 0
        %3528 = vmatpush1.bf16.msra.mxu0 0
        %3529 = vmatprep.subr.bf16.mxu0 0
        %3530 = vmatpush1.bf16.msra.mxu0 0
        %3531 = vmatprep.subr.bf16.mxu0 0
        %3532 = vmatpush1.bf16.msra.mxu0 0
        %3533 = vmatprep.subr.bf16.mxu0 0
        %3534 = vmatpush1.bf16.msra.mxu0 0
        %3535 = vmatprep.mubr.bf16.mxu0 %v3432
        %3536 = vmatmul.mubr.bf16.gmra.mrb[0].mxu0 %v3239
        %v3537 = vpop.f32.mrb[0].mxu0
        %v3538 = vadd.f32 0.0, %v3537
        %v3539 = vpop.f32.mrb[0].mxu0
        %v3540 = vpop.f32.mrb[0].mxu0
        %v3541 = vadd.f32 0.0, %v3540
        %v3542 = vpop.f32.mrb[0].mxu0
        %3543 = vmatprep.mubr.bf16.mxu0 %v3435
        %3544 = vmatmul.mubr.bf16.gmra.mrb[0].mxu0 %v3244
        %v3545 = vpop.f32.mrb[0].mxu0
        %v3546 = vadd.f32 0.0, %v3545
        %v3547 = vpop.f32.mrb[0].mxu0
        %v3548 = vpop.f32.mrb[0].mxu0
        %v3549 = vadd.f32 0.0, %v3548
        %v3550 = vpop.f32.mrb[0].mxu0
        %3551 = vmatprep.mubr.bf16.mxu0 %v3438
        %3552 = vmatmul.mubr.bf16.gmra.mrb[0].mxu0 %v3248
        %v3553 = vpop.f32.mrb[0].mxu0
        %v3554 = vadd.f32 0.0, %v3553
        %v3555 = vpop.f32.mrb[0].mxu0
        %v3556 = vpop.f32.mrb[0].mxu0
        %v3557 = vadd.f32 0.0, %v3556
        %v3558 = vpop.f32.mrb[0].mxu0
        %3559 = vmatprep.mubr.bf16.mxu0 %v3441
        %3560 = vmatmul.mubr.bf16.gmra.mrb[0].mxu0 %v3252
        %v3561 = vpop.f32.mrb[0].mxu0
        %v3562 = vadd.f32 0.0, %v3561
        %v3563 = vpop.f32.mrb[0].mxu0
        %v3564 = vpop.f32.mrb[0].mxu0
        %v3565 = vadd.f32 0.0, %v3564
        %v3566 = vpop.f32.mrb[0].mxu0
        %3567 = vmatprep.mubr.bf16.mxu0 %v3444
        %3568 = vmatmul.mubr.bf16.gmra.mrb[0].mxu0 %v3256
        %v3569 = vpop.f32.mrb[0].mxu0
        %v3570 = vadd.f32 0.0, %v3569
        %v3571 = vpop.f32.mrb[0].mxu0
        %v3572 = vpop.f32.mrb[0].mxu0
        %v3573 = vadd.f32 0.0, %v3572
        %v3574 = vpop.f32.mrb[0].mxu0
        %3575 = vmatprep.mubr.bf16.mxu0 %v3447
        %3576 = vmatmul.mubr.bf16.gmra.mrb[0].mxu0 %v3260
        %v3577 = vpop.f32.mrb[0].mxu0
        %v3578 = vadd.f32 0.0, %v3577
        %v3579 = vpop.f32.mrb[0].mxu0
        %v3580 = vpop.f32.mrb[0].mxu0
        %v3581 = vadd.f32 0.0, %v3580
        %v3582 = vpop.f32.mrb[0].mxu0
        %3583 = vmatprep.mubr.bf16.mxu0 %v3450
        %3584 = vmatmul.mubr.bf16.gmra.mrb[0].mxu0 %v3264
        %v3585 = vpop.f32.mrb[0].mxu0
        %v3586 = vadd.f32 0.0, %v3585
        %v3587 = vpop.f32.mrb[0].mxu0
        %v3588 = vpop.f32.mrb[0].mxu0
        %v3589 = vadd.f32 0.0, %v3588
        %v3590 = vpop.f32.mrb[0].mxu0
        %3591 = vmatprep.mubr.bf16.mxu0 %v3453
        %3592 = vmatmul.mubr.bf16.gmra.mrb[0].mxu0 %v3268
        %v3593 = vpop.f32.mrb[0].mxu0
        %v3594 = vadd.f32 0.0, %v3593
        %v3595 = vpop.f32.mrb[0].mxu0
        %v3596 = vpop.f32.mrb[0].mxu0
        %v3597 = vadd.f32 0.0, %v3596
        %v3598 = vpop.f32.mrb[0].mxu0
        %3599 = vmatprep.mubr.bf16.mxu0 %v3456
        %3600 = vmatmul.mubr.bf16.gmra.mrb[0].mxu0 %v3272
        %v3601 = vpop.f32.mrb[0].mxu0
        %v3602 = vadd.f32 0.0, %v3601
        %v3603 = vpop.f32.mrb[0].mxu0
        %v3604 = vpop.f32.mrb[0].mxu0
        %v3605 = vadd.f32 0.0, %v3604
        %v3606 = vpop.f32.mrb[0].mxu0
        %3607 = vmatprep.mubr.bf16.mxu0 %v3459
        %3608 = vmatmul.mubr.bf16.gmra.mrb[0].mxu0 %v3276
        %v3609 = vpop.f32.mrb[0].mxu0
        %v3610 = vadd.f32 0.0, %v3609
        %v3611 = vpop.f32.mrb[0].mxu0
        %v3612 = vpop.f32.mrb[0].mxu0
        %v3613 = vadd.f32 0.0, %v3612
        %v3614 = vpop.f32.mrb[0].mxu0
        %3615 = vmatprep.mubr.bf16.mxu0 %v3462
        %3616 = vmatmul.mubr.bf16.gmra.mrb[0].mxu0 %v3280
        %v3617 = vpop.f32.mrb[0].mxu0
        %v3618 = vadd.f32 0.0, %v3617
        %v3619 = vpop.f32.mrb[0].mxu0
        %v3620 = vpop.f32.mrb[0].mxu0
        %v3621 = vadd.f32 0.0, %v3620
        %v3622 = vpop.f32.mrb[0].mxu0
        %3623 = vmatprep.mubr.bf16.mxu0 %v3465
        %3624 = vmatmul.mubr.bf16.gmra.mrb[0].mxu0 %v3284
        %v3625 = vpop.f32.mrb[0].mxu0
        %v3626 = vadd.f32 0.0, %v3625
        %v3627 = vpop.f32.mrb[0].mxu0
        %v3628 = vpop.f32.mrb[0].mxu0
        %v3629 = vadd.f32 0.0, %v3628
        %v3630 = vpop.f32.mrb[0].mxu0
        %3631 = vmatprep.mubr.bf16.mxu0 %v3468
        %3632 = vmatmul.mubr.bf16.gmra.mrb[0].mxu0 %v3288
        %v3633 = vpop.f32.mrb[0].mxu0
        %v3634 = vadd.f32 0.0, %v3633
        %v3635 = vpop.f32.mrb[0].mxu0
        %v3636 = vpop.f32.mrb[0].mxu0
        %v3637 = vadd.f32 0.0, %v3636
        %v3638 = vpop.f32.mrb[0].mxu0
        %3639 = vmatprep.mubr.bf16.mxu0 %v3471
        %3640 = vmatmul.mubr.bf16.gmra.mrb[0].mxu0 %v3292
        %v3641 = vpop.f32.mrb[0].mxu0
        %v3642 = vadd.f32 0.0, %v3641
        %v3643 = vpop.f32.mrb[0].mxu0
        %v3644 = vpop.f32.mrb[0].mxu0
        %v3645 = vadd.f32 0.0, %v3644
        %v3646 = vpop.f32.mrb[0].mxu0
        %3647 = vmatprep.mubr.bf16.mxu0 %v3474
        %3648 = vmatmul.mubr.bf16.gmra.mrb[0].mxu0 %v3296
        %v3649 = vpop.f32.mrb[0].mxu0
        %v3650 = vadd.f32 0.0, %v3649
        %v3651 = vpop.f32.mrb[0].mxu0
        %v3652 = vpop.f32.mrb[0].mxu0
        %v3653 = vadd.f32 0.0, %v3652
        %v3654 = vpop.f32.mrb[0].mxu0
        %3655 = vmatprep.mubr.bf16.mxu0 %v3477
        %3656 = vmatmul.mubr.bf16.gmra.mrb[0].mxu0 %v3300
        %v3657 = vpop.f32.mrb[0].mxu0
        %v3658 = vadd.f32 0.0, %v3657
        %v3659 = vpop.f32.mrb[0].mxu0
        %v3660 = vpop.f32.mrb[0].mxu0
        %v3661 = vadd.f32 0.0, %v3660
        %v3662 = vpop.f32.mrb[0].mxu0
        %3663 = vmatprep.mubr.bf16.mxu0 %v3480
        %3664 = vmatmul.mubr.bf16.gmra.mrb[0].mxu0 %v3304
        %v3665 = vpop.f32.mrb[0].mxu0
        %v3666 = vadd.f32 0.0, %v3665
        %v3667 = vpop.f32.mrb[0].mxu0
        %v3668 = vpop.f32.mrb[0].mxu0
        %v3669 = vadd.f32 0.0, %v3668
        %v3670 = vpop.f32.mrb[0].mxu0
        %3671 = vmatprep.mubr.bf16.mxu0 %v3483
        %3672 = vmatmul.mubr.bf16.gmra.mrb[0].mxu0 %v3308
        %v3673 = vpop.f32.mrb[0].mxu0
        %v3674 = vadd.f32 0.0, %v3673
        %v3675 = vpop.f32.mrb[0].mxu0
        %v3676 = vpop.f32.mrb[0].mxu0
        %v3677 = vadd.f32 0.0, %v3676
        %v3678 = vpop.f32.mrb[0].mxu0
        %3679 = vmatprep.mubr.bf16.mxu0 %v3486
        %3680 = vmatmul.mubr.bf16.gmra.mrb[0].mxu0 %v3312
        %v3681 = vpop.f32.mrb[0].mxu0
        %v3682 = vadd.f32 0.0, %v3681
        %v3683 = vpop.f32.mrb[0].mxu0
        %v3684 = vpop.f32.mrb[0].mxu0
        %v3685 = vadd.f32 0.0, %v3684
        %v3686 = vpop.f32.mrb[0].mxu0
        %3687 = vmatprep.mubr.bf16.mxu0 %v3489
        %3688 = vmatmul.mubr.bf16.gmra.mrb[0].mxu0 %v3316
        %v3689 = vpop.f32.mrb[0].mxu0
        %v3690 = vadd.f32 0.0, %v3689
        %v3691 = vpop.f32.mrb[0].mxu0
        %v3692 = vpop.f32.mrb[0].mxu0
        %v3693 = vadd.f32 0.0, %v3692
        %v3694 = vpop.f32.mrb[0].mxu0
        %3695 = vmatprep.mubr.bf16.mxu0 %v3492
        %3696 = vmatmul.mubr.bf16.gmra.mrb[0].mxu0 %v3320
        %v3697 = vpop.f32.mrb[0].mxu0
        %v3698 = vadd.f32 0.0, %v3697
        %v3699 = vpop.f32.mrb[0].mxu0
        %v3700 = vpop.f32.mrb[0].mxu0
        %v3701 = vadd.f32 0.0, %v3700
        %v3702 = vpop.f32.mrb[0].mxu0
        %3703 = vmatprep.mubr.bf16.mxu0 %v3495
        %3704 = vmatmul.mubr.bf16.gmra.mrb[0].mxu0 %v3324
        %v3705 = vpop.f32.mrb[0].mxu0
        %v3706 = vadd.f32 0.0, %v3705
        %v3707 = vpop.f32.mrb[0].mxu0
        %v3708 = vpop.f32.mrb[0].mxu0
        %v3709 = vadd.f32 0.0, %v3708
        %v3710 = vpop.f32.mrb[0].mxu0
        %3711 = vmatprep.mubr.bf16.mxu0 %v3498
        %3712 = vmatmul.mubr.bf16.gmra.mrb[0].mxu0 %v3328
        %v3713 = vpop.f32.mrb[0].mxu0
        %v3714 = vadd.f32 0.0, %v3713
        %v3715 = vpop.f32.mrb[0].mxu0
        %v3716 = vpop.f32.mrb[0].mxu0
        %v3717 = vadd.f32 0.0, %v3716
        %v3718 = vpop.f32.mrb[0].mxu0
        %3719 = vmatprep.mubr.bf16.mxu0 %v3501
        %3720 = vmatmul.mubr.bf16.gmra.mrb[0].mxu0 %v3332
        %v3721 = vpop.f32.mrb[0].mxu0
        %v3722 = vadd.f32 0.0, %v3721
        %v3723 = vpop.f32.mrb[0].mxu0
        %v3724 = vpop.f32.mrb[0].mxu0
        %v3725 = vadd.f32 0.0, %v3724
        %v3726 = vpop.f32.mrb[0].mxu0
        %3727 = vdwg.mxu0
        %v3752 = vunpack.c.l.b16 %v3162
        %v3753 = vunpack.c.l.b16 %v3163
        %v3754 = vunpack.c.l.b16 %v3164
        %v3755 = vunpack.c.l.b16 %v3165
        %v3756 = vunpack.c.l.b16 %v3166
        %v3757 = vunpack.c.l.b16 %v3167
        %v3758 = vunpack.c.l.b16 %v3168
        %v3759 = vunpack.c.l.b16 %v3169
        %v3760 = vunpack.c.l.b16 %v3170
        %v3761 = vunpack.c.l.b16 %v3171
        %v3762 = vunpack.c.l.b16 %v3172
        %v3763 = vunpack.c.l.b16 %v3173
        %v3764 = vunpack.c.l.b16 %v3174
        %v3765 = vunpack.c.l.b16 %v3175
        %v3766 = vunpack.c.l.b16 %v3176
        %v3767 = vunpack.c.l.b16 %v3177
        %v3768 = vunpack.c.l.b16 %v3178
        %v3769 = vunpack.c.l.b16 %v3179
        %v3770 = vunpack.c.l.b16 %v3180
        %v3771 = vunpack.c.l.b16 %v3181
        %v3772 = vunpack.c.l.b16 %v3182
        %v3773 = vunpack.c.l.b16 %v3183
        %v3774 = vunpack.c.l.b16 %v3184
        %v3775 = vunpack.c.l.b16 %v3185
        %v3776 = vpack.c.b16 %v3753, %v3752
        %v3777 = vpack.c.b16 %v3755, %v3754
        %v3778 = vpack.c.b16 %v3757, %v3756
        %v3779 = vpack.c.b16 %v3759, %v3758
        %v3780 = vpack.c.b16 %v3761, %v3760
        %v3781 = vpack.c.b16 %v3763, %v3762
        %v3782 = vpack.c.b16 %v3765, %v3764
        %v3783 = vpack.c.b16 %v3767, %v3766
        %v3784 = vpack.c.b16 %v3769, %v3768
        %v3785 = vpack.c.b16 %v3771, %v3770
        %v3786 = vpack.c.b16 %v3773, %v3772
        %v3787 = vpack.c.b16 %v3775, %v3774
        %v3801 = vsel %vm2127, %v2892, 0
        %v3804 = vsel %vm2127, %v2895, 0
        %v3807 = vsel %vm2127, %v2898, 0
        %v3810 = vsel %vm2127, %v2901, 0
        %v3813 = vsel %vm2127, %v2904, 0
        %v3816 = vsel %vm2127, %v2907, 0
        %v3819 = vsel %vm2127, %v2910, 0
        %v3822 = vsel %vm2127, %v2913, 0
        %v3825 = vsel %vm2127, %v2916, 0
        %v3828 = vsel %vm2127, %v2919, 0
        %v3831 = vsel %vm2127, %v2922, 0
        %v3834 = vsel %vm2127, %v2925, 0
        %v3837 = vsel %vm2127, %v2928, 0
        %v3840 = vsel %vm2127, %v2931, 0
        %v3843 = vsel %vm2127, %v2934, 0
        %v3846 = vsel %vm2127, %v2937, 0
        %v3849 = vsel %vm2127, %v2940, 0
        %v3852 = vsel %vm2127, %v2943, 0
        %v3855 = vsel %vm2127, %v2946, 0
        %v3858 = vsel %vm2127, %v2949, 0
        %v3861 = vsel %vm2127, %v2952, 0
        %v3864 = vsel %vm2127, %v2955, 0
        %v3867 = vsel %vm2127, %v2958, 0
        %v3870 = vsel %vm2127, %v2961, 0
        %3872 = vmatprep.subr.bf16.mxu0 0
        %3873 = vmatpush1.bf16.msra.mxu0 %v3776
        %3874 = vmatprep.subr.bf16.mxu0 0
        %3875 = vmatpush1.bf16.msra.mxu0 %v3777
        %3876 = vmatprep.subr.bf16.mxu0 0
        %3877 = vmatpush1.bf16.msra.mxu0 %v3778
        %3878 = vmatprep.subr.bf16.mxu0 0
        %3879 = vmatpush1.bf16.msra.mxu0 %v3779
        %3880 = vmatprep.subr.bf16.mxu0 0
        %3881 = vmatpush1.bf16.msra.mxu0 %v3780
        %3882 = vmatprep.subr.bf16.mxu0 0
        %3883 = vmatpush1.bf16.msra.mxu0 %v3781
        %3884 = vmatprep.subr.bf16.mxu0 0
        %3885 = vmatpush1.bf16.msra.mxu0 %v3782
        %3886 = vmatprep.subr.bf16.mxu0 0
        %3887 = vmatpush1.bf16.msra.mxu0 %v3783
        %3888 = vmatprep.subr.bf16.mxu0 0
        %3889 = vmatpush1.bf16.msra.mxu0 %v3784
        %3890 = vmatprep.subr.bf16.mxu0 0
        %3891 = vmatpush1.bf16.msra.mxu0 %v3785
        %3892 = vmatprep.subr.bf16.mxu0 0
        %3893 = vmatpush1.bf16.msra.mxu0 %v3786
        %3894 = vmatprep.subr.bf16.mxu0 0
        %3895 = vmatpush1.bf16.msra.mxu0 %v3787
        %3896 = vmatprep.subr.bf16.mxu0 0
        %3897 = vmatpush1.bf16.msra.mxu0 0
        %3898 = vmatprep.subr.bf16.mxu0 0
        %3899 = vmatpush1.bf16.msra.mxu0 0
        %3900 = vmatprep.subr.bf16.mxu0 0
        %3901 = vmatpush1.bf16.msra.mxu0 0
        %3902 = vmatprep.subr.bf16.mxu0 0
        %3903 = vmatpush1.bf16.msra.mxu0 0
        %3904 = vmatprep.mubr.bf16.mxu0 %v3801
        %3905 = vmatmul.mubr.bf16.gmra.mrb[0].mxu0 %v3056
        %v3906 = vpop.f32.mrb[0].mxu0
        %v3907 = vadd.f32 %v3538, %v3906
        %v3908 = vpop.f32.mrb[0].mxu0
        %v3909 = vpop.f32.mrb[0].mxu0
        %v3910 = vadd.f32 %v3541, %v3909
        %v3911 = vpop.f32.mrb[0].mxu0
        %3912 = vmatprep.mubr.bf16.mxu0 %v3804
        %3913 = vmatmul.mubr.bf16.gmra.mrb[0].mxu0 %v3060
        %v3914 = vpop.f32.mrb[0].mxu0
        %v3915 = vadd.f32 %v3546, %v3914
        %v3916 = vpop.f32.mrb[0].mxu0
        %v3917 = vpop.f32.mrb[0].mxu0
        %v3918 = vadd.f32 %v3549, %v3917
        %v3919 = vpop.f32.mrb[0].mxu0
        %3920 = vmatprep.mubr.bf16.mxu0 %v3807
        %3921 = vmatmul.mubr.bf16.gmra.mrb[0].mxu0 %v3064
        %v3922 = vpop.f32.mrb[0].mxu0
        %v3923 = vadd.f32 %v3554, %v3922
        %v3924 = vpop.f32.mrb[0].mxu0
        %v3925 = vpop.f32.mrb[0].mxu0
        %v3926 = vadd.f32 %v3557, %v3925
        %v3927 = vpop.f32.mrb[0].mxu0
        %3928 = vmatprep.mubr.bf16.mxu0 %v3810
        %3929 = vmatmul.mubr.bf16.gmra.mrb[0].mxu0 %v3068
        %v3930 = vpop.f32.mrb[0].mxu0
        %v3931 = vadd.f32 %v3562, %v3930
        %v3932 = vpop.f32.mrb[0].mxu0
        %v3933 = vpop.f32.mrb[0].mxu0
        %v3934 = vadd.f32 %v3565, %v3933
        %v3935 = vpop.f32.mrb[0].mxu0
        %3936 = vmatprep.mubr.bf16.mxu0 %v3813
        %3937 = vmatmul.mubr.bf16.gmra.mrb[0].mxu0 %v3072
        %v3938 = vpop.f32.mrb[0].mxu0
        %v3939 = vadd.f32 %v3570, %v3938
        %v3940 = vpop.f32.mrb[0].mxu0
        %v3941 = vpop.f32.mrb[0].mxu0
        %v3942 = vadd.f32 %v3573, %v3941
        %v3943 = vpop.f32.mrb[0].mxu0
        %3944 = vmatprep.mubr.bf16.mxu0 %v3816
        %3945 = vmatmul.mubr.bf16.gmra.mrb[0].mxu0 %v3076
        %v3946 = vpop.f32.mrb[0].mxu0
        %v3947 = vadd.f32 %v3578, %v3946
        %v3948 = vpop.f32.mrb[0].mxu0
        %v3949 = vpop.f32.mrb[0].mxu0
        %v3950 = vadd.f32 %v3581, %v3949
        %v3951 = vpop.f32.mrb[0].mxu0
        %3952 = vmatprep.mubr.bf16.mxu0 %v3819
        %3953 = vmatmul.mubr.bf16.gmra.mrb[0].mxu0 %v3080
        %v3954 = vpop.f32.mrb[0].mxu0
        %v3955 = vadd.f32 %v3586, %v3954
        %v3956 = vpop.f32.mrb[0].mxu0
        %v3957 = vpop.f32.mrb[0].mxu0
        %v3958 = vadd.f32 %v3589, %v3957
        %v3959 = vpop.f32.mrb[0].mxu0
        %3960 = vmatprep.mubr.bf16.mxu0 %v3822
        %3961 = vmatmul.mubr.bf16.gmra.mrb[0].mxu0 %v3084
        %v3962 = vpop.f32.mrb[0].mxu0
        %v3963 = vadd.f32 %v3594, %v3962
        %v3964 = vpop.f32.mrb[0].mxu0
        %v3965 = vpop.f32.mrb[0].mxu0
        %v3966 = vadd.f32 %v3597, %v3965
        %v3967 = vpop.f32.mrb[0].mxu0
        %3968 = vmatprep.mubr.bf16.mxu0 %v3825
        %3969 = vmatmul.mubr.bf16.gmra.mrb[0].mxu0 %v3088
        %v3970 = vpop.f32.mrb[0].mxu0
        %v3971 = vadd.f32 %v3602, %v3970
        %v3972 = vpop.f32.mrb[0].mxu0
        %v3973 = vpop.f32.mrb[0].mxu0
        %v3974 = vadd.f32 %v3605, %v3973
        %v3975 = vpop.f32.mrb[0].mxu0
        %3976 = vmatprep.mubr.bf16.mxu0 %v3828
        %3977 = vmatmul.mubr.bf16.gmra.mrb[0].mxu0 %v3092
        %v3978 = vpop.f32.mrb[0].mxu0
        %v3979 = vadd.f32 %v3610, %v3978
        %v3980 = vpop.f32.mrb[0].mxu0
        %v3981 = vpop.f32.mrb[0].mxu0
        %v3982 = vadd.f32 %v3613, %v3981
        %v3983 = vpop.f32.mrb[0].mxu0
        %3984 = vmatprep.mubr.bf16.mxu0 %v3831
        %3985 = vmatmul.mubr.bf16.gmra.mrb[0].mxu0 %v3096
        %v3986 = vpop.f32.mrb[0].mxu0
        %v3987 = vadd.f32 %v3618, %v3986
        %v3988 = vpop.f32.mrb[0].mxu0
        %v3989 = vpop.f32.mrb[0].mxu0
        %v3990 = vadd.f32 %v3621, %v3989
        %v3991 = vpop.f32.mrb[0].mxu0
        %3992 = vmatprep.mubr.bf16.mxu0 %v3834
        %3993 = vmatmul.mubr.bf16.gmra.mrb[0].mxu0 %v3100
        %v3994 = vpop.f32.mrb[0].mxu0
        %v3995 = vadd.f32 %v3626, %v3994
        %v3996 = vpop.f32.mrb[0].mxu0
        %v3997 = vpop.f32.mrb[0].mxu0
        %v3998 = vadd.f32 %v3629, %v3997
        %v3999 = vpop.f32.mrb[0].mxu0
        %4000 = vmatprep.mubr.bf16.mxu0 %v3837
        %4001 = vmatmul.mubr.bf16.gmra.mrb[0].mxu0 %v3104
        %v4002 = vpop.f32.mrb[0].mxu0
        %v4003 = vadd.f32 %v3634, %v4002
        %v4004 = vpop.f32.mrb[0].mxu0
        %v4005 = vpop.f32.mrb[0].mxu0
        %v4006 = vadd.f32 %v3637, %v4005
        %v4007 = vpop.f32.mrb[0].mxu0
        %4008 = vmatprep.mubr.bf16.mxu0 %v3840
        %4009 = vmatmul.mubr.bf16.gmra.mrb[0].mxu0 %v3108
        %v4010 = vpop.f32.mrb[0].mxu0
        %v4011 = vadd.f32 %v3642, %v4010
        %v4012 = vpop.f32.mrb[0].mxu0
        %v4013 = vpop.f32.mrb[0].mxu0
        %v4014 = vadd.f32 %v3645, %v4013
        %v4015 = vpop.f32.mrb[0].mxu0
        %4016 = vmatprep.mubr.bf16.mxu0 %v3843
        %4017 = vmatmul.mubr.bf16.gmra.mrb[0].mxu0 %v3112
        %v4018 = vpop.f32.mrb[0].mxu0
        %v4019 = vadd.f32 %v3650, %v4018
        %v4020 = vpop.f32.mrb[0].mxu0
        %v4021 = vpop.f32.mrb[0].mxu0
        %v4022 = vadd.f32 %v3653, %v4021
        %v4023 = vpop.f32.mrb[0].mxu0
        %4024 = vmatprep.mubr.bf16.mxu0 %v3846
        %4025 = vmatmul.mubr.bf16.gmra.mrb[0].mxu0 %v3116
        %v4026 = vpop.f32.mrb[0].mxu0
        %v4027 = vadd.f32 %v3658, %v4026
        %v4028 = vpop.f32.mrb[0].mxu0
        %v4029 = vpop.f32.mrb[0].mxu0
        %v4030 = vadd.f32 %v3661, %v4029
        %v4031 = vpop.f32.mrb[0].mxu0
        %4032 = vmatprep.mubr.bf16.mxu0 %v3849
        %4033 = vmatmul.mubr.bf16.gmra.mrb[0].mxu0 %v3120
        %v4034 = vpop.f32.mrb[0].mxu0
        %v4035 = vadd.f32 %v3666, %v4034
        %v4036 = vpop.f32.mrb[0].mxu0
        %v4037 = vpop.f32.mrb[0].mxu0
        %v4038 = vadd.f32 %v3669, %v4037
        %v4039 = vpop.f32.mrb[0].mxu0
        %4040 = vmatprep.mubr.bf16.mxu0 %v3852
        %4041 = vmatmul.mubr.bf16.gmra.mrb[0].mxu0 %v3124
        %v4042 = vpop.f32.mrb[0].mxu0
        %v4043 = vadd.f32 %v3674, %v4042
        %v4044 = vpop.f32.mrb[0].mxu0
        %v4045 = vpop.f32.mrb[0].mxu0
        %v4046 = vadd.f32 %v3677, %v4045
        %v4047 = vpop.f32.mrb[0].mxu0
        %4048 = vmatprep.mubr.bf16.mxu0 %v3855
        %4049 = vmatmul.mubr.bf16.gmra.mrb[0].mxu0 %v3128
        %v4050 = vpop.f32.mrb[0].mxu0
        %v4051 = vadd.f32 %v3682, %v4050
        %v4052 = vpop.f32.mrb[0].mxu0
        %v4053 = vpop.f32.mrb[0].mxu0
        %v4054 = vadd.f32 %v3685, %v4053
        %v4055 = vpop.f32.mrb[0].mxu0
        %4056 = vmatprep.mubr.bf16.mxu0 %v3858
        %4057 = vmatmul.mubr.bf16.gmra.mrb[0].mxu0 %v3132
        %v4058 = vpop.f32.mrb[0].mxu0
        %v4059 = vadd.f32 %v3690, %v4058
        %v4060 = vpop.f32.mrb[0].mxu0
        %v4061 = vpop.f32.mrb[0].mxu0
        %v4062 = vadd.f32 %v3693, %v4061
        %v4063 = vpop.f32.mrb[0].mxu0
        %4064 = vmatprep.mubr.bf16.mxu0 %v3861
        %4065 = vmatmul.mubr.bf16.gmra.mrb[0].mxu0 %v3136
        %v4066 = vpop.f32.mrb[0].mxu0
        %v4067 = vadd.f32 %v3698, %v4066
        %v4068 = vpop.f32.mrb[0].mxu0
        %v4069 = vpop.f32.mrb[0].mxu0
        %v4070 = vadd.f32 %v3701, %v4069
        %v4071 = vpop.f32.mrb[0].mxu0
        %4072 = vmatprep.mubr.bf16.mxu0 %v3864
        %4073 = vmatmul.mubr.bf16.gmra.mrb[0].mxu0 %v3140
        %v4074 = vpop.f32.mrb[0].mxu0
        %v4075 = vadd.f32 %v3706, %v4074
        %v4076 = vpop.f32.mrb[0].mxu0
        %v4077 = vpop.f32.mrb[0].mxu0
        %v4078 = vadd.f32 %v3709, %v4077
        %v4079 = vpop.f32.mrb[0].mxu0
        %4080 = vmatprep.mubr.bf16.mxu0 %v3867
        %4081 = vmatmul.mubr.bf16.gmra.mrb[0].mxu0 %v3144
        %v4082 = vpop.f32.mrb[0].mxu0
        %v4083 = vadd.f32 %v3714, %v4082
        %v4084 = vpop.f32.mrb[0].mxu0
        %v4085 = vpop.f32.mrb[0].mxu0
        %v4086 = vadd.f32 %v3717, %v4085
        %v4087 = vpop.f32.mrb[0].mxu0
        %4088 = vmatprep.mubr.bf16.mxu0 %v3870
        %4089 = vmatmul.mubr.bf16.gmra.mrb[0].mxu0 %v3148
        %v4090 = vpop.f32.mrb[0].mxu0
        %v4091 = vadd.f32 %v3722, %v4090
        %v4092 = vpop.f32.mrb[0].mxu0
        %v4093 = vpop.f32.mrb[0].mxu0
        %v4094 = vadd.f32 %v3725, %v4093
        %v4095 = vpop.f32.mrb[0].mxu0
        %4096 = vdwg.mxu0
        %s4097 = scalar_lea.vmem [#allocation11], 192
        %v4098 = vld [vmem:[%s4097] sm:$0xf]
        %v4099 = vld [vmem:[%s4097 + $0x4] sm:$0xf]
        %v4100 = vld [vmem:[%s4097 + $0x8] sm:$0xf]
        %v4101 = vld [vmem:[%s4097 + $0xc] sm:$0xf]
        %v4102 = vld [vmem:[%s4097 + $0x10] sm:$0xf]
        %v4103 = vld [vmem:[%s4097 + $0x14] sm:$0xf]
        %v4104 = vld [vmem:[%s4097 + $0x18] sm:$0xf]
        %v4105 = vld [vmem:[%s4097 + $0x1c] sm:$0xf]
        %v4106 = vld [vmem:[%s4097 + $0x20] sm:$0xf]
        %v4107 = vld [vmem:[%s4097 + $0x24] sm:$0xf]
        %v4108 = vld [vmem:[%s4097 + $0x28] sm:$0xf]
        %v4109 = vld [vmem:[%s4097 + $0x2c] sm:$0xf]
        %v4110 = vld [vmem:[%s4097 + $0x30] sm:$0xf]
        %v4111 = vld [vmem:[%s4097 + $0x34] sm:$0xf]
        %v4112 = vld [vmem:[%s4097 + $0x38] sm:$0xf]
        %v4113 = vld [vmem:[%s4097 + $0x3c] sm:$0xf]
        %v4114 = vld [vmem:[%s4097 + $0x40] sm:$0xf]
        %v4115 = vld [vmem:[%s4097 + $0x44] sm:$0xf]
        %v4116 = vld [vmem:[%s4097 + $0x48] sm:$0xf]
        %v4117 = vld [vmem:[%s4097 + $0x4c] sm:$0xf]
        %v4118 = vld [vmem:[%s4097 + $0x50] sm:$0xf]
        %v4119 = vld [vmem:[%s4097 + $0x54] sm:$0xf]
        %v4120 = vld [vmem:[%s4097 + $0x58] sm:$0xf]
        %v4121 = vld [vmem:[%s4097 + $0x5c] sm:$0xf]
        %v4146 = vunpack.c.l.b16 %v4098
        %v4147 = vunpack.c.l.b16 %v4099
        %v4148 = vunpack.c.l.b16 %v4100
        %v4149 = vunpack.c.l.b16 %v4101
        %v4150 = vunpack.c.l.b16 %v4102
        %v4151 = vunpack.c.l.b16 %v4103
        %v4152 = vunpack.c.l.b16 %v4104
        %v4153 = vunpack.c.l.b16 %v4105
        %v4154 = vunpack.c.l.b16 %v4106
        %v4155 = vunpack.c.l.b16 %v4107
        %v4156 = vunpack.c.l.b16 %v4108
        %v4157 = vunpack.c.l.b16 %v4109
        %v4158 = vunpack.c.l.b16 %v4110
        %v4159 = vunpack.c.l.b16 %v4111
        %v4160 = vunpack.c.l.b16 %v4112
        %v4161 = vunpack.c.l.b16 %v4113
        %v4162 = vunpack.c.l.b16 %v4114
        %v4163 = vunpack.c.l.b16 %v4115
        %v4164 = vunpack.c.l.b16 %v4116
        %v4165 = vunpack.c.l.b16 %v4117
        %v4166 = vunpack.c.l.b16 %v4118
        %v4167 = vunpack.c.l.b16 %v4119
        %v4168 = vunpack.c.l.b16 %v4120
        %v4169 = vunpack.c.l.b16 %v4121
        %v4170 = vpack.c.b16 %v4147, %v4146
        %v4171 = vpack.c.b16 %v4149, %v4148
        %v4172 = vpack.c.b16 %v4151, %v4150
        %v4173 = vpack.c.b16 %v4153, %v4152
        %v4174 = vpack.c.b16 %v4155, %v4154
        %v4175 = vpack.c.b16 %v4157, %v4156
        %v4176 = vpack.c.b16 %v4159, %v4158
        %v4177 = vpack.c.b16 %v4161, %v4160
        %v4178 = vpack.c.b16 %v4163, %v4162
        %v4179 = vpack.c.b16 %v4165, %v4164
        %v4180 = vpack.c.b16 %v4167, %v4166
        %v4181 = vpack.c.b16 %v4169, %v4168
        %v4195 = vsel %vm2127, %v2964, 0
        %v4198 = vsel %vm2127, %v2967, 0
        %v4201 = vsel %vm2127, %v2972, 0
        %4203 = vmatprep.subr.bf16.mxu0 0
        %4204 = vmatpush1.bf16.msra.mxu0 %v4170
        %4205 = vmatprep.subr.bf16.mxu0 0
        %4206 = vmatpush1.bf16.msra.mxu0 %v4171
        %4207 = vmatprep.subr.bf16.mxu0 0
        %4208 = vmatpush1.bf16.msra.mxu0 %v4172
        %4209 = vmatprep.subr.bf16.mxu0 0
        %4210 = vmatpush1.bf16.msra.mxu0 %v4173
        %4211 = vmatprep.subr.bf16.mxu0 0
        %4212 = vmatpush1.bf16.msra.mxu0 %v4174
        %4213 = vmatprep.subr.bf16.mxu0 0
        %4214 = vmatpush1.bf16.msra.mxu0 %v4175
        %4215 = vmatprep.subr.bf16.mxu0 0
        %4216 = vmatpush1.bf16.msra.mxu0 %v4176
        %4217 = vmatprep.subr.bf16.mxu0 0
        %4218 = vmatpush1.bf16.msra.mxu0 %v4177
        %4219 = vmatprep.subr.bf16.mxu0 0
        %4220 = vmatpush1.bf16.msra.mxu0 %v4178
        %4221 = vmatprep.subr.bf16.mxu0 0
        %4222 = vmatpush1.bf16.msra.mxu0 %v4179
        %4223 = vmatprep.subr.bf16.mxu0 0
        %4224 = vmatpush1.bf16.msra.mxu0 %v4180
        %4225 = vmatprep.subr.bf16.mxu0 0
        %4226 = vmatpush1.bf16.msra.mxu0 %v4181
        %4227 = vmatprep.subr.bf16.mxu0 0
        %4228 = vmatpush1.bf16.msra.mxu0 0
        %4229 = vmatprep.subr.bf16.mxu0 0
        %4230 = vmatpush1.bf16.msra.mxu0 0
        %4231 = vmatprep.subr.bf16.mxu0 0
        %4232 = vmatpush1.bf16.msra.mxu0 0
        %4233 = vmatprep.subr.bf16.mxu0 0
        %4234 = vmatpush1.bf16.msra.mxu0 0
        %4235 = vmatprep.mubr.bf16.mxu0 %v3810
        %4236 = vmatmul.mubr.bf16.gmra.mrb[0].mxu0 %v3068
        %v4237 = vpop.f32.mrb[0].mxu0
        %v4238 = vadd.f32 0.0, %v4237
        %v4239 = vpop.f32.mrb[0].mxu0
        %v4240 = vpop.f32.mrb[0].mxu0
        %v4241 = vadd.f32 0.0, %v4240
        %v4242 = vpop.f32.mrb[0].mxu0
        %4243 = vmatprep.mubr.bf16.mxu0 %v3813
        %4244 = vmatmul.mubr.bf16.gmra.mrb[0].mxu0 %v3072
        %v4245 = vpop.f32.mrb[0].mxu0
        %v4246 = vadd.f32 0.0, %v4245
        %v4247 = vpop.f32.mrb[0].mxu0
        %v4248 = vpop.f32.mrb[0].mxu0
        %v4249 = vadd.f32 0.0, %v4248
        %v4250 = vpop.f32.mrb[0].mxu0
        %4251 = vmatprep.mubr.bf16.mxu0 %v3816
        %4252 = vmatmul.mubr.bf16.gmra.mrb[0].mxu0 %v3076
        %v4253 = vpop.f32.mrb[0].mxu0
        %v4254 = vadd.f32 0.0, %v4253
        %v4255 = vpop.f32.mrb[0].mxu0
        %v4256 = vpop.f32.mrb[0].mxu0
        %v4257 = vadd.f32 0.0, %v4256
        %v4258 = vpop.f32.mrb[0].mxu0
        %4259 = vmatprep.mubr.bf16.mxu0 %v3819
        %4260 = vmatmul.mubr.bf16.gmra.mrb[0].mxu0 %v3080
        %v4261 = vpop.f32.mrb[0].mxu0
        %v4262 = vadd.f32 0.0, %v4261
        %v4263 = vpop.f32.mrb[0].mxu0
        %v4264 = vpop.f32.mrb[0].mxu0
        %v4265 = vadd.f32 0.0, %v4264
        %v4266 = vpop.f32.mrb[0].mxu0
        %4267 = vmatprep.mubr.bf16.mxu0 %v3822
        %4268 = vmatmul.mubr.bf16.gmra.mrb[0].mxu0 %v3084
        %v4269 = vpop.f32.mrb[0].mxu0
        %v4270 = vadd.f32 0.0, %v4269
        %v4271 = vpop.f32.mrb[0].mxu0
        %v4272 = vpop.f32.mrb[0].mxu0
        %v4273 = vadd.f32 0.0, %v4272
        %v4274 = vpop.f32.mrb[0].mxu0
        %4275 = vmatprep.mubr.bf16.mxu0 %v3825
        %4276 = vmatmul.mubr.bf16.gmra.mrb[0].mxu0 %v3088
        %v4277 = vpop.f32.mrb[0].mxu0
        %v4278 = vadd.f32 0.0, %v4277
        %v4279 = vpop.f32.mrb[0].mxu0
        %v4280 = vpop.f32.mrb[0].mxu0
        %v4281 = vadd.f32 0.0, %v4280
        %v4282 = vpop.f32.mrb[0].mxu0
        %4283 = vmatprep.mubr.bf16.mxu0 %v3828
        %4284 = vmatmul.mubr.bf16.gmra.mrb[0].mxu0 %v3092
        %v4285 = vpop.f32.mrb[0].mxu0
        %v4286 = vadd.f32 0.0, %v4285
        %v4287 = vpop.f32.mrb[0].mxu0
        %v4288 = vpop.f32.mrb[0].mxu0
        %v4289 = vadd.f32 0.0, %v4288
        %v4290 = vpop.f32.mrb[0].mxu0
        %4291 = vmatprep.mubr.bf16.mxu0 %v3831
        %4292 = vmatmul.mubr.bf16.gmra.mrb[0].mxu0 %v3096
        %v4293 = vpop.f32.mrb[0].mxu0
        %v4294 = vadd.f32 0.0, %v4293
        %v4295 = vpop.f32.mrb[0].mxu0
        %v4296 = vpop.f32.mrb[0].mxu0
        %v4297 = vadd.f32 0.0, %v4296
        %v4298 = vpop.f32.mrb[0].mxu0
        %4299 = vmatprep.mubr.bf16.mxu0 %v3834
        %4300 = vmatmul.mubr.bf16.gmra.mrb[0].mxu0 %v3100
        %v4301 = vpop.f32.mrb[0].mxu0
        %v4302 = vadd.f32 0.0, %v4301
        %v4303 = vpop.f32.mrb[0].mxu0
        %v4304 = vpop.f32.mrb[0].mxu0
        %v4305 = vadd.f32 0.0, %v4304
        %v4306 = vpop.f32.mrb[0].mxu0
        %4307 = vmatprep.mubr.bf16.mxu0 %v3837
        %4308 = vmatmul.mubr.bf16.gmra.mrb[0].mxu0 %v3104
        %v4309 = vpop.f32.mrb[0].mxu0
        %v4310 = vadd.f32 0.0, %v4309
        %v4311 = vpop.f32.mrb[0].mxu0
        %v4312 = vpop.f32.mrb[0].mxu0
        %v4313 = vadd.f32 0.0, %v4312
        %v4314 = vpop.f32.mrb[0].mxu0
        %4315 = vmatprep.mubr.bf16.mxu0 %v3840
        %4316 = vmatmul.mubr.bf16.gmra.mrb[0].mxu0 %v3108
        %v4317 = vpop.f32.mrb[0].mxu0
        %v4318 = vadd.f32 0.0, %v4317
        %v4319 = vpop.f32.mrb[0].mxu0
        %v4320 = vpop.f32.mrb[0].mxu0
        %v4321 = vadd.f32 0.0, %v4320
        %v4322 = vpop.f32.mrb[0].mxu0
        %4323 = vmatprep.mubr.bf16.mxu0 %v3843
        %4324 = vmatmul.mubr.bf16.gmra.mrb[0].mxu0 %v3112
        %v4325 = vpop.f32.mrb[0].mxu0
        %v4326 = vadd.f32 0.0, %v4325
        %v4327 = vpop.f32.mrb[0].mxu0
        %v4328 = vpop.f32.mrb[0].mxu0
        %v4329 = vadd.f32 0.0, %v4328
        %v4330 = vpop.f32.mrb[0].mxu0
        %4331 = vmatprep.mubr.bf16.mxu0 %v3846
        %4332 = vmatmul.mubr.bf16.gmra.mrb[0].mxu0 %v3116
        %v4333 = vpop.f32.mrb[0].mxu0
        %v4334 = vadd.f32 0.0, %v4333
        %v4335 = vpop.f32.mrb[0].mxu0
        %v4336 = vpop.f32.mrb[0].mxu0
        %v4337 = vadd.f32 0.0, %v4336
        %v4338 = vpop.f32.mrb[0].mxu0
        %4339 = vmatprep.mubr.bf16.mxu0 %v3849
        %4340 = vmatmul.mubr.bf16.gmra.mrb[0].mxu0 %v3120
        %v4341 = vpop.f32.mrb[0].mxu0
        %v4342 = vadd.f32 0.0, %v4341
        %v4343 = vpop.f32.mrb[0].mxu0
        %v4344 = vpop.f32.mrb[0].mxu0
        %v4345 = vadd.f32 0.0, %v4344
        %v4346 = vpop.f32.mrb[0].mxu0
        %4347 = vmatprep.mubr.bf16.mxu0 %v3852
        %4348 = vmatmul.mubr.bf16.gmra.mrb[0].mxu0 %v3124
        %v4349 = vpop.f32.mrb[0].mxu0
        %v4350 = vadd.f32 0.0, %v4349
        %v4351 = vpop.f32.mrb[0].mxu0
        %v4352 = vpop.f32.mrb[0].mxu0
        %v4353 = vadd.f32 0.0, %v4352
        %v4354 = vpop.f32.mrb[0].mxu0
        %4355 = vmatprep.mubr.bf16.mxu0 %v3855
        %4356 = vmatmul.mubr.bf16.gmra.mrb[0].mxu0 %v3128
        %v4357 = vpop.f32.mrb[0].mxu0
        %v4358 = vadd.f32 0.0, %v4357
        %v4359 = vpop.f32.mrb[0].mxu0
        %v4360 = vpop.f32.mrb[0].mxu0
        %v4361 = vadd.f32 0.0, %v4360
        %v4362 = vpop.f32.mrb[0].mxu0
        %4363 = vmatprep.mubr.bf16.mxu0 %v3858
        %4364 = vmatmul.mubr.bf16.gmra.mrb[0].mxu0 %v3132
        %v4365 = vpop.f32.mrb[0].mxu0
        %v4366 = vadd.f32 0.0, %v4365
        %v4367 = vpop.f32.mrb[0].mxu0
        %v4368 = vpop.f32.mrb[0].mxu0
        %v4369 = vadd.f32 0.0, %v4368
        %v4370 = vpop.f32.mrb[0].mxu0
        %4371 = vmatprep.mubr.bf16.mxu0 %v3861
        %4372 = vmatmul.mubr.bf16.gmra.mrb[0].mxu0 %v3136
        %v4373 = vpop.f32.mrb[0].mxu0
        %v4374 = vadd.f32 0.0, %v4373
        %v4375 = vpop.f32.mrb[0].mxu0
        %v4376 = vpop.f32.mrb[0].mxu0
        %v4377 = vadd.f32 0.0, %v4376
        %v4378 = vpop.f32.mrb[0].mxu0
        %4379 = vmatprep.mubr.bf16.mxu0 %v3864
        %4380 = vmatmul.mubr.bf16.gmra.mrb[0].mxu0 %v3140
        %v4381 = vpop.f32.mrb[0].mxu0
        %v4382 = vadd.f32 0.0, %v4381
        %v4383 = vpop.f32.mrb[0].mxu0
        %v4384 = vpop.f32.mrb[0].mxu0
        %v4385 = vadd.f32 0.0, %v4384
        %v4386 = vpop.f32.mrb[0].mxu0
        %4387 = vmatprep.mubr.bf16.mxu0 %v3867
        %4388 = vmatmul.mubr.bf16.gmra.mrb[0].mxu0 %v3144
        %v4389 = vpop.f32.mrb[0].mxu0
        %v4390 = vadd.f32 0.0, %v4389
        %v4391 = vpop.f32.mrb[0].mxu0
        %v4392 = vpop.f32.mrb[0].mxu0
        %v4393 = vadd.f32 0.0, %v4392
        %v4394 = vpop.f32.mrb[0].mxu0
        %4395 = vmatprep.mubr.bf16.mxu0 %v3870
        %4396 = vmatmul.mubr.bf16.gmra.mrb[0].mxu0 %v3148
        %v4397 = vpop.f32.mrb[0].mxu0
        %v4398 = vadd.f32 0.0, %v4397
        %v4399 = vpop.f32.mrb[0].mxu0
        %v4400 = vpop.f32.mrb[0].mxu0
        %v4401 = vadd.f32 0.0, %v4400
        %v4402 = vpop.f32.mrb[0].mxu0
        %4403 = vmatprep.mubr.bf16.mxu0 %v4195
        %4404 = vmatmul.mubr.bf16.gmra.mrb[0].mxu0 %v3152
        %v4405 = vpop.f32.mrb[0].mxu0
        %v4406 = vadd.f32 0.0, %v4405
        %v4407 = vpop.f32.mrb[0].mxu0
        %v4408 = vpop.f32.mrb[0].mxu0
        %v4409 = vadd.f32 0.0, %v4408
        %v4410 = vpop.f32.mrb[0].mxu0
        %4411 = vmatprep.mubr.bf16.mxu0 %v4198
        %4412 = vmatmul.mubr.bf16.gmra.mrb[0].mxu0 %v3156
        %v4413 = vpop.f32.mrb[0].mxu0
        %v4414 = vadd.f32 0.0, %v4413
        %v4415 = vpop.f32.mrb[0].mxu0
        %v4416 = vpop.f32.mrb[0].mxu0
        %v4417 = vadd.f32 0.0, %v4416
        %v4418 = vpop.f32.mrb[0].mxu0
        %4419 = vmatprep.mubr.bf16.mxu0 %v4201
        %4420 = vmatmul.mubr.bf16.gmra.mrb[0].mxu0 %v3160
        %v4421 = vpop.f32.mrb[0].mxu0
        %v4422 = vadd.f32 0.0, %v4421
        %v4423 = vpop.f32.mrb[0].mxu0
        %v4424 = vpop.f32.mrb[0].mxu0
        %v4425 = vadd.f32 0.0, %v4424
        %v4426 = vpop.f32.mrb[0].mxu0
        %4427 = vdwg.mxu0
        %v4428 = vadd.f32 %v3907, %v4238
        %v4429 = vadd.f32 %v3910, %v4241
        %v4430 = vadd.f32 %v3915, %v4246
        %v4431 = vadd.f32 %v3918, %v4249
        %v4432 = vadd.f32 %v3923, %v4254
        %v4433 = vadd.f32 %v3926, %v4257
        %v4434 = vadd.f32 %v3931, %v4262
        %v4435 = vadd.f32 %v3934, %v4265
        %v4436 = vadd.f32 %v3939, %v4270
        %v4437 = vadd.f32 %v3942, %v4273
        %v4438 = vadd.f32 %v3947, %v4278
        %v4439 = vadd.f32 %v3950, %v4281
        %v4440 = vadd.f32 %v3955, %v4286
        %v4441 = vadd.f32 %v3958, %v4289
        %v4442 = vadd.f32 %v3963, %v4294
        %v4443 = vadd.f32 %v3966, %v4297
        %v4444 = vadd.f32 %v3971, %v4302
        %v4445 = vadd.f32 %v3974, %v4305
        %v4446 = vadd.f32 %v3979, %v4310
        %v4447 = vadd.f32 %v3982, %v4313
        %v4448 = vadd.f32 %v3987, %v4318
        %v4449 = vadd.f32 %v3990, %v4321
        %v4450 = vadd.f32 %v3995, %v4326
        %v4451 = vadd.f32 %v3998, %v4329
        %v4452 = vadd.f32 %v4003, %v4334
        %v4453 = vadd.f32 %v4006, %v4337
        %v4454 = vadd.f32 %v4011, %v4342
        %v4455 = vadd.f32 %v4014, %v4345
        %v4456 = vadd.f32 %v4019, %v4350
        %v4457 = vadd.f32 %v4022, %v4353
        %v4458 = vadd.f32 %v4027, %v4358
        %v4459 = vadd.f32 %v4030, %v4361
        %v4460 = vadd.f32 %v4035, %v4366
        %v4461 = vadd.f32 %v4038, %v4369
        %v4462 = vadd.f32 %v4043, %v4374
        %v4463 = vadd.f32 %v4046, %v4377
        %v4464 = vadd.f32 %v4051, %v4382
        %v4465 = vadd.f32 %v4054, %v4385
        %v4466 = vadd.f32 %v4059, %v4390
        %v4467 = vadd.f32 %v4062, %v4393
        %v4468 = vadd.f32 %v4067, %v4398
        %v4469 = vadd.f32 %v4070, %v4401
        %v4470 = vadd.f32 %v4075, %v4406
        %v4471 = vadd.f32 %v4078, %v4409
        %v4472 = vadd.f32 %v4083, %v4414
        %v4473 = vadd.f32 %v4086, %v4417
        %v4474 = vadd.f32 %v4091, %v4422
        %v4475 = vadd.f32 %v4094, %v4425
        %v4476 = vld [vmem:[#allocation13] sm:$0x1]
        %v4478 = vlaneseq
        %v4479 = vshrl.u32 %v4478, 7
        %v4480 = vsub.s32 0, %v4479
        %v4481 = vrot.slane %v4476, %v4480
        %v4483 = vadd.f32 %v4428, %v4481
        %v4484 = vadd.f32 %v4429, %v4481
        %v4485 = vadd.f32 %v4430, %v4481
        %v4486 = vadd.f32 %v4431, %v4481
        %v4487 = vadd.f32 %v4432, %v4481
        %v4488 = vadd.f32 %v4433, %v4481
        %v4489 = vadd.f32 %v4434, %v4481
        %v4490 = vadd.f32 %v4435, %v4481
        %v4491 = vadd.f32 %v4436, %v4481
        %v4492 = vadd.f32 %v4437, %v4481
        %v4493 = vadd.f32 %v4438, %v4481
        %v4494 = vadd.f32 %v4439, %v4481
        %v4495 = vadd.f32 %v4440, %v4481
        %v4496 = vadd.f32 %v4441, %v4481
        %v4497 = vadd.f32 %v4442, %v4481
        %v4498 = vadd.f32 %v4443, %v4481
        %v4499 = vadd.f32 %v4444, %v4481
        %v4500 = vadd.f32 %v4445, %v4481
        %v4501 = vadd.f32 %v4446, %v4481
        %v4502 = vadd.f32 %v4447, %v4481
        %v4503 = vadd.f32 %v4448, %v4481
        %v4504 = vadd.f32 %v4449, %v4481
        %v4505 = vadd.f32 %v4450, %v4481
        %v4506 = vadd.f32 %v4451, %v4481
        %v4507 = vadd.f32 %v4452, %v4481
        %v4508 = vadd.f32 %v4453, %v4481
        %v4509 = vadd.f32 %v4454, %v4481
        %v4510 = vadd.f32 %v4455, %v4481
        %v4511 = vadd.f32 %v4456, %v4481
        %v4512 = vadd.f32 %v4457, %v4481
        %v4513 = vadd.f32 %v4458, %v4481
        %v4514 = vadd.f32 %v4459, %v4481
        %v4515 = vadd.f32 %v4460, %v4481
        %v4516 = vadd.f32 %v4461, %v4481
        %v4517 = vadd.f32 %v4462, %v4481
        %v4518 = vadd.f32 %v4463, %v4481
        %v4519 = vadd.f32 %v4464, %v4481
        %v4520 = vadd.f32 %v4465, %v4481
        %v4521 = vadd.f32 %v4466, %v4481
        %v4522 = vadd.f32 %v4467, %v4481
        %v4523 = vadd.f32 %v4468, %v4481
        %v4524 = vadd.f32 %v4469, %v4481
        %v4525 = vadd.f32 %v4470, %v4481
        %v4526 = vadd.f32 %v4471, %v4481
        %v4527 = vadd.f32 %v4472, %v4481
        %v4528 = vadd.f32 %v4473, %v4481
        %v4529 = vadd.f32 %v4474, %v4481
        %v4530 = vadd.f32 %v4475, %v4481
        %v4531 = vld [vmem:[#allocation8] sm:$0x1]
        %v4533 = vlaneseq
        %v4534 = vshrl.u32 %v4533, 7
        %v4535 = vsub.s32 0, %v4534
        %v4536 = vrot.slane %v4531, %v4535
        %v4538 = vmul.f32 %v4483, %v4536
        %v4539 = vmul.f32 %v4484, %v4536
        %v4540 = vmul.f32 %v4485, %v4536
        %v4541 = vmul.f32 %v4486, %v4536
        %v4542 = vmul.f32 %v4487, %v4536
        %v4543 = vmul.f32 %v4488, %v4536
        %v4544 = vmul.f32 %v4489, %v4536
        %v4545 = vmul.f32 %v4490, %v4536
        %v4546 = vmul.f32 %v4491, %v4536
        %v4547 = vmul.f32 %v4492, %v4536
        %v4548 = vmul.f32 %v4493, %v4536
        %v4549 = vmul.f32 %v4494, %v4536
        %v4550 = vmul.f32 %v4495, %v4536
        %v4551 = vmul.f32 %v4496, %v4536
        %v4552 = vmul.f32 %v4497, %v4536
        %v4553 = vmul.f32 %v4498, %v4536
        %v4554 = vmul.f32 %v4499, %v4536
        %v4555 = vmul.f32 %v4500, %v4536
        %v4556 = vmul.f32 %v4501, %v4536
        %v4557 = vmul.f32 %v4502, %v4536
        %v4558 = vmul.f32 %v4503, %v4536
        %v4559 = vmul.f32 %v4504, %v4536
        %v4560 = vmul.f32 %v4505, %v4536
        %v4561 = vmul.f32 %v4506, %v4536
        %v4562 = vmul.f32 %v4507, %v4536
        %v4563 = vmul.f32 %v4508, %v4536
        %v4564 = vmul.f32 %v4509, %v4536
        %v4565 = vmul.f32 %v4510, %v4536
        %v4566 = vmul.f32 %v4511, %v4536
        %v4567 = vmul.f32 %v4512, %v4536
        %v4568 = vmul.f32 %v4513, %v4536
        %v4569 = vmul.f32 %v4514, %v4536
        %v4570 = vmul.f32 %v4515, %v4536
        %v4571 = vmul.f32 %v4516, %v4536
        %v4572 = vmul.f32 %v4517, %v4536
        %v4573 = vmul.f32 %v4518, %v4536
        %v4574 = vmul.f32 %v4519, %v4536
        %v4575 = vmul.f32 %v4520, %v4536
        %v4576 = vmul.f32 %v4521, %v4536
        %v4577 = vmul.f32 %v4522, %v4536
        %v4578 = vmul.f32 %v4523, %v4536
        %v4579 = vmul.f32 %v4524, %v4536
        %v4580 = vmul.f32 %v4525, %v4536
        %v4581 = vmul.f32 %v4526, %v4536
        %v4582 = vmul.f32 %v4527, %v4536
        %v4583 = vmul.f32 %v4528, %v4536
        %v4584 = vmul.f32 %v4529, %v4536
        %v4585 = vmul.f32 %v4530, %v4536
        %v4586 = vld [vmem:[#allocation10] sm:$0x1]
        %v4588 = vlaneseq
        %v4589 = vshrl.u32 %v4588, 7
        %v4590 = vsub.s32 0, %v4589
        %v4591 = vrot.slane %v4586, %v4590
        %v4593 = vadd.f32 %v4538, %v4591
        %v4594 = vadd.f32 %v4539, %v4591
        %v4595 = vadd.f32 %v4540, %v4591
        %v4596 = vadd.f32 %v4541, %v4591
        %v4597 = vadd.f32 %v4542, %v4591
        %v4598 = vadd.f32 %v4543, %v4591
        %v4599 = vadd.f32 %v4544, %v4591
        %v4600 = vadd.f32 %v4545, %v4591
        %v4601 = vadd.f32 %v4546, %v4591
        %v4602 = vadd.f32 %v4547, %v4591
        %v4603 = vadd.f32 %v4548, %v4591
        %v4604 = vadd.f32 %v4549, %v4591
        %v4605 = vadd.f32 %v4550, %v4591
        %v4606 = vadd.f32 %v4551, %v4591
        %v4607 = vadd.f32 %v4552, %v4591
        %v4608 = vadd.f32 %v4553, %v4591
        %v4609 = vadd.f32 %v4554, %v4591
        %v4610 = vadd.f32 %v4555, %v4591
        %v4611 = vadd.f32 %v4556, %v4591
        %v4612 = vadd.f32 %v4557, %v4591
        %v4613 = vadd.f32 %v4558, %v4591
        %v4614 = vadd.f32 %v4559, %v4591
        %v4615 = vadd.f32 %v4560, %v4591
        %v4616 = vadd.f32 %v4561, %v4591
        %v4617 = vadd.f32 %v4562, %v4591
        %v4618 = vadd.f32 %v4563, %v4591
        %v4619 = vadd.f32 %v4564, %v4591
        %v4620 = vadd.f32 %v4565, %v4591
        %v4621 = vadd.f32 %v4566, %v4591
        %v4622 = vadd.f32 %v4567, %v4591
        %v4623 = vadd.f32 %v4568, %v4591
        %v4624 = vadd.f32 %v4569, %v4591
        %v4625 = vadd.f32 %v4570, %v4591
        %v4626 = vadd.f32 %v4571, %v4591
        %v4627 = vadd.f32 %v4572, %v4591
        %v4628 = vadd.f32 %v4573, %v4591
        %v4629 = vadd.f32 %v4574, %v4591
        %v4630 = vadd.f32 %v4575, %v4591
        %v4631 = vadd.f32 %v4576, %v4591
        %v4632 = vadd.f32 %v4577, %v4591
        %v4633 = vadd.f32 %v4578, %v4591
        %v4634 = vadd.f32 %v4579, %v4591
        %v4635 = vadd.f32 %v4580, %v4591
        %v4636 = vadd.f32 %v4581, %v4591
        %v4637 = vadd.f32 %v4582, %v4591
        %v4638 = vadd.f32 %v4583, %v4591
        %v4639 = vadd.f32 %v4584, %v4591
        %v4640 = vadd.f32 %v4585, %v4591
        %v4641 = vmax.f32 %v4593, 0.0
        %v4642 = vmax.f32 %v4594, 0.0
        %v4643 = vmax.f32 %v4595, 0.0
        %v4644 = vmax.f32 %v4596, 0.0
        %v4645 = vmax.f32 %v4597, 0.0
        %v4646 = vmax.f32 %v4598, 0.0
        %v4647 = vmax.f32 %v4599, 0.0
        %v4648 = vmax.f32 %v4600, 0.0
        %v4649 = vmax.f32 %v4601, 0.0
        %v4650 = vmax.f32 %v4602, 0.0
        %v4651 = vmax.f32 %v4603, 0.0
        %v4652 = vmax.f32 %v4604, 0.0
        %v4653 = vmax.f32 %v4605, 0.0
        %v4654 = vmax.f32 %v4606, 0.0
        %v4655 = vmax.f32 %v4607, 0.0
        %v4656 = vmax.f32 %v4608, 0.0
        %v4657 = vmax.f32 %v4609, 0.0
        %v4658 = vmax.f32 %v4610, 0.0
        %v4659 = vmax.f32 %v4611, 0.0
        %v4660 = vmax.f32 %v4612, 0.0
        %v4661 = vmax.f32 %v4613, 0.0
        %v4662 = vmax.f32 %v4614, 0.0
        %v4663 = vmax.f32 %v4615, 0.0
        %v4664 = vmax.f32 %v4616, 0.0
        %v4665 = vmax.f32 %v4617, 0.0
        %v4666 = vmax.f32 %v4618, 0.0
        %v4667 = vmax.f32 %v4619, 0.0
        %v4668 = vmax.f32 %v4620, 0.0
        %v4669 = vmax.f32 %v4621, 0.0
        %v4670 = vmax.f32 %v4622, 0.0
        %v4671 = vmax.f32 %v4623, 0.0
        %v4672 = vmax.f32 %v4624, 0.0
        %v4673 = vmax.f32 %v4625, 0.0
        %v4674 = vmax.f32 %v4626, 0.0
        %v4675 = vmax.f32 %v4627, 0.0
        %v4676 = vmax.f32 %v4628, 0.0
        %v4677 = vmax.f32 %v4629, 0.0
        %v4678 = vmax.f32 %v4630, 0.0
        %v4679 = vmax.f32 %v4631, 0.0
        %v4680 = vmax.f32 %v4632, 0.0
        %v4681 = vmax.f32 %v4633, 0.0
        %v4682 = vmax.f32 %v4634, 0.0
        %v4683 = vmax.f32 %v4635, 0.0
        %v4684 = vmax.f32 %v4636, 0.0
        %v4685 = vmax.f32 %v4637, 0.0
        %v4686 = vmax.f32 %v4638, 0.0
        %v4687 = vmax.f32 %v4639, 0.0
        %v4688 = vmax.f32 %v4640, 0.0
        %v4689 = vsel %vm1564, 1, 0
        %v4690 = vsel %vm1565, 1, 0
        %v4691 = vsel %vm1566, 1, 0
        %v4692 = vsel %vm1567, 1, 0
        %v4693 = vsel %vm1568, 1, 0
        %v4694 = vsel %vm1569, 1, 0
        %v4695 = vsel %vm1570, 1, 0
        %v4696 = vsel %vm1571, 1, 0
        %v4697 = vsel %vm1572, 1, 0
        %v4698 = vsel %vm1573, 1, 0
        %v4699 = vsel %vm1574, 1, 0
        %v4700 = vsel %vm1575, 1, 0
        %v4701 = vsel %vm1576, 1, 0
        %v4702 = vsel %vm1577, 1, 0
        %v4703 = vsel %vm1578, 1, 0
        %v4704 = vsel %vm1579, 1, 0
        %v4705 = vsel %vm1580, 1, 0
        %v4706 = vsel %vm1581, 1, 0
        %v4707 = vsel %vm1582, 1, 0
        %v4708 = vsel %vm1583, 1, 0
        %v4709 = vsel %vm1584, 1, 0
        %v4710 = vsel %vm1585, 1, 0
        %v4711 = vsel %vm1586, 1, 0
        %v4712 = vsel %vm1587, 1, 0
        %v4713 = vsel %vm1588, 1, 0
        %v4714 = vsel %vm1589, 1, 0
        %v4715 = vsel %vm1590, 1, 0
        %v4716 = vsel %vm1591, 1, 0
        %v4717 = vsel %vm1592, 1, 0
        %v4718 = vsel %vm1593, 1, 0
        %v4719 = vsel %vm1594, 1, 0
        %v4720 = vsel %vm1595, 1, 0
        %v4721 = vsel %vm1596, 1, 0
        %v4722 = vsel %vm1597, 1, 0
        %v4723 = vsel %vm1598, 1, 0
        %v4724 = vsel %vm1599, 1, 0
        %v4725 = vsel %vm1600, 1, 0
        %v4726 = vsel %vm1601, 1, 0
        %v4727 = vsel %vm1602, 1, 0
        %v4728 = vsel %vm1603, 1, 0
        %v4729 = vsel %vm1604, 1, 0
        %v4730 = vsel %vm1605, 1, 0
        %v4731 = vsel %vm1606, 1, 0
        %v4732 = vsel %vm1607, 1, 0
        %v4733 = vsel %vm1608, 1, 0
        %v4734 = vsel %vm1609, 1, 0
        %v4735 = vsel %vm1610, 1, 0
        %v4736 = vsel %vm1611, 1, 0
        %vm4737 = vcmp.eq.s32.totalorder %v4689, 1
        %vm4738 = vcmp.eq.s32.totalorder %v4690, 1
        %vm4739 = vcmp.eq.s32.totalorder %v4691, 1
        %vm4740 = vcmp.eq.s32.totalorder %v4692, 1
        %vm4741 = vcmp.eq.s32.totalorder %v4693, 1
        %vm4742 = vcmp.eq.s32.totalorder %v4694, 1
        %vm4743 = vcmp.eq.s32.totalorder %v4695, 1
        %vm4744 = vcmp.eq.s32.totalorder %v4696, 1
        %vm4745 = vcmp.eq.s32.totalorder %v4697, 1
        %vm4746 = vcmp.eq.s32.totalorder %v4698, 1
        %vm4747 = vcmp.eq.s32.totalorder %v4699, 1
        %vm4748 = vcmp.eq.s32.totalorder %v4700, 1
        %vm4749 = vcmp.eq.s32.totalorder %v4701, 1
        %vm4750 = vcmp.eq.s32.totalorder %v4702, 1
        %vm4751 = vcmp.eq.s32.totalorder %v4703, 1
        %vm4752 = vcmp.eq.s32.totalorder %v4704, 1
        %vm4753 = vcmp.eq.s32.totalorder %v4705, 1
        %vm4754 = vcmp.eq.s32.totalorder %v4706, 1
        %vm4755 = vcmp.eq.s32.totalorder %v4707, 1
        %vm4756 = vcmp.eq.s32.totalorder %v4708, 1
        %vm4757 = vcmp.eq.s32.totalorder %v4709, 1
        %vm4758 = vcmp.eq.s32.totalorder %v4710, 1
        %vm4759 = vcmp.eq.s32.totalorder %v4711, 1
        %vm4760 = vcmp.eq.s32.totalorder %v4712, 1
        %vm4761 = vcmp.eq.s32.totalorder %v4713, 1
        %vm4762 = vcmp.eq.s32.totalorder %v4714, 1
        %vm4763 = vcmp.eq.s32.totalorder %v4715, 1
        %vm4764 = vcmp.eq.s32.totalorder %v4716, 1
        %vm4765 = vcmp.eq.s32.totalorder %v4717, 1
        %vm4766 = vcmp.eq.s32.totalorder %v4718, 1
        %vm4767 = vcmp.eq.s32.totalorder %v4719, 1
        %vm4768 = vcmp.eq.s32.totalorder %v4720, 1
        %vm4769 = vcmp.eq.s32.totalorder %v4721, 1
        %vm4770 = vcmp.eq.s32.totalorder %v4722, 1
        %vm4771 = vcmp.eq.s32.totalorder %v4723, 1
        %vm4772 = vcmp.eq.s32.totalorder %v4724, 1
        %vm4773 = vcmp.eq.s32.totalorder %v4725, 1
        %vm4774 = vcmp.eq.s32.totalorder %v4726, 1
        %vm4775 = vcmp.eq.s32.totalorder %v4727, 1
        %vm4776 = vcmp.eq.s32.totalorder %v4728, 1
        %vm4777 = vcmp.eq.s32.totalorder %v4729, 1
        %vm4778 = vcmp.eq.s32.totalorder %v4730, 1
        %vm4779 = vcmp.eq.s32.totalorder %v4731, 1
        %vm4780 = vcmp.eq.s32.totalorder %v4732, 1
        %vm4781 = vcmp.eq.s32.totalorder %v4733, 1
        %vm4782 = vcmp.eq.s32.totalorder %v4734, 1
        %vm4783 = vcmp.eq.s32.totalorder %v4735, 1
        %vm4784 = vcmp.eq.s32.totalorder %v4736, 1
        %v4785 = vsel %vm4737, %v4641, 0.0
        %v4786 = vsel %vm4738, %v4642, 0.0
        %v4787 = vsel %vm4739, %v4643, 0.0
        %v4788 = vsel %vm4740, %v4644, 0.0
        %v4789 = vsel %vm4741, %v4645, 0.0
        %v4790 = vsel %vm4742, %v4646, 0.0
        %v4791 = vsel %vm4743, %v4647, 0.0
        %v4792 = vsel %vm4744, %v4648, 0.0
        %v4793 = vsel %vm4745, %v4649, 0.0
        %v4794 = vsel %vm4746, %v4650, 0.0
        %v4795 = vsel %vm4747, %v4651, 0.0
        %v4796 = vsel %vm4748, %v4652, 0.0
        %v4797 = vsel %vm4749, %v4653, 0.0
        %v4798 = vsel %vm4750, %v4654, 0.0
        %v4799 = vsel %vm4751, %v4655, 0.0
        %v4800 = vsel %vm4752, %v4656, 0.0
        %v4801 = vsel %vm4753, %v4657, 0.0
        %v4802 = vsel %vm4754, %v4658, 0.0
        %v4803 = vsel %vm4755, %v4659, 0.0
        %v4804 = vsel %vm4756, %v4660, 0.0
        %v4805 = vsel %vm4757, %v4661, 0.0
        %v4806 = vsel %vm4758, %v4662, 0.0
        %v4807 = vsel %vm4759, %v4663, 0.0
        %v4808 = vsel %vm4760, %v4664, 0.0
        %v4809 = vsel %vm4761, %v4665, 0.0
        %v4810 = vsel %vm4762, %v4666, 0.0
        %v4811 = vsel %vm4763, %v4667, 0.0
        %v4812 = vsel %vm4764, %v4668, 0.0
        %v4813 = vsel %vm4765, %v4669, 0.0
        %v4814 = vsel %vm4766, %v4670, 0.0
        %v4815 = vsel %vm4767, %v4671, 0.0
        %v4816 = vsel %vm4768, %v4672, 0.0
        %v4817 = vsel %vm4769, %v4673, 0.0
        %v4818 = vsel %vm4770, %v4674, 0.0
        %v4819 = vsel %vm4771, %v4675, 0.0
        %v4820 = vsel %vm4772, %v4676, 0.0
        %v4821 = vsel %vm4773, %v4677, 0.0
        %v4822 = vsel %vm4774, %v4678, 0.0
        %v4823 = vsel %vm4775, %v4679, 0.0
        %v4824 = vsel %vm4776, %v4680, 0.0
        %v4825 = vsel %vm4777, %v4681, 0.0
        %v4826 = vsel %vm4778, %v4682, 0.0
        %v4827 = vsel %vm4779, %v4683, 0.0
        %v4828 = vsel %vm4780, %v4684, 0.0
        %v4829 = vsel %vm4781, %v4685, 0.0
        %v4830 = vsel %vm4782, %v4686, 0.0
        %v4831 = vsel %vm4783, %v4687, 0.0
        %v4832 = vsel %vm4784, %v4688, 0.0
        %v4833 = vpack.c.bf16 %v4786, %v4785
        %v4834 = vpack.c.bf16 %v4788, %v4787
        %v4835 = vpack.c.bf16 %v4790, %v4789
        %v4836 = vpack.c.bf16 %v4792, %v4791
        %v4837 = vpack.c.bf16 %v4794, %v4793
        %v4838 = vpack.c.bf16 %v4796, %v4795
        %v4839 = vpack.c.bf16 %v4798, %v4797
        %v4840 = vpack.c.bf16 %v4800, %v4799
        %v4841 = vpack.c.bf16 %v4802, %v4801
        %v4842 = vpack.c.bf16 %v4804, %v4803
        %v4843 = vpack.c.bf16 %v4806, %v4805
        %v4844 = vpack.c.bf16 %v4808, %v4807
        %v4845 = vpack.c.bf16 %v4810, %v4809
        %v4846 = vpack.c.bf16 %v4812, %v4811
        %v4847 = vpack.c.bf16 %v4814, %v4813
        %v4848 = vpack.c.bf16 %v4816, %v4815
        %v4849 = vpack.c.bf16 %v4818, %v4817
        %v4850 = vpack.c.bf16 %v4820, %v4819
        %v4851 = vpack.c.bf16 %v4822, %v4821
        %v4852 = vpack.c.bf16 %v4824, %v4823
        %v4853 = vpack.c.bf16 %v4826, %v4825
        %v4854 = vpack.c.bf16 %v4828, %v4827
        %v4855 = vpack.c.bf16 %v4830, %v4829
        %v4856 = vpack.c.bf16 %v4832, %v4831
        %v4881 = vrot.slane %v4833, 4
        %v4882 = vrot.slane %v4834, 4
        %v4883 = vsel %vm3236, %v4881, %v4882
        %v4884 = vrot.slane %v4835, 4
        %v4885 = vsel %vm3236, %v4882, %v4884
        %v4886 = vrot.slane %v4836, 4
        %v4887 = vsel %vm3236, %v4884, %v4886
        %v4888 = vrot.slane %v4837, 4
        %v4889 = vsel %vm3236, %v4886, %v4888
        %v4890 = vrot.slane %v4838, 4
        %v4891 = vsel %vm3236, %v4888, %v4890
        %v4892 = vrot.slane %v4839, 4
        %v4893 = vsel %vm3236, %v4890, %v4892
        %v4894 = vrot.slane %v4840, 4
        %v4895 = vsel %vm3236, %v4892, %v4894
        %v4896 = vrot.slane %v4841, 4
        %v4897 = vsel %vm3236, %v4894, %v4896
        %v4898 = vrot.slane %v4842, 4
        %v4899 = vsel %vm3236, %v4896, %v4898
        %v4900 = vrot.slane %v4843, 4
        %v4901 = vsel %vm3236, %v4898, %v4900
        %v4902 = vrot.slane %v4844, 4
        %v4903 = vsel %vm3236, %v4900, %v4902
        %v4904 = vrot.slane %v4845, 4
        %v4905 = vsel %vm3236, %v4902, %v4904
        %v4906 = vrot.slane %v4846, 4
        %v4907 = vsel %vm3236, %v4904, %v4906
        %v4908 = vrot.slane %v4847, 4
        %v4909 = vsel %vm3236, %v4906, %v4908
        %v4910 = vrot.slane %v4848, 4
        %v4911 = vsel %vm3236, %v4908, %v4910
        %v4912 = vrot.slane %v4849, 4
        %v4913 = vsel %vm3236, %v4910, %v4912
        %v4914 = vrot.slane %v4850, 4
        %v4915 = vsel %vm3236, %v4912, %v4914
        %v4916 = vrot.slane %v4851, 4
        %v4917 = vsel %vm3236, %v4914, %v4916
        %v4918 = vrot.slane %v4852, 4
        %v4919 = vsel %vm3236, %v4916, %v4918
        %v4920 = vrot.slane %v4853, 4
        %v4921 = vsel %vm3236, %v4918, %v4920
        %v4922 = vrot.slane %v4854, 4
        %v4923 = vsel %vm3236, %v4920, %v4922
        %v4924 = vrot.slane %v4855, 4
        %v4925 = vsel %vm3236, %v4922, %v4924
        %v4926 = vrot.slane %v4856, 4
        %v4927 = vsel %vm3236, %v4924, %v4926
        %vm4951 = vcmask 1043456
        %v4954 = vsel %vm4951, 0, %v4881
        %v4957 = vsel %vm4951, %v4926, 0
        %v4959 = vshrl.u32 0, 16
        %v4961 = vrot.slane %v4959, 7
        %v4962 = vshll.u32 0, 16
        %v4964 = vor.u32 %v4961, %v4962
        %v4965 = vshrl.u32 %v4954, 16
        %v4967 = vrot.slane %v4965, 7
        %v4968 = vshll.u32 %v4954, 16
        %v4970 = vor.u32 %v4967, %v4968
        %v4971 = vsel %vm2668, %v4961, %v4970
        %v4973 = vshrl.u32 %v4883, 16
        %v4975 = vrot.slane %v4973, 7
        %v4976 = vshll.u32 %v4883, 16
        %v4978 = vor.u32 %v4975, %v4976
        %v4979 = vsel %vm2668, %v4967, %v4978
        %v4981 = vshrl.u32 %v4885, 16
        %v4983 = vrot.slane %v4981, 7
        %v4984 = vshll.u32 %v4885, 16
        %v4986 = vor.u32 %v4983, %v4984
        %v4987 = vsel %vm2668, %v4975, %v4986
        %v4989 = vshrl.u32 %v4887, 16
        %v4991 = vrot.slane %v4989, 7
        %v4992 = vshll.u32 %v4887, 16
        %v4994 = vor.u32 %v4991, %v4992
        %v4995 = vsel %vm2668, %v4983, %v4994
        %v4997 = vshrl.u32 %v4889, 16
        %v4999 = vrot.slane %v4997, 7
        %v5000 = vshll.u32 %v4889, 16
        %v5002 = vor.u32 %v4999, %v5000
        %v5003 = vsel %vm2668, %v4991, %v5002
        %v5005 = vshrl.u32 %v4891, 16
        %v5007 = vrot.slane %v5005, 7
        %v5008 = vshll.u32 %v4891, 16
        %v5010 = vor.u32 %v5007, %v5008
        %v5011 = vsel %vm2668, %v4999, %v5010
        %v5013 = vshrl.u32 %v4893, 16
        %v5015 = vrot.slane %v5013, 7
        %v5016 = vshll.u32 %v4893, 16
        %v5018 = vor.u32 %v5015, %v5016
        %v5019 = vsel %vm2668, %v5007, %v5018
        %v5021 = vshrl.u32 %v4895, 16
        %v5023 = vrot.slane %v5021, 7
        %v5024 = vshll.u32 %v4895, 16
        %v5026 = vor.u32 %v5023, %v5024
        %v5027 = vsel %vm2668, %v5015, %v5026
        %v5029 = vshrl.u32 %v4897, 16
        %v5031 = vrot.slane %v5029, 7
        %v5032 = vshll.u32 %v4897, 16
        %v5034 = vor.u32 %v5031, %v5032
        %v5035 = vsel %vm2668, %v5023, %v5034
        %v5037 = vshrl.u32 %v4899, 16
        %v5039 = vrot.slane %v5037, 7
        %v5040 = vshll.u32 %v4899, 16
        %v5042 = vor.u32 %v5039, %v5040
        %v5043 = vsel %vm2668, %v5031, %v5042
        %v5045 = vshrl.u32 %v4901, 16
        %v5047 = vrot.slane %v5045, 7
        %v5048 = vshll.u32 %v4901, 16
        %v5050 = vor.u32 %v5047, %v5048
        %v5051 = vsel %vm2668, %v5039, %v5050
        %v5053 = vshrl.u32 %v4903, 16
        %v5055 = vrot.slane %v5053, 7
        %v5056 = vshll.u32 %v4903, 16
        %v5058 = vor.u32 %v5055, %v5056
        %v5059 = vsel %vm2668, %v5047, %v5058
        %v5061 = vshrl.u32 %v4905, 16
        %v5063 = vrot.slane %v5061, 7
        %v5064 = vshll.u32 %v4905, 16
        %v5066 = vor.u32 %v5063, %v5064
        %v5067 = vsel %vm2668, %v5055, %v5066
        %v5069 = vshrl.u32 %v4907, 16
        %v5071 = vrot.slane %v5069, 7
        %v5072 = vshll.u32 %v4907, 16
        %v5074 = vor.u32 %v5071, %v5072
        %v5075 = vsel %vm2668, %v5063, %v5074
        %v5077 = vshrl.u32 %v4909, 16
        %v5079 = vrot.slane %v5077, 7
        %v5080 = vshll.u32 %v4909, 16
        %v5082 = vor.u32 %v5079, %v5080
        %v5083 = vsel %vm2668, %v5071, %v5082
        %v5085 = vshrl.u32 %v4911, 16
        %v5087 = vrot.slane %v5085, 7
        %v5088 = vshll.u32 %v4911, 16
        %v5090 = vor.u32 %v5087, %v5088
        %v5091 = vsel %vm2668, %v5079, %v5090
        %v5093 = vshrl.u32 %v4913, 16
        %v5095 = vrot.slane %v5093, 7
        %v5096 = vshll.u32 %v4913, 16
        %v5098 = vor.u32 %v5095, %v5096
        %v5099 = vsel %vm2668, %v5087, %v5098
        %v5101 = vshrl.u32 %v4915, 16
        %v5103 = vrot.slane %v5101, 7
        %v5104 = vshll.u32 %v4915, 16
        %v5106 = vor.u32 %v5103, %v5104
        %v5107 = vsel %vm2668, %v5095, %v5106
        %v5109 = vshrl.u32 %v4917, 16
        %v5111 = vrot.slane %v5109, 7
        %v5112 = vshll.u32 %v4917, 16
        %v5114 = vor.u32 %v5111, %v5112
        %v5115 = vsel %vm2668, %v5103, %v5114
        %v5117 = vshrl.u32 %v4919, 16
        %v5119 = vrot.slane %v5117, 7
        %v5120 = vshll.u32 %v4919, 16
        %v5122 = vor.u32 %v5119, %v5120
        %v5123 = vsel %vm2668, %v5111, %v5122
        %v5125 = vshrl.u32 %v4921, 16
        %v5127 = vrot.slane %v5125, 7
        %v5128 = vshll.u32 %v4921, 16
        %v5130 = vor.u32 %v5127, %v5128
        %v5131 = vsel %vm2668, %v5119, %v5130
        %v5133 = vshrl.u32 %v4923, 16
        %v5135 = vrot.slane %v5133, 7
        %v5136 = vshll.u32 %v4923, 16
        %v5138 = vor.u32 %v5135, %v5136
        %v5139 = vsel %vm2668, %v5127, %v5138
        %v5141 = vshrl.u32 %v4925, 16
        %v5143 = vrot.slane %v5141, 7
        %v5144 = vshll.u32 %v4925, 16
        %v5146 = vor.u32 %v5143, %v5144
        %v5147 = vsel %vm2668, %v5135, %v5146
        %v5149 = vshrl.u32 %v4927, 16
        %v5151 = vrot.slane %v5149, 7
        %v5152 = vshll.u32 %v4927, 16
        %v5154 = vor.u32 %v5151, %v5152
        %v5155 = vsel %vm2668, %v5143, %v5154
        %v5156 = vshrl.u32 %v4957, 16
        %v5158 = vrot.slane %v5156, 7
        %v5159 = vshll.u32 %v4957, 16
        %v5161 = vor.u32 %v5158, %v5159
        %v5162 = vsel %vm2668, %v5151, %v5161
        %v5163 = vsel %vm2668, %v5158, %v4964
        %v5191 = vsel %vm2886, 0, %v4964
        %v5192 = vrot.slane %v4962, 1
        %v5193 = vor.u32 %v4959, %v5192
        %v5194 = vrot.slane %v4968, 1
        %v5195 = vsel %vm2888, %v5193, %v5194
        %v5196 = vor.u32 %v4965, %v5194
        %v5197 = vrot.slane %v4976, 1
        %v5198 = vsel %vm2888, %v5196, %v5197
        %v5199 = vor.u32 %v4973, %v5197
        %v5200 = vrot.slane %v4984, 1
        %v5201 = vsel %vm2888, %v5199, %v5200
        %v5202 = vor.u32 %v4981, %v5200
        %v5203 = vrot.slane %v4992, 1
        %v5204 = vsel %vm2888, %v5202, %v5203
        %v5205 = vor.u32 %v4989, %v5203
        %v5206 = vrot.slane %v5000, 1
        %v5207 = vsel %vm2888, %v5205, %v5206
        %v5208 = vor.u32 %v4997, %v5206
        %v5209 = vrot.slane %v5008, 1
        %v5210 = vsel %vm2888, %v5208, %v5209
        %v5211 = vor.u32 %v5005, %v5209
        %v5212 = vrot.slane %v5016, 1
        %v5213 = vsel %vm2888, %v5211, %v5212
        %v5214 = vor.u32 %v5013, %v5212
        %v5215 = vrot.slane %v5024, 1
        %v5216 = vsel %vm2888, %v5214, %v5215
        %v5217 = vor.u32 %v5021, %v5215
        %v5218 = vrot.slane %v5032, 1
        %v5219 = vsel %vm2888, %v5217, %v5218
        %v5220 = vor.u32 %v5029, %v5218
        %v5221 = vrot.slane %v5040, 1
        %v5222 = vsel %vm2888, %v5220, %v5221
        %v5223 = vor.u32 %v5037, %v5221
        %v5224 = vrot.slane %v5048, 1
        %v5225 = vsel %vm2888, %v5223, %v5224
        %v5226 = vor.u32 %v5045, %v5224
        %v5227 = vrot.slane %v5056, 1
        %v5228 = vsel %vm2888, %v5226, %v5227
        %v5229 = vor.u32 %v5053, %v5227
        %v5230 = vrot.slane %v5064, 1
        %v5231 = vsel %vm2888, %v5229, %v5230
        %v5232 = vor.u32 %v5061, %v5230
        %v5233 = vrot.slane %v5072, 1
        %v5234 = vsel %vm2888, %v5232, %v5233
        %v5235 = vor.u32 %v5069, %v5233
        %v5236 = vrot.slane %v5080, 1
        %v5237 = vsel %vm2888, %v5235, %v5236
        %v5238 = vor.u32 %v5077, %v5236
        %v5239 = vrot.slane %v5088, 1
        %v5240 = vsel %vm2888, %v5238, %v5239
        %v5241 = vor.u32 %v5085, %v5239
        %v5242 = vrot.slane %v5096, 1
        %v5243 = vsel %vm2888, %v5241, %v5242
        %v5244 = vor.u32 %v5093, %v5242
        %v5245 = vrot.slane %v5104, 1
        %v5246 = vsel %vm2888, %v5244, %v5245
        %v5247 = vor.u32 %v5101, %v5245
        %v5248 = vrot.slane %v5112, 1
        %v5249 = vsel %vm2888, %v5247, %v5248
        %v5250 = vor.u32 %v5109, %v5248
        %v5251 = vrot.slane %v5120, 1
        %v5252 = vsel %vm2888, %v5250, %v5251
        %v5253 = vor.u32 %v5117, %v5251
        %v5254 = vrot.slane %v5128, 1
        %v5255 = vsel %vm2888, %v5253, %v5254
        %v5256 = vor.u32 %v5125, %v5254
        %v5257 = vrot.slane %v5136, 1
        %v5258 = vsel %vm2888, %v5256, %v5257
        %v5259 = vor.u32 %v5133, %v5257
        %v5260 = vrot.slane %v5144, 1
        %v5261 = vsel %vm2888, %v5259, %v5260
        %v5262 = vor.u32 %v5141, %v5260
        %v5263 = vrot.slane %v5152, 1
        %v5264 = vsel %vm2888, %v5262, %v5263
        %v5265 = vor.u32 %v5149, %v5263
        %v5266 = vrot.slane %v5159, 1
        %v5267 = vsel %vm2888, %v5265, %v5266
        %v5268 = vor.u32 %v5156, %v5266
        %v5269 = vsel %vm2888, %v5268, %v5192
        %v5297 = vsel %vm2971, %v5193, 0
        %v5298 = vld [vmem:[#allocation14] sm:$0xf]
        %v5299 = vld [vmem:[#allocation14 + $0x4] sm:$0xf]
        %v5300 = vld [vmem:[#allocation14 + $0x8] sm:$0xf]
        %v5301 = vld [vmem:[#allocation14 + $0xc] sm:$0xf]
        %v5302 = vld [vmem:[#allocation14 + $0x10] sm:$0xf]
        %v5303 = vld [vmem:[#allocation14 + $0x14] sm:$0xf]
        %v5304 = vld [vmem:[#allocation14 + $0x18] sm:$0xf]
        %v5305 = vld [vmem:[#allocation14 + $0x1c] sm:$0xf]
        %v5306 = vld [vmem:[#allocation14 + $0x20] sm:$0xf]
        %v5307 = vld [vmem:[#allocation14 + $0x24] sm:$0xf]
        %v5308 = vld [vmem:[#allocation14 + $0x28] sm:$0xf]
        %v5309 = vld [vmem:[#allocation14 + $0x2c] sm:$0xf]
        %v5310 = vld [vmem:[#allocation14 + $0x30] sm:$0xf]
        %v5311 = vld [vmem:[#allocation14 + $0x34] sm:$0xf]
        %v5312 = vld [vmem:[#allocation14 + $0x38] sm:$0xf]
        %v5313 = vld [vmem:[#allocation14 + $0x3c] sm:$0xf]
        %v5314 = vld [vmem:[#allocation14 + $0x40] sm:$0xf]
        %v5315 = vld [vmem:[#allocation14 + $0x44] sm:$0xf]
        %v5316 = vld [vmem:[#allocation14 + $0x48] sm:$0xf]
        %v5317 = vld [vmem:[#allocation14 + $0x4c] sm:$0xf]
        %v5318 = vld [vmem:[#allocation14 + $0x50] sm:$0xf]
        %v5319 = vld [vmem:[#allocation14 + $0x54] sm:$0xf]
        %v5320 = vld [vmem:[#allocation14 + $0x58] sm:$0xf]
        %v5321 = vld [vmem:[#allocation14 + $0x5c] sm:$0xf]
        %v5322 = vld [vmem:[#allocation14 + $0x60] sm:$0xf]
        %v5323 = vld [vmem:[#allocation14 + $0x64] sm:$0xf]
        %v5324 = vld [vmem:[#allocation14 + $0x68] sm:$0xf]
        %v5325 = vld [vmem:[#allocation14 + $0x6c] sm:$0xf]
        %v5326 = vld [vmem:[#allocation14 + $0x70] sm:$0xf]
        %v5327 = vld [vmem:[#allocation14 + $0x74] sm:$0xf]
        %v5328 = vld [vmem:[#allocation14 + $0x78] sm:$0xf]
        %v5329 = vld [vmem:[#allocation14 + $0x7c] sm:$0xf]
        %v5330 = vld [vmem:[#allocation14 + $0x80] sm:$0xf]
        %v5331 = vld [vmem:[#allocation14 + $0x84] sm:$0xf]
        %v5332 = vld [vmem:[#allocation14 + $0x88] sm:$0xf]
        %v5333 = vld [vmem:[#allocation14 + $0x8c] sm:$0xf]
        %v5334 = vld [vmem:[#allocation14 + $0x90] sm:$0xf]
        %v5335 = vld [vmem:[#allocation14 + $0x94] sm:$0xf]
        %v5336 = vld [vmem:[#allocation14 + $0x98] sm:$0xf]
        %v5337 = vld [vmem:[#allocation14 + $0x9c] sm:$0xf]
        %v5338 = vld [vmem:[#allocation14 + $0xa0] sm:$0xf]
        %v5339 = vld [vmem:[#allocation14 + $0xa4] sm:$0xf]
        %v5340 = vld [vmem:[#allocation14 + $0xa8] sm:$0xf]
        %v5341 = vld [vmem:[#allocation14 + $0xac] sm:$0xf]
        %v5342 = vld [vmem:[#allocation14 + $0xb0] sm:$0xf]
        %v5343 = vld [vmem:[#allocation14 + $0xb4] sm:$0xf]
        %v5344 = vld [vmem:[#allocation14 + $0xb8] sm:$0xf]
        %v5345 = vld [vmem:[#allocation14 + $0xbc] sm:$0xf]
        %s5346 = scalar_lea.vmem [#allocation14], 192
        %v5347 = vld [vmem:[%s5346] sm:$0xf]
        %v5348 = vld [vmem:[%s5346 + $0x4] sm:$0xf]
        %v5349 = vld [vmem:[%s5346 + $0x8] sm:$0xf]
        %v5350 = vld [vmem:[%s5346 + $0xc] sm:$0xf]
        %v5351 = vld [vmem:[%s5346 + $0x10] sm:$0xf]
        %v5352 = vld [vmem:[%s5346 + $0x14] sm:$0xf]
        %v5353 = vld [vmem:[%s5346 + $0x18] sm:$0xf]
        %v5354 = vld [vmem:[%s5346 + $0x1c] sm:$0xf]
        %v5355 = vld [vmem:[%s5346 + $0x20] sm:$0xf]
        %v5356 = vld [vmem:[%s5346 + $0x24] sm:$0xf]
        %v5357 = vld [vmem:[%s5346 + $0x28] sm:$0xf]
        %v5358 = vld [vmem:[%s5346 + $0x2c] sm:$0xf]
        %v5359 = vld [vmem:[%s5346 + $0x30] sm:$0xf]
        %v5360 = vld [vmem:[%s5346 + $0x34] sm:$0xf]
        %v5361 = vld [vmem:[%s5346 + $0x38] sm:$0xf]
        %v5362 = vld [vmem:[%s5346 + $0x3c] sm:$0xf]
        %v5363 = vld [vmem:[%s5346 + $0x40] sm:$0xf]
        %v5364 = vld [vmem:[%s5346 + $0x44] sm:$0xf]
        %v5365 = vld [vmem:[%s5346 + $0x48] sm:$0xf]
        %v5366 = vld [vmem:[%s5346 + $0x4c] sm:$0xf]
        %v5367 = vld [vmem:[%s5346 + $0x50] sm:$0xf]
        %v5368 = vld [vmem:[%s5346 + $0x54] sm:$0xf]
        %v5369 = vld [vmem:[%s5346 + $0x58] sm:$0xf]
        %v5370 = vld [vmem:[%s5346 + $0x5c] sm:$0xf]
        %v5371 = vld [vmem:[%s5346 + $0x60] sm:$0xf]
        %v5372 = vld [vmem:[%s5346 + $0x64] sm:$0xf]
        %v5373 = vld [vmem:[%s5346 + $0x68] sm:$0xf]
        %v5374 = vld [vmem:[%s5346 + $0x6c] sm:$0xf]
        %v5375 = vld [vmem:[%s5346 + $0x70] sm:$0xf]
        %v5376 = vld [vmem:[%s5346 + $0x74] sm:$0xf]
        %v5377 = vld [vmem:[%s5346 + $0x78] sm:$0xf]
        %v5378 = vld [vmem:[%s5346 + $0x7c] sm:$0xf]
        %v5379 = vld [vmem:[%s5346 + $0x80] sm:$0xf]
        %v5380 = vld [vmem:[%s5346 + $0x84] sm:$0xf]
        %v5381 = vld [vmem:[%s5346 + $0x88] sm:$0xf]
        %v5382 = vld [vmem:[%s5346 + $0x8c] sm:$0xf]
        %v5383 = vld [vmem:[%s5346 + $0x90] sm:$0xf]
        %v5384 = vld [vmem:[%s5346 + $0x94] sm:$0xf]
        %v5385 = vld [vmem:[%s5346 + $0x98] sm:$0xf]
        %v5386 = vld [vmem:[%s5346 + $0x9c] sm:$0xf]
        %v5387 = vld [vmem:[%s5346 + $0xa0] sm:$0xf]
        %v5388 = vld [vmem:[%s5346 + $0xa4] sm:$0xf]
        %v5389 = vld [vmem:[%s5346 + $0xa8] sm:$0xf]
        %v5390 = vld [vmem:[%s5346 + $0xac] sm:$0xf]
        %v5391 = vld [vmem:[%s5346 + $0xb0] sm:$0xf]
        %v5392 = vld [vmem:[%s5346 + $0xb4] sm:$0xf]
        %v5393 = vld [vmem:[%s5346 + $0xb8] sm:$0xf]
        %v5394 = vld [vmem:[%s5346 + $0xbc] sm:$0xf]
        %v5397 = vrot.slane %v4971, 4
        %v5398 = vrot.slane %v4979, 4
        %v5399 = vsel %vm3236, %v5397, %v5398
        %v5400 = vrot.slane %v4954, 4
        %v5401 = vrot.slane %v4883, 4
        %v5402 = vsel %vm3236, %v5400, %v5401
        %v5403 = vrot.slane %v5198, 4
        %v5404 = vrot.slane %v5201, 4
        %v5405 = vsel %vm3236, %v5403, %v5404
        %v5406 = vrot.slane %v4987, 4
        %v5407 = vsel %vm3236, %v5398, %v5406
        %v5408 = vrot.slane %v4885, 4
        %v5409 = vsel %vm3236, %v5401, %v5408
        %v5410 = vrot.slane %v5204, 4
        %v5411 = vsel %vm3236, %v5404, %v5410
        %v5412 = vrot.slane %v4995, 4
        %v5413 = vsel %vm3236, %v5406, %v5412
        %v5414 = vrot.slane %v4887, 4
        %v5415 = vsel %vm3236, %v5408, %v5414
        %v5416 = vrot.slane %v5207, 4
        %v5417 = vsel %vm3236, %v5410, %v5416
        %v5418 = vrot.slane %v5003, 4
        %v5419 = vsel %vm3236, %v5412, %v5418
        %v5420 = vrot.slane %v4889, 4
        %v5421 = vsel %vm3236, %v5414, %v5420
        %v5422 = vrot.slane %v5210, 4
        %v5423 = vsel %vm3236, %v5416, %v5422
        %v5424 = vrot.slane %v5011, 4
        %v5425 = vsel %vm3236, %v5418, %v5424
        %v5426 = vrot.slane %v4891, 4
        %v5427 = vsel %vm3236, %v5420, %v5426
        %v5428 = vrot.slane %v5213, 4
        %v5429 = vsel %vm3236, %v5422, %v5428
        %v5430 = vrot.slane %v5019, 4
        %v5431 = vsel %vm3236, %v5424, %v5430
        %v5432 = vrot.slane %v4893, 4
        %v5433 = vsel %vm3236, %v5426, %v5432
        %v5434 = vrot.slane %v5216, 4
        %v5435 = vsel %vm3236, %v5428, %v5434
        %v5436 = vrot.slane %v5027, 4
        %v5437 = vsel %vm3236, %v5430, %v5436
        %v5438 = vrot.slane %v4895, 4
        %v5439 = vsel %vm3236, %v5432, %v5438
        %v5440 = vrot.slane %v5219, 4
        %v5441 = vsel %vm3236, %v5434, %v5440
        %v5442 = vrot.slane %v5035, 4
        %v5443 = vsel %vm3236, %v5436, %v5442
        %v5444 = vrot.slane %v4897, 4
        %v5445 = vsel %vm3236, %v5438, %v5444
        %v5446 = vrot.slane %v5222, 4
        %v5447 = vsel %vm3236, %v5440, %v5446
        %v5448 = vrot.slane %v5043, 4
        %v5449 = vsel %vm3236, %v5442, %v5448
        %v5450 = vrot.slane %v4899, 4
        %v5451 = vsel %vm3236, %v5444, %v5450
        %v5452 = vrot.slane %v5225, 4
        %v5453 = vsel %vm3236, %v5446, %v5452
        %v5454 = vrot.slane %v5051, 4
        %v5455 = vsel %vm3236, %v5448, %v5454
        %v5456 = vrot.slane %v4901, 4
        %v5457 = vsel %vm3236, %v5450, %v5456
        %v5458 = vrot.slane %v5228, 4
        %v5459 = vsel %vm3236, %v5452, %v5458
        %v5460 = vrot.slane %v5059, 4
        %v5461 = vsel %vm3236, %v5454, %v5460
        %v5462 = vrot.slane %v4903, 4
        %v5463 = vsel %vm3236, %v5456, %v5462
        %v5464 = vrot.slane %v5231, 4
        %v5465 = vsel %vm3236, %v5458, %v5464
        %v5466 = vrot.slane %v5067, 4
        %v5467 = vsel %vm3236, %v5460, %v5466
        %v5468 = vrot.slane %v4905, 4
        %v5469 = vsel %vm3236, %v5462, %v5468
        %v5470 = vrot.slane %v5234, 4
        %v5471 = vsel %vm3236, %v5464, %v5470
        %v5472 = vrot.slane %v5075, 4
        %v5473 = vsel %vm3236, %v5466, %v5472
        %v5474 = vrot.slane %v4907, 4
        %v5475 = vsel %vm3236, %v5468, %v5474
        %v5476 = vrot.slane %v5237, 4
        %v5477 = vsel %vm3236, %v5470, %v5476
        %v5478 = vrot.slane %v5083, 4
        %v5479 = vsel %vm3236, %v5472, %v5478
        %v5480 = vrot.slane %v4909, 4
        %v5481 = vsel %vm3236, %v5474, %v5480
        %v5482 = vrot.slane %v5240, 4
        %v5483 = vsel %vm3236, %v5476, %v5482
        %v5484 = vrot.slane %v5091, 4
        %v5485 = vsel %vm3236, %v5478, %v5484
        %v5486 = vrot.slane %v4911, 4
        %v5487 = vsel %vm3236, %v5480, %v5486
        %v5488 = vrot.slane %v5243, 4
        %v5489 = vsel %vm3236, %v5482, %v5488
        %v5490 = vrot.slane %v5099, 4
        %v5491 = vsel %vm3236, %v5484, %v5490
        %v5492 = vrot.slane %v4913, 4
        %v5493 = vsel %vm3236, %v5486, %v5492
        %v5494 = vrot.slane %v5246, 4
        %v5495 = vsel %vm3236, %v5488, %v5494
        %v5496 = vrot.slane %v5107, 4
        %v5497 = vsel %vm3236, %v5490, %v5496
        %v5498 = vrot.slane %v4915, 4
        %v5499 = vsel %vm3236, %v5492, %v5498
        %v5500 = vrot.slane %v5249, 4
        %v5501 = vsel %vm3236, %v5494, %v5500
        %v5502 = vrot.slane %v5115, 4
        %v5503 = vsel %vm3236, %v5496, %v5502
        %v5504 = vrot.slane %v4917, 4
        %v5505 = vsel %vm3236, %v5498, %v5504
        %v5506 = vrot.slane %v5252, 4
        %v5507 = vsel %vm3236, %v5500, %v5506
        %v5508 = vrot.slane %v5123, 4
        %v5509 = vsel %vm3236, %v5502, %v5508
        %v5510 = vrot.slane %v4919, 4
        %v5511 = vsel %vm3236, %v5504, %v5510
        %v5512 = vrot.slane %v5255, 4
        %v5513 = vsel %vm3236, %v5506, %v5512
        %v5514 = vrot.slane %v5131, 4
        %v5515 = vsel %vm3236, %v5508, %v5514
        %v5516 = vrot.slane %v4921, 4
        %v5517 = vsel %vm3236, %v5510, %v5516
        %v5518 = vrot.slane %v5258, 4
        %v5519 = vsel %vm3236, %v5512, %v5518
        %v5520 = vrot.slane %v5139, 4
        %v5521 = vsel %vm3236, %v5514, %v5520
        %v5522 = vrot.slane %v4923, 4
        %v5523 = vsel %vm3236, %v5516, %v5522
        %v5524 = vrot.slane %v5261, 4
        %v5525 = vsel %vm3236, %v5518, %v5524
        %v5526 = vrot.slane %v5147, 4
        %v5527 = vsel %vm3236, %v5520, %v5526
        %v5528 = vrot.slane %v4925, 4
        %v5529 = vsel %vm3236, %v5522, %v5528
        %v5530 = vrot.slane %v5264, 4
        %v5531 = vsel %vm3236, %v5524, %v5530
        %v5532 = vrot.slane %v5155, 4
        %v5533 = vsel %vm3236, %v5526, %v5532
        %v5534 = vrot.slane %v4927, 4
        %v5535 = vsel %vm3236, %v5528, %v5534
        %v5536 = vrot.slane %v5267, 4
        %v5537 = vsel %vm3236, %v5530, %v5536
        %v5538 = vrot.slane %v5162, 4
        %v5539 = vsel %vm3236, %v5532, %v5538
        %v5540 = vrot.slane %v4957, 4
        %v5541 = vsel %vm3236, %v5534, %v5540
        %v5542 = vrot.slane %v5269, 4
        %v5543 = vsel %vm3236, %v5536, %v5542
        %v5664 = vunpack.c.l.b16 %v5347
        %v5665 = vunpack.c.l.b16 %v5348
        %v5666 = vunpack.c.l.b16 %v5349
        %v5667 = vunpack.c.l.b16 %v5350
        %v5668 = vunpack.c.l.b16 %v5351
        %v5669 = vunpack.c.l.b16 %v5352
        %v5670 = vunpack.c.l.b16 %v5353
        %v5671 = vunpack.c.l.b16 %v5354
        %v5672 = vunpack.c.l.b16 %v5355
        %v5673 = vunpack.c.l.b16 %v5356
        %v5674 = vunpack.c.l.b16 %v5357
        %v5675 = vunpack.c.l.b16 %v5358
        %v5676 = vunpack.c.l.b16 %v5359
        %v5677 = vunpack.c.l.b16 %v5360
        %v5678 = vunpack.c.l.b16 %v5361
        %v5679 = vunpack.c.l.b16 %v5362
        %v5680 = vunpack.c.l.b16 %v5363
        %v5681 = vunpack.c.l.b16 %v5364
        %v5682 = vunpack.c.l.b16 %v5365
        %v5683 = vunpack.c.l.b16 %v5366
        %v5684 = vunpack.c.l.b16 %v5367
        %v5685 = vunpack.c.l.b16 %v5368
        %v5686 = vunpack.c.l.b16 %v5369
        %v5687 = vunpack.c.l.b16 %v5370
        %v5688 = vunpack.c.l.b16 %v5371
        %v5689 = vunpack.c.l.b16 %v5372
        %v5690 = vunpack.c.l.b16 %v5373
        %v5691 = vunpack.c.l.b16 %v5374
        %v5692 = vunpack.c.l.b16 %v5375
        %v5693 = vunpack.c.l.b16 %v5376
        %v5694 = vunpack.c.l.b16 %v5377
        %v5695 = vunpack.c.l.b16 %v5378
        %v5696 = vunpack.c.l.b16 %v5379
        %v5697 = vunpack.c.l.b16 %v5380
        %v5698 = vunpack.c.l.b16 %v5381
        %v5699 = vunpack.c.l.b16 %v5382
        %v5700 = vunpack.c.l.b16 %v5383
        %v5701 = vunpack.c.l.b16 %v5384
        %v5702 = vunpack.c.l.b16 %v5385
        %v5703 = vunpack.c.l.b16 %v5386
        %v5704 = vunpack.c.l.b16 %v5387
        %v5705 = vunpack.c.l.b16 %v5388
        %v5706 = vunpack.c.l.b16 %v5389
        %v5707 = vunpack.c.l.b16 %v5390
        %v5708 = vunpack.c.l.b16 %v5391
        %v5709 = vunpack.c.l.b16 %v5392
        %v5710 = vunpack.c.l.b16 %v5393
        %v5711 = vunpack.c.l.b16 %v5394
        %v5712 = vpack.c.b16 %v5665, %v5664
        %v5713 = vpack.c.b16 %v5667, %v5666
        %v5714 = vpack.c.b16 %v5669, %v5668
        %v5715 = vpack.c.b16 %v5671, %v5670
        %v5716 = vpack.c.b16 %v5673, %v5672
        %v5717 = vpack.c.b16 %v5675, %v5674
        %v5718 = vpack.c.b16 %v5677, %v5676
        %v5719 = vpack.c.b16 %v5679, %v5678
        %v5720 = vpack.c.b16 %v5681, %v5680
        %v5721 = vpack.c.b16 %v5683, %v5682
        %v5722 = vpack.c.b16 %v5685, %v5684
        %v5723 = vpack.c.b16 %v5687, %v5686
        %v5724 = vpack.c.b16 %v5689, %v5688
        %v5725 = vpack.c.b16 %v5691, %v5690
        %v5726 = vpack.c.b16 %v5693, %v5692
        %v5727 = vpack.c.b16 %v5695, %v5694
        %v5728 = vpack.c.b16 %v5697, %v5696
        %v5729 = vpack.c.b16 %v5699, %v5698
        %v5730 = vpack.c.b16 %v5701, %v5700
        %v5731 = vpack.c.b16 %v5703, %v5702
        %v5732 = vpack.c.b16 %v5705, %v5704
        %v5733 = vpack.c.b16 %v5707, %v5706
        %v5734 = vpack.c.b16 %v5709, %v5708
        %v5735 = vpack.c.b16 %v5711, %v5710
        %5760 = vmatprep.subr.bf16.mxu0 0
        %5761 = vmatpush1.bf16.msra.mxu0 %v5712
        %5762 = vmatprep.subr.bf16.mxu0 0
        %5763 = vmatpush1.bf16.msra.mxu0 %v5713
        %5764 = vmatprep.subr.bf16.mxu0 0
        %5765 = vmatpush1.bf16.msra.mxu0 %v5714
        %5766 = vmatprep.subr.bf16.mxu0 0
        %5767 = vmatpush1.bf16.msra.mxu0 %v5715
        %5768 = vmatprep.subr.bf16.mxu0 0
        %5769 = vmatpush1.bf16.msra.mxu0 %v5716
        %5770 = vmatprep.subr.bf16.mxu0 0
        %5771 = vmatpush1.bf16.msra.mxu0 %v5717
        %5772 = vmatprep.subr.bf16.mxu0 0
        %5773 = vmatpush1.bf16.msra.mxu0 %v5718
        %5774 = vmatprep.subr.bf16.mxu0 0
        %5775 = vmatpush1.bf16.msra.mxu0 %v5719
        %5776 = vmatprep.subr.bf16.mxu0 0
        %5777 = vmatpush1.bf16.msra.mxu0 %v5720
        %5778 = vmatprep.subr.bf16.mxu0 0
        %5779 = vmatpush1.bf16.msra.mxu0 %v5721
        %5780 = vmatprep.subr.bf16.mxu0 0
        %5781 = vmatpush1.bf16.msra.mxu0 %v5722
        %5782 = vmatprep.subr.bf16.mxu0 0
        %5783 = vmatpush1.bf16.msra.mxu0 %v5723
        %5784 = vmatprep.subr.bf16.mxu0 0
        %5785 = vmatpush1.bf16.msra.mxu0 %v5724
        %5786 = vmatprep.subr.bf16.mxu0 0
        %5787 = vmatpush1.bf16.msra.mxu0 %v5725
        %5788 = vmatprep.subr.bf16.mxu0 0
        %5789 = vmatpush1.bf16.msra.mxu0 %v5726
        %5790 = vmatprep.subr.bf16.mxu0 0
        %5791 = vmatpush1.bf16.msra.mxu0 %v5727
        %5792 = vmatprep.mubr.bf16.mxu0 %v5402
        %5793 = vmatmul.mubr.bf16.gmra.mrb[0].mxu0 %v5399
        %v5794 = vpop.f32.mrb[0].mxu0
        %v5795 = vadd.f32 0.0, %v5794
        %v5796 = vpop.f32.mrb[0].mxu0
        %v5797 = vpop.f32.mrb[0].mxu0
        %v5798 = vadd.f32 0.0, %v5797
        %v5799 = vpop.f32.mrb[0].mxu0
        %5800 = vmatprep.mubr.bf16.mxu0 %v5409
        %5801 = vmatmul.mubr.bf16.gmra.mrb[0].mxu0 %v5407
        %v5802 = vpop.f32.mrb[0].mxu0
        %v5803 = vadd.f32 0.0, %v5802
        %v5804 = vpop.f32.mrb[0].mxu0
        %v5805 = vpop.f32.mrb[0].mxu0
        %v5806 = vadd.f32 0.0, %v5805
        %v5807 = vpop.f32.mrb[0].mxu0
        %5808 = vmatprep.mubr.bf16.mxu0 %v5415
        %5809 = vmatmul.mubr.bf16.gmra.mrb[0].mxu0 %v5413
        %v5810 = vpop.f32.mrb[0].mxu0
        %v5811 = vadd.f32 0.0, %v5810
        %v5812 = vpop.f32.mrb[0].mxu0
        %v5813 = vpop.f32.mrb[0].mxu0
        %v5814 = vadd.f32 0.0, %v5813
        %v5815 = vpop.f32.mrb[0].mxu0
        %5816 = vmatprep.mubr.bf16.mxu0 %v5421
        %5817 = vmatmul.mubr.bf16.gmra.mrb[0].mxu0 %v5419
        %v5818 = vpop.f32.mrb[0].mxu0
        %v5819 = vadd.f32 0.0, %v5818
        %v5820 = vpop.f32.mrb[0].mxu0
        %v5821 = vpop.f32.mrb[0].mxu0
        %v5822 = vadd.f32 0.0, %v5821
        %v5823 = vpop.f32.mrb[0].mxu0
        %5824 = vmatprep.mubr.bf16.mxu0 %v5427
        %5825 = vmatmul.mubr.bf16.gmra.mrb[0].mxu0 %v5425
        %v5826 = vpop.f32.mrb[0].mxu0
        %v5827 = vadd.f32 0.0, %v5826
        %v5828 = vpop.f32.mrb[0].mxu0
        %v5829 = vpop.f32.mrb[0].mxu0
        %v5830 = vadd.f32 0.0, %v5829
        %v5831 = vpop.f32.mrb[0].mxu0
        %5832 = vmatprep.mubr.bf16.mxu0 %v5433
        %5833 = vmatmul.mubr.bf16.gmra.mrb[0].mxu0 %v5431
        %v5834 = vpop.f32.mrb[0].mxu0
        %v5835 = vadd.f32 0.0, %v5834
        %v5836 = vpop.f32.mrb[0].mxu0
        %v5837 = vpop.f32.mrb[0].mxu0
        %v5838 = vadd.f32 0.0, %v5837
        %v5839 = vpop.f32.mrb[0].mxu0
        %5840 = vmatprep.mubr.bf16.mxu0 %v5439
        %5841 = vmatmul.mubr.bf16.gmra.mrb[0].mxu0 %v5437
        %v5842 = vpop.f32.mrb[0].mxu0
        %v5843 = vadd.f32 0.0, %v5842
        %v5844 = vpop.f32.mrb[0].mxu0
        %v5845 = vpop.f32.mrb[0].mxu0
        %v5846 = vadd.f32 0.0, %v5845
        %v5847 = vpop.f32.mrb[0].mxu0
        %5848 = vmatprep.mubr.bf16.mxu0 %v5445
        %5849 = vmatmul.mubr.bf16.gmra.mrb[0].mxu0 %v5443
        %v5850 = vpop.f32.mrb[0].mxu0
        %v5851 = vadd.f32 0.0, %v5850
        %v5852 = vpop.f32.mrb[0].mxu0
        %v5853 = vpop.f32.mrb[0].mxu0
        %v5854 = vadd.f32 0.0, %v5853
        %v5855 = vpop.f32.mrb[0].mxu0
        %5856 = vmatprep.mubr.bf16.mxu0 %v5451
        %5857 = vmatmul.mubr.bf16.gmra.mrb[0].mxu0 %v5449
        %v5858 = vpop.f32.mrb[0].mxu0
        %v5859 = vadd.f32 0.0, %v5858
        %v5860 = vpop.f32.mrb[0].mxu0
        %v5861 = vpop.f32.mrb[0].mxu0
        %v5862 = vadd.f32 0.0, %v5861
        %v5863 = vpop.f32.mrb[0].mxu0
        %5864 = vmatprep.mubr.bf16.mxu0 %v5457
        %5865 = vmatmul.mubr.bf16.gmra.mrb[0].mxu0 %v5455
        %v5866 = vpop.f32.mrb[0].mxu0
        %v5867 = vadd.f32 0.0, %v5866
        %v5868 = vpop.f32.mrb[0].mxu0
        %v5869 = vpop.f32.mrb[0].mxu0
        %v5870 = vadd.f32 0.0, %v5869
        %v5871 = vpop.f32.mrb[0].mxu0
        %5872 = vmatprep.mubr.bf16.mxu0 %v5463
        %5873 = vmatmul.mubr.bf16.gmra.mrb[0].mxu0 %v5461
        %v5874 = vpop.f32.mrb[0].mxu0
        %v5875 = vadd.f32 0.0, %v5874
        %v5876 = vpop.f32.mrb[0].mxu0
        %v5877 = vpop.f32.mrb[0].mxu0
        %v5878 = vadd.f32 0.0, %v5877
        %v5879 = vpop.f32.mrb[0].mxu0
        %5880 = vmatprep.mubr.bf16.mxu0 %v5469
        %5881 = vmatmul.mubr.bf16.gmra.mrb[0].mxu0 %v5467
        %v5882 = vpop.f32.mrb[0].mxu0
        %v5883 = vadd.f32 0.0, %v5882
        %v5884 = vpop.f32.mrb[0].mxu0
        %v5885 = vpop.f32.mrb[0].mxu0
        %v5886 = vadd.f32 0.0, %v5885
        %v5887 = vpop.f32.mrb[0].mxu0
        %5888 = vmatprep.mubr.bf16.mxu0 %v5475
        %5889 = vmatmul.mubr.bf16.gmra.mrb[0].mxu0 %v5473
        %v5890 = vpop.f32.mrb[0].mxu0
        %v5891 = vadd.f32 0.0, %v5890
        %v5892 = vpop.f32.mrb[0].mxu0
        %v5893 = vpop.f32.mrb[0].mxu0
        %v5894 = vadd.f32 0.0, %v5893
        %v5895 = vpop.f32.mrb[0].mxu0
        %5896 = vmatprep.mubr.bf16.mxu0 %v5481
        %5897 = vmatmul.mubr.bf16.gmra.mrb[0].mxu0 %v5479
        %v5898 = vpop.f32.mrb[0].mxu0
        %v5899 = vadd.f32 0.0, %v5898
        %v5900 = vpop.f32.mrb[0].mxu0
        %v5901 = vpop.f32.mrb[0].mxu0
        %v5902 = vadd.f32 0.0, %v5901
        %v5903 = vpop.f32.mrb[0].mxu0
        %5904 = vmatprep.mubr.bf16.mxu0 %v5487
        %5905 = vmatmul.mubr.bf16.gmra.mrb[0].mxu0 %v5485
        %v5906 = vpop.f32.mrb[0].mxu0
        %v5907 = vadd.f32 0.0, %v5906
        %v5908 = vpop.f32.mrb[0].mxu0
        %v5909 = vpop.f32.mrb[0].mxu0
        %v5910 = vadd.f32 0.0, %v5909
        %v5911 = vpop.f32.mrb[0].mxu0
        %5912 = vmatprep.mubr.bf16.mxu0 %v5493
        %5913 = vmatmul.mubr.bf16.gmra.mrb[0].mxu0 %v5491
        %v5914 = vpop.f32.mrb[0].mxu0
        %v5915 = vadd.f32 0.0, %v5914
        %v5916 = vpop.f32.mrb[0].mxu0
        %v5917 = vpop.f32.mrb[0].mxu0
        %v5918 = vadd.f32 0.0, %v5917
        %v5919 = vpop.f32.mrb[0].mxu0
        %5920 = vmatprep.mubr.bf16.mxu0 %v5499
        %5921 = vmatmul.mubr.bf16.gmra.mrb[0].mxu0 %v5497
        %v5922 = vpop.f32.mrb[0].mxu0
        %v5923 = vadd.f32 0.0, %v5922
        %v5924 = vpop.f32.mrb[0].mxu0
        %v5925 = vpop.f32.mrb[0].mxu0
        %v5926 = vadd.f32 0.0, %v5925
        %v5927 = vpop.f32.mrb[0].mxu0
        %5928 = vmatprep.mubr.bf16.mxu0 %v5505
        %5929 = vmatmul.mubr.bf16.gmra.mrb[0].mxu0 %v5503
        %v5930 = vpop.f32.mrb[0].mxu0
        %v5931 = vadd.f32 0.0, %v5930
        %v5932 = vpop.f32.mrb[0].mxu0
        %v5933 = vpop.f32.mrb[0].mxu0
        %v5934 = vadd.f32 0.0, %v5933
        %v5935 = vpop.f32.mrb[0].mxu0
        %5936 = vmatprep.mubr.bf16.mxu0 %v5511
        %5937 = vmatmul.mubr.bf16.gmra.mrb[0].mxu0 %v5509
        %v5938 = vpop.f32.mrb[0].mxu0
        %v5939 = vadd.f32 0.0, %v5938
        %v5940 = vpop.f32.mrb[0].mxu0
        %v5941 = vpop.f32.mrb[0].mxu0
        %v5942 = vadd.f32 0.0, %v5941
        %v5943 = vpop.f32.mrb[0].mxu0
        %5944 = vmatprep.mubr.bf16.mxu0 %v5517
        %5945 = vmatmul.mubr.bf16.gmra.mrb[0].mxu0 %v5515
        %v5946 = vpop.f32.mrb[0].mxu0
        %v5947 = vadd.f32 0.0, %v5946
        %v5948 = vpop.f32.mrb[0].mxu0
        %v5949 = vpop.f32.mrb[0].mxu0
        %v5950 = vadd.f32 0.0, %v5949
        %v5951 = vpop.f32.mrb[0].mxu0
        %5952 = vmatprep.mubr.bf16.mxu0 %v5523
        %5953 = vmatmul.mubr.bf16.gmra.mrb[0].mxu0 %v5521
        %v5954 = vpop.f32.mrb[0].mxu0
        %v5955 = vadd.f32 0.0, %v5954
        %v5956 = vpop.f32.mrb[0].mxu0
        %v5957 = vpop.f32.mrb[0].mxu0
        %v5958 = vadd.f32 0.0, %v5957
        %v5959 = vpop.f32.mrb[0].mxu0
        %5960 = vmatprep.mubr.bf16.mxu0 %v5529
        %5961 = vmatmul.mubr.bf16.gmra.mrb[0].mxu0 %v5527
        %v5962 = vpop.f32.mrb[0].mxu0
        %v5963 = vadd.f32 0.0, %v5962
        %v5964 = vpop.f32.mrb[0].mxu0
        %v5965 = vpop.f32.mrb[0].mxu0
        %v5966 = vadd.f32 0.0, %v5965
        %v5967 = vpop.f32.mrb[0].mxu0
        %5968 = vmatprep.mubr.bf16.mxu0 %v5535
        %5969 = vmatmul.mubr.bf16.gmra.mrb[0].mxu0 %v5533
        %v5970 = vpop.f32.mrb[0].mxu0
        %v5971 = vadd.f32 0.0, %v5970
        %v5972 = vpop.f32.mrb[0].mxu0
        %v5973 = vpop.f32.mrb[0].mxu0
        %v5974 = vadd.f32 0.0, %v5973
        %v5975 = vpop.f32.mrb[0].mxu0
        %5976 = vmatprep.mubr.bf16.mxu0 %v5541
        %5977 = vmatmul.mubr.bf16.gmra.mrb[0].mxu0 %v5539
        %v5978 = vpop.f32.mrb[0].mxu0
        %v5979 = vadd.f32 0.0, %v5978
        %v5980 = vpop.f32.mrb[0].mxu0
        %v5981 = vpop.f32.mrb[0].mxu0
        %v5982 = vadd.f32 0.0, %v5981
        %v5983 = vpop.f32.mrb[0].mxu0
        %5984 = vdwg.mxu0
        %5985 = vmatprep.subr.bf16.mxu0 0
        %5986 = vmatpush1.bf16.msra.mxu0 %v5728
        %5987 = vmatprep.subr.bf16.mxu0 0
        %5988 = vmatpush1.bf16.msra.mxu0 %v5729
        %5989 = vmatprep.subr.bf16.mxu0 0
        %5990 = vmatpush1.bf16.msra.mxu0 %v5730
        %5991 = vmatprep.subr.bf16.mxu0 0
        %5992 = vmatpush1.bf16.msra.mxu0 %v5731
        %5993 = vmatprep.subr.bf16.mxu0 0
        %5994 = vmatpush1.bf16.msra.mxu0 %v5732
        %5995 = vmatprep.subr.bf16.mxu0 0
        %5996 = vmatpush1.bf16.msra.mxu0 %v5733
        %5997 = vmatprep.subr.bf16.mxu0 0
        %5998 = vmatpush1.bf16.msra.mxu0 %v5734
        %5999 = vmatprep.subr.bf16.mxu0 0
        %6000 = vmatpush1.bf16.msra.mxu0 %v5735
        %6001 = vmatprep.subr.bf16.mxu0 0
        %6002 = vmatpush1.bf16.msra.mxu0 0
        %6003 = vmatprep.subr.bf16.mxu0 0
        %6004 = vmatpush1.bf16.msra.mxu0 0
        %6005 = vmatprep.subr.bf16.mxu0 0
        %6006 = vmatpush1.bf16.msra.mxu0 0
        %6007 = vmatprep.subr.bf16.mxu0 0
        %6008 = vmatpush1.bf16.msra.mxu0 0
        %6009 = vmatprep.subr.bf16.mxu0 0
        %6010 = vmatpush1.bf16.msra.mxu0 0
        %6011 = vmatprep.subr.bf16.mxu0 0
        %6012 = vmatpush1.bf16.msra.mxu0 0
        %6013 = vmatprep.subr.bf16.mxu0 0
        %6014 = vmatpush1.bf16.msra.mxu0 0
        %6015 = vmatprep.subr.bf16.mxu0 0
        %6016 = vmatpush1.bf16.msra.mxu0 0
        %6017 = vmatprep.mubr.bf16.mxu0 0
        %6018 = vmatmul.mubr.bf16.gmra.mrb[0].mxu0 %v5405
        %v6019 = vpop.f32.mrb[0].mxu0
        %v6020 = vadd.f32 %v5795, %v6019
        %v6021 = vpop.f32.mrb[0].mxu0
        %v6022 = vpop.f32.mrb[0].mxu0
        %v6023 = vadd.f32 %v5798, %v6022
        %v6024 = vpop.f32.mrb[0].mxu0
        %6025 = vmatprep.mubr.bf16.mxu0 0
        %6026 = vmatmul.mubr.bf16.gmra.mrb[0].mxu0 %v5411
        %v6027 = vpop.f32.mrb[0].mxu0
        %v6028 = vadd.f32 %v5803, %v6027
        %v6029 = vpop.f32.mrb[0].mxu0
        %v6030 = vpop.f32.mrb[0].mxu0
        %v6031 = vadd.f32 %v5806, %v6030
        %v6032 = vpop.f32.mrb[0].mxu0
        %6033 = vmatprep.mubr.bf16.mxu0 0
        %6034 = vmatmul.mubr.bf16.gmra.mrb[0].mxu0 %v5417
        %v6035 = vpop.f32.mrb[0].mxu0
        %v6036 = vadd.f32 %v5811, %v6035
        %v6037 = vpop.f32.mrb[0].mxu0
        %v6038 = vpop.f32.mrb[0].mxu0
        %v6039 = vadd.f32 %v5814, %v6038
        %v6040 = vpop.f32.mrb[0].mxu0
        %6041 = vmatprep.mubr.bf16.mxu0 0
        %6042 = vmatmul.mubr.bf16.gmra.mrb[0].mxu0 %v5423
        %v6043 = vpop.f32.mrb[0].mxu0
        %v6044 = vadd.f32 %v5819, %v6043
        %v6045 = vpop.f32.mrb[0].mxu0
        %v6046 = vpop.f32.mrb[0].mxu0
        %v6047 = vadd.f32 %v5822, %v6046
        %v6048 = vpop.f32.mrb[0].mxu0
        %6049 = vmatprep.mubr.bf16.mxu0 0
        %6050 = vmatmul.mubr.bf16.gmra.mrb[0].mxu0 %v5429
        %v6051 = vpop.f32.mrb[0].mxu0
        %v6052 = vadd.f32 %v5827, %v6051
        %v6053 = vpop.f32.mrb[0].mxu0
        %v6054 = vpop.f32.mrb[0].mxu0
        %v6055 = vadd.f32 %v5830, %v6054
        %v6056 = vpop.f32.mrb[0].mxu0
        %6057 = vmatprep.mubr.bf16.mxu0 0
        %6058 = vmatmul.mubr.bf16.gmra.mrb[0].mxu0 %v5435
        %v6059 = vpop.f32.mrb[0].mxu0
        %v6060 = vadd.f32 %v5835, %v6059
        %v6061 = vpop.f32.mrb[0].mxu0
        %v6062 = vpop.f32.mrb[0].mxu0
        %v6063 = vadd.f32 %v5838, %v6062
        %v6064 = vpop.f32.mrb[0].mxu0
        %6065 = vmatprep.mubr.bf16.mxu0 0
        %6066 = vmatmul.mubr.bf16.gmra.mrb[0].mxu0 %v5441
        %v6067 = vpop.f32.mrb[0].mxu0
        %v6068 = vadd.f32 %v5843, %v6067
        %v6069 = vpop.f32.mrb[0].mxu0
        %v6070 = vpop.f32.mrb[0].mxu0
        %v6071 = vadd.f32 %v5846, %v6070
        %v6072 = vpop.f32.mrb[0].mxu0
        %6073 = vmatprep.mubr.bf16.mxu0 0
        %6074 = vmatmul.mubr.bf16.gmra.mrb[0].mxu0 %v5447
        %v6075 = vpop.f32.mrb[0].mxu0
        %v6076 = vadd.f32 %v5851, %v6075
        %v6077 = vpop.f32.mrb[0].mxu0
        %v6078 = vpop.f32.mrb[0].mxu0
        %v6079 = vadd.f32 %v5854, %v6078
        %v6080 = vpop.f32.mrb[0].mxu0
        %6081 = vmatprep.mubr.bf16.mxu0 0
        %6082 = vmatmul.mubr.bf16.gmra.mrb[0].mxu0 %v5453
        %v6083 = vpop.f32.mrb[0].mxu0
        %v6084 = vadd.f32 %v5859, %v6083
        %v6085 = vpop.f32.mrb[0].mxu0
        %v6086 = vpop.f32.mrb[0].mxu0
        %v6087 = vadd.f32 %v5862, %v6086
        %v6088 = vpop.f32.mrb[0].mxu0
        %6089 = vmatprep.mubr.bf16.mxu0 0
        %6090 = vmatmul.mubr.bf16.gmra.mrb[0].mxu0 %v5459
        %v6091 = vpop.f32.mrb[0].mxu0
        %v6092 = vadd.f32 %v5867, %v6091
        %v6093 = vpop.f32.mrb[0].mxu0
        %v6094 = vpop.f32.mrb[0].mxu0
        %v6095 = vadd.f32 %v5870, %v6094
        %v6096 = vpop.f32.mrb[0].mxu0
        %6097 = vmatprep.mubr.bf16.mxu0 0
        %6098 = vmatmul.mubr.bf16.gmra.mrb[0].mxu0 %v5465
        %v6099 = vpop.f32.mrb[0].mxu0
        %v6100 = vadd.f32 %v5875, %v6099
        %v6101 = vpop.f32.mrb[0].mxu0
        %v6102 = vpop.f32.mrb[0].mxu0
        %v6103 = vadd.f32 %v5878, %v6102
        %v6104 = vpop.f32.mrb[0].mxu0
        %6105 = vmatprep.mubr.bf16.mxu0 0
        %6106 = vmatmul.mubr.bf16.gmra.mrb[0].mxu0 %v5471
        %v6107 = vpop.f32.mrb[0].mxu0
        %v6108 = vadd.f32 %v5883, %v6107
        %v6109 = vpop.f32.mrb[0].mxu0
        %v6110 = vpop.f32.mrb[0].mxu0
        %v6111 = vadd.f32 %v5886, %v6110
        %v6112 = vpop.f32.mrb[0].mxu0
        %6113 = vmatprep.mubr.bf16.mxu0 0
        %6114 = vmatmul.mubr.bf16.gmra.mrb[0].mxu0 %v5477
        %v6115 = vpop.f32.mrb[0].mxu0
        %v6116 = vadd.f32 %v5891, %v6115
        %v6117 = vpop.f32.mrb[0].mxu0
        %v6118 = vpop.f32.mrb[0].mxu0
        %v6119 = vadd.f32 %v5894, %v6118
        %v6120 = vpop.f32.mrb[0].mxu0
        %6121 = vmatprep.mubr.bf16.mxu0 0
        %6122 = vmatmul.mubr.bf16.gmra.mrb[0].mxu0 %v5483
        %v6123 = vpop.f32.mrb[0].mxu0
        %v6124 = vadd.f32 %v5899, %v6123
        %v6125 = vpop.f32.mrb[0].mxu0
        %v6126 = vpop.f32.mrb[0].mxu0
        %v6127 = vadd.f32 %v5902, %v6126
        %v6128 = vpop.f32.mrb[0].mxu0
        %6129 = vmatprep.mubr.bf16.mxu0 0
        %6130 = vmatmul.mubr.bf16.gmra.mrb[0].mxu0 %v5489
        %v6131 = vpop.f32.mrb[0].mxu0
        %v6132 = vadd.f32 %v5907, %v6131
        %v6133 = vpop.f32.mrb[0].mxu0
        %v6134 = vpop.f32.mrb[0].mxu0
        %v6135 = vadd.f32 %v5910, %v6134
        %v6136 = vpop.f32.mrb[0].mxu0
        %6137 = vmatprep.mubr.bf16.mxu0 0
        %6138 = vmatmul.mubr.bf16.gmra.mrb[0].mxu0 %v5495
        %v6139 = vpop.f32.mrb[0].mxu0
        %v6140 = vadd.f32 %v5915, %v6139
        %v6141 = vpop.f32.mrb[0].mxu0
        %v6142 = vpop.f32.mrb[0].mxu0
        %v6143 = vadd.f32 %v5918, %v6142
        %v6144 = vpop.f32.mrb[0].mxu0
        %6145 = vmatprep.mubr.bf16.mxu0 0
        %6146 = vmatmul.mubr.bf16.gmra.mrb[0].mxu0 %v5501
        %v6147 = vpop.f32.mrb[0].mxu0
        %v6148 = vadd.f32 %v5923, %v6147
        %v6149 = vpop.f32.mrb[0].mxu0
        %v6150 = vpop.f32.mrb[0].mxu0
        %v6151 = vadd.f32 %v5926, %v6150
        %v6152 = vpop.f32.mrb[0].mxu0
        %6153 = vmatprep.mubr.bf16.mxu0 0
        %6154 = vmatmul.mubr.bf16.gmra.mrb[0].mxu0 %v5507
        %v6155 = vpop.f32.mrb[0].mxu0
        %v6156 = vadd.f32 %v5931, %v6155
        %v6157 = vpop.f32.mrb[0].mxu0
        %v6158 = vpop.f32.mrb[0].mxu0
        %v6159 = vadd.f32 %v5934, %v6158
        %v6160 = vpop.f32.mrb[0].mxu0
        %6161 = vmatprep.mubr.bf16.mxu0 0
        %6162 = vmatmul.mubr.bf16.gmra.mrb[0].mxu0 %v5513
        %v6163 = vpop.f32.mrb[0].mxu0
        %v6164 = vadd.f32 %v5939, %v6163
        %v6165 = vpop.f32.mrb[0].mxu0
        %v6166 = vpop.f32.mrb[0].mxu0
        %v6167 = vadd.f32 %v5942, %v6166
        %v6168 = vpop.f32.mrb[0].mxu0
        %6169 = vmatprep.mubr.bf16.mxu0 0
        %6170 = vmatmul.mubr.bf16.gmra.mrb[0].mxu0 %v5519
        %v6171 = vpop.f32.mrb[0].mxu0
        %v6172 = vadd.f32 %v5947, %v6171
        %v6173 = vpop.f32.mrb[0].mxu0
        %v6174 = vpop.f32.mrb[0].mxu0
        %v6175 = vadd.f32 %v5950, %v6174
        %v6176 = vpop.f32.mrb[0].mxu0
        %6177 = vmatprep.mubr.bf16.mxu0 0
        %6178 = vmatmul.mubr.bf16.gmra.mrb[0].mxu0 %v5525
        %v6179 = vpop.f32.mrb[0].mxu0
        %v6180 = vadd.f32 %v5955, %v6179
        %v6181 = vpop.f32.mrb[0].mxu0
        %v6182 = vpop.f32.mrb[0].mxu0
        %v6183 = vadd.f32 %v5958, %v6182
        %v6184 = vpop.f32.mrb[0].mxu0
        %6185 = vmatprep.mubr.bf16.mxu0 0
        %6186 = vmatmul.mubr.bf16.gmra.mrb[0].mxu0 %v5531
        %v6187 = vpop.f32.mrb[0].mxu0
        %v6188 = vadd.f32 %v5963, %v6187
        %v6189 = vpop.f32.mrb[0].mxu0
        %v6190 = vpop.f32.mrb[0].mxu0
        %v6191 = vadd.f32 %v5966, %v6190
        %v6192 = vpop.f32.mrb[0].mxu0
        %6193 = vmatprep.mubr.bf16.mxu0 0
        %6194 = vmatmul.mubr.bf16.gmra.mrb[0].mxu0 %v5537
        %v6195 = vpop.f32.mrb[0].mxu0
        %v6196 = vadd.f32 %v5971, %v6195
        %v6197 = vpop.f32.mrb[0].mxu0
        %v6198 = vpop.f32.mrb[0].mxu0
        %v6199 = vadd.f32 %v5974, %v6198
        %v6200 = vpop.f32.mrb[0].mxu0
        %6201 = vmatprep.mubr.bf16.mxu0 0
        %6202 = vmatmul.mubr.bf16.gmra.mrb[0].mxu0 %v5543
        %v6203 = vpop.f32.mrb[0].mxu0
        %v6204 = vadd.f32 %v5979, %v6203
        %v6205 = vpop.f32.mrb[0].mxu0
        %v6206 = vpop.f32.mrb[0].mxu0
        %v6207 = vadd.f32 %v5982, %v6206
        %v6208 = vpop.f32.mrb[0].mxu0
        %6209 = vdwg.mxu0
        %v6258 = vunpack.c.l.b16 %v5298
        %v6259 = vunpack.c.l.b16 %v5299
        %v6260 = vunpack.c.l.b16 %v5300
        %v6261 = vunpack.c.l.b16 %v5301
        %v6262 = vunpack.c.l.b16 %v5302
        %v6263 = vunpack.c.l.b16 %v5303
        %v6264 = vunpack.c.l.b16 %v5304
        %v6265 = vunpack.c.l.b16 %v5305
        %v6266 = vunpack.c.l.b16 %v5306
        %v6267 = vunpack.c.l.b16 %v5307
        %v6268 = vunpack.c.l.b16 %v5308
        %v6269 = vunpack.c.l.b16 %v5309
        %v6270 = vunpack.c.l.b16 %v5310
        %v6271 = vunpack.c.l.b16 %v5311
        %v6272 = vunpack.c.l.b16 %v5312
        %v6273 = vunpack.c.l.b16 %v5313
        %v6274 = vunpack.c.l.b16 %v5314
        %v6275 = vunpack.c.l.b16 %v5315
        %v6276 = vunpack.c.l.b16 %v5316
        %v6277 = vunpack.c.l.b16 %v5317
        %v6278 = vunpack.c.l.b16 %v5318
        %v6279 = vunpack.c.l.b16 %v5319
        %v6280 = vunpack.c.l.b16 %v5320
        %v6281 = vunpack.c.l.b16 %v5321
        %v6282 = vunpack.c.l.b16 %v5322
        %v6283 = vunpack.c.l.b16 %v5323
        %v6284 = vunpack.c.l.b16 %v5324
        %v6285 = vunpack.c.l.b16 %v5325
        %v6286 = vunpack.c.l.b16 %v5326
        %v6287 = vunpack.c.l.b16 %v5327
        %v6288 = vunpack.c.l.b16 %v5328
        %v6289 = vunpack.c.l.b16 %v5329
        %v6290 = vunpack.c.l.b16 %v5330
        %v6291 = vunpack.c.l.b16 %v5331
        %v6292 = vunpack.c.l.b16 %v5332
        %v6293 = vunpack.c.l.b16 %v5333
        %v6294 = vunpack.c.l.b16 %v5334
        %v6295 = vunpack.c.l.b16 %v5335
        %v6296 = vunpack.c.l.b16 %v5336
        %v6297 = vunpack.c.l.b16 %v5337
        %v6298 = vunpack.c.l.b16 %v5338
        %v6299 = vunpack.c.l.b16 %v5339
        %v6300 = vunpack.c.l.b16 %v5340
        %v6301 = vunpack.c.l.b16 %v5341
        %v6302 = vunpack.c.l.b16 %v5342
        %v6303 = vunpack.c.l.b16 %v5343
        %v6304 = vunpack.c.l.b16 %v5344
        %v6305 = vunpack.c.l.b16 %v5345
        %v6306 = vpack.c.b16 %v6259, %v6258
        %v6307 = vpack.c.b16 %v6261, %v6260
        %v6308 = vpack.c.b16 %v6263, %v6262
        %v6309 = vpack.c.b16 %v6265, %v6264
        %v6310 = vpack.c.b16 %v6267, %v6266
        %v6311 = vpack.c.b16 %v6269, %v6268
        %v6312 = vpack.c.b16 %v6271, %v6270
        %v6313 = vpack.c.b16 %v6273, %v6272
        %v6314 = vpack.c.b16 %v6275, %v6274
        %v6315 = vpack.c.b16 %v6277, %v6276
        %v6316 = vpack.c.b16 %v6279, %v6278
        %v6317 = vpack.c.b16 %v6281, %v6280
        %v6318 = vpack.c.b16 %v6283, %v6282
        %v6319 = vpack.c.b16 %v6285, %v6284
        %v6320 = vpack.c.b16 %v6287, %v6286
        %v6321 = vpack.c.b16 %v6289, %v6288
        %v6322 = vpack.c.b16 %v6291, %v6290
        %v6323 = vpack.c.b16 %v6293, %v6292
        %v6324 = vpack.c.b16 %v6295, %v6294
        %v6325 = vpack.c.b16 %v6297, %v6296
        %v6326 = vpack.c.b16 %v6299, %v6298
        %v6327 = vpack.c.b16 %v6301, %v6300
        %v6328 = vpack.c.b16 %v6303, %v6302
        %v6329 = vpack.c.b16 %v6305, %v6304
        %6354 = vmatprep.subr.bf16.mxu0 0
        %6355 = vmatpush1.bf16.msra.mxu0 %v6306
        %6356 = vmatprep.subr.bf16.mxu0 0
        %6357 = vmatpush1.bf16.msra.mxu0 %v6307
        %6358 = vmatprep.subr.bf16.mxu0 0
        %6359 = vmatpush1.bf16.msra.mxu0 %v6308
        %6360 = vmatprep.subr.bf16.mxu0 0
        %6361 = vmatpush1.bf16.msra.mxu0 %v6309
        %6362 = vmatprep.subr.bf16.mxu0 0
        %6363 = vmatpush1.bf16.msra.mxu0 %v6310
        %6364 = vmatprep.subr.bf16.mxu0 0
        %6365 = vmatpush1.bf16.msra.mxu0 %v6311
        %6366 = vmatprep.subr.bf16.mxu0 0
        %6367 = vmatpush1.bf16.msra.mxu0 %v6312
        %6368 = vmatprep.subr.bf16.mxu0 0
        %6369 = vmatpush1.bf16.msra.mxu0 %v6313
        %6370 = vmatprep.subr.bf16.mxu0 0
        %6371 = vmatpush1.bf16.msra.mxu0 %v6314
        %6372 = vmatprep.subr.bf16.mxu0 0
        %6373 = vmatpush1.bf16.msra.mxu0 %v6315
        %6374 = vmatprep.subr.bf16.mxu0 0
        %6375 = vmatpush1.bf16.msra.mxu0 %v6316
        %6376 = vmatprep.subr.bf16.mxu0 0
        %6377 = vmatpush1.bf16.msra.mxu0 %v6317
        %6378 = vmatprep.subr.bf16.mxu0 0
        %6379 = vmatpush1.bf16.msra.mxu0 %v6318
        %6380 = vmatprep.subr.bf16.mxu0 0
        %6381 = vmatpush1.bf16.msra.mxu0 %v6319
        %6382 = vmatprep.subr.bf16.mxu0 0
        %6383 = vmatpush1.bf16.msra.mxu0 %v6320
        %6384 = vmatprep.subr.bf16.mxu0 0
        %6385 = vmatpush1.bf16.msra.mxu0 %v6321
        %6386 = vmatprep.mubr.bf16.mxu0 0
        %6387 = vmatmul.mubr.bf16.gmra.mrb[0].mxu0 %v5191
        %v6388 = vpop.f32.mrb[0].mxu0
        %v6389 = vadd.f32 %v6020, %v6388
        %v6390 = vpop.f32.mrb[0].mxu0
        %v6391 = vpop.f32.mrb[0].mxu0
        %v6392 = vadd.f32 %v6023, %v6391
        %v6393 = vpop.f32.mrb[0].mxu0
        %6394 = vmatprep.mubr.bf16.mxu0 %v4954
        %6395 = vmatmul.mubr.bf16.gmra.mrb[0].mxu0 %v4971
        %v6396 = vpop.f32.mrb[0].mxu0
        %v6397 = vadd.f32 %v6028, %v6396
        %v6398 = vpop.f32.mrb[0].mxu0
        %v6399 = vpop.f32.mrb[0].mxu0
        %v6400 = vadd.f32 %v6031, %v6399
        %v6401 = vpop.f32.mrb[0].mxu0
        %6402 = vmatprep.mubr.bf16.mxu0 %v4883
        %6403 = vmatmul.mubr.bf16.gmra.mrb[0].mxu0 %v4979
        %v6404 = vpop.f32.mrb[0].mxu0
        %v6405 = vadd.f32 %v6036, %v6404
        %v6406 = vpop.f32.mrb[0].mxu0
        %v6407 = vpop.f32.mrb[0].mxu0
        %v6408 = vadd.f32 %v6039, %v6407
        %v6409 = vpop.f32.mrb[0].mxu0
        %6410 = vmatprep.mubr.bf16.mxu0 %v4885
        %6411 = vmatmul.mubr.bf16.gmra.mrb[0].mxu0 %v4987
        %v6412 = vpop.f32.mrb[0].mxu0
        %v6413 = vadd.f32 %v6044, %v6412
        %v6414 = vpop.f32.mrb[0].mxu0
        %v6415 = vpop.f32.mrb[0].mxu0
        %v6416 = vadd.f32 %v6047, %v6415
        %v6417 = vpop.f32.mrb[0].mxu0
        %6418 = vmatprep.mubr.bf16.mxu0 %v4887
        %6419 = vmatmul.mubr.bf16.gmra.mrb[0].mxu0 %v4995
        %v6420 = vpop.f32.mrb[0].mxu0
        %v6421 = vadd.f32 %v6052, %v6420
        %v6422 = vpop.f32.mrb[0].mxu0
        %v6423 = vpop.f32.mrb[0].mxu0
        %v6424 = vadd.f32 %v6055, %v6423
        %v6425 = vpop.f32.mrb[0].mxu0
        %6426 = vmatprep.mubr.bf16.mxu0 %v4889
        %6427 = vmatmul.mubr.bf16.gmra.mrb[0].mxu0 %v5003
        %v6428 = vpop.f32.mrb[0].mxu0
        %v6429 = vadd.f32 %v6060, %v6428
        %v6430 = vpop.f32.mrb[0].mxu0
        %v6431 = vpop.f32.mrb[0].mxu0
        %v6432 = vadd.f32 %v6063, %v6431
        %v6433 = vpop.f32.mrb[0].mxu0
        %6434 = vmatprep.mubr.bf16.mxu0 %v4891
        %6435 = vmatmul.mubr.bf16.gmra.mrb[0].mxu0 %v5011
        %v6436 = vpop.f32.mrb[0].mxu0
        %v6437 = vadd.f32 %v6068, %v6436
        %v6438 = vpop.f32.mrb[0].mxu0
        %v6439 = vpop.f32.mrb[0].mxu0
        %v6440 = vadd.f32 %v6071, %v6439
        %v6441 = vpop.f32.mrb[0].mxu0
        %6442 = vmatprep.mubr.bf16.mxu0 %v4893
        %6443 = vmatmul.mubr.bf16.gmra.mrb[0].mxu0 %v5019
        %v6444 = vpop.f32.mrb[0].mxu0
        %v6445 = vadd.f32 %v6076, %v6444
        %v6446 = vpop.f32.mrb[0].mxu0
        %v6447 = vpop.f32.mrb[0].mxu0
        %v6448 = vadd.f32 %v6079, %v6447
        %v6449 = vpop.f32.mrb[0].mxu0
        %6450 = vmatprep.mubr.bf16.mxu0 %v4895
        %6451 = vmatmul.mubr.bf16.gmra.mrb[0].mxu0 %v5027
        %v6452 = vpop.f32.mrb[0].mxu0
        %v6453 = vadd.f32 %v6084, %v6452
        %v6454 = vpop.f32.mrb[0].mxu0
        %v6455 = vpop.f32.mrb[0].mxu0
        %v6456 = vadd.f32 %v6087, %v6455
        %v6457 = vpop.f32.mrb[0].mxu0
        %6458 = vmatprep.mubr.bf16.mxu0 %v4897
        %6459 = vmatmul.mubr.bf16.gmra.mrb[0].mxu0 %v5035
        %v6460 = vpop.f32.mrb[0].mxu0
        %v6461 = vadd.f32 %v6092, %v6460
        %v6462 = vpop.f32.mrb[0].mxu0
        %v6463 = vpop.f32.mrb[0].mxu0
        %v6464 = vadd.f32 %v6095, %v6463
        %v6465 = vpop.f32.mrb[0].mxu0
        %6466 = vmatprep.mubr.bf16.mxu0 %v4899
        %6467 = vmatmul.mubr.bf16.gmra.mrb[0].mxu0 %v5043
        %v6468 = vpop.f32.mrb[0].mxu0
        %v6469 = vadd.f32 %v6100, %v6468
        %v6470 = vpop.f32.mrb[0].mxu0
        %v6471 = vpop.f32.mrb[0].mxu0
        %v6472 = vadd.f32 %v6103, %v6471
        %v6473 = vpop.f32.mrb[0].mxu0
        %6474 = vmatprep.mubr.bf16.mxu0 %v4901
        %6475 = vmatmul.mubr.bf16.gmra.mrb[0].mxu0 %v5051
        %v6476 = vpop.f32.mrb[0].mxu0
        %v6477 = vadd.f32 %v6108, %v6476
        %v6478 = vpop.f32.mrb[0].mxu0
        %v6479 = vpop.f32.mrb[0].mxu0
        %v6480 = vadd.f32 %v6111, %v6479
        %v6481 = vpop.f32.mrb[0].mxu0
        %6482 = vmatprep.mubr.bf16.mxu0 %v4903
        %6483 = vmatmul.mubr.bf16.gmra.mrb[0].mxu0 %v5059
        %v6484 = vpop.f32.mrb[0].mxu0
        %v6485 = vadd.f32 %v6116, %v6484
        %v6486 = vpop.f32.mrb[0].mxu0
        %v6487 = vpop.f32.mrb[0].mxu0
        %v6488 = vadd.f32 %v6119, %v6487
        %v6489 = vpop.f32.mrb[0].mxu0
        %6490 = vmatprep.mubr.bf16.mxu0 %v4905
        %6491 = vmatmul.mubr.bf16.gmra.mrb[0].mxu0 %v5067
        %v6492 = vpop.f32.mrb[0].mxu0
        %v6493 = vadd.f32 %v6124, %v6492
        %v6494 = vpop.f32.mrb[0].mxu0
        %v6495 = vpop.f32.mrb[0].mxu0
        %v6496 = vadd.f32 %v6127, %v6495
        %v6497 = vpop.f32.mrb[0].mxu0
        %6498 = vmatprep.mubr.bf16.mxu0 %v4907
        %6499 = vmatmul.mubr.bf16.gmra.mrb[0].mxu0 %v5075
        %v6500 = vpop.f32.mrb[0].mxu0
        %v6501 = vadd.f32 %v6132, %v6500
        %v6502 = vpop.f32.mrb[0].mxu0
        %v6503 = vpop.f32.mrb[0].mxu0
        %v6504 = vadd.f32 %v6135, %v6503
        %v6505 = vpop.f32.mrb[0].mxu0
        %6506 = vmatprep.mubr.bf16.mxu0 %v4909
        %6507 = vmatmul.mubr.bf16.gmra.mrb[0].mxu0 %v5083
        %v6508 = vpop.f32.mrb[0].mxu0
        %v6509 = vadd.f32 %v6140, %v6508
        %v6510 = vpop.f32.mrb[0].mxu0
        %v6511 = vpop.f32.mrb[0].mxu0
        %v6512 = vadd.f32 %v6143, %v6511
        %v6513 = vpop.f32.mrb[0].mxu0
        %6514 = vmatprep.mubr.bf16.mxu0 %v4911
        %6515 = vmatmul.mubr.bf16.gmra.mrb[0].mxu0 %v5091
        %v6516 = vpop.f32.mrb[0].mxu0
        %v6517 = vadd.f32 %v6148, %v6516
        %v6518 = vpop.f32.mrb[0].mxu0
        %v6519 = vpop.f32.mrb[0].mxu0
        %v6520 = vadd.f32 %v6151, %v6519
        %v6521 = vpop.f32.mrb[0].mxu0
        %6522 = vmatprep.mubr.bf16.mxu0 %v4913
        %6523 = vmatmul.mubr.bf16.gmra.mrb[0].mxu0 %v5099
        %v6524 = vpop.f32.mrb[0].mxu0
        %v6525 = vadd.f32 %v6156, %v6524
        %v6526 = vpop.f32.mrb[0].mxu0
        %v6527 = vpop.f32.mrb[0].mxu0
        %v6528 = vadd.f32 %v6159, %v6527
        %v6529 = vpop.f32.mrb[0].mxu0
        %6530 = vmatprep.mubr.bf16.mxu0 %v4915
        %6531 = vmatmul.mubr.bf16.gmra.mrb[0].mxu0 %v5107
        %v6532 = vpop.f32.mrb[0].mxu0
        %v6533 = vadd.f32 %v6164, %v6532
        %v6534 = vpop.f32.mrb[0].mxu0
        %v6535 = vpop.f32.mrb[0].mxu0
        %v6536 = vadd.f32 %v6167, %v6535
        %v6537 = vpop.f32.mrb[0].mxu0
        %6538 = vmatprep.mubr.bf16.mxu0 %v4917
        %6539 = vmatmul.mubr.bf16.gmra.mrb[0].mxu0 %v5115
        %v6540 = vpop.f32.mrb[0].mxu0
        %v6541 = vadd.f32 %v6172, %v6540
        %v6542 = vpop.f32.mrb[0].mxu0
        %v6543 = vpop.f32.mrb[0].mxu0
        %v6544 = vadd.f32 %v6175, %v6543
        %v6545 = vpop.f32.mrb[0].mxu0
        %6546 = vmatprep.mubr.bf16.mxu0 %v4919
        %6547 = vmatmul.mubr.bf16.gmra.mrb[0].mxu0 %v5123
        %v6548 = vpop.f32.mrb[0].mxu0
        %v6549 = vadd.f32 %v6180, %v6548
        %v6550 = vpop.f32.mrb[0].mxu0
        %v6551 = vpop.f32.mrb[0].mxu0
        %v6552 = vadd.f32 %v6183, %v6551
        %v6553 = vpop.f32.mrb[0].mxu0
        %6554 = vmatprep.mubr.bf16.mxu0 %v4921
        %6555 = vmatmul.mubr.bf16.gmra.mrb[0].mxu0 %v5131
        %v6556 = vpop.f32.mrb[0].mxu0
        %v6557 = vadd.f32 %v6188, %v6556
        %v6558 = vpop.f32.mrb[0].mxu0
        %v6559 = vpop.f32.mrb[0].mxu0
        %v6560 = vadd.f32 %v6191, %v6559
        %v6561 = vpop.f32.mrb[0].mxu0
        %6562 = vmatprep.mubr.bf16.mxu0 %v4923
        %6563 = vmatmul.mubr.bf16.gmra.mrb[0].mxu0 %v5139
        %v6564 = vpop.f32.mrb[0].mxu0
        %v6565 = vadd.f32 %v6196, %v6564
        %v6566 = vpop.f32.mrb[0].mxu0
        %v6567 = vpop.f32.mrb[0].mxu0
        %v6568 = vadd.f32 %v6199, %v6567
        %v6569 = vpop.f32.mrb[0].mxu0
        %6570 = vmatprep.mubr.bf16.mxu0 %v4925
        %6571 = vmatmul.mubr.bf16.gmra.mrb[0].mxu0 %v5147
        %v6572 = vpop.f32.mrb[0].mxu0
        %v6573 = vadd.f32 %v6204, %v6572
        %v6574 = vpop.f32.mrb[0].mxu0
        %v6575 = vpop.f32.mrb[0].mxu0
        %v6576 = vadd.f32 %v6207, %v6575
        %v6577 = vpop.f32.mrb[0].mxu0
        %6578 = vdwg.mxu0
        %6579 = vmatprep.subr.bf16.mxu0 0
        %6580 = vmatpush1.bf16.msra.mxu0 %v6322
        %6581 = vmatprep.subr.bf16.mxu0 0
        %6582 = vmatpush1.bf16.msra.mxu0 %v6323
        %6583 = vmatprep.subr.bf16.mxu0 0
        %6584 = vmatpush1.bf16.msra.mxu0 %v6324
        %6585 = vmatprep.subr.bf16.mxu0 0
        %6586 = vmatpush1.bf16.msra.mxu0 %v6325
        %6587 = vmatprep.subr.bf16.mxu0 0
        %6588 = vmatpush1.bf16.msra.mxu0 %v6326
        %6589 = vmatprep.subr.bf16.mxu0 0
        %6590 = vmatpush1.bf16.msra.mxu0 %v6327
        %6591 = vmatprep.subr.bf16.mxu0 0
        %6592 = vmatpush1.bf16.msra.mxu0 %v6328
        %6593 = vmatprep.subr.bf16.mxu0 0
        %6594 = vmatpush1.bf16.msra.mxu0 %v6329
        %6595 = vmatprep.subr.bf16.mxu0 0
        %6596 = vmatpush1.bf16.msra.mxu0 0
        %6597 = vmatprep.subr.bf16.mxu0 0
        %6598 = vmatpush1.bf16.msra.mxu0 0
        %6599 = vmatprep.subr.bf16.mxu0 0
        %6600 = vmatpush1.bf16.msra.mxu0 0
        %6601 = vmatprep.subr.bf16.mxu0 0
        %6602 = vmatpush1.bf16.msra.mxu0 0
        %6603 = vmatprep.subr.bf16.mxu0 0
        %6604 = vmatpush1.bf16.msra.mxu0 0
        %6605 = vmatprep.subr.bf16.mxu0 0
        %6606 = vmatpush1.bf16.msra.mxu0 0
        %6607 = vmatprep.subr.bf16.mxu0 0
        %6608 = vmatpush1.bf16.msra.mxu0 0
        %6609 = vmatprep.subr.bf16.mxu0 0
        %6610 = vmatpush1.bf16.msra.mxu0 0
        %6611 = vmatprep.mubr.bf16.mxu0 0
        %6612 = vmatmul.mubr.bf16.gmra.mrb[0].mxu0 %v5195
        %v6613 = vpop.f32.mrb[0].mxu0
        %v6614 = vadd.f32 %v6389, %v6613
        %v6615 = vpop.f32.mrb[0].mxu0
        %v6616 = vpop.f32.mrb[0].mxu0
        %v6617 = vadd.f32 %v6392, %v6616
        %v6618 = vpop.f32.mrb[0].mxu0
        %6619 = vmatprep.mubr.bf16.mxu0 0
        %6620 = vmatmul.mubr.bf16.gmra.mrb[0].mxu0 %v5198
        %v6621 = vpop.f32.mrb[0].mxu0
        %v6622 = vadd.f32 %v6397, %v6621
        %v6623 = vpop.f32.mrb[0].mxu0
        %v6624 = vpop.f32.mrb[0].mxu0
        %v6625 = vadd.f32 %v6400, %v6624
        %v6626 = vpop.f32.mrb[0].mxu0
        %6627 = vmatprep.mubr.bf16.mxu0 0
        %6628 = vmatmul.mubr.bf16.gmra.mrb[0].mxu0 %v5201
        %v6629 = vpop.f32.mrb[0].mxu0
        %v6630 = vadd.f32 %v6405, %v6629
        %v6631 = vpop.f32.mrb[0].mxu0
        %v6632 = vpop.f32.mrb[0].mxu0
        %v6633 = vadd.f32 %v6408, %v6632
        %v6634 = vpop.f32.mrb[0].mxu0
        %6635 = vmatprep.mubr.bf16.mxu0 0
        %6636 = vmatmul.mubr.bf16.gmra.mrb[0].mxu0 %v5204
        %v6637 = vpop.f32.mrb[0].mxu0
        %v6638 = vadd.f32 %v6413, %v6637
        %v6639 = vpop.f32.mrb[0].mxu0
        %v6640 = vpop.f32.mrb[0].mxu0
        %v6641 = vadd.f32 %v6416, %v6640
        %v6642 = vpop.f32.mrb[0].mxu0
        %6643 = vmatprep.mubr.bf16.mxu0 0
        %6644 = vmatmul.mubr.bf16.gmra.mrb[0].mxu0 %v5207
        %v6645 = vpop.f32.mrb[0].mxu0
        %v6646 = vadd.f32 %v6421, %v6645
        %v6647 = vpop.f32.mrb[0].mxu0
        %v6648 = vpop.f32.mrb[0].mxu0
        %v6649 = vadd.f32 %v6424, %v6648
        %v6650 = vpop.f32.mrb[0].mxu0
        %6651 = vmatprep.mubr.bf16.mxu0 0
        %6652 = vmatmul.mubr.bf16.gmra.mrb[0].mxu0 %v5210
        %v6653 = vpop.f32.mrb[0].mxu0
        %v6654 = vadd.f32 %v6429, %v6653
        %v6655 = vpop.f32.mrb[0].mxu0
        %v6656 = vpop.f32.mrb[0].mxu0
        %v6657 = vadd.f32 %v6432, %v6656
        %v6658 = vpop.f32.mrb[0].mxu0
        %6659 = vmatprep.mubr.bf16.mxu0 0
        %6660 = vmatmul.mubr.bf16.gmra.mrb[0].mxu0 %v5213
        %v6661 = vpop.f32.mrb[0].mxu0
        %v6662 = vadd.f32 %v6437, %v6661
        %v6663 = vpop.f32.mrb[0].mxu0
        %v6664 = vpop.f32.mrb[0].mxu0
        %v6665 = vadd.f32 %v6440, %v6664
        %v6666 = vpop.f32.mrb[0].mxu0
        %6667 = vmatprep.mubr.bf16.mxu0 0
        %6668 = vmatmul.mubr.bf16.gmra.mrb[0].mxu0 %v5216
        %v6669 = vpop.f32.mrb[0].mxu0
        %v6670 = vadd.f32 %v6445, %v6669
        %v6671 = vpop.f32.mrb[0].mxu0
        %v6672 = vpop.f32.mrb[0].mxu0
        %v6673 = vadd.f32 %v6448, %v6672
        %v6674 = vpop.f32.mrb[0].mxu0
        %6675 = vmatprep.mubr.bf16.mxu0 0
        %6676 = vmatmul.mubr.bf16.gmra.mrb[0].mxu0 %v5219
        %v6677 = vpop.f32.mrb[0].mxu0
        %v6678 = vadd.f32 %v6453, %v6677
        %v6679 = vpop.f32.mrb[0].mxu0
        %v6680 = vpop.f32.mrb[0].mxu0
        %v6681 = vadd.f32 %v6456, %v6680
        %v6682 = vpop.f32.mrb[0].mxu0
        %6683 = vmatprep.mubr.bf16.mxu0 0
        %6684 = vmatmul.mubr.bf16.gmra.mrb[0].mxu0 %v5222
        %v6685 = vpop.f32.mrb[0].mxu0
        %v6686 = vadd.f32 %v6461, %v6685
        %v6687 = vpop.f32.mrb[0].mxu0
        %v6688 = vpop.f32.mrb[0].mxu0
        %v6689 = vadd.f32 %v6464, %v6688
        %v6690 = vpop.f32.mrb[0].mxu0
        %6691 = vmatprep.mubr.bf16.mxu0 0
        %6692 = vmatmul.mubr.bf16.gmra.mrb[0].mxu0 %v5225
        %v6693 = vpop.f32.mrb[0].mxu0
        %v6694 = vadd.f32 %v6469, %v6693
        %v6695 = vpop.f32.mrb[0].mxu0
        %v6696 = vpop.f32.mrb[0].mxu0
        %v6697 = vadd.f32 %v6472, %v6696
        %v6698 = vpop.f32.mrb[0].mxu0
        %6699 = vmatprep.mubr.bf16.mxu0 0
        %6700 = vmatmul.mubr.bf16.gmra.mrb[0].mxu0 %v5228
        %v6701 = vpop.f32.mrb[0].mxu0
        %v6702 = vadd.f32 %v6477, %v6701
        %v6703 = vpop.f32.mrb[0].mxu0
        %v6704 = vpop.f32.mrb[0].mxu0
        %v6705 = vadd.f32 %v6480, %v6704
        %v6706 = vpop.f32.mrb[0].mxu0
        %6707 = vmatprep.mubr.bf16.mxu0 0
        %6708 = vmatmul.mubr.bf16.gmra.mrb[0].mxu0 %v5231
        %v6709 = vpop.f32.mrb[0].mxu0
        %v6710 = vadd.f32 %v6485, %v6709
        %v6711 = vpop.f32.mrb[0].mxu0
        %v6712 = vpop.f32.mrb[0].mxu0
        %v6713 = vadd.f32 %v6488, %v6712
        %v6714 = vpop.f32.mrb[0].mxu0
        %6715 = vmatprep.mubr.bf16.mxu0 0
        %6716 = vmatmul.mubr.bf16.gmra.mrb[0].mxu0 %v5234
        %v6717 = vpop.f32.mrb[0].mxu0
        %v6718 = vadd.f32 %v6493, %v6717
        %v6719 = vpop.f32.mrb[0].mxu0
        %v6720 = vpop.f32.mrb[0].mxu0
        %v6721 = vadd.f32 %v6496, %v6720
        %v6722 = vpop.f32.mrb[0].mxu0
        %6723 = vmatprep.mubr.bf16.mxu0 0
        %6724 = vmatmul.mubr.bf16.gmra.mrb[0].mxu0 %v5237
        %v6725 = vpop.f32.mrb[0].mxu0
        %v6726 = vadd.f32 %v6501, %v6725
        %v6727 = vpop.f32.mrb[0].mxu0
        %v6728 = vpop.f32.mrb[0].mxu0
        %v6729 = vadd.f32 %v6504, %v6728
        %v6730 = vpop.f32.mrb[0].mxu0
        %6731 = vmatprep.mubr.bf16.mxu0 0
        %6732 = vmatmul.mubr.bf16.gmra.mrb[0].mxu0 %v5240
        %v6733 = vpop.f32.mrb[0].mxu0
        %v6734 = vadd.f32 %v6509, %v6733
        %v6735 = vpop.f32.mrb[0].mxu0
        %v6736 = vpop.f32.mrb[0].mxu0
        %v6737 = vadd.f32 %v6512, %v6736
        %v6738 = vpop.f32.mrb[0].mxu0
        %6739 = vmatprep.mubr.bf16.mxu0 0
        %6740 = vmatmul.mubr.bf16.gmra.mrb[0].mxu0 %v5243
        %v6741 = vpop.f32.mrb[0].mxu0
        %v6742 = vadd.f32 %v6517, %v6741
        %v6743 = vpop.f32.mrb[0].mxu0
        %v6744 = vpop.f32.mrb[0].mxu0
        %v6745 = vadd.f32 %v6520, %v6744
        %v6746 = vpop.f32.mrb[0].mxu0
        %6747 = vmatprep.mubr.bf16.mxu0 0
        %6748 = vmatmul.mubr.bf16.gmra.mrb[0].mxu0 %v5246
        %v6749 = vpop.f32.mrb[0].mxu0
        %v6750 = vadd.f32 %v6525, %v6749
        %v6751 = vpop.f32.mrb[0].mxu0
        %v6752 = vpop.f32.mrb[0].mxu0
        %v6753 = vadd.f32 %v6528, %v6752
        %v6754 = vpop.f32.mrb[0].mxu0
        %6755 = vmatprep.mubr.bf16.mxu0 0
        %6756 = vmatmul.mubr.bf16.gmra.mrb[0].mxu0 %v5249
        %v6757 = vpop.f32.mrb[0].mxu0
        %v6758 = vadd.f32 %v6533, %v6757
        %v6759 = vpop.f32.mrb[0].mxu0
        %v6760 = vpop.f32.mrb[0].mxu0
        %v6761 = vadd.f32 %v6536, %v6760
        %v6762 = vpop.f32.mrb[0].mxu0
        %6763 = vmatprep.mubr.bf16.mxu0 0
        %6764 = vmatmul.mubr.bf16.gmra.mrb[0].mxu0 %v5252
        %v6765 = vpop.f32.mrb[0].mxu0
        %v6766 = vadd.f32 %v6541, %v6765
        %v6767 = vpop.f32.mrb[0].mxu0
        %v6768 = vpop.f32.mrb[0].mxu0
        %v6769 = vadd.f32 %v6544, %v6768
        %v6770 = vpop.f32.mrb[0].mxu0
        %6771 = vmatprep.mubr.bf16.mxu0 0
        %6772 = vmatmul.mubr.bf16.gmra.mrb[0].mxu0 %v5255
        %v6773 = vpop.f32.mrb[0].mxu0
        %v6774 = vadd.f32 %v6549, %v6773
        %v6775 = vpop.f32.mrb[0].mxu0
        %v6776 = vpop.f32.mrb[0].mxu0
        %v6777 = vadd.f32 %v6552, %v6776
        %v6778 = vpop.f32.mrb[0].mxu0
        %6779 = vmatprep.mubr.bf16.mxu0 0
        %6780 = vmatmul.mubr.bf16.gmra.mrb[0].mxu0 %v5258
        %v6781 = vpop.f32.mrb[0].mxu0
        %v6782 = vadd.f32 %v6557, %v6781
        %v6783 = vpop.f32.mrb[0].mxu0
        %v6784 = vpop.f32.mrb[0].mxu0
        %v6785 = vadd.f32 %v6560, %v6784
        %v6786 = vpop.f32.mrb[0].mxu0
        %6787 = vmatprep.mubr.bf16.mxu0 0
        %6788 = vmatmul.mubr.bf16.gmra.mrb[0].mxu0 %v5261
        %v6789 = vpop.f32.mrb[0].mxu0
        %v6790 = vadd.f32 %v6565, %v6789
        %v6791 = vpop.f32.mrb[0].mxu0
        %v6792 = vpop.f32.mrb[0].mxu0
        %v6793 = vadd.f32 %v6568, %v6792
        %v6794 = vpop.f32.mrb[0].mxu0
        %6795 = vmatprep.mubr.bf16.mxu0 0
        %6796 = vmatmul.mubr.bf16.gmra.mrb[0].mxu0 %v5264
        %v6797 = vpop.f32.mrb[0].mxu0
        %v6798 = vadd.f32 %v6573, %v6797
        %v6799 = vpop.f32.mrb[0].mxu0
        %v6800 = vpop.f32.mrb[0].mxu0
        %v6801 = vadd.f32 %v6576, %v6800
        %v6802 = vpop.f32.mrb[0].mxu0
        %6803 = vdwg.mxu0
        %s6804 = scalar_lea.vmem [#allocation14], 384
        %v6805 = vld [vmem:[%s6804] sm:$0xf]
        %v6806 = vld [vmem:[%s6804 + $0x4] sm:$0xf]
        %v6807 = vld [vmem:[%s6804 + $0x8] sm:$0xf]
        %v6808 = vld [vmem:[%s6804 + $0xc] sm:$0xf]
        %v6809 = vld [vmem:[%s6804 + $0x10] sm:$0xf]
        %v6810 = vld [vmem:[%s6804 + $0x14] sm:$0xf]
        %v6811 = vld [vmem:[%s6804 + $0x18] sm:$0xf]
        %v6812 = vld [vmem:[%s6804 + $0x1c] sm:$0xf]
        %v6813 = vld [vmem:[%s6804 + $0x20] sm:$0xf]
        %v6814 = vld [vmem:[%s6804 + $0x24] sm:$0xf]
        %v6815 = vld [vmem:[%s6804 + $0x28] sm:$0xf]
        %v6816 = vld [vmem:[%s6804 + $0x2c] sm:$0xf]
        %v6817 = vld [vmem:[%s6804 + $0x30] sm:$0xf]
        %v6818 = vld [vmem:[%s6804 + $0x34] sm:$0xf]
        %v6819 = vld [vmem:[%s6804 + $0x38] sm:$0xf]
        %v6820 = vld [vmem:[%s6804 + $0x3c] sm:$0xf]
        %v6821 = vld [vmem:[%s6804 + $0x40] sm:$0xf]
        %v6822 = vld [vmem:[%s6804 + $0x44] sm:$0xf]
        %v6823 = vld [vmem:[%s6804 + $0x48] sm:$0xf]
        %v6824 = vld [vmem:[%s6804 + $0x4c] sm:$0xf]
        %v6825 = vld [vmem:[%s6804 + $0x50] sm:$0xf]
        %v6826 = vld [vmem:[%s6804 + $0x54] sm:$0xf]
        %v6827 = vld [vmem:[%s6804 + $0x58] sm:$0xf]
        %v6828 = vld [vmem:[%s6804 + $0x5c] sm:$0xf]
        %v6829 = vld [vmem:[%s6804 + $0x60] sm:$0xf]
        %v6830 = vld [vmem:[%s6804 + $0x64] sm:$0xf]
        %v6831 = vld [vmem:[%s6804 + $0x68] sm:$0xf]
        %v6832 = vld [vmem:[%s6804 + $0x6c] sm:$0xf]
        %v6833 = vld [vmem:[%s6804 + $0x70] sm:$0xf]
        %v6834 = vld [vmem:[%s6804 + $0x74] sm:$0xf]
        %v6835 = vld [vmem:[%s6804 + $0x78] sm:$0xf]
        %v6836 = vld [vmem:[%s6804 + $0x7c] sm:$0xf]
        %v6837 = vld [vmem:[%s6804 + $0x80] sm:$0xf]
        %v6838 = vld [vmem:[%s6804 + $0x84] sm:$0xf]
        %v6839 = vld [vmem:[%s6804 + $0x88] sm:$0xf]
        %v6840 = vld [vmem:[%s6804 + $0x8c] sm:$0xf]
        %v6841 = vld [vmem:[%s6804 + $0x90] sm:$0xf]
        %v6842 = vld [vmem:[%s6804 + $0x94] sm:$0xf]
        %v6843 = vld [vmem:[%s6804 + $0x98] sm:$0xf]
        %v6844 = vld [vmem:[%s6804 + $0x9c] sm:$0xf]
        %v6845 = vld [vmem:[%s6804 + $0xa0] sm:$0xf]
        %v6846 = vld [vmem:[%s6804 + $0xa4] sm:$0xf]
        %v6847 = vld [vmem:[%s6804 + $0xa8] sm:$0xf]
        %v6848 = vld [vmem:[%s6804 + $0xac] sm:$0xf]
        %v6849 = vld [vmem:[%s6804 + $0xb0] sm:$0xf]
        %v6850 = vld [vmem:[%s6804 + $0xb4] sm:$0xf]
        %v6851 = vld [vmem:[%s6804 + $0xb8] sm:$0xf]
        %v6852 = vld [vmem:[%s6804 + $0xbc] sm:$0xf]
        %v6901 = vunpack.c.l.b16 %v6805
        %v6902 = vunpack.c.l.b16 %v6806
        %v6903 = vunpack.c.l.b16 %v6807
        %v6904 = vunpack.c.l.b16 %v6808
        %v6905 = vunpack.c.l.b16 %v6809
        %v6906 = vunpack.c.l.b16 %v6810
        %v6907 = vunpack.c.l.b16 %v6811
        %v6908 = vunpack.c.l.b16 %v6812
        %v6909 = vunpack.c.l.b16 %v6813
        %v6910 = vunpack.c.l.b16 %v6814
        %v6911 = vunpack.c.l.b16 %v6815
        %v6912 = vunpack.c.l.b16 %v6816
        %v6913 = vunpack.c.l.b16 %v6817
        %v6914 = vunpack.c.l.b16 %v6818
        %v6915 = vunpack.c.l.b16 %v6819
        %v6916 = vunpack.c.l.b16 %v6820
        %v6917 = vunpack.c.l.b16 %v6821
        %v6918 = vunpack.c.l.b16 %v6822
        %v6919 = vunpack.c.l.b16 %v6823
        %v6920 = vunpack.c.l.b16 %v6824
        %v6921 = vunpack.c.l.b16 %v6825
        %v6922 = vunpack.c.l.b16 %v6826
        %v6923 = vunpack.c.l.b16 %v6827
        %v6924 = vunpack.c.l.b16 %v6828
        %v6925 = vunpack.c.l.b16 %v6829
        %v6926 = vunpack.c.l.b16 %v6830
        %v6927 = vunpack.c.l.b16 %v6831
        %v6928 = vunpack.c.l.b16 %v6832
        %v6929 = vunpack.c.l.b16 %v6833
        %v6930 = vunpack.c.l.b16 %v6834
        %v6931 = vunpack.c.l.b16 %v6835
        %v6932 = vunpack.c.l.b16 %v6836
        %v6933 = vunpack.c.l.b16 %v6837
        %v6934 = vunpack.c.l.b16 %v6838
        %v6935 = vunpack.c.l.b16 %v6839
        %v6936 = vunpack.c.l.b16 %v6840
        %v6937 = vunpack.c.l.b16 %v6841
        %v6938 = vunpack.c.l.b16 %v6842
        %v6939 = vunpack.c.l.b16 %v6843
        %v6940 = vunpack.c.l.b16 %v6844
        %v6941 = vunpack.c.l.b16 %v6845
        %v6942 = vunpack.c.l.b16 %v6846
        %v6943 = vunpack.c.l.b16 %v6847
        %v6944 = vunpack.c.l.b16 %v6848
        %v6945 = vunpack.c.l.b16 %v6849
        %v6946 = vunpack.c.l.b16 %v6850
        %v6947 = vunpack.c.l.b16 %v6851
        %v6948 = vunpack.c.l.b16 %v6852
        %v6949 = vpack.c.b16 %v6902, %v6901
        %v6950 = vpack.c.b16 %v6904, %v6903
        %v6951 = vpack.c.b16 %v6906, %v6905
        %v6952 = vpack.c.b16 %v6908, %v6907
        %v6953 = vpack.c.b16 %v6910, %v6909
        %v6954 = vpack.c.b16 %v6912, %v6911
        %v6955 = vpack.c.b16 %v6914, %v6913
        %v6956 = vpack.c.b16 %v6916, %v6915
        %v6957 = vpack.c.b16 %v6918, %v6917
        %v6958 = vpack.c.b16 %v6920, %v6919
        %v6959 = vpack.c.b16 %v6922, %v6921
        %v6960 = vpack.c.b16 %v6924, %v6923
        %v6961 = vpack.c.b16 %v6926, %v6925
        %v6962 = vpack.c.b16 %v6928, %v6927
        %v6963 = vpack.c.b16 %v6930, %v6929
        %v6964 = vpack.c.b16 %v6932, %v6931
        %v6965 = vpack.c.b16 %v6934, %v6933
        %v6966 = vpack.c.b16 %v6936, %v6935
        %v6967 = vpack.c.b16 %v6938, %v6937
        %v6968 = vpack.c.b16 %v6940, %v6939
        %v6969 = vpack.c.b16 %v6942, %v6941
        %v6970 = vpack.c.b16 %v6944, %v6943
        %v6971 = vpack.c.b16 %v6946, %v6945
        %v6972 = vpack.c.b16 %v6948, %v6947
        %6997 = vmatprep.subr.bf16.mxu0 0
        %6998 = vmatpush1.bf16.msra.mxu0 %v6949
        %6999 = vmatprep.subr.bf16.mxu0 0
        %7000 = vmatpush1.bf16.msra.mxu0 %v6950
        %7001 = vmatprep.subr.bf16.mxu0 0
        %7002 = vmatpush1.bf16.msra.mxu0 %v6951
        %7003 = vmatprep.subr.bf16.mxu0 0
        %7004 = vmatpush1.bf16.msra.mxu0 %v6952
        %7005 = vmatprep.subr.bf16.mxu0 0
        %7006 = vmatpush1.bf16.msra.mxu0 %v6953
        %7007 = vmatprep.subr.bf16.mxu0 0
        %7008 = vmatpush1.bf16.msra.mxu0 %v6954
        %7009 = vmatprep.subr.bf16.mxu0 0
        %7010 = vmatpush1.bf16.msra.mxu0 %v6955
        %7011 = vmatprep.subr.bf16.mxu0 0
        %7012 = vmatpush1.bf16.msra.mxu0 %v6956
        %7013 = vmatprep.subr.bf16.mxu0 0
        %7014 = vmatpush1.bf16.msra.mxu0 %v6957
        %7015 = vmatprep.subr.bf16.mxu0 0
        %7016 = vmatpush1.bf16.msra.mxu0 %v6958
        %7017 = vmatprep.subr.bf16.mxu0 0
        %7018 = vmatpush1.bf16.msra.mxu0 %v6959
        %7019 = vmatprep.subr.bf16.mxu0 0
        %7020 = vmatpush1.bf16.msra.mxu0 %v6960
        %7021 = vmatprep.subr.bf16.mxu0 0
        %7022 = vmatpush1.bf16.msra.mxu0 %v6961
        %7023 = vmatprep.subr.bf16.mxu0 0
        %7024 = vmatpush1.bf16.msra.mxu0 %v6962
        %7025 = vmatprep.subr.bf16.mxu0 0
        %7026 = vmatpush1.bf16.msra.mxu0 %v6963
        %7027 = vmatprep.subr.bf16.mxu0 0
        %7028 = vmatpush1.bf16.msra.mxu0 %v6964
        %7029 = vmatprep.mubr.bf16.mxu0 %v4885
        %7030 = vmatmul.mubr.bf16.gmra.mrb[0].mxu0 %v4987
        %v7031 = vpop.f32.mrb[0].mxu0
        %v7032 = vadd.f32 0.0, %v7031
        %v7033 = vpop.f32.mrb[0].mxu0
        %v7034 = vpop.f32.mrb[0].mxu0
        %v7035 = vadd.f32 0.0, %v7034
        %v7036 = vpop.f32.mrb[0].mxu0
        %7037 = vmatprep.mubr.bf16.mxu0 %v4887
        %7038 = vmatmul.mubr.bf16.gmra.mrb[0].mxu0 %v4995
        %v7039 = vpop.f32.mrb[0].mxu0
        %v7040 = vadd.f32 0.0, %v7039
        %v7041 = vpop.f32.mrb[0].mxu0
        %v7042 = vpop.f32.mrb[0].mxu0
        %v7043 = vadd.f32 0.0, %v7042
        %v7044 = vpop.f32.mrb[0].mxu0
        %7045 = vmatprep.mubr.bf16.mxu0 %v4889
        %7046 = vmatmul.mubr.bf16.gmra.mrb[0].mxu0 %v5003
        %v7047 = vpop.f32.mrb[0].mxu0
        %v7048 = vadd.f32 0.0, %v7047
        %v7049 = vpop.f32.mrb[0].mxu0
        %v7050 = vpop.f32.mrb[0].mxu0
        %v7051 = vadd.f32 0.0, %v7050
        %v7052 = vpop.f32.mrb[0].mxu0
        %7053 = vmatprep.mubr.bf16.mxu0 %v4891
        %7054 = vmatmul.mubr.bf16.gmra.mrb[0].mxu0 %v5011
        %v7055 = vpop.f32.mrb[0].mxu0
        %v7056 = vadd.f32 0.0, %v7055
        %v7057 = vpop.f32.mrb[0].mxu0
        %v7058 = vpop.f32.mrb[0].mxu0
        %v7059 = vadd.f32 0.0, %v7058
        %v7060 = vpop.f32.mrb[0].mxu0
        %7061 = vmatprep.mubr.bf16.mxu0 %v4893
        %7062 = vmatmul.mubr.bf16.gmra.mrb[0].mxu0 %v5019
        %v7063 = vpop.f32.mrb[0].mxu0
        %v7064 = vadd.f32 0.0, %v7063
        %v7065 = vpop.f32.mrb[0].mxu0
        %v7066 = vpop.f32.mrb[0].mxu0
        %v7067 = vadd.f32 0.0, %v7066
        %v7068 = vpop.f32.mrb[0].mxu0
        %7069 = vmatprep.mubr.bf16.mxu0 %v4895
        %7070 = vmatmul.mubr.bf16.gmra.mrb[0].mxu0 %v5027
        %v7071 = vpop.f32.mrb[0].mxu0
        %v7072 = vadd.f32 0.0, %v7071
        %v7073 = vpop.f32.mrb[0].mxu0
        %v7074 = vpop.f32.mrb[0].mxu0
        %v7075 = vadd.f32 0.0, %v7074
        %v7076 = vpop.f32.mrb[0].mxu0
        %7077 = vmatprep.mubr.bf16.mxu0 %v4897
        %7078 = vmatmul.mubr.bf16.gmra.mrb[0].mxu0 %v5035
        %v7079 = vpop.f32.mrb[0].mxu0
        %v7080 = vadd.f32 0.0, %v7079
        %v7081 = vpop.f32.mrb[0].mxu0
        %v7082 = vpop.f32.mrb[0].mxu0
        %v7083 = vadd.f32 0.0, %v7082
        %v7084 = vpop.f32.mrb[0].mxu0
        %7085 = vmatprep.mubr.bf16.mxu0 %v4899
        %7086 = vmatmul.mubr.bf16.gmra.mrb[0].mxu0 %v5043
        %v7087 = vpop.f32.mrb[0].mxu0
        %v7088 = vadd.f32 0.0, %v7087
        %v7089 = vpop.f32.mrb[0].mxu0
        %v7090 = vpop.f32.mrb[0].mxu0
        %v7091 = vadd.f32 0.0, %v7090
        %v7092 = vpop.f32.mrb[0].mxu0
        %7093 = vmatprep.mubr.bf16.mxu0 %v4901
        %7094 = vmatmul.mubr.bf16.gmra.mrb[0].mxu0 %v5051
        %v7095 = vpop.f32.mrb[0].mxu0
        %v7096 = vadd.f32 0.0, %v7095
        %v7097 = vpop.f32.mrb[0].mxu0
        %v7098 = vpop.f32.mrb[0].mxu0
        %v7099 = vadd.f32 0.0, %v7098
        %v7100 = vpop.f32.mrb[0].mxu0
        %7101 = vmatprep.mubr.bf16.mxu0 %v4903
        %7102 = vmatmul.mubr.bf16.gmra.mrb[0].mxu0 %v5059
        %v7103 = vpop.f32.mrb[0].mxu0
        %v7104 = vadd.f32 0.0, %v7103
        %v7105 = vpop.f32.mrb[0].mxu0
        %v7106 = vpop.f32.mrb[0].mxu0
        %v7107 = vadd.f32 0.0, %v7106
        %v7108 = vpop.f32.mrb[0].mxu0
        %7109 = vmatprep.mubr.bf16.mxu0 %v4905
        %7110 = vmatmul.mubr.bf16.gmra.mrb[0].mxu0 %v5067
        %v7111 = vpop.f32.mrb[0].mxu0
        %v7112 = vadd.f32 0.0, %v7111
        %v7113 = vpop.f32.mrb[0].mxu0
        %v7114 = vpop.f32.mrb[0].mxu0
        %v7115 = vadd.f32 0.0, %v7114
        %v7116 = vpop.f32.mrb[0].mxu0
        %7117 = vmatprep.mubr.bf16.mxu0 %v4907
        %7118 = vmatmul.mubr.bf16.gmra.mrb[0].mxu0 %v5075
        %v7119 = vpop.f32.mrb[0].mxu0
        %v7120 = vadd.f32 0.0, %v7119
        %v7121 = vpop.f32.mrb[0].mxu0
        %v7122 = vpop.f32.mrb[0].mxu0
        %v7123 = vadd.f32 0.0, %v7122
        %v7124 = vpop.f32.mrb[0].mxu0
        %7125 = vmatprep.mubr.bf16.mxu0 %v4909
        %7126 = vmatmul.mubr.bf16.gmra.mrb[0].mxu0 %v5083
        %v7127 = vpop.f32.mrb[0].mxu0
        %v7128 = vadd.f32 0.0, %v7127
        %v7129 = vpop.f32.mrb[0].mxu0
        %v7130 = vpop.f32.mrb[0].mxu0
        %v7131 = vadd.f32 0.0, %v7130
        %v7132 = vpop.f32.mrb[0].mxu0
        %7133 = vmatprep.mubr.bf16.mxu0 %v4911
        %7134 = vmatmul.mubr.bf16.gmra.mrb[0].mxu0 %v5091
        %v7135 = vpop.f32.mrb[0].mxu0
        %v7136 = vadd.f32 0.0, %v7135
        %v7137 = vpop.f32.mrb[0].mxu0
        %v7138 = vpop.f32.mrb[0].mxu0
        %v7139 = vadd.f32 0.0, %v7138
        %v7140 = vpop.f32.mrb[0].mxu0
        %7141 = vmatprep.mubr.bf16.mxu0 %v4913
        %7142 = vmatmul.mubr.bf16.gmra.mrb[0].mxu0 %v5099
        %v7143 = vpop.f32.mrb[0].mxu0
        %v7144 = vadd.f32 0.0, %v7143
        %v7145 = vpop.f32.mrb[0].mxu0
        %v7146 = vpop.f32.mrb[0].mxu0
        %v7147 = vadd.f32 0.0, %v7146
        %v7148 = vpop.f32.mrb[0].mxu0
        %7149 = vmatprep.mubr.bf16.mxu0 %v4915
        %7150 = vmatmul.mubr.bf16.gmra.mrb[0].mxu0 %v5107
        %v7151 = vpop.f32.mrb[0].mxu0
        %v7152 = vadd.f32 0.0, %v7151
        %v7153 = vpop.f32.mrb[0].mxu0
        %v7154 = vpop.f32.mrb[0].mxu0
        %v7155 = vadd.f32 0.0, %v7154
        %v7156 = vpop.f32.mrb[0].mxu0
        %7157 = vmatprep.mubr.bf16.mxu0 %v4917
        %7158 = vmatmul.mubr.bf16.gmra.mrb[0].mxu0 %v5115
        %v7159 = vpop.f32.mrb[0].mxu0
        %v7160 = vadd.f32 0.0, %v7159
        %v7161 = vpop.f32.mrb[0].mxu0
        %v7162 = vpop.f32.mrb[0].mxu0
        %v7163 = vadd.f32 0.0, %v7162
        %v7164 = vpop.f32.mrb[0].mxu0
        %7165 = vmatprep.mubr.bf16.mxu0 %v4919
        %7166 = vmatmul.mubr.bf16.gmra.mrb[0].mxu0 %v5123
        %v7167 = vpop.f32.mrb[0].mxu0
        %v7168 = vadd.f32 0.0, %v7167
        %v7169 = vpop.f32.mrb[0].mxu0
        %v7170 = vpop.f32.mrb[0].mxu0
        %v7171 = vadd.f32 0.0, %v7170
        %v7172 = vpop.f32.mrb[0].mxu0
        %7173 = vmatprep.mubr.bf16.mxu0 %v4921
        %7174 = vmatmul.mubr.bf16.gmra.mrb[0].mxu0 %v5131
        %v7175 = vpop.f32.mrb[0].mxu0
        %v7176 = vadd.f32 0.0, %v7175
        %v7177 = vpop.f32.mrb[0].mxu0
        %v7178 = vpop.f32.mrb[0].mxu0
        %v7179 = vadd.f32 0.0, %v7178
        %v7180 = vpop.f32.mrb[0].mxu0
        %7181 = vmatprep.mubr.bf16.mxu0 %v4923
        %7182 = vmatmul.mubr.bf16.gmra.mrb[0].mxu0 %v5139
        %v7183 = vpop.f32.mrb[0].mxu0
        %v7184 = vadd.f32 0.0, %v7183
        %v7185 = vpop.f32.mrb[0].mxu0
        %v7186 = vpop.f32.mrb[0].mxu0
        %v7187 = vadd.f32 0.0, %v7186
        %v7188 = vpop.f32.mrb[0].mxu0
        %7189 = vmatprep.mubr.bf16.mxu0 %v4925
        %7190 = vmatmul.mubr.bf16.gmra.mrb[0].mxu0 %v5147
        %v7191 = vpop.f32.mrb[0].mxu0
        %v7192 = vadd.f32 0.0, %v7191
        %v7193 = vpop.f32.mrb[0].mxu0
        %v7194 = vpop.f32.mrb[0].mxu0
        %v7195 = vadd.f32 0.0, %v7194
        %v7196 = vpop.f32.mrb[0].mxu0
        %7197 = vmatprep.mubr.bf16.mxu0 %v4927
        %7198 = vmatmul.mubr.bf16.gmra.mrb[0].mxu0 %v5155
        %v7199 = vpop.f32.mrb[0].mxu0
        %v7200 = vadd.f32 0.0, %v7199
        %v7201 = vpop.f32.mrb[0].mxu0
        %v7202 = vpop.f32.mrb[0].mxu0
        %v7203 = vadd.f32 0.0, %v7202
        %v7204 = vpop.f32.mrb[0].mxu0
        %7205 = vmatprep.mubr.bf16.mxu0 %v4957
        %7206 = vmatmul.mubr.bf16.gmra.mrb[0].mxu0 %v5162
        %v7207 = vpop.f32.mrb[0].mxu0
        %v7208 = vadd.f32 0.0, %v7207
        %v7209 = vpop.f32.mrb[0].mxu0
        %v7210 = vpop.f32.mrb[0].mxu0
        %v7211 = vadd.f32 0.0, %v7210
        %v7212 = vpop.f32.mrb[0].mxu0
        %7213 = vmatprep.mubr.bf16.mxu0 0
        %7214 = vmatmul.mubr.bf16.gmra.mrb[0].mxu0 %v5163
        %v7215 = vpop.f32.mrb[0].mxu0
        %v7216 = vadd.f32 0.0, %v7215
        %v7217 = vpop.f32.mrb[0].mxu0
        %v7218 = vpop.f32.mrb[0].mxu0
        %v7219 = vadd.f32 0.0, %v7218
        %v7220 = vpop.f32.mrb[0].mxu0
        %7221 = vdwg.mxu0
        %7222 = vmatprep.subr.bf16.mxu0 0
        %7223 = vmatpush1.bf16.msra.mxu0 %v6965
        %7224 = vmatprep.subr.bf16.mxu0 0
        %7225 = vmatpush1.bf16.msra.mxu0 %v6966
        %7226 = vmatprep.subr.bf16.mxu0 0
        %7227 = vmatpush1.bf16.msra.mxu0 %v6967
        %7228 = vmatprep.subr.bf16.mxu0 0
        %7229 = vmatpush1.bf16.msra.mxu0 %v6968
        %7230 = vmatprep.subr.bf16.mxu0 0
        %7231 = vmatpush1.bf16.msra.mxu0 %v6969
        %7232 = vmatprep.subr.bf16.mxu0 0
        %7233 = vmatpush1.bf16.msra.mxu0 %v6970
        %7234 = vmatprep.subr.bf16.mxu0 0
        %7235 = vmatpush1.bf16.msra.mxu0 %v6971
        %7236 = vmatprep.subr.bf16.mxu0 0
        %7237 = vmatpush1.bf16.msra.mxu0 %v6972
        %7238 = vmatprep.subr.bf16.mxu0 0
        %7239 = vmatpush1.bf16.msra.mxu0 0
        %7240 = vmatprep.subr.bf16.mxu0 0
        %7241 = vmatpush1.bf16.msra.mxu0 0
        %7242 = vmatprep.subr.bf16.mxu0 0
        %7243 = vmatpush1.bf16.msra.mxu0 0
        %7244 = vmatprep.subr.bf16.mxu0 0
        %7245 = vmatpush1.bf16.msra.mxu0 0
        %7246 = vmatprep.subr.bf16.mxu0 0
        %7247 = vmatpush1.bf16.msra.mxu0 0
        %7248 = vmatprep.subr.bf16.mxu0 0
        %7249 = vmatpush1.bf16.msra.mxu0 0
        %7250 = vmatprep.subr.bf16.mxu0 0
        %7251 = vmatpush1.bf16.msra.mxu0 0
        %7252 = vmatprep.subr.bf16.mxu0 0
        %7253 = vmatpush1.bf16.msra.mxu0 0
        %7254 = vmatprep.mubr.bf16.mxu0 0
        %7255 = vmatmul.mubr.bf16.gmra.mrb[0].mxu0 %v5204
        %v7256 = vpop.f32.mrb[0].mxu0
        %v7257 = vadd.f32 %v7032, %v7256
        %v7258 = vpop.f32.mrb[0].mxu0
        %v7259 = vpop.f32.mrb[0].mxu0
        %v7260 = vadd.f32 %v7035, %v7259
        %v7261 = vpop.f32.mrb[0].mxu0
        %7262 = vmatprep.mubr.bf16.mxu0 0
        %7263 = vmatmul.mubr.bf16.gmra.mrb[0].mxu0 %v5207
        %v7264 = vpop.f32.mrb[0].mxu0
        %v7265 = vadd.f32 %v7040, %v7264
        %v7266 = vpop.f32.mrb[0].mxu0
        %v7267 = vpop.f32.mrb[0].mxu0
        %v7268 = vadd.f32 %v7043, %v7267
        %v7269 = vpop.f32.mrb[0].mxu0
        %7270 = vmatprep.mubr.bf16.mxu0 0
        %7271 = vmatmul.mubr.bf16.gmra.mrb[0].mxu0 %v5210
        %v7272 = vpop.f32.mrb[0].mxu0
        %v7273 = vadd.f32 %v7048, %v7272
        %v7274 = vpop.f32.mrb[0].mxu0
        %v7275 = vpop.f32.mrb[0].mxu0
        %v7276 = vadd.f32 %v7051, %v7275
        %v7277 = vpop.f32.mrb[0].mxu0
        %7278 = vmatprep.mubr.bf16.mxu0 0
        %7279 = vmatmul.mubr.bf16.gmra.mrb[0].mxu0 %v5213
        %v7280 = vpop.f32.mrb[0].mxu0
        %v7281 = vadd.f32 %v7056, %v7280
        %v7282 = vpop.f32.mrb[0].mxu0
        %v7283 = vpop.f32.mrb[0].mxu0
        %v7284 = vadd.f32 %v7059, %v7283
        %v7285 = vpop.f32.mrb[0].mxu0
        %7286 = vmatprep.mubr.bf16.mxu0 0
        %7287 = vmatmul.mubr.bf16.gmra.mrb[0].mxu0 %v5216
        %v7288 = vpop.f32.mrb[0].mxu0
        %v7289 = vadd.f32 %v7064, %v7288
        %v7290 = vpop.f32.mrb[0].mxu0
        %v7291 = vpop.f32.mrb[0].mxu0
        %v7292 = vadd.f32 %v7067, %v7291
        %v7293 = vpop.f32.mrb[0].mxu0
        %7294 = vmatprep.mubr.bf16.mxu0 0
        %7295 = vmatmul.mubr.bf16.gmra.mrb[0].mxu0 %v5219
        %v7296 = vpop.f32.mrb[0].mxu0
        %v7297 = vadd.f32 %v7072, %v7296
        %v7298 = vpop.f32.mrb[0].mxu0
        %v7299 = vpop.f32.mrb[0].mxu0
        %v7300 = vadd.f32 %v7075, %v7299
        %v7301 = vpop.f32.mrb[0].mxu0
        %7302 = vmatprep.mubr.bf16.mxu0 0
        %7303 = vmatmul.mubr.bf16.gmra.mrb[0].mxu0 %v5222
        %v7304 = vpop.f32.mrb[0].mxu0
        %v7305 = vadd.f32 %v7080, %v7304
        %v7306 = vpop.f32.mrb[0].mxu0
        %v7307 = vpop.f32.mrb[0].mxu0
        %v7308 = vadd.f32 %v7083, %v7307
        %v7309 = vpop.f32.mrb[0].mxu0
        %7310 = vmatprep.mubr.bf16.mxu0 0
        %7311 = vmatmul.mubr.bf16.gmra.mrb[0].mxu0 %v5225
        %v7312 = vpop.f32.mrb[0].mxu0
        %v7313 = vadd.f32 %v7088, %v7312
        %v7314 = vpop.f32.mrb[0].mxu0
        %v7315 = vpop.f32.mrb[0].mxu0
        %v7316 = vadd.f32 %v7091, %v7315
        %v7317 = vpop.f32.mrb[0].mxu0
        %7318 = vmatprep.mubr.bf16.mxu0 0
        %7319 = vmatmul.mubr.bf16.gmra.mrb[0].mxu0 %v5228
        %v7320 = vpop.f32.mrb[0].mxu0
        %v7321 = vadd.f32 %v7096, %v7320
        %v7322 = vpop.f32.mrb[0].mxu0
        %v7323 = vpop.f32.mrb[0].mxu0
        %v7324 = vadd.f32 %v7099, %v7323
        %v7325 = vpop.f32.mrb[0].mxu0
        %7326 = vmatprep.mubr.bf16.mxu0 0
        %7327 = vmatmul.mubr.bf16.gmra.mrb[0].mxu0 %v5231
        %v7328 = vpop.f32.mrb[0].mxu0
        %v7329 = vadd.f32 %v7104, %v7328
        %v7330 = vpop.f32.mrb[0].mxu0
        %v7331 = vpop.f32.mrb[0].mxu0
        %v7332 = vadd.f32 %v7107, %v7331
        %v7333 = vpop.f32.mrb[0].mxu0
        %7334 = vmatprep.mubr.bf16.mxu0 0
        %7335 = vmatmul.mubr.bf16.gmra.mrb[0].mxu0 %v5234
        %v7336 = vpop.f32.mrb[0].mxu0
        %v7337 = vadd.f32 %v7112, %v7336
        %v7338 = vpop.f32.mrb[0].mxu0
        %v7339 = vpop.f32.mrb[0].mxu0
        %v7340 = vadd.f32 %v7115, %v7339
        %v7341 = vpop.f32.mrb[0].mxu0
        %7342 = vmatprep.mubr.bf16.mxu0 0
        %7343 = vmatmul.mubr.bf16.gmra.mrb[0].mxu0 %v5237
        %v7344 = vpop.f32.mrb[0].mxu0
        %v7345 = vadd.f32 %v7120, %v7344
        %v7346 = vpop.f32.mrb[0].mxu0
        %v7347 = vpop.f32.mrb[0].mxu0
        %v7348 = vadd.f32 %v7123, %v7347
        %v7349 = vpop.f32.mrb[0].mxu0
        %7350 = vmatprep.mubr.bf16.mxu0 0
        %7351 = vmatmul.mubr.bf16.gmra.mrb[0].mxu0 %v5240
        %v7352 = vpop.f32.mrb[0].mxu0
        %v7353 = vadd.f32 %v7128, %v7352
        %v7354 = vpop.f32.mrb[0].mxu0
        %v7355 = vpop.f32.mrb[0].mxu0
        %v7356 = vadd.f32 %v7131, %v7355
        %v7357 = vpop.f32.mrb[0].mxu0
        %7358 = vmatprep.mubr.bf16.mxu0 0
        %7359 = vmatmul.mubr.bf16.gmra.mrb[0].mxu0 %v5243
        %v7360 = vpop.f32.mrb[0].mxu0
        %v7361 = vadd.f32 %v7136, %v7360
        %v7362 = vpop.f32.mrb[0].mxu0
        %v7363 = vpop.f32.mrb[0].mxu0
        %v7364 = vadd.f32 %v7139, %v7363
        %v7365 = vpop.f32.mrb[0].mxu0
        %7366 = vmatprep.mubr.bf16.mxu0 0
        %7367 = vmatmul.mubr.bf16.gmra.mrb[0].mxu0 %v5246
        %v7368 = vpop.f32.mrb[0].mxu0
        %v7369 = vadd.f32 %v7144, %v7368
        %v7370 = vpop.f32.mrb[0].mxu0
        %v7371 = vpop.f32.mrb[0].mxu0
        %v7372 = vadd.f32 %v7147, %v7371
        %v7373 = vpop.f32.mrb[0].mxu0
        %7374 = vmatprep.mubr.bf16.mxu0 0
        %7375 = vmatmul.mubr.bf16.gmra.mrb[0].mxu0 %v5249
        %v7376 = vpop.f32.mrb[0].mxu0
        %v7377 = vadd.f32 %v7152, %v7376
        %v7378 = vpop.f32.mrb[0].mxu0
        %v7379 = vpop.f32.mrb[0].mxu0
        %v7380 = vadd.f32 %v7155, %v7379
        %v7381 = vpop.f32.mrb[0].mxu0
        %7382 = vmatprep.mubr.bf16.mxu0 0
        %7383 = vmatmul.mubr.bf16.gmra.mrb[0].mxu0 %v5252
        %v7384 = vpop.f32.mrb[0].mxu0
        %v7385 = vadd.f32 %v7160, %v7384
        %v7386 = vpop.f32.mrb[0].mxu0
        %v7387 = vpop.f32.mrb[0].mxu0
        %v7388 = vadd.f32 %v7163, %v7387
        %v7389 = vpop.f32.mrb[0].mxu0
        %7390 = vmatprep.mubr.bf16.mxu0 0
        %7391 = vmatmul.mubr.bf16.gmra.mrb[0].mxu0 %v5255
        %v7392 = vpop.f32.mrb[0].mxu0
        %v7393 = vadd.f32 %v7168, %v7392
        %v7394 = vpop.f32.mrb[0].mxu0
        %v7395 = vpop.f32.mrb[0].mxu0
        %v7396 = vadd.f32 %v7171, %v7395
        %v7397 = vpop.f32.mrb[0].mxu0
        %7398 = vmatprep.mubr.bf16.mxu0 0
        %7399 = vmatmul.mubr.bf16.gmra.mrb[0].mxu0 %v5258
        %v7400 = vpop.f32.mrb[0].mxu0
        %v7401 = vadd.f32 %v7176, %v7400
        %v7402 = vpop.f32.mrb[0].mxu0
        %v7403 = vpop.f32.mrb[0].mxu0
        %v7404 = vadd.f32 %v7179, %v7403
        %v7405 = vpop.f32.mrb[0].mxu0
        %7406 = vmatprep.mubr.bf16.mxu0 0
        %7407 = vmatmul.mubr.bf16.gmra.mrb[0].mxu0 %v5261
        %v7408 = vpop.f32.mrb[0].mxu0
        %v7409 = vadd.f32 %v7184, %v7408
        %v7410 = vpop.f32.mrb[0].mxu0
        %v7411 = vpop.f32.mrb[0].mxu0
        %v7412 = vadd.f32 %v7187, %v7411
        %v7413 = vpop.f32.mrb[0].mxu0
        %7414 = vmatprep.mubr.bf16.mxu0 0
        %7415 = vmatmul.mubr.bf16.gmra.mrb[0].mxu0 %v5264
        %v7416 = vpop.f32.mrb[0].mxu0
        %v7417 = vadd.f32 %v7192, %v7416
        %v7418 = vpop.f32.mrb[0].mxu0
        %v7419 = vpop.f32.mrb[0].mxu0
        %v7420 = vadd.f32 %v7195, %v7419
        %v7421 = vpop.f32.mrb[0].mxu0
        %7422 = vmatprep.mubr.bf16.mxu0 0
        %7423 = vmatmul.mubr.bf16.gmra.mrb[0].mxu0 %v5267
        %v7424 = vpop.f32.mrb[0].mxu0
        %v7425 = vadd.f32 %v7200, %v7424
        %v7426 = vpop.f32.mrb[0].mxu0
        %v7427 = vpop.f32.mrb[0].mxu0
        %v7428 = vadd.f32 %v7203, %v7427
        %v7429 = vpop.f32.mrb[0].mxu0
        %7430 = vmatprep.mubr.bf16.mxu0 0
        %7431 = vmatmul.mubr.bf16.gmra.mrb[0].mxu0 %v5269
        %v7432 = vpop.f32.mrb[0].mxu0
        %v7433 = vadd.f32 %v7208, %v7432
        %v7434 = vpop.f32.mrb[0].mxu0
        %v7435 = vpop.f32.mrb[0].mxu0
        %v7436 = vadd.f32 %v7211, %v7435
        %v7437 = vpop.f32.mrb[0].mxu0
        %7438 = vmatprep.mubr.bf16.mxu0 0
        %7439 = vmatmul.mubr.bf16.gmra.mrb[0].mxu0 %v5297
        %v7440 = vpop.f32.mrb[0].mxu0
        %v7441 = vadd.f32 %v7216, %v7440
        %v7442 = vpop.f32.mrb[0].mxu0
        %v7443 = vpop.f32.mrb[0].mxu0
        %v7444 = vadd.f32 %v7219, %v7443
        %v7445 = vpop.f32.mrb[0].mxu0
        %7446 = vdwg.mxu0
        %v7447 = vadd.f32 %v6614, %v7257
        %v7448 = vadd.f32 %v6617, %v7260
        %v7449 = vadd.f32 %v6622, %v7265
        %v7450 = vadd.f32 %v6625, %v7268
        %v7451 = vadd.f32 %v6630, %v7273
        %v7452 = vadd.f32 %v6633, %v7276
        %v7453 = vadd.f32 %v6638, %v7281
        %v7454 = vadd.f32 %v6641, %v7284
        %v7455 = vadd.f32 %v6646, %v7289
        %v7456 = vadd.f32 %v6649, %v7292
        %v7457 = vadd.f32 %v6654, %v7297
        %v7458 = vadd.f32 %v6657, %v7300
        %v7459 = vadd.f32 %v6662, %v7305
        %v7460 = vadd.f32 %v6665, %v7308
        %v7461 = vadd.f32 %v6670, %v7313
        %v7462 = vadd.f32 %v6673, %v7316
        %v7463 = vadd.f32 %v6678, %v7321
        %v7464 = vadd.f32 %v6681, %v7324
        %v7465 = vadd.f32 %v6686, %v7329
        %v7466 = vadd.f32 %v6689, %v7332
        %v7467 = vadd.f32 %v6694, %v7337
        %v7468 = vadd.f32 %v6697, %v7340
        %v7469 = vadd.f32 %v6702, %v7345
        %v7470 = vadd.f32 %v6705, %v7348
        %v7471 = vadd.f32 %v6710, %v7353
        %v7472 = vadd.f32 %v6713, %v7356
        %v7473 = vadd.f32 %v6718, %v7361
        %v7474 = vadd.f32 %v6721, %v7364
        %v7475 = vadd.f32 %v6726, %v7369
        %v7476 = vadd.f32 %v6729, %v7372
        %v7477 = vadd.f32 %v6734, %v7377
        %v7478 = vadd.f32 %v6737, %v7380
        %v7479 = vadd.f32 %v6742, %v7385
        %v7480 = vadd.f32 %v6745, %v7388
        %v7481 = vadd.f32 %v6750, %v7393
        %v7482 = vadd.f32 %v6753, %v7396
        %v7483 = vadd.f32 %v6758, %v7401
        %v7484 = vadd.f32 %v6761, %v7404
        %v7485 = vadd.f32 %v6766, %v7409
        %v7486 = vadd.f32 %v6769, %v7412
        %v7487 = vadd.f32 %v6774, %v7417
        %v7488 = vadd.f32 %v6777, %v7420
        %v7489 = vadd.f32 %v6782, %v7425
        %v7490 = vadd.f32 %v6785, %v7428
        %v7491 = vadd.f32 %v6790, %v7433
        %v7492 = vadd.f32 %v6793, %v7436
        %v7493 = vadd.f32 %v6798, %v7441
        %v7494 = vadd.f32 %v6801, %v7444
        %v7495 = vld [vmem:[#allocation16] sm:$0x1]
        %v7497 = vlaneseq
        %v7498 = vshrl.u32 %v7497, 7
        %v7499 = vsub.s32 0, %v7498
        %v7500 = vrot.slane %v7495, %v7499
        %v7502 = vadd.f32 %v7447, %v7500
        %v7503 = vadd.f32 %v7448, %v7500
        %v7504 = vadd.f32 %v7449, %v7500
        %v7505 = vadd.f32 %v7450, %v7500
        %v7506 = vadd.f32 %v7451, %v7500
        %v7507 = vadd.f32 %v7452, %v7500
        %v7508 = vadd.f32 %v7453, %v7500
        %v7509 = vadd.f32 %v7454, %v7500
        %v7510 = vadd.f32 %v7455, %v7500
        %v7511 = vadd.f32 %v7456, %v7500
        %v7512 = vadd.f32 %v7457, %v7500
        %v7513 = vadd.f32 %v7458, %v7500
        %v7514 = vadd.f32 %v7459, %v7500
        %v7515 = vadd.f32 %v7460, %v7500
        %v7516 = vadd.f32 %v7461, %v7500
        %v7517 = vadd.f32 %v7462, %v7500
        %v7518 = vadd.f32 %v7463, %v7500
        %v7519 = vadd.f32 %v7464, %v7500
        %v7520 = vadd.f32 %v7465, %v7500
        %v7521 = vadd.f32 %v7466, %v7500
        %v7522 = vadd.f32 %v7467, %v7500
        %v7523 = vadd.f32 %v7468, %v7500
        %v7524 = vadd.f32 %v7469, %v7500
        %v7525 = vadd.f32 %v7470, %v7500
        %v7526 = vadd.f32 %v7471, %v7500
        %v7527 = vadd.f32 %v7472, %v7500
        %v7528 = vadd.f32 %v7473, %v7500
        %v7529 = vadd.f32 %v7474, %v7500
        %v7530 = vadd.f32 %v7475, %v7500
        %v7531 = vadd.f32 %v7476, %v7500
        %v7532 = vadd.f32 %v7477, %v7500
        %v7533 = vadd.f32 %v7478, %v7500
        %v7534 = vadd.f32 %v7479, %v7500
        %v7535 = vadd.f32 %v7480, %v7500
        %v7536 = vadd.f32 %v7481, %v7500
        %v7537 = vadd.f32 %v7482, %v7500
        %v7538 = vadd.f32 %v7483, %v7500
        %v7539 = vadd.f32 %v7484, %v7500
        %v7540 = vadd.f32 %v7485, %v7500
        %v7541 = vadd.f32 %v7486, %v7500
        %v7542 = vadd.f32 %v7487, %v7500
        %v7543 = vadd.f32 %v7488, %v7500
        %v7544 = vadd.f32 %v7489, %v7500
        %v7545 = vadd.f32 %v7490, %v7500
        %v7546 = vadd.f32 %v7491, %v7500
        %v7547 = vadd.f32 %v7492, %v7500
        %v7548 = vadd.f32 %v7493, %v7500
        %v7549 = vadd.f32 %v7494, %v7500
        %v7550 = vadd.f32 %v7502, %v2235
        %v7551 = vadd.f32 %v7503, %v2238
        %v7552 = vadd.f32 %v7504, %v2243
        %v7553 = vadd.f32 %v7505, %v2246
        %v7554 = vadd.f32 %v7506, %v2251
        %v7555 = vadd.f32 %v7507, %v2254
        %v7556 = vadd.f32 %v7508, %v2259
        %v7557 = vadd.f32 %v7509, %v2262
        %v7558 = vadd.f32 %v7510, %v2267
        %v7559 = vadd.f32 %v7511, %v2270
        %v7560 = vadd.f32 %v7512, %v2275
        %v7561 = vadd.f32 %v7513, %v2278
        %v7562 = vadd.f32 %v7514, %v2283
        %v7563 = vadd.f32 %v7515, %v2286
        %v7564 = vadd.f32 %v7516, %v2291
        %v7565 = vadd.f32 %v7517, %v2294
        %v7566 = vadd.f32 %v7518, %v2299
        %v7567 = vadd.f32 %v7519, %v2302
        %v7568 = vadd.f32 %v7520, %v2307
        %v7569 = vadd.f32 %v7521, %v2310
        %v7570 = vadd.f32 %v7522, %v2315
        %v7571 = vadd.f32 %v7523, %v2318
        %v7572 = vadd.f32 %v7524, %v2323
        %v7573 = vadd.f32 %v7525, %v2326
        %v7574 = vadd.f32 %v7526, %v2331
        %v7575 = vadd.f32 %v7527, %v2334
        %v7576 = vadd.f32 %v7528, %v2339
        %v7577 = vadd.f32 %v7529, %v2342
        %v7578 = vadd.f32 %v7530, %v2347
        %v7579 = vadd.f32 %v7531, %v2350
        %v7580 = vadd.f32 %v7532, %v2355
        %v7581 = vadd.f32 %v7533, %v2358
        %v7582 = vadd.f32 %v7534, %v2363
        %v7583 = vadd.f32 %v7535, %v2366
        %v7584 = vadd.f32 %v7536, %v2371
        %v7585 = vadd.f32 %v7537, %v2374
        %v7586 = vadd.f32 %v7538, %v2379
        %v7587 = vadd.f32 %v7539, %v2382
        %v7588 = vadd.f32 %v7540, %v2387
        %v7589 = vadd.f32 %v7541, %v2390
        %v7590 = vadd.f32 %v7542, %v2395
        %v7591 = vadd.f32 %v7543, %v2398
        %v7592 = vadd.f32 %v7544, %v2403
        %v7593 = vadd.f32 %v7545, %v2406
        %v7594 = vadd.f32 %v7546, %v2411
        %v7595 = vadd.f32 %v7547, %v2414
        %v7596 = vadd.f32 %v7548, %v2419
        %v7597 = vadd.f32 %v7549, %v2422
        %7598 = vst [vmem:[%s535] sm:$0xff] %v7550
        %7599 = vst [vmem:[%s535 + $0x8] sm:$0xff] %v7551
        %7600 = vst [vmem:[%s535 + $0x10] sm:$0xff] %v7552
        %7601 = vst [vmem:[%s535 + $0x18] sm:$0xff] %v7553
        %7602 = vst [vmem:[%s535 + $0x20] sm:$0xff] %v7554
        %7603 = vst [vmem:[%s535 + $0x28] sm:$0xff] %v7555
        %7604 = vst [vmem:[%s535 + $0x30] sm:$0xff] %v7556
        %7605 = vst [vmem:[%s535 + $0x38] sm:$0xff] %v7557
        %7606 = vst [vmem:[%s535 + $0x40] sm:$0xff] %v7558
        %7607 = vst [vmem:[%s535 + $0x48] sm:$0xff] %v7559
        %7608 = vst [vmem:[%s535 + $0x50] sm:$0xff] %v7560
        %7609 = vst [vmem:[%s535 + $0x58] sm:$0xff] %v7561
        %7610 = vst [vmem:[%s535 + $0x60] sm:$0xff] %v7562
        %7611 = vst [vmem:[%s535 + $0x68] sm:$0xff] %v7563
        %7612 = vst [vmem:[%s535 + $0x70] sm:$0xff] %v7564
        %7613 = vst [vmem:[%s535 + $0x78] sm:$0xff] %v7565
        %7614 = vst [vmem:[%s535 + $0x80] sm:$0xff] %v7566
        %7615 = vst [vmem:[%s535 + $0x88] sm:$0xff] %v7567
        %7616 = vst [vmem:[%s535 + $0x90] sm:$0xff] %v7568
        %7617 = vst [vmem:[%s535 + $0x98] sm:$0xff] %v7569
        %7618 = vst [vmem:[%s535 + $0xa0] sm:$0xff] %v7570
        %7619 = vst [vmem:[%s535 + $0xa8] sm:$0xff] %v7571
        %7620 = vst [vmem:[%s535 + $0xb0] sm:$0xff] %v7572
        %7621 = vst [vmem:[%s535 + $0xb8] sm:$0xff] %v7573
        %7622 = vst [vmem:[%s535 + $0xc0] sm:$0xff] %v7574
        %7623 = vst [vmem:[%s535 + $0xc8] sm:$0xff] %v7575
        %7624 = vst [vmem:[%s535 + $0xd0] sm:$0xff] %v7576
        %7625 = vst [vmem:[%s535 + $0xd8] sm:$0xff] %v7577
        %7626 = vst [vmem:[%s535 + $0xe0] sm:$0xff] %v7578
        %7627 = vst [vmem:[%s535 + $0xe8] sm:$0xff] %v7579
        %7628 = vst [vmem:[%s535 + $0xf0] sm:$0xff] %v7580
        %7629 = vst [vmem:[%s535 + $0xf8] sm:$0xff] %v7581
        %7630 = vst [vmem:[%s535 + $0x100] sm:$0xff] %v7582
        %7631 = vst [vmem:[%s535 + $0x108] sm:$0xff] %v7583
        %7632 = vst [vmem:[%s535 + $0x110] sm:$0xff] %v7584
        %7633 = vst [vmem:[%s535 + $0x118] sm:$0xff] %v7585
        %7634 = vst [vmem:[%s535 + $0x120] sm:$0xff] %v7586
        %7635 = vst [vmem:[%s535 + $0x128] sm:$0xff] %v7587
        %7636 = vst [vmem:[%s535 + $0x130] sm:$0xff] %v7588
        %7637 = vst [vmem:[%s535 + $0x138] sm:$0xff] %v7589
        %7638 = vst [vmem:[%s535 + $0x140] sm:$0xff] %v7590
        %7639 = vst [vmem:[%s535 + $0x148] sm:$0xff] %v7591
        %7640 = vst [vmem:[%s535 + $0x150] sm:$0xff] %v7592
        %7641 = vst [vmem:[%s535 + $0x158] sm:$0xff] %v7593
        %7642 = vst [vmem:[%s535 + $0x160] sm:$0xff] %v7594
        %7643 = vst [vmem:[%s535 + $0x168] sm:$0xff] %v7595
        %7644 = vst [vmem:[%s535 + $0x170] sm:$0xff] %v7596
        %7645 = vst [vmem:[%s535 + $0x178] sm:$0xff] %v7597
        %s7646 = sand.u32 %s277, 1
        %s7647 = scalar_lea.sflag [#allocation4], %s7646
        %s7648 = sand.u32 %s277, 1
        %s7649 = smul.addr %s7648, 384
        %s7650 = scalar_lea.vmem [#allocation20], %s7649
        // Predicated region
        $region109: #{seg_block.1} parent=63 // pred_check
          %p7651 = pneg %p287
        $region110: #{seg_block.1} parent=63 // pred_check_branch
          %7653 = sbr.rel (%p7651) target = $region112
        $region111: #{seg_block.1} parent=63 // pred_region
          %s7655 = ssub.s32 6144, 6144
          %7656 = vsyncadd %s7647, %s7655
          %s7657 = smul.addr %s33, 48
          %s7658 = smul.addr %s7657, 128
          %s7659 = scalar_lea.hbm %s11, %s7658
          %s7660 = sshll.u32 %s7650, 4
          %s7661 = int_to_ptr.vmem [resolvable:$true] %s7660
          %7666 = dma.vmem_to_hbm [thread:$0]  %s7661, 6144, %s7659, %s7647, 128, 128, 8
        $region112: #{seg_block.1} parent=63 // pred_fallthru
          _
      $region64: #{seg_block.1} parent=5 // pred_fallthru
        _
      %p7667 = scmp.le.s32.totalorder 2, %s28
      // Predicated region
      $region113: #{seg_block.1} parent=5 // pred_check
        %p7668 = pneg %p7667
      $region114: #{seg_block.1} parent=5 // pred_check_branch
        %7670 = sbr.rel (%p7668) target = $region116
      $region115: #{seg_block.1} parent=5 // pred_region
        %s7671 = ssub.s32 %s28, 2
        // Predicated region
        $region117: #{seg_block.1} parent=115 // pred_check
          %p7672 = pneg %p293
        $region118: #{seg_block.1} parent=115 // pred_check_branch
          %7674 = sbr.rel (%p7672) target = $region120
        $region119: #{seg_block.1} parent=115 // pred_region
          %s7675 = sand.u32 %s278, 1
          %s7676 = scalar_lea.sflag [#allocation4], %s7675
          %s7677 = sand.u32 %s278, 1
          %s7678 = smul.addr %s7677, 384
          %s7679 = scalar_lea.vmem [#allocation20], %s7678
          %7680 = dma.done %s7676, 6144
        $region120: #{seg_block.1} parent=115 // pred_fallthru
          _
      $region116: #{seg_block.1} parent=5 // pred_fallthru
        _
    $region6: #{seg_block.1} parent=1 // loop_footer
      %s32 = sadd.s32 1, %s28
    $region7: #{seg_block.1} parent=1 // loop_footer_branch
      %27 = sbr.rel target = $region3
    $region8: #{seg_block.1} parent=1 // loop_exit
      _
    %7681 = vsyncpa [#allocation3], 1
    %s7682 = scalar_lea.sflag [#allocation3], 1
    %7683 = vsyncpa %s7682, 1
    %7684 = vsyncpa [#allocation6], 1
    %7685 = vsyncpa [#allocation9], 1
    %7686 = vsyncpa [#allocation12], 1
    %7687 = vsyncpa [#allocation15], 1
    %7688 = vsyncpa [#allocation18], 1
    %7689 = vsyncpa [#allocation4], 1
    %s7690 = scalar_lea.sflag [#allocation4], 1
    %7691 = vsyncpa %s7690, 1

</llo_original>
